<compile_context>
chip_gen: v7x
topology: tpu7x:2x2x1
jax: 0.10.0
libtpu: 0.0.40
codegen_flags: <defaults>
</compile_context>

<pallas_src>
import functools

import jax
import jax.numpy as jnp
from jax.experimental import pallas as pl
from jax.experimental.pallas import tpu as pltpu


def _round_up(x, m):
    return ((x + m - 1) // m) * m


def _rmsnorm(x, g, eps):
    # x: (T, D) f32, g: (1, D) f32
    ms = jnp.mean(jnp.square(x), axis=-1, keepdims=True)
    return x * jax.lax.rsqrt(ms + eps) * g


def cross_attn_ffn_kernel(
    lat_ref, emb_ref, mask_ref,
    g1_ref, wq_ref, bq_ref, wk_ref, bk_ref, wv_ref, bv_ref, wo_ref, bo_ref,
    g2_ref, w1_ref, b1_ref, w2_ref, b2_ref,
    out_ref,
    k_scr, v_scr,
    *, num_heads,
):
    eps = jnp.float32(jnp.finfo(jnp.float32).eps)   # nn.RMSNorm default eps
    H = num_heads

    # ---- K/V projections: computed once per batch element (first L tile) and kept
    #      resident in VMEM scratch for the rest of the (arbitrary) L axis.
    @pl.when(pl.program_id(1) == 0)
    def _():
        e = emb_ref[...]                                              # (S, D) bf16
        for h in range(H):                                            # contiguous 2D matmuls
            kh = jnp.dot(e, wk_ref[h], preferred_element_type=jnp.float32) + bk_ref[h]
            vh = jnp.dot(e, wv_ref[h], preferred_element_type=jnp.float32) + bv_ref[h]
            k_scr[h] = kh.astype(jnp.bfloat16)                        # (S, hd)
            v_scr[h] = vh.astype(jnp.bfloat16)

    x = lat_ref[...]                                                  # (TL, D) f32
    mask = mask_ref[...]                                              # (1, S)  f32

    # ---- cross_attn_pre_norm (RMSNorm, f32) ----
    xn = _rmsnorm(x, g1_ref[...], eps)
    xn_b = xn.astype(jnp.bfloat16)

    # Additive key-padding bias, hoisted out of the head loop (no -inf NaNs).
    bias = jnp.where(mask > 0, jnp.float32(0.0), jnp.float32(-1e30))  # (1, S)

    # ---- multi-head cross attention, unrolled over heads.
    #      Head-major weights make every matmul a contiguous 2D MXU op; the output
    #      projection is folded into a per-head accumulation (no concat / reshape).
    #      1/sqrt(hd) is already folded into wq/bq in the wrapper.
    acc = jnp.zeros(xn.shape, jnp.float32)
    for h in range(H):
        q = jnp.dot(xn_b, wq_ref[h], preferred_element_type=jnp.float32) + bq_ref[h]  # (TL, hd)
        k = k_scr[h]                                                   # (S, hd) bf16
        v = v_scr[h]                                                   # (S, hd) bf16
        s = jnp.einsum('le,se->ls', q.astype(jnp.bfloat16), k,
                       preferred_element_type=jnp.float32)             # (TL, S)
        s = s + bias
        m = jnp.max(s, axis=-1, keepdims=True)
        p = jnp.exp(s - m)
        denom = jnp.sum(p, axis=-1, keepdims=True)
        p = p * pl.reciprocal(denom, approx=True)                      # EUP, not VPU divide
        ctx = jnp.dot(p.astype(jnp.bfloat16), v,
                      preferred_element_type=jnp.float32)              # (TL, hd)
        acc = acc + jnp.dot(ctx.astype(jnp.bfloat16), wo_ref[h],
                            preferred_element_type=jnp.float32)        # (TL, D)
    attn = acc + bo_ref[...]
    x1 = attn + xn   # residual adds the *normed* latents (matches the reference forward)

    # ---- cross_ffn_pre_norm + FeedForward (Linear -> SiLU -> Linear, non-gated) ----
    # TODO(synk): for production widths (HID = 4*D, D >= 2048) stream w1/w2 in HID chunks
    #             over an extra "arbitrary" grid axis instead of keeping both resident
    #             (needed to stay inside v7x's 64 MiB VMEM without shrinking block_l).
    x2 = _rmsnorm(x1, g2_ref[...], eps)
    h1 = jnp.dot(x2.astype(jnp.bfloat16), w1_ref[...],
                 preferred_element_type=jnp.float32) + b1_ref[...]
    h1 = h1 * jax.nn.sigmoid(h1)                                       # SiLU in f32
    ff = jnp.dot(h1.astype(jnp.bfloat16), w2_ref[...],
                 preferred_element_type=jnp.float32) + b2_ref[...]

    out_ref[...] = (ff + x2).astype(out_ref.dtype)


def _vmem_limit_bytes():
    """~75% of physical per-core VMEM: ~96 MiB on v5e/v6e (128 MiB), ~48 MiB on v7x (64 MiB)."""
    cap = None
    try:
        info = pltpu.get_tpu_info()
        for name in ("vmem_capacity_bytes", "vmem_bytes", "vmem_size_bytes"):
            v = getattr(info, name, None)
            if v:
                cap = int(v)
                break
    except Exception:
        cap = None
    if cap is None:
        return 64 * 1024 * 1024   # conservative known-good fallback
    return (cap * 3) // 4


def cross_attention_and_feed_forward(latents, embeddings, mask, params, num_heads,
                                     *, block_l=None, out_dtype=None):
    B, L, D = latents.shape
    _, S, _ = embeddings.shape
    H = num_heads
    assert D % H == 0, "embed_dim must be divisible by num_heads"
    hd = D // H
    out_dtype = out_dtype or latents.dtype

    if mask is None:
        mask = jnp.ones((B, S), dtype=jnp.float32)
    mask = mask.astype(jnp.float32).reshape(B, 1, S)

    # --- latent-row tiling: cdiv grid + zero padding of the tail tile (padded rows are
    #     computed independently and sliced off; never a single monolithic tile).
    #     Default 256 rows keeps the q / output-proj / FFN matmuls aligned to the
    #     v6e/v7x 256-wide MXU; pass block_l=128 on v5e if preferred.
    target = 256 if block_l is None else block_l
    block_l = _round_up(min(target, _round_up(L, 8)), 8)
    L_pad = _round_up(L, block_l)
    n_l = L_pad // block_l
    if B == 1 and n_l == 1 and block_l >= 16:
        # v7x has 2 TensorCores; give the "parallel" part of the grid >= 2 points.
        block_l = _round_up(block_l // 2, 8)
        L_pad = _round_up(L, block_l)
        n_l = L_pad // block_l

    lat = latents.astype(jnp.float32)
    if L_pad != L:
        lat = jnp.pad(lat, ((0, 0), (0, L_pad - L), (0, 0)))

    scale = 1.0 / float(hd) ** 0.5

    def head_in(w):    # (D, D) -> (H, D, hd): per-head input projection, bf16 MXU operand
        return jnp.asarray(w).reshape(D, H, hd).transpose(1, 0, 2).astype(jnp.bfloat16)

    def head_bias(b):  # (D,) -> (H, 1, hd)
        return jnp.asarray(b).reshape(H, 1, hd).astype(jnp.float32)

    def row(v):        # (N,) -> (1, N) f32
        return jnp.asarray(v).reshape(1, -1).astype(jnp.float32)

    def bf16(w):
        return jnp.asarray(w).astype(jnp.bfloat16)

    weights = [
        row(params["g1"]),
        head_in(params["wq"] * scale), head_bias(params["bq"] * scale),  # fold 1/sqrt(hd)
        head_in(params["wk"]), head_bias(params["bk"]),
        head_in(params["wv"]), head_bias(params["bv"]),
        bf16(params["wo"]).reshape(H, hd, D), row(params["bo"]),
        row(params["g2"]),
        bf16(params["w1"]), row(params["b1"]),
        bf16(params["w2"]), row(params["b2"]),
    ]

    kernel = functools.partial(cross_attn_ffn_kernel, num_heads=H)
    buffered = getattr(pl, "Buffered", None)

    def build(single_buffer_weights):
        # Constant-index weight/bias blocks: single-buffer them (window never moves, so
        # double-buffering only doubles resident VMEM).
        wkw = {"pipeline_mode": buffered(1)} if single_buffer_weights else {}

        def full_spec(arr):
            nd = arr.ndim
            return pl.BlockSpec(arr.shape, lambda b, i, _nd=nd: (0,) * _nd, **wkw)

        in_specs = [
            # latents: one (block_l, D) tile per step (leading batch dim squeezed)
            pl.BlockSpec((None, block_l, D), lambda b, i: (b, i, 0)),
            # embeddings / mask: indexed by batch only -> resident across the L axis
            pl.BlockSpec((None, S, D), lambda b, i: (b, 0, 0)),
            pl.BlockSpec((None, 1, S), lambda b, i: (b, 0, 0)),
        ] + [full_spec(w) for w in weights]

        return pl.pallas_call(
            kernel,
            out_shape=jax.ShapeDtypeStruct((B, L_pad, D), out_dtype),
            grid=(B, n_l),
            in_specs=in_specs,
            out_specs=pl.BlockSpec((None, block_l, D), lambda b, i: (b, i, 0)),
            scratch_shapes=[
                pltpu.VMEM((H, S, hd), jnp.bfloat16),   # K, per-batch resident
                pltpu.VMEM((H, S, hd), jnp.bfloat16),   # V, per-batch resident
            ],
            compiler_params=pltpu.CompilerParams(
                # batch stays parallel (v7x megacore shards it); the L axis is
                # "arbitrary" so the i==0 K/V projection is reused across L tiles.
                dimension_semantics=("parallel", "arbitrary"),
                vmem_limit_bytes=_vmem_limit_bytes(),
            ),
        )

    args = (lat, embeddings.astype(jnp.bfloat16), mask, *weights)
    if buffered is not None:
        try:
            out = build(True)(*args)
        except Exception:
            out = build(False)(*args)   # runtime rejected Buffered(1); default buffering
    else:
        out = build(False)(*args)

    return out[:, :L, :] if L_pad != L else out


def _reference(latents, embeddings, mask, params, num_heads):
    """Pure-JAX f32 reference mirroring the PyTorch forward."""
    eps = jnp.finfo(jnp.float32).eps
    B, L, D = latents.shape
    S = embeddings.shape[1]
    hd = D // num_heads

    def rms(x, g):
        return x * jax.lax.rsqrt(jnp.mean(x * x, -1, keepdims=True) + eps) * g

    xn = rms(latents, params["g1"])
    q = xn @ params["wq"] + params["bq"]
    k = embeddings @ params["wk"] + params["bk"]
    v = embeddings @ params["wv"] + params["bv"]
    q = q.reshape(B, L, num_heads, hd).transpose(0, 2, 1, 3)
    k = k.reshape(B, S, num_heads, hd).transpose(0, 2, 1, 3)
    v = v.reshape(B, S, num_heads, hd).transpose(0, 2, 1, 3)
    s = jnp.einsum("bhld,bhsd->bhls", q, k) / jnp.sqrt(hd).astype(jnp.float32)
    m = mask.reshape(B, 1, 1, S)
    s = jnp.where(m > 0, s, -1e30)
    p = jax.nn.softmax(s, axis=-1)
    o = jnp.einsum("bhls,bhsd->bhld", p, v).transpose(0, 2, 1, 3).reshape(B, L, D)
    o = o @ params["wo"] + params["bo"]
    x1 = o + xn
    x2 = rms(x1, params["g2"])
    h1 = x2 @ params["w1"] + params["b1"]
    h1 = h1 * jax.nn.sigmoid(h1)
    ff = h1 @ params["w2"] + params["b2"]
    return ff + x2


if __name__ == "__main__":
    B, L, S = 2, 8, 16         # batch, num latents, num embeddings
    D, H, HID = 32, 4, 64      # embed_dim, num_heads, hidden_dim

    key = jax.random.PRNGKey(0)
    ks = jax.random.split(key, 20)

    def w(k, shape, scale=0.05):
        return (scale * jax.random.normal(k, shape)).astype(jnp.float32)

    params = {
        "g1": (1.0 + 0.1 * jax.random.normal(ks[0], (D,))).astype(jnp.float32),
        "wq": w(ks[1], (D, D)), "bq": w(ks[2], (D,)),
        "wk": w(ks[3], (D, D)), "bk": w(ks[4], (D,)),
        "wv": w(ks[5], (D, D)), "bv": w(ks[6], (D,)),
        "wo": w(ks[7], (D, D)), "bo": w(ks[8], (D,)),
        "g2": (1.0 + 0.1 * jax.random.normal(ks[9], (D,))).astype(jnp.float32),
        "w1": w(ks[10], (D, HID)), "b1": w(ks[11], (HID,)),
        "w2": w(ks[12], (HID, D)), "b2": w(ks[13], (D,)),
    }

    latents = jax.random.normal(ks[14], (B, L, D), jnp.float32)
    embeddings = jax.random.normal(ks[15], (B, S, D), jnp.float32)
    # padding mask: batch 0 fully valid, batch 1 has last 5 key positions masked out
    mask = jnp.ones((B, S), jnp.float32).at[1, S - 5:].set(0.0)

    out = cross_attention_and_feed_forward(latents, embeddings, mask, params, num_heads=H)
    out = jax.block_until_ready(out)

    ref = _reference(latents, embeddings, mask, params, num_heads=H)
    assert out.shape == (B, L, D)
    # bf16 MXU operands + approx reciprocal vs. pure-f32 reference -> loosened tolerance
    err = float(jnp.max(jnp.abs(out - ref)))
    assert jnp.allclose(out, ref, atol=3e-2, rtol=3e-2), err

    print("KERNEL_OK")
</pallas_src>

<mosaic_0001>
module attributes {stable_mosaic.version = 11 : i64} {
  func.func @cross_attn_ffn_kernel(%arg0: i32, %arg1: i32, %arg2: memref<1x8x32xf32, #tpu.memory_space<vmem>>, %arg3: memref<1x16x32xbf16, #tpu.memory_space<vmem>>, %arg4: memref<1x1x16xf32, #tpu.memory_space<vmem>>, %arg5: memref<1x32xf32, #tpu.memory_space<vmem>>, %arg6: memref<4x32x8xbf16, #tpu.memory_space<vmem>>, %arg7: memref<4x1x8xf32, #tpu.memory_space<vmem>>, %arg8: memref<4x32x8xbf16, #tpu.memory_space<vmem>>, %arg9: memref<4x1x8xf32, #tpu.memory_space<vmem>>, %arg10: memref<4x32x8xbf16, #tpu.memory_space<vmem>>, %arg11: memref<4x1x8xf32, #tpu.memory_space<vmem>>, %arg12: memref<4x8x32xbf16, #tpu.memory_space<vmem>>, %arg13: memref<1x32xf32, #tpu.memory_space<vmem>>, %arg14: memref<1x32xf32, #tpu.memory_space<vmem>>, %arg15: memref<32x64xbf16, #tpu.memory_space<vmem>>, %arg16: memref<1x64xf32, #tpu.memory_space<vmem>>, %arg17: memref<64x32xbf16, #tpu.memory_space<vmem>>, %arg18: memref<1x32xf32, #tpu.memory_space<vmem>>, %arg19: memref<1x8x32xf32, #tpu.memory_space<vmem>>, %arg20: memref<4x16x8xbf16, #tpu.memory_space<vmem>>, %arg21: memref<4x16x8xbf16, #tpu.memory_space<vmem>>) attributes {dimension_semantics = [#tpu.dimension_semantics<parallel>, #tpu.dimension_semantics<arbitrary>], iteration_bounds = array<i64: 2, 1>, scalar_prefetch = 0 : i64, scratch_operands = 2 : i64, tpu.core_type = #tpu.core_type<tc>, window_params = [{transform_indices = @transform_0, window_bounds = array<i64: 1, 8, 32>}, {transform_indices = @transform_1, window_bounds = array<i64: 1, 16, 32>}, {transform_indices = @transform_2, window_bounds = array<i64: 1, 1, 16>}, {pipeline_mode = #tpu.pipeline_mode<synchronous>, transform_indices = @transform_3, window_bounds = array<i64: 1, 32>}, {pipeline_mode = #tpu.pipeline_mode<synchronous>, transform_indices = @transform_4, window_bounds = array<i64: 4, 32, 8>}, {pipeline_mode = #tpu.pipeline_mode<synchronous>, transform_indices = @transform_5, window_bounds = array<i64: 4, 1, 8>}, {pipeline_mode = #tpu.pipeline_mode<synchronous>, transform_indices = @transform_6, window_bounds = array<i64: 4, 32, 8>}, {pipeline_mode = #tpu.pipeline_mode<synchronous>, transform_indices = @transform_7, window_bounds = array<i64: 4, 1, 8>}, {pipeline_mode = #tpu.pipeline_mode<synchronous>, transform_indices = @transform_8, window_bounds = array<i64: 4, 32, 8>}, {pipeline_mode = #tpu.pipeline_mode<synchronous>, transform_indices = @transform_9, window_bounds = array<i64: 4, 1, 8>}, {pipeline_mode = #tpu.pipeline_mode<synchronous>, transform_indices = @transform_10, window_bounds = array<i64: 4, 8, 32>}, {pipeline_mode = #tpu.pipeline_mode<synchronous>, transform_indices = @transform_11, window_bounds = array<i64: 1, 32>}, {pipeline_mode = #tpu.pipeline_mode<synchronous>, transform_indices = @transform_12, window_bounds = array<i64: 1, 32>}, {pipeline_mode = #tpu.pipeline_mode<synchronous>, transform_indices = @transform_13, window_bounds = array<i64: 32, 64>}, {pipeline_mode = #tpu.pipeline_mode<synchronous>, transform_indices = @transform_14, window_bounds = array<i64: 1, 64>}, {pipeline_mode = #tpu.pipeline_mode<synchronous>, transform_indices = @transform_15, window_bounds = array<i64: 64, 32>}, {pipeline_mode = #tpu.pipeline_mode<synchronous>, transform_indices = @transform_16, window_bounds = array<i64: 1, 32>}, {transform_indices = @transform_17, window_bounds = array<i64: 1, 8, 32>}]} {
    %c0_i32 = arith.constant 0 : i32
    %0 = arith.cmpi eq, %arg1, %c0_i32 : i32
    %1 = arith.extui %0 : i1 to i32
    %c0_i32_0 = arith.constant 0 : i32
    %2 = arith.cmpi ne, %1, %c0_i32_0 : i32
    scf.if %2 {
      %c0_116 = arith.constant 0 : index
      %c0_117 = arith.constant 0 : index
      %c0_118 = arith.constant 0 : index
      %194 = vector.load %arg3[%c0_116, %c0_117, %c0_118] : memref<1x16x32xbf16, #tpu.memory_space<vmem>>, vector<1x16x32xbf16>
      %195 = vector.shape_cast %194 : vector<1x16x32xbf16> to vector<16x32xbf16>
      %c0_119 = arith.constant 0 : index
      %c0_120 = arith.constant 0 : index
      %c0_121 = arith.constant 0 : index
      %196 = vector.load %arg8[%c0_119, %c0_120, %c0_121] : memref<4x32x8xbf16, #tpu.memory_space<vmem>>, vector<1x32x8xbf16>
      %197 = vector.shape_cast %196 : vector<1x32x8xbf16> to vector<32x8xbf16>
      %cst_122 = arith.constant dense<0.000000e+00> : vector<16x8xf32>
      %198 = tpu.matmul %195, %197, %cst_122 {dimension_numbers = #tpu.dot_dimension_numbers<[1], [0], [0], [1], [0, 0, 1, 1], [], []>} : vector<16x32xbf16>, vector<32x8xbf16>, vector<16x8xf32> -> vector<16x8xf32>
      %c0_123 = arith.constant 0 : index
      %c0_124 = arith.constant 0 : index
      %c0_125 = arith.constant 0 : index
      %199 = vector.load %arg9[%c0_123, %c0_124, %c0_125] : memref<4x1x8xf32, #tpu.memory_space<vmem>>, vector<1x1x8xf32>
      %200 = vector.shape_cast %199 : vector<1x1x8xf32> to vector<1x8xf32>
      %201 = vector.broadcast %200 : vector<1x8xf32> to vector<16x8xf32>
      %202 = arith.addf %198, %201 : vector<16x8xf32>
      %c0_126 = arith.constant 0 : index
      %c0_127 = arith.constant 0 : index
      %c0_128 = arith.constant 0 : index
      %203 = vector.load %arg10[%c0_126, %c0_127, %c0_128] : memref<4x32x8xbf16, #tpu.memory_space<vmem>>, vector<1x32x8xbf16>
      %204 = vector.shape_cast %203 : vector<1x32x8xbf16> to vector<32x8xbf16>
      %cst_129 = arith.constant dense<0.000000e+00> : vector<16x8xf32>
      %205 = tpu.matmul %195, %204, %cst_129 {dimension_numbers = #tpu.dot_dimension_numbers<[1], [0], [0], [1], [0, 0, 1, 1], [], []>} : vector<16x32xbf16>, vector<32x8xbf16>, vector<16x8xf32> -> vector<16x8xf32>
      %c0_130 = arith.constant 0 : index
      %c0_131 = arith.constant 0 : index
      %c0_132 = arith.constant 0 : index
      %206 = vector.load %arg11[%c0_130, %c0_131, %c0_132] : memref<4x1x8xf32, #tpu.memory_space<vmem>>, vector<1x1x8xf32>
      %207 = vector.shape_cast %206 : vector<1x1x8xf32> to vector<1x8xf32>
      %208 = vector.broadcast %207 : vector<1x8xf32> to vector<16x8xf32>
      %209 = arith.addf %205, %208 : vector<16x8xf32>
      %210 = arith.truncf %202 : vector<16x8xf32> to vector<16x8xbf16>
      %c0_133 = arith.constant 0 : index
      %c0_134 = arith.constant 0 : index
      %c0_135 = arith.constant 0 : index
      %211 = vector.load %arg20[%c0_133, %c0_134, %c0_135] : memref<4x16x8xbf16, #tpu.memory_space<vmem>>, vector<1x16x8xbf16>
      %212 = vector.shape_cast %211 : vector<1x16x8xbf16> to vector<16x8xbf16>
      %213 = vector.shape_cast %210 : vector<16x8xbf16> to vector<1x16x8xbf16>
      tpu.vector_store %arg20[%c0_133, %c0_134, %c0_135], %213 {strides = array<i32>} : memref<4x16x8xbf16, #tpu.memory_space<vmem>>, vector<1x16x8xbf16>,
      %214 = arith.truncf %209 : vector<16x8xf32> to vector<16x8xbf16>
      %c0_136 = arith.constant 0 : index
      %c0_137 = arith.constant 0 : index
      %c0_138 = arith.constant 0 : index
      %215 = vector.load %arg21[%c0_136, %c0_137, %c0_138] : memref<4x16x8xbf16, #tpu.memory_space<vmem>>, vector<1x16x8xbf16>
      %216 = vector.shape_cast %215 : vector<1x16x8xbf16> to vector<16x8xbf16>
      %217 = vector.shape_cast %214 : vector<16x8xbf16> to vector<1x16x8xbf16>
      tpu.vector_store %arg21[%c0_136, %c0_137, %c0_138], %217 {strides = array<i32>} : memref<4x16x8xbf16, #tpu.memory_space<vmem>>, vector<1x16x8xbf16>,
      %c1_139 = arith.constant 1 : index
      %c0_140 = arith.constant 0 : index
      %c0_141 = arith.constant 0 : index
      %218 = vector.load %arg8[%c1_139, %c0_140, %c0_141] : memref<4x32x8xbf16, #tpu.memory_space<vmem>>, vector<1x32x8xbf16>
      %219 = vector.shape_cast %218 : vector<1x32x8xbf16> to vector<32x8xbf16>
      %cst_142 = arith.constant dense<0.000000e+00> : vector<16x8xf32>
      %220 = tpu.matmul %195, %219, %cst_142 {dimension_numbers = #tpu.dot_dimension_numbers<[1], [0], [0], [1], [0, 0, 1, 1], [], []>} : vector<16x32xbf16>, vector<32x8xbf16>, vector<16x8xf32> -> vector<16x8xf32>
      %c1_143 = arith.constant 1 : index
      %c0_144 = arith.constant 0 : index
      %c0_145 = arith.constant 0 : index
      %221 = vector.load %arg9[%c1_143, %c0_144, %c0_145] : memref<4x1x8xf32, #tpu.memory_space<vmem>>, vector<1x1x8xf32>
      %222 = vector.shape_cast %221 : vector<1x1x8xf32> to vector<1x8xf32>
      %223 = vector.broadcast %222 : vector<1x8xf32> to vector<16x8xf32>
      %224 = arith.addf %220, %223 : vector<16x8xf32>
      %c1_146 = arith.constant 1 : index
      %c0_147 = arith.constant 0 : index
      %c0_148 = arith.constant 0 : index
      %225 = vector.load %arg10[%c1_146, %c0_147, %c0_148] : memref<4x32x8xbf16, #tpu.memory_space<vmem>>, vector<1x32x8xbf16>
      %226 = vector.shape_cast %225 : vector<1x32x8xbf16> to vector<32x8xbf16>
      %cst_149 = arith.constant dense<0.000000e+00> : vector<16x8xf32>
      %227 = tpu.matmul %195, %226, %cst_149 {dimension_numbers = #tpu.dot_dimension_numbers<[1], [0], [0], [1], [0, 0, 1, 1], [], []>} : vector<16x32xbf16>, vector<32x8xbf16>, vector<16x8xf32> -> vector<16x8xf32>
      %c1_150 = arith.constant 1 : index
      %c0_151 = arith.constant 0 : index
      %c0_152 = arith.constant 0 : index
      %228 = vector.load %arg11[%c1_150, %c0_151, %c0_152] : memref<4x1x8xf32, #tpu.memory_space<vmem>>, vector<1x1x8xf32>
      %229 = vector.shape_cast %228 : vector<1x1x8xf32> to vector<1x8xf32>
      %230 = vector.broadcast %229 : vector<1x8xf32> to vector<16x8xf32>
      %231 = arith.addf %227, %230 : vector<16x8xf32>
      %232 = arith.truncf %224 : vector<16x8xf32> to vector<16x8xbf16>
      %c1_153 = arith.constant 1 : index
      %c0_154 = arith.constant 0 : index
      %c0_155 = arith.constant 0 : index
      %233 = vector.load %arg20[%c1_153, %c0_154, %c0_155] : memref<4x16x8xbf16, #tpu.memory_space<vmem>>, vector<1x16x8xbf16>
      %234 = vector.shape_cast %233 : vector<1x16x8xbf16> to vector<16x8xbf16>
      %235 = vector.shape_cast %232 : vector<16x8xbf16> to vector<1x16x8xbf16>
      tpu.vector_store %arg20[%c1_153, %c0_154, %c0_155], %235 {strides = array<i32>} : memref<4x16x8xbf16, #tpu.memory_space<vmem>>, vector<1x16x8xbf16>,
      %236 = arith.truncf %231 : vector<16x8xf32> to vector<16x8xbf16>
      %c1_156 = arith.constant 1 : index
      %c0_157 = arith.constant 0 : index
      %c0_158 = arith.constant 0 : index
      %237 = vector.load %arg21[%c1_156, %c0_157, %c0_158] : memref<4x16x8xbf16, #tpu.memory_space<vmem>>, vector<1x16x8xbf16>
      %238 = vector.shape_cast %237 : vector<1x16x8xbf16> to vector<16x8xbf16>
      %239 = vector.shape_cast %236 : vector<16x8xbf16> to vector<1x16x8xbf16>
      tpu.vector_store %arg21[%c1_156, %c0_157, %c0_158], %239 {strides = array<i32>} : memref<4x16x8xbf16, #tpu.memory_space<vmem>>, vector<1x16x8xbf16>,
      %c2_159 = arith.constant 2 : index
      %c0_160 = arith.constant 0 : index
      %c0_161 = arith.constant 0 : index
      %240 = vector.load %arg8[%c2_159, %c0_160, %c0_161] : memref<4x32x8xbf16, #tpu.memory_space<vmem>>, vector<1x32x8xbf16>
      %241 = vector.shape_cast %240 : vector<1x32x8xbf16> to vector<32x8xbf16>
      %cst_162 = arith.constant dense<0.000000e+00> : vector<16x8xf32>
      %242 = tpu.matmul %195, %241, %cst_162 {dimension_numbers = #tpu.dot_dimension_numbers<[1], [0], [0], [1], [0, 0, 1, 1], [], []>} : vector<16x32xbf16>, vector<32x8xbf16>, vector<16x8xf32> -> vector<16x8xf32>
      %c2_163 = arith.constant 2 : index
      %c0_164 = arith.constant 0 : index
      %c0_165 = arith.constant 0 : index
      %243 = vector.load %arg9[%c2_163, %c0_164, %c0_165] : memref<4x1x8xf32, #tpu.memory_space<vmem>>, vector<1x1x8xf32>
      %244 = vector.shape_cast %243 : vector<1x1x8xf32> to vector<1x8xf32>
      %245 = vector.broadcast %244 : vector<1x8xf32> to vector<16x8xf32>
      %246 = arith.addf %242, %245 : vector<16x8xf32>
      %c2_166 = arith.constant 2 : index
      %c0_167 = arith.constant 0 : index
      %c0_168 = arith.constant 0 : index
      %247 = vector.load %arg10[%c2_166, %c0_167, %c0_168] : memref<4x32x8xbf16, #tpu.memory_space<vmem>>, vector<1x32x8xbf16>
      %248 = vector.shape_cast %247 : vector<1x32x8xbf16> to vector<32x8xbf16>
      %cst_169 = arith.constant dense<0.000000e+00> : vector<16x8xf32>
      %249 = tpu.matmul %195, %248, %cst_169 {dimension_numbers = #tpu.dot_dimension_numbers<[1], [0], [0], [1], [0, 0, 1, 1], [], []>} : vector<16x32xbf16>, vector<32x8xbf16>, vector<16x8xf32> -> vector<16x8xf32>
      %c2_170 = arith.constant 2 : index
      %c0_171 = arith.constant 0 : index
      %c0_172 = arith.constant 0 : index
      %250 = vector.load %arg11[%c2_170, %c0_171, %c0_172] : memref<4x1x8xf32, #tpu.memory_space<vmem>>, vector<1x1x8xf32>
      %251 = vector.shape_cast %250 : vector<1x1x8xf32> to vector<1x8xf32>
      %252 = vector.broadcast %251 : vector<1x8xf32> to vector<16x8xf32>
      %253 = arith.addf %249, %252 : vector<16x8xf32>
      %254 = arith.truncf %246 : vector<16x8xf32> to vector<16x8xbf16>
      %c2_173 = arith.constant 2 : index
      %c0_174 = arith.constant 0 : index
      %c0_175 = arith.constant 0 : index
      %255 = vector.load %arg20[%c2_173, %c0_174, %c0_175] : memref<4x16x8xbf16, #tpu.memory_space<vmem>>, vector<1x16x8xbf16>
      %256 = vector.shape_cast %255 : vector<1x16x8xbf16> to vector<16x8xbf16>
      %257 = vector.shape_cast %254 : vector<16x8xbf16> to vector<1x16x8xbf16>
      tpu.vector_store %arg20[%c2_173, %c0_174, %c0_175], %257 {strides = array<i32>} : memref<4x16x8xbf16, #tpu.memory_space<vmem>>, vector<1x16x8xbf16>,
      %258 = arith.truncf %253 : vector<16x8xf32> to vector<16x8xbf16>
      %c2_176 = arith.constant 2 : index
      %c0_177 = arith.constant 0 : index
      %c0_178 = arith.constant 0 : index
      %259 = vector.load %arg21[%c2_176, %c0_177, %c0_178] : memref<4x16x8xbf16, #tpu.memory_space<vmem>>, vector<1x16x8xbf16>
      %260 = vector.shape_cast %259 : vector<1x16x8xbf16> to vector<16x8xbf16>
      %261 = vector.shape_cast %258 : vector<16x8xbf16> to vector<1x16x8xbf16>
      tpu.vector_store %arg21[%c2_176, %c0_177, %c0_178], %261 {strides = array<i32>} : memref<4x16x8xbf16, #tpu.memory_space<vmem>>, vector<1x16x8xbf16>,
      %c3_179 = arith.constant 3 : index
      %c0_180 = arith.constant 0 : index
      %c0_181 = arith.constant 0 : index
      %262 = vector.load %arg8[%c3_179, %c0_180, %c0_181] : memref<4x32x8xbf16, #tpu.memory_space<vmem>>, vector<1x32x8xbf16>
      %263 = vector.shape_cast %262 : vector<1x32x8xbf16> to vector<32x8xbf16>
      %cst_182 = arith.constant dense<0.000000e+00> : vector<16x8xf32>
      %264 = tpu.matmul %195, %263, %cst_182 {dimension_numbers = #tpu.dot_dimension_numbers<[1], [0], [0], [1], [0, 0, 1, 1], [], []>} : vector<16x32xbf16>, vector<32x8xbf16>, vector<16x8xf32> -> vector<16x8xf32>
      %c3_183 = arith.constant 3 : index
      %c0_184 = arith.constant 0 : index
      %c0_185 = arith.constant 0 : index
      %265 = vector.load %arg9[%c3_183, %c0_184, %c0_185] : memref<4x1x8xf32, #tpu.memory_space<vmem>>, vector<1x1x8xf32>
      %266 = vector.shape_cast %265 : vector<1x1x8xf32> to vector<1x8xf32>
      %267 = vector.broadcast %266 : vector<1x8xf32> to vector<16x8xf32>
      %268 = arith.addf %264, %267 : vector<16x8xf32>
      %c3_186 = arith.constant 3 : index
      %c0_187 = arith.constant 0 : index
      %c0_188 = arith.constant 0 : index
      %269 = vector.load %arg10[%c3_186, %c0_187, %c0_188] : memref<4x32x8xbf16, #tpu.memory_space<vmem>>, vector<1x32x8xbf16>
      %270 = vector.shape_cast %269 : vector<1x32x8xbf16> to vector<32x8xbf16>
      %cst_189 = arith.constant dense<0.000000e+00> : vector<16x8xf32>
      %271 = tpu.matmul %195, %270, %cst_189 {dimension_numbers = #tpu.dot_dimension_numbers<[1], [0], [0], [1], [0, 0, 1, 1], [], []>} : vector<16x32xbf16>, vector<32x8xbf16>, vector<16x8xf32> -> vector<16x8xf32>
      %c3_190 = arith.constant 3 : index
      %c0_191 = arith.constant 0 : index
      %c0_192 = arith.constant 0 : index
      %272 = vector.load %arg11[%c3_190, %c0_191, %c0_192] : memref<4x1x8xf32, #tpu.memory_space<vmem>>, vector<1x1x8xf32>
      %273 = vector.shape_cast %272 : vector<1x1x8xf32> to vector<1x8xf32>
      %274 = vector.broadcast %273 : vector<1x8xf32> to vector<16x8xf32>
      %275 = arith.addf %271, %274 : vector<16x8xf32>
      %276 = arith.truncf %268 : vector<16x8xf32> to vector<16x8xbf16>
      %c3_193 = arith.constant 3 : index
      %c0_194 = arith.constant 0 : index
      %c0_195 = arith.constant 0 : index
      %277 = vector.load %arg20[%c3_193, %c0_194, %c0_195] : memref<4x16x8xbf16, #tpu.memory_space<vmem>>, vector<1x16x8xbf16>
      %278 = vector.shape_cast %277 : vector<1x16x8xbf16> to vector<16x8xbf16>
      %279 = vector.shape_cast %276 : vector<16x8xbf16> to vector<1x16x8xbf16>
      tpu.vector_store %arg20[%c3_193, %c0_194, %c0_195], %279 {strides = array<i32>} : memref<4x16x8xbf16, #tpu.memory_space<vmem>>, vector<1x16x8xbf16>,
      %280 = arith.truncf %275 : vector<16x8xf32> to vector<16x8xbf16>
      %c3_196 = arith.constant 3 : index
      %c0_197 = arith.constant 0 : index
      %c0_198 = arith.constant 0 : index
      %281 = vector.load %arg21[%c3_196, %c0_197, %c0_198] : memref<4x16x8xbf16, #tpu.memory_space<vmem>>, vector<1x16x8xbf16>
      %282 = vector.shape_cast %281 : vector<1x16x8xbf16> to vector<16x8xbf16>
      %283 = vector.shape_cast %280 : vector<16x8xbf16> to vector<1x16x8xbf16>
      tpu.vector_store %arg21[%c3_196, %c0_197, %c0_198], %283 {strides = array<i32>} : memref<4x16x8xbf16, #tpu.memory_space<vmem>>, vector<1x16x8xbf16>,
    } else {
    }
    %c0 = arith.constant 0 : index
    %c0_1 = arith.constant 0 : index
    %c0_2 = arith.constant 0 : index
    %3 = vector.load %arg2[%c0, %c0_1, %c0_2] : memref<1x8x32xf32, #tpu.memory_space<vmem>>, vector<1x8x32xf32>
    %4 = vector.shape_cast %3 : vector<1x8x32xf32> to vector<8x32xf32>
    %c0_3 = arith.constant 0 : index
    %c0_4 = arith.constant 0 : index
    %c0_5 = arith.constant 0 : index
    %5 = vector.load %arg4[%c0_3, %c0_4, %c0_5] : memref<1x1x16xf32, #tpu.memory_space<vmem>>, vector<1x1x16xf32>
    %6 = vector.shape_cast %5 : vector<1x1x16xf32> to vector<1x16xf32>
    %c0_6 = arith.constant 0 : index
    %c0_7 = arith.constant 0 : index
    %7 = vector.load %arg5[%c0_6, %c0_7] : memref<1x32xf32, #tpu.memory_space<vmem>>, vector<1x32xf32>
    %8 = arith.mulf %4, %4 : vector<8x32xf32>
    %cst = arith.constant dense<0.000000e+00> : vector<8xf32>
    %9 = vector.multi_reduction <add>, %8, %cst [1] : vector<8x32xf32> to vector<8xf32>
    %10 = vector.shape_cast %9 : vector<8xf32> to vector<8x1xf32>
    %cst_8 = arith.constant 3.200000e+01 : f32
    %11 = vector.broadcast %cst_8 : f32 to vector<8x1xf32>
    %12 = arith.divf %10, %11 : vector<8x1xf32>
    %cst_9 = arith.constant 1.1920929E-7 : f32
    %13 = vector.broadcast %cst_9 : f32 to vector<8x1xf32>
    %14 = arith.addf %12, %13 : vector<8x1xf32>
    %15 = math.rsqrt %14 : vector<8x1xf32>
    %16 = vector.broadcast %15 : vector<8x1xf32> to vector<8x32xf32>
    %17 = arith.mulf %4, %16 : vector<8x32xf32>
    %18 = vector.broadcast %7 : vector<1x32xf32> to vector<8x32xf32>
    %19 = arith.mulf %17, %18 : vector<8x32xf32>
    %20 = arith.truncf %19 : vector<8x32xf32> to vector<8x32xbf16>
    %cst_10 = arith.constant 0.000000e+00 : f32
    %21 = vector.broadcast %cst_10 : f32 to vector<1x16xf32>
    %22 = arith.cmpf ogt, %6, %21 : vector<1x16xf32>
    %cst_11 = arith.constant 0.000000e+00 : f32
    %cst_12 = arith.constant -1.000000e+30 : f32
    %23 = vector.broadcast %cst_11 : f32 to vector<1x16xf32>
    %24 = vector.broadcast %cst_12 : f32 to vector<1x16xf32>
    %25 = arith.select %22, %23, %24 : vector<1x16xi1>, vector<1x16xf32>
    %cst_13 = arith.constant 0.000000e+00 : f32
    %26 = vector.broadcast %cst_13 : f32 to vector<8x32xf32>
    %c0_14 = arith.constant 0 : index
    %c0_15 = arith.constant 0 : index
    %c0_16 = arith.constant 0 : index
    %27 = vector.load %arg6[%c0_14, %c0_15, %c0_16] : memref<4x32x8xbf16, #tpu.memory_space<vmem>>, vector<1x32x8xbf16>
    %28 = vector.shape_cast %27 : vector<1x32x8xbf16> to vector<32x8xbf16>
    %cst_17 = arith.constant dense<0.000000e+00> : vector<8x8xf32>
    %29 = tpu.matmul %20, %28, %cst_17 {dimension_numbers = #tpu.dot_dimension_numbers<[1], [0], [0], [1], [0, 0, 1, 1], [], []>} : vector<8x32xbf16>, vector<32x8xbf16>, vector<8x8xf32> -> vector<8x8xf32>
    %c0_18 = arith.constant 0 : index
    %c0_19 = arith.constant 0 : index
    %c0_20 = arith.constant 0 : index
    %30 = vector.load %arg7[%c0_18, %c0_19, %c0_20] : memref<4x1x8xf32, #tpu.memory_space<vmem>>, vector<1x1x8xf32>
    %31 = vector.shape_cast %30 : vector<1x1x8xf32> to vector<1x8xf32>
    %32 = vector.broadcast %31 : vector<1x8xf32> to vector<8x8xf32>
    %33 = arith.addf %29, %32 : vector<8x8xf32>
    %c0_21 = arith.constant 0 : index
    %c0_22 = arith.constant 0 : index
    %c0_23 = arith.constant 0 : index
    %34 = vector.load %arg20[%c0_21, %c0_22, %c0_23] : memref<4x16x8xbf16, #tpu.memory_space<vmem>>, vector<1x16x8xbf16>
    %35 = vector.shape_cast %34 : vector<1x16x8xbf16> to vector<16x8xbf16>
    %c0_24 = arith.constant 0 : index
    %c0_25 = arith.constant 0 : index
    %c0_26 = arith.constant 0 : index
    %36 = vector.load %arg21[%c0_24, %c0_25, %c0_26] : memref<4x16x8xbf16, #tpu.memory_space<vmem>>, vector<1x16x8xbf16>
    %37 = vector.shape_cast %36 : vector<1x16x8xbf16> to vector<16x8xbf16>
    %38 = arith.truncf %33 : vector<8x8xf32> to vector<8x8xbf16>
    "tpu.trace_start"() <{level = 10 : i32, message = "le,se->ls"}> : () -> ()
    %cst_27 = arith.constant dense<0.000000e+00> : vector<8x16xf32>
    %39 = tpu.matmul %38, %35, %cst_27 {dimension_numbers = #tpu.dot_dimension_numbers<[1], [1], [0], [0], [0, 0, 1, 0], [], []>} : vector<8x8xbf16>, vector<16x8xbf16>, vector<8x16xf32> -> vector<8x16xf32>
    "tpu.trace_stop"() : () -> ()
    %40 = vector.broadcast %25 : vector<1x16xf32> to vector<8x16xf32>
    %41 = arith.addf %39, %40 : vector<8x16xf32>
    %cst_28 = arith.constant dense<0xFF800000> : vector<8xf32>
    %42 = vector.multi_reduction <maximumf>, %41, %cst_28 [1] : vector<8x16xf32> to vector<8xf32>
    %43 = vector.shape_cast %42 : vector<8xf32> to vector<8x1xf32>
    %44 = vector.broadcast %43 : vector<8x1xf32> to vector<8x16xf32>
    %45 = arith.subf %41, %44 : vector<8x16xf32>
    %46 = math.exp %45 : vector<8x16xf32>
    %cst_29 = arith.constant dense<0.000000e+00> : vector<8xf32>
    %47 = vector.multi_reduction <add>, %46, %cst_29 [1] : vector<8x16xf32> to vector<8xf32>
    %48 = vector.shape_cast %47 : vector<8xf32> to vector<8x1xf32>
    %49 = tpu.reciprocal %48 {approx = true} : vector<8x1xf32> -> vector<8x1xf32>
    %50 = vector.broadcast %49 : vector<8x1xf32> to vector<8x16xf32>
    %51 = arith.mulf %46, %50 : vector<8x16xf32>
    %52 = arith.truncf %51 : vector<8x16xf32> to vector<8x16xbf16>
    %cst_30 = arith.constant dense<0.000000e+00> : vector<8x8xf32>
    %53 = tpu.matmul %52, %37, %cst_30 {dimension_numbers = #tpu.dot_dimension_numbers<[1], [0], [0], [1], [0, 0, 1, 1], [], []>} : vector<8x16xbf16>, vector<16x8xbf16>, vector<8x8xf32> -> vector<8x8xf32>
    %54 = arith.truncf %53 : vector<8x8xf32> to vector<8x8xbf16>
    %c0_31 = arith.constant 0 : index
    %c0_32 = arith.constant 0 : index
    %c0_33 = arith.constant 0 : index
    %55 = vector.load %arg12[%c0_31, %c0_32, %c0_33] : memref<4x8x32xbf16, #tpu.memory_space<vmem>>, vector<1x8x32xbf16>
    %56 = vector.shape_cast %55 : vector<1x8x32xbf16> to vector<8x32xbf16>
    %cst_34 = arith.constant dense<0.000000e+00> : vector<8x32xf32>
    %57 = tpu.matmul %54, %56, %cst_34 {dimension_numbers = #tpu.dot_dimension_numbers<[1], [0], [0], [1], [0, 0, 1, 1], [], []>} : vector<8x8xbf16>, vector<8x32xbf16>, vector<8x32xf32> -> vector<8x32xf32>
    %58 = arith.addf %26, %57 : vector<8x32xf32>
    %c1 = arith.constant 1 : index
    %c0_35 = arith.constant 0 : index
    %c0_36 = arith.constant 0 : index
    %59 = vector.load %arg6[%c1, %c0_35, %c0_36] : memref<4x32x8xbf16, #tpu.memory_space<vmem>>, vector<1x32x8xbf16>
    %60 = vector.shape_cast %59 : vector<1x32x8xbf16> to vector<32x8xbf16>
    %cst_37 = arith.constant dense<0.000000e+00> : vector<8x8xf32>
    %61 = tpu.matmul %20, %60, %cst_37 {dimension_numbers = #tpu.dot_dimension_numbers<[1], [0], [0], [1], [0, 0, 1, 1], [], []>} : vector<8x32xbf16>, vector<32x8xbf16>, vector<8x8xf32> -> vector<8x8xf32>
    %c1_38 = arith.constant 1 : index
    %c0_39 = arith.constant 0 : index
    %c0_40 = arith.constant 0 : index
    %62 = vector.load %arg7[%c1_38, %c0_39, %c0_40] : memref<4x1x8xf32, #tpu.memory_space<vmem>>, vector<1x1x8xf32>
    %63 = vector.shape_cast %62 : vector<1x1x8xf32> to vector<1x8xf32>
    %64 = vector.broadcast %63 : vector<1x8xf32> to vector<8x8xf32>
    %65 = arith.addf %61, %64 : vector<8x8xf32>
    %c1_41 = arith.constant 1 : index
    %c0_42 = arith.constant 0 : index
    %c0_43 = arith.constant 0 : index
    %66 = vector.load %arg20[%c1_41, %c0_42, %c0_43] : memref<4x16x8xbf16, #tpu.memory_space<vmem>>, vector<1x16x8xbf16>
    %67 = vector.shape_cast %66 : vector<1x16x8xbf16> to vector<16x8xbf16>
    %c1_44 = arith.constant 1 : index
    %c0_45 = arith.constant 0 : index
    %c0_46 = arith.constant 0 : index
    %68 = vector.load %arg21[%c1_44, %c0_45, %c0_46] : memref<4x16x8xbf16, #tpu.memory_space<vmem>>, vector<1x16x8xbf16>
    %69 = vector.shape_cast %68 : vector<1x16x8xbf16> to vector<16x8xbf16>
    %70 = arith.truncf %65 : vector<8x8xf32> to vector<8x8xbf16>
    "tpu.trace_start"() <{level = 10 : i32, message = "le,se->ls"}> : () -> ()
    %cst_47 = arith.constant dense<0.000000e+00> : vector<8x16xf32>
    %71 = tpu.matmul %70, %67, %cst_47 {dimension_numbers = #tpu.dot_dimension_numbers<[1], [1], [0], [0], [0, 0, 1, 0], [], []>} : vector<8x8xbf16>, vector<16x8xbf16>, vector<8x16xf32> -> vector<8x16xf32>
    "tpu.trace_stop"() : () -> ()
    %72 = vector.broadcast %25 : vector<1x16xf32> to vector<8x16xf32>
    %73 = arith.addf %71, %72 : vector<8x16xf32>
    %cst_48 = arith.constant dense<0xFF800000> : vector<8xf32>
    %74 = vector.multi_reduction <maximumf>, %73, %cst_48 [1] : vector<8x16xf32> to vector<8xf32>
    %75 = vector.shape_cast %74 : vector<8xf32> to vector<8x1xf32>
    %76 = vector.broadcast %75 : vector<8x1xf32> to vector<8x16xf32>
    %77 = arith.subf %73, %76 : vector<8x16xf32>
    %78 = math.exp %77 : vector<8x16xf32>
    %cst_49 = arith.constant dense<0.000000e+00> : vector<8xf32>
    %79 = vector.multi_reduction <add>, %78, %cst_49 [1] : vector<8x16xf32> to vector<8xf32>
    %80 = vector.shape_cast %79 : vector<8xf32> to vector<8x1xf32>
    %81 = tpu.reciprocal %80 {approx = true} : vector<8x1xf32> -> vector<8x1xf32>
    %82 = vector.broadcast %81 : vector<8x1xf32> to vector<8x16xf32>
    %83 = arith.mulf %78, %82 : vector<8x16xf32>
    %84 = arith.truncf %83 : vector<8x16xf32> to vector<8x16xbf16>
    %cst_50 = arith.constant dense<0.000000e+00> : vector<8x8xf32>
    %85 = tpu.matmul %84, %69, %cst_50 {dimension_numbers = #tpu.dot_dimension_numbers<[1], [0], [0], [1], [0, 0, 1, 1], [], []>} : vector<8x16xbf16>, vector<16x8xbf16>, vector<8x8xf32> -> vector<8x8xf32>
    %86 = arith.truncf %85 : vector<8x8xf32> to vector<8x8xbf16>
    %c1_51 = arith.constant 1 : index
    %c0_52 = arith.constant 0 : index
    %c0_53 = arith.constant 0 : index
    %87 = vector.load %arg12[%c1_51, %c0_52, %c0_53] : memref<4x8x32xbf16, #tpu.memory_space<vmem>>, vector<1x8x32xbf16>
    %88 = vector.shape_cast %87 : vector<1x8x32xbf16> to vector<8x32xbf16>
    %cst_54 = arith.constant dense<0.000000e+00> : vector<8x32xf32>
    %89 = tpu.matmul %86, %88, %cst_54 {dimension_numbers = #tpu.dot_dimension_numbers<[1], [0], [0], [1], [0, 0, 1, 1], [], []>} : vector<8x8xbf16>, vector<8x32xbf16>, vector<8x32xf32> -> vector<8x32xf32>
    %90 = arith.addf %58, %89 : vector<8x32xf32>
    %c2 = arith.constant 2 : index
    %c0_55 = arith.constant 0 : index
    %c0_56 = arith.constant 0 : index
    %91 = vector.load %arg6[%c2, %c0_55, %c0_56] : memref<4x32x8xbf16, #tpu.memory_space<vmem>>, vector<1x32x8xbf16>
    %92 = vector.shape_cast %91 : vector<1x32x8xbf16> to vector<32x8xbf16>
    %cst_57 = arith.constant dense<0.000000e+00> : vector<8x8xf32>
    %93 = tpu.matmul %20, %92, %cst_57 {dimension_numbers = #tpu.dot_dimension_numbers<[1], [0], [0], [1], [0, 0, 1, 1], [], []>} : vector<8x32xbf16>, vector<32x8xbf16>, vector<8x8xf32> -> vector<8x8xf32>
    %c2_58 = arith.constant 2 : index
    %c0_59 = arith.constant 0 : index
    %c0_60 = arith.constant 0 : index
    %94 = vector.load %arg7[%c2_58, %c0_59, %c0_60] : memref<4x1x8xf32, #tpu.memory_space<vmem>>, vector<1x1x8xf32>
    %95 = vector.shape_cast %94 : vector<1x1x8xf32> to vector<1x8xf32>
    %96 = vector.broadcast %95 : vector<1x8xf32> to vector<8x8xf32>
    %97 = arith.addf %93, %96 : vector<8x8xf32>
    %c2_61 = arith.constant 2 : index
    %c0_62 = arith.constant 0 : index
    %c0_63 = arith.constant 0 : index
    %98 = vector.load %arg20[%c2_61, %c0_62, %c0_63] : memref<4x16x8xbf16, #tpu.memory_space<vmem>>, vector<1x16x8xbf16>
    %99 = vector.shape_cast %98 : vector<1x16x8xbf16> to vector<16x8xbf16>
    %c2_64 = arith.constant 2 : index
    %c0_65 = arith.constant 0 : index
    %c0_66 = arith.constant 0 : index
    %100 = vector.load %arg21[%c2_64, %c0_65, %c0_66] : memref<4x16x8xbf16, #tpu.memory_space<vmem>>, vector<1x16x8xbf16>
    %101 = vector.shape_cast %100 : vector<1x16x8xbf16> to vector<16x8xbf16>
    %102 = arith.truncf %97 : vector<8x8xf32> to vector<8x8xbf16>
    "tpu.trace_start"() <{level = 10 : i32, message = "le,se->ls"}> : () -> ()
    %cst_67 = arith.constant dense<0.000000e+00> : vector<8x16xf32>
    %103 = tpu.matmul %102, %99, %cst_67 {dimension_numbers = #tpu.dot_dimension_numbers<[1], [1], [0], [0], [0, 0, 1, 0], [], []>} : vector<8x8xbf16>, vector<16x8xbf16>, vector<8x16xf32> -> vector<8x16xf32>
    "tpu.trace_stop"() : () -> ()
    %104 = vector.broadcast %25 : vector<1x16xf32> to vector<8x16xf32>
    %105 = arith.addf %103, %104 : vector<8x16xf32>
    %cst_68 = arith.constant dense<0xFF800000> : vector<8xf32>
    %106 = vector.multi_reduction <maximumf>, %105, %cst_68 [1] : vector<8x16xf32> to vector<8xf32>
    %107 = vector.shape_cast %106 : vector<8xf32> to vector<8x1xf32>
    %108 = vector.broadcast %107 : vector<8x1xf32> to vector<8x16xf32>
    %109 = arith.subf %105, %108 : vector<8x16xf32>
    %110 = math.exp %109 : vector<8x16xf32>
    %cst_69 = arith.constant dense<0.000000e+00> : vector<8xf32>
    %111 = vector.multi_reduction <add>, %110, %cst_69 [1] : vector<8x16xf32> to vector<8xf32>
    %112 = vector.shape_cast %111 : vector<8xf32> to vector<8x1xf32>
    %113 = tpu.reciprocal %112 {approx = true} : vector<8x1xf32> -> vector<8x1xf32>
    %114 = vector.broadcast %113 : vector<8x1xf32> to vector<8x16xf32>
    %115 = arith.mulf %110, %114 : vector<8x16xf32>
    %116 = arith.truncf %115 : vector<8x16xf32> to vector<8x16xbf16>
    %cst_70 = arith.constant dense<0.000000e+00> : vector<8x8xf32>
    %117 = tpu.matmul %116, %101, %cst_70 {dimension_numbers = #tpu.dot_dimension_numbers<[1], [0], [0], [1], [0, 0, 1, 1], [], []>} : vector<8x16xbf16>, vector<16x8xbf16>, vector<8x8xf32> -> vector<8x8xf32>
    %118 = arith.truncf %117 : vector<8x8xf32> to vector<8x8xbf16>
    %c2_71 = arith.constant 2 : index
    %c0_72 = arith.constant 0 : index
    %c0_73 = arith.constant 0 : index
    %119 = vector.load %arg12[%c2_71, %c0_72, %c0_73] : memref<4x8x32xbf16, #tpu.memory_space<vmem>>, vector<1x8x32xbf16>
    %120 = vector.shape_cast %119 : vector<1x8x32xbf16> to vector<8x32xbf16>
    %cst_74 = arith.constant dense<0.000000e+00> : vector<8x32xf32>
    %121 = tpu.matmul %118, %120, %cst_74 {dimension_numbers = #tpu.dot_dimension_numbers<[1], [0], [0], [1], [0, 0, 1, 1], [], []>} : vector<8x8xbf16>, vector<8x32xbf16>, vector<8x32xf32> -> vector<8x32xf32>
    %122 = arith.addf %90, %121 : vector<8x32xf32>
    %c3 = arith.constant 3 : index
    %c0_75 = arith.constant 0 : index
    %c0_76 = arith.constant 0 : index
    %123 = vector.load %arg6[%c3, %c0_75, %c0_76] : memref<4x32x8xbf16, #tpu.memory_space<vmem>>, vector<1x32x8xbf16>
    %124 = vector.shape_cast %123 : vector<1x32x8xbf16> to vector<32x8xbf16>
    %cst_77 = arith.constant dense<0.000000e+00> : vector<8x8xf32>
    %125 = tpu.matmul %20, %124, %cst_77 {dimension_numbers = #tpu.dot_dimension_numbers<[1], [0], [0], [1], [0, 0, 1, 1], [], []>} : vector<8x32xbf16>, vector<32x8xbf16>, vector<8x8xf32> -> vector<8x8xf32>
    %c3_78 = arith.constant 3 : index
    %c0_79 = arith.constant 0 : index
    %c0_80 = arith.constant 0 : index
    %126 = vector.load %arg7[%c3_78, %c0_79, %c0_80] : memref<4x1x8xf32, #tpu.memory_space<vmem>>, vector<1x1x8xf32>
    %127 = vector.shape_cast %126 : vector<1x1x8xf32> to vector<1x8xf32>
    %128 = vector.broadcast %127 : vector<1x8xf32> to vector<8x8xf32>
    %129 = arith.addf %125, %128 : vector<8x8xf32>
    %c3_81 = arith.constant 3 : index
    %c0_82 = arith.constant 0 : index
    %c0_83 = arith.constant 0 : index
    %130 = vector.load %arg20[%c3_81, %c0_82, %c0_83] : memref<4x16x8xbf16, #tpu.memory_space<vmem>>, vector<1x16x8xbf16>
    %131 = vector.shape_cast %130 : vector<1x16x8xbf16> to vector<16x8xbf16>
    %c3_84 = arith.constant 3 : index
    %c0_85 = arith.constant 0 : index
    %c0_86 = arith.constant 0 : index
    %132 = vector.load %arg21[%c3_84, %c0_85, %c0_86] : memref<4x16x8xbf16, #tpu.memory_space<vmem>>, vector<1x16x8xbf16>
    %133 = vector.shape_cast %132 : vector<1x16x8xbf16> to vector<16x8xbf16>
    %134 = arith.truncf %129 : vector<8x8xf32> to vector<8x8xbf16>
    "tpu.trace_start"() <{level = 10 : i32, message = "le,se->ls"}> : () -> ()
    %cst_87 = arith.constant dense<0.000000e+00> : vector<8x16xf32>
    %135 = tpu.matmul %134, %131, %cst_87 {dimension_numbers = #tpu.dot_dimension_numbers<[1], [1], [0], [0], [0, 0, 1, 0], [], []>} : vector<8x8xbf16>, vector<16x8xbf16>, vector<8x16xf32> -> vector<8x16xf32>
    "tpu.trace_stop"() : () -> ()
    %136 = vector.broadcast %25 : vector<1x16xf32> to vector<8x16xf32>
    %137 = arith.addf %135, %136 : vector<8x16xf32>
    %cst_88 = arith.constant dense<0xFF800000> : vector<8xf32>
    %138 = vector.multi_reduction <maximumf>, %137, %cst_88 [1] : vector<8x16xf32> to vector<8xf32>
    %139 = vector.shape_cast %138 : vector<8xf32> to vector<8x1xf32>
    %140 = vector.broadcast %139 : vector<8x1xf32> to vector<8x16xf32>
    %141 = arith.subf %137, %140 : vector<8x16xf32>
    %142 = math.exp %141 : vector<8x16xf32>
    %cst_89 = arith.constant dense<0.000000e+00> : vector<8xf32>
    %143 = vector.multi_reduction <add>, %142, %cst_89 [1] : vector<8x16xf32> to vector<8xf32>
    %144 = vector.shape_cast %143 : vector<8xf32> to vector<8x1xf32>
    %145 = tpu.reciprocal %144 {approx = true} : vector<8x1xf32> -> vector<8x1xf32>
    %146 = vector.broadcast %145 : vector<8x1xf32> to vector<8x16xf32>
    %147 = arith.mulf %142, %146 : vector<8x16xf32>
    %148 = arith.truncf %147 : vector<8x16xf32> to vector<8x16xbf16>
    %cst_90 = arith.constant dense<0.000000e+00> : vector<8x8xf32>
    %149 = tpu.matmul %148, %133, %cst_90 {dimension_numbers = #tpu.dot_dimension_numbers<[1], [0], [0], [1], [0, 0, 1, 1], [], []>} : vector<8x16xbf16>, vector<16x8xbf16>, vector<8x8xf32> -> vector<8x8xf32>
    %150 = arith.truncf %149 : vector<8x8xf32> to vector<8x8xbf16>
    %c3_91 = arith.constant 3 : index
    %c0_92 = arith.constant 0 : index
    %c0_93 = arith.constant 0 : index
    %151 = vector.load %arg12[%c3_91, %c0_92, %c0_93] : memref<4x8x32xbf16, #tpu.memory_space<vmem>>, vector<1x8x32xbf16>
    %152 = vector.shape_cast %151 : vector<1x8x32xbf16> to vector<8x32xbf16>
    %cst_94 = arith.constant dense<0.000000e+00> : vector<8x32xf32>
    %153 = tpu.matmul %150, %152, %cst_94 {dimension_numbers = #tpu.dot_dimension_numbers<[1], [0], [0], [1], [0, 0, 1, 1], [], []>} : vector<8x8xbf16>, vector<8x32xbf16>, vector<8x32xf32> -> vector<8x32xf32>
    %154 = arith.addf %122, %153 : vector<8x32xf32>
    %c0_95 = arith.constant 0 : index
    %c0_96 = arith.constant 0 : index
    %155 = vector.load %arg13[%c0_95, %c0_96] : memref<1x32xf32, #tpu.memory_space<vmem>>, vector<1x32xf32>
    %156 = vector.broadcast %155 : vector<1x32xf32> to vector<8x32xf32>
    %157 = arith.addf %154, %156 : vector<8x32xf32>
    %158 = arith.addf %157, %19 : vector<8x32xf32>
    %c0_97 = arith.constant 0 : index
    %c0_98 = arith.constant 0 : index
    %159 = vector.load %arg14[%c0_97, %c0_98] : memref<1x32xf32, #tpu.memory_space<vmem>>, vector<1x32xf32>
    %160 = arith.mulf %158, %158 : vector<8x32xf32>
    %cst_99 = arith.constant dense<0.000000e+00> : vector<8xf32>
    %161 = vector.multi_reduction <add>, %160, %cst_99 [1] : vector<8x32xf32> to vector<8xf32>
    %162 = vector.shape_cast %161 : vector<8xf32> to vector<8x1xf32>
    %cst_100 = arith.constant 3.200000e+01 : f32
    %163 = vector.broadcast %cst_100 : f32 to vector<8x1xf32>
    %164 = arith.divf %162, %163 : vector<8x1xf32>
    %cst_101 = arith.constant 1.1920929E-7 : f32
    %165 = vector.broadcast %cst_101 : f32 to vector<8x1xf32>
    %166 = arith.addf %164, %165 : vector<8x1xf32>
    %167 = math.rsqrt %166 : vector<8x1xf32>
    %168 = vector.broadcast %167 : vector<8x1xf32> to vector<8x32xf32>
    %169 = arith.mulf %158, %168 : vector<8x32xf32>
    %170 = vector.broadcast %159 : vector<1x32xf32> to vector<8x32xf32>
    %171 = arith.mulf %169, %170 : vector<8x32xf32>
    %172 = arith.truncf %171 : vector<8x32xf32> to vector<8x32xbf16>
    %c0_102 = arith.constant 0 : index
    %c0_103 = arith.constant 0 : index
    %173 = vector.load %arg15[%c0_102, %c0_103] : memref<32x64xbf16, #tpu.memory_space<vmem>>, vector<32x64xbf16>
    %cst_104 = arith.constant dense<0.000000e+00> : vector<8x64xf32>
    %174 = tpu.matmul %172, %173, %cst_104 {dimension_numbers = #tpu.dot_dimension_numbers<[1], [0], [0], [1], [0, 0, 1, 1], [], []>} : vector<8x32xbf16>, vector<32x64xbf16>, vector<8x64xf32> -> vector<8x64xf32>
    %c0_105 = arith.constant 0 : index
    %c0_106 = arith.constant 0 : index
    %175 = vector.load %arg16[%c0_105, %c0_106] : memref<1x64xf32, #tpu.memory_space<vmem>>, vector<1x64xf32>
    %176 = vector.broadcast %175 : vector<1x64xf32> to vector<8x64xf32>
    %177 = arith.addf %174, %176 : vector<8x64xf32>
    %178 = arith.negf %177 : vector<8x64xf32>
    %179 = math.exp %178 : vector<8x64xf32>
    %cst_107 = arith.constant 1.000000e+00 : f32
    %180 = vector.broadcast %cst_107 : f32 to vector<8x64xf32>
    %181 = arith.addf %180, %179 : vector<8x64xf32>
    %182 = arith.divf %180, %181 : vector<8x64xf32>
    %183 = arith.mulf %177, %182 : vector<8x64xf32>
    %184 = arith.truncf %183 : vector<8x64xf32> to vector<8x64xbf16>
    %c0_108 = arith.constant 0 : index
    %c0_109 = arith.constant 0 : index
    %185 = vector.load %arg17[%c0_108, %c0_109] : memref<64x32xbf16, #tpu.memory_space<vmem>>, vector<64x32xbf16>
    %cst_110 = arith.constant dense<0.000000e+00> : vector<8x32xf32>
    %186 = tpu.matmul %184, %185, %cst_110 {dimension_numbers = #tpu.dot_dimension_numbers<[1], [0], [0], [1], [0, 0, 1, 1], [], []>} : vector<8x64xbf16>, vector<64x32xbf16>, vector<8x32xf32> -> vector<8x32xf32>
    %c0_111 = arith.constant 0 : index
    %c0_112 = arith.constant 0 : index
    %187 = vector.load %arg18[%c0_111, %c0_112] : memref<1x32xf32, #tpu.memory_space<vmem>>, vector<1x32xf32>
    %188 = vector.broadcast %187 : vector<1x32xf32> to vector<8x32xf32>
    %189 = arith.addf %186, %188 : vector<8x32xf32>
    %190 = arith.addf %189, %171 : vector<8x32xf32>
    %c0_113 = arith.constant 0 : index
    %c0_114 = arith.constant 0 : index
    %c0_115 = arith.constant 0 : index
    %191 = vector.load %arg19[%c0_113, %c0_114, %c0_115] : memref<1x8x32xf32, #tpu.memory_space<vmem>>, vector<1x8x32xf32>
    %192 = vector.shape_cast %191 : vector<1x8x32xf32> to vector<8x32xf32>
    %193 = vector.shape_cast %190 : vector<8x32xf32> to vector<1x8x32xf32>
    tpu.vector_store %arg19[%c0_113, %c0_114, %c0_115], %193 {strides = array<i32>} : memref<1x8x32xf32, #tpu.memory_space<vmem>>, vector<1x8x32xf32>,
    return
  }
  func.func @transform_0(%arg0: i32, %arg1: i32) -> (i32, i32, i32) {
    %c0_i32 = arith.constant 0 : i32
    %c0_i32_0 = arith.constant 0 : i32
    return %arg0, %arg1, %c0_i32 : i32, i32, i32
  }
  func.func @transform_1(%arg0: i32, %arg1: i32) -> (i32, i32, i32) {
    %c0_i32 = arith.constant 0 : i32
    %c0_i32_0 = arith.constant 0 : i32
    %c0_i32_1 = arith.constant 0 : i32
    return %arg0, %c0_i32, %c0_i32_0 : i32, i32, i32
  }
  func.func @transform_2(%arg0: i32, %arg1: i32) -> (i32, i32, i32) {
    %c0_i32 = arith.constant 0 : i32
    %c0_i32_0 = arith.constant 0 : i32
    %c0_i32_1 = arith.constant 0 : i32
    return %arg0, %c0_i32, %c0_i32_0 : i32, i32, i32
  }
  func.func @transform_3(%arg0: i32, %arg1: i32) -> (i32, i32) {
    %c0_i32 = arith.constant 0 : i32
    %c0_i32_0 = arith.constant 0 : i32
    %c0_i32_1 = arith.constant 0 : i32
    return %c0_i32, %c0_i32_0 : i32, i32
  }
  func.func @transform_4(%arg0: i32, %arg1: i32) -> (i32, i32, i32) {
    %c0_i32 = arith.constant 0 : i32
    %c0_i32_0 = arith.constant 0 : i32
    %c0_i32_1 = arith.constant 0 : i32
    %c0_i32_2 = arith.constant 0 : i32
    return %c0_i32, %c0_i32_0, %c0_i32_1 : i32, i32, i32
  }
  func.func @transform_5(%arg0: i32, %arg1: i32) -> (i32, i32, i32) {
    %c0_i32 = arith.constant 0 : i32
    %c0_i32_0 = arith.constant 0 : i32
    %c0_i32_1 = arith.constant 0 : i32
    %c0_i32_2 = arith.constant 0 : i32
    return %c0_i32, %c0_i32_0, %c0_i32_1 : i32, i32, i32
  }
  func.func @transform_6(%arg0: i32, %arg1: i32) -> (i32, i32, i32) {
    %c0_i32 = arith.constant 0 : i32
    %c0_i32_0 = arith.constant 0 : i32
    %c0_i32_1 = arith.constant 0 : i32
    %c0_i32_2 = arith.constant 0 : i32
    return %c0_i32, %c0_i32_0, %c0_i32_1 : i32, i32, i32
  }
  func.func @transform_7(%arg0: i32, %arg1: i32) -> (i32, i32, i32) {
    %c0_i32 = arith.constant 0 : i32
    %c0_i32_0 = arith.constant 0 : i32
    %c0_i32_1 = arith.constant 0 : i32
    %c0_i32_2 = arith.constant 0 : i32
    return %c0_i32, %c0_i32_0, %c0_i32_1 : i32, i32, i32
  }
  func.func @transform_8(%arg0: i32, %arg1: i32) -> (i32, i32, i32) {
    %c0_i32 = arith.constant 0 : i32
    %c0_i32_0 = arith.constant 0 : i32
    %c0_i32_1 = arith.constant 0 : i32
    %c0_i32_2 = arith.constant 0 : i32
    return %c0_i32, %c0_i32_0, %c0_i32_1 : i32, i32, i32
  }
  func.func @transform_9(%arg0: i32, %arg1: i32) -> (i32, i32, i32) {
    %c0_i32 = arith.constant 0 : i32
    %c0_i32_0 = arith.constant 0 : i32
    %c0_i32_1 = arith.constant 0 : i32
    %c0_i32_2 = arith.constant 0 : i32
    return %c0_i32, %c0_i32_0, %c0_i32_1 : i32, i32, i32
  }
  func.func @transform_10(%arg0: i32, %arg1: i32) -> (i32, i32, i32) {
    %c0_i32 = arith.constant 0 : i32
    %c0_i32_0 = arith.constant 0 : i32
    %c0_i32_1 = arith.constant 0 : i32
    %c0_i32_2 = arith.constant 0 : i32
    return %c0_i32, %c0_i32_0, %c0_i32_1 : i32, i32, i32
  }
  func.func @transform_11(%arg0: i32, %arg1: i32) -> (i32, i32) {
    %c0_i32 = arith.constant 0 : i32
    %c0_i32_0 = arith.constant 0 : i32
    %c0_i32_1 = arith.constant 0 : i32
    return %c0_i32, %c0_i32_0 : i32, i32
  }
  func.func @transform_12(%arg0: i32, %arg1: i32) -> (i32, i32) {
    %c0_i32 = arith.constant 0 : i32
    %c0_i32_0 = arith.constant 0 : i32
    %c0_i32_1 = arith.constant 0 : i32
    return %c0_i32, %c0_i32_0 : i32, i32
  }
  func.func @transform_13(%arg0: i32, %arg1: i32) -> (i32, i32) {
    %c0_i32 = arith.constant 0 : i32
    %c0_i32_0 = arith.constant 0 : i32
    %c0_i32_1 = arith.constant 0 : i32
    return %c0_i32, %c0_i32_0 : i32, i32
  }
  func.func @transform_14(%arg0: i32, %arg1: i32) -> (i32, i32) {
    %c0_i32 = arith.constant 0 : i32
    %c0_i32_0 = arith.constant 0 : i32
    %c0_i32_1 = arith.constant 0 : i32
    return %c0_i32, %c0_i32_0 : i32, i32
  }
  func.func @transform_15(%arg0: i32, %arg1: i32) -> (i32, i32) {
    %c0_i32 = arith.constant 0 : i32
    %c0_i32_0 = arith.constant 0 : i32
    %c0_i32_1 = arith.constant 0 : i32
    return %c0_i32, %c0_i32_0 : i32, i32
  }
  func.func @transform_16(%arg0: i32, %arg1: i32) -> (i32, i32) {
    %c0_i32 = arith.constant 0 : i32
    %c0_i32_0 = arith.constant 0 : i32
    %c0_i32_1 = arith.constant 0 : i32
    return %c0_i32, %c0_i32_0 : i32, i32
  }
  func.func @transform_17(%arg0: i32, %arg1: i32) -> (i32, i32, i32) {
    %c0_i32 = arith.constant 0 : i32
    %c0_i32_0 = arith.constant 0 : i32
    return %arg0, %arg1, %c0_i32 : i32, i32, i32
  }
}

module attributes {stable_mosaic.version = 11 : i64} {
  func.func @cross_attn_ffn_kernel(%arg0: i32, %arg1: i32, %arg2: memref<1x8x32xf32, #tpu.memory_space<vmem>>, %arg3: memref<1x16x32xbf16, #tpu.memory_space<vmem>>, %arg4: memref<1x1x16xf32, #tpu.memory_space<vmem>>, %arg5: memref<1x32xf32, #tpu.memory_space<vmem>>, %arg6: memref<4x32x8xbf16, #tpu.memory_space<vmem>>, %arg7: memref<4x1x8xf32, #tpu.memory_space<vmem>>, %arg8: memref<4x32x8xbf16, #tpu.memory_space<vmem>>, %arg9: memref<4x1x8xf32, #tpu.memory_space<vmem>>, %arg10: memref<4x32x8xbf16, #tpu.memory_space<vmem>>, %arg11: memref<4x1x8xf32, #tpu.memory_space<vmem>>, %arg12: memref<4x8x32xbf16, #tpu.memory_space<vmem>>, %arg13: memref<1x32xf32, #tpu.memory_space<vmem>>, %arg14: memref<1x32xf32, #tpu.memory_space<vmem>>, %arg15: memref<32x64xbf16, #tpu.memory_space<vmem>>, %arg16: memref<1x64xf32, #tpu.memory_space<vmem>>, %arg17: memref<64x32xbf16, #tpu.memory_space<vmem>>, %arg18: memref<1x32xf32, #tpu.memory_space<vmem>>, %arg19: memref<1x8x32xf32, #tpu.memory_space<vmem>>, %arg20: memref<4x16x8xbf16, #tpu.memory_space<vmem>>, %arg21: memref<4x16x8xbf16, #tpu.memory_space<vmem>>) attributes {dimension_semantics = [#tpu.dimension_semantics<parallel>, #tpu.dimension_semantics<arbitrary>], iteration_bounds = array<i64: 2, 1>, scalar_prefetch = 0 : i64, scratch_operands = 2 : i64, tpu.core_type = #tpu.core_type<tc>, window_params = [{transform_indices = @transform_0, window_bounds = array<i64: 1, 8, 32>}, {transform_indices = @transform_1, window_bounds = array<i64: 1, 16, 32>}, {transform_indices = @transform_2, window_bounds = array<i64: 1, 1, 16>}, {pipeline_mode = #tpu.pipeline_mode<synchronous>, transform_indices = @transform_3, window_bounds = array<i64: 1, 32>}, {pipeline_mode = #tpu.pipeline_mode<synchronous>, transform_indices = @transform_4, window_bounds = array<i64: 4, 32, 8>}, {pipeline_mode = #tpu.pipeline_mode<synchronous>, transform_indices = @transform_5, window_bounds = array<i64: 4, 1, 8>}, {pipeline_mode = #tpu.pipeline_mode<synchronous>, transform_indices = @transform_6, window_bounds = array<i64: 4, 32, 8>}, {pipeline_mode = #tpu.pipeline_mode<synchronous>, transform_indices = @transform_7, window_bounds = array<i64: 4, 1, 8>}, {pipeline_mode = #tpu.pipeline_mode<synchronous>, transform_indices = @transform_8, window_bounds = array<i64: 4, 32, 8>}, {pipeline_mode = #tpu.pipeline_mode<synchronous>, transform_indices = @transform_9, window_bounds = array<i64: 4, 1, 8>}, {pipeline_mode = #tpu.pipeline_mode<synchronous>, transform_indices = @transform_10, window_bounds = array<i64: 4, 8, 32>}, {pipeline_mode = #tpu.pipeline_mode<synchronous>, transform_indices = @transform_11, window_bounds = array<i64: 1, 32>}, {pipeline_mode = #tpu.pipeline_mode<synchronous>, transform_indices = @transform_12, window_bounds = array<i64: 1, 32>}, {pipeline_mode = #tpu.pipeline_mode<synchronous>, transform_indices = @transform_13, window_bounds = array<i64: 32, 64>}, {pipeline_mode = #tpu.pipeline_mode<synchronous>, transform_indices = @transform_14, window_bounds = array<i64: 1, 64>}, {pipeline_mode = #tpu.pipeline_mode<synchronous>, transform_indices = @transform_15, window_bounds = array<i64: 64, 32>}, {pipeline_mode = #tpu.pipeline_mode<synchronous>, transform_indices = @transform_16, window_bounds = array<i64: 1, 32>}, {transform_indices = @transform_17, window_bounds = array<i64: 1, 8, 32>}]} {
    %c0_i32 = arith.constant 0 : i32
    %0 = arith.cmpi eq, %arg1, %c0_i32 : i32
    %1 = arith.extui %0 : i1 to i32
    %c0_i32_0 = arith.constant 0 : i32
    %2 = arith.cmpi ne, %1, %c0_i32_0 : i32
    scf.if %2 {
      %c0_116 = arith.constant 0 : index
      %c0_117 = arith.constant 0 : index
      %c0_118 = arith.constant 0 : index
      %194 = vector.load %arg3[%c0_116, %c0_117, %c0_118] : memref<1x16x32xbf16, #tpu.memory_space<vmem>>, vector<1x16x32xbf16>
      %195 = vector.shape_cast %194 : vector<1x16x32xbf16> to vector<16x32xbf16>
      %c0_119 = arith.constant 0 : index
      %c0_120 = arith.constant 0 : index
      %c0_121 = arith.constant 0 : index
      %196 = vector.load %arg8[%c0_119, %c0_120, %c0_121] : memref<4x32x8xbf16, #tpu.memory_space<vmem>>, vector<1x32x8xbf16>
      %197 = vector.shape_cast %196 : vector<1x32x8xbf16> to vector<32x8xbf16>
      %cst_122 = arith.constant dense<0.000000e+00> : vector<16x8xf32>
      %198 = tpu.matmul %195, %197, %cst_122 {dimension_numbers = #tpu.dot_dimension_numbers<[1], [0], [0], [1], [0, 0, 1, 1], [], []>} : vector<16x32xbf16>, vector<32x8xbf16>, vector<16x8xf32> -> vector<16x8xf32>
      %c0_123 = arith.constant 0 : index
      %c0_124 = arith.constant 0 : index
      %c0_125 = arith.constant 0 : index
      %199 = vector.load %arg9[%c0_123, %c0_124, %c0_125] : memref<4x1x8xf32, #tpu.memory_space<vmem>>, vector<1x1x8xf32>
      %200 = vector.shape_cast %199 : vector<1x1x8xf32> to vector<1x8xf32>
      %201 = vector.broadcast %200 : vector<1x8xf32> to vector<16x8xf32>
      %202 = arith.addf %198, %201 : vector<16x8xf32>
      %c0_126 = arith.constant 0 : index
      %c0_127 = arith.constant 0 : index
      %c0_128 = arith.constant 0 : index
      %203 = vector.load %arg10[%c0_126, %c0_127, %c0_128] : memref<4x32x8xbf16, #tpu.memory_space<vmem>>, vector<1x32x8xbf16>
      %204 = vector.shape_cast %203 : vector<1x32x8xbf16> to vector<32x8xbf16>
      %cst_129 = arith.constant dense<0.000000e+00> : vector<16x8xf32>
      %205 = tpu.matmul %195, %204, %cst_129 {dimension_numbers = #tpu.dot_dimension_numbers<[1], [0], [0], [1], [0, 0, 1, 1], [], []>} : vector<16x32xbf16>, vector<32x8xbf16>, vector<16x8xf32> -> vector<16x8xf32>
      %c0_130 = arith.constant 0 : index
      %c0_131 = arith.constant 0 : index
      %c0_132 = arith.constant 0 : index
      %206 = vector.load %arg11[%c0_130, %c0_131, %c0_132] : memref<4x1x8xf32, #tpu.memory_space<vmem>>, vector<1x1x8xf32>
      %207 = vector.shape_cast %206 : vector<1x1x8xf32> to vector<1x8xf32>
      %208 = vector.broadcast %207 : vector<1x8xf32> to vector<16x8xf32>
      %209 = arith.addf %205, %208 : vector<16x8xf32>
      %210 = arith.truncf %202 : vector<16x8xf32> to vector<16x8xbf16>
      %c0_133 = arith.constant 0 : index
      %c0_134 = arith.constant 0 : index
      %c0_135 = arith.constant 0 : index
      %211 = vector.load %arg20[%c0_133, %c0_134, %c0_135] : memref<4x16x8xbf16, #tpu.memory_space<vmem>>, vector<1x16x8xbf16>
      %212 = vector.shape_cast %211 : vector<1x16x8xbf16> to vector<16x8xbf16>
      %213 = vector.shape_cast %210 : vector<16x8xbf16> to vector<1x16x8xbf16>
      tpu.vector_store %arg20[%c0_133, %c0_134, %c0_135], %213 {strides = array<i32>} : memref<4x16x8xbf16, #tpu.memory_space<vmem>>, vector<1x16x8xbf16>,
      %214 = arith.truncf %209 : vector<16x8xf32> to vector<16x8xbf16>
      %c0_136 = arith.constant 0 : index
      %c0_137 = arith.constant 0 : index
      %c0_138 = arith.constant 0 : index
      %215 = vector.load %arg21[%c0_136, %c0_137, %c0_138] : memref<4x16x8xbf16, #tpu.memory_space<vmem>>, vector<1x16x8xbf16>
      %216 = vector.shape_cast %215 : vector<1x16x8xbf16> to vector<16x8xbf16>
      %217 = vector.shape_cast %214 : vector<16x8xbf16> to vector<1x16x8xbf16>
      tpu.vector_store %arg21[%c0_136, %c0_137, %c0_138], %217 {strides = array<i32>} : memref<4x16x8xbf16, #tpu.memory_space<vmem>>, vector<1x16x8xbf16>,
      %c1_139 = arith.constant 1 : index
      %c0_140 = arith.constant 0 : index
      %c0_141 = arith.constant 0 : index
      %218 = vector.load %arg8[%c1_139, %c0_140, %c0_141] : memref<4x32x8xbf16, #tpu.memory_space<vmem>>, vector<1x32x8xbf16>
      %219 = vector.shape_cast %218 : vector<1x32x8xbf16> to vector<32x8xbf16>
      %cst_142 = arith.constant dense<0.000000e+00> : vector<16x8xf32>
      %220 = tpu.matmul %195, %219, %cst_142 {dimension_numbers = #tpu.dot_dimension_numbers<[1], [0], [0], [1], [0, 0, 1, 1], [], []>} : vector<16x32xbf16>, vector<32x8xbf16>, vector<16x8xf32> -> vector<16x8xf32>
      %c1_143 = arith.constant 1 : index
      %c0_144 = arith.constant 0 : index
      %c0_145 = arith.constant 0 : index
      %221 = vector.load %arg9[%c1_143, %c0_144, %c0_145] : memref<4x1x8xf32, #tpu.memory_space<vmem>>, vector<1x1x8xf32>
      %222 = vector.shape_cast %221 : vector<1x1x8xf32> to vector<1x8xf32>
      %223 = vector.broadcast %222 : vector<1x8xf32> to vector<16x8xf32>
      %224 = arith.addf %220, %223 : vector<16x8xf32>
      %c1_146 = arith.constant 1 : index
      %c0_147 = arith.constant 0 : index
      %c0_148 = arith.constant 0 : index
      %225 = vector.load %arg10[%c1_146, %c0_147, %c0_148] : memref<4x32x8xbf16, #tpu.memory_space<vmem>>, vector<1x32x8xbf16>
      %226 = vector.shape_cast %225 : vector<1x32x8xbf16> to vector<32x8xbf16>
      %cst_149 = arith.constant dense<0.000000e+00> : vector<16x8xf32>
      %227 = tpu.matmul %195, %226, %cst_149 {dimension_numbers = #tpu.dot_dimension_numbers<[1], [0], [0], [1], [0, 0, 1, 1], [], []>} : vector<16x32xbf16>, vector<32x8xbf16>, vector<16x8xf32> -> vector<16x8xf32>
      %c1_150 = arith.constant 1 : index
      %c0_151 = arith.constant 0 : index
      %c0_152 = arith.constant 0 : index
      %228 = vector.load %arg11[%c1_150, %c0_151, %c0_152] : memref<4x1x8xf32, #tpu.memory_space<vmem>>, vector<1x1x8xf32>
      %229 = vector.shape_cast %228 : vector<1x1x8xf32> to vector<1x8xf32>
      %230 = vector.broadcast %229 : vector<1x8xf32> to vector<16x8xf32>
      %231 = arith.addf %227, %230 : vector<16x8xf32>
      %232 = arith.truncf %224 : vector<16x8xf32> to vector<16x8xbf16>
      %c1_153 = arith.constant 1 : index
      %c0_154 = arith.constant 0 : index
      %c0_155 = arith.constant 0 : index
      %233 = vector.load %arg20[%c1_153, %c0_154, %c0_155] : memref<4x16x8xbf16, #tpu.memory_space<vmem>>, vector<1x16x8xbf16>
      %234 = vector.shape_cast %233 : vector<1x16x8xbf16> to vector<16x8xbf16>
      %235 = vector.shape_cast %232 : vector<16x8xbf16> to vector<1x16x8xbf16>
      tpu.vector_store %arg20[%c1_153, %c0_154, %c0_155], %235 {strides = array<i32>} : memref<4x16x8xbf16, #tpu.memory_space<vmem>>, vector<1x16x8xbf16>,
      %236 = arith.truncf %231 : vector<16x8xf32> to vector<16x8xbf16>
      %c1_156 = arith.constant 1 : index
      %c0_157 = arith.constant 0 : index
      %c0_158 = arith.constant 0 : index
      %237 = vector.load %arg21[%c1_156, %c0_157, %c0_158] : memref<4x16x8xbf16, #tpu.memory_space<vmem>>, vector<1x16x8xbf16>
      %238 = vector.shape_cast %237 : vector<1x16x8xbf16> to vector<16x8xbf16>
      %239 = vector.shape_cast %236 : vector<16x8xbf16> to vector<1x16x8xbf16>
      tpu.vector_store %arg21[%c1_156, %c0_157, %c0_158], %239 {strides = array<i32>} : memref<4x16x8xbf16, #tpu.memory_space<vmem>>, vector<1x16x8xbf16>,
      %c2_159 = arith.constant 2 : index
      %c0_160 = arith.constant 0 : index
      %c0_161 = arith.constant 0 : index
      %240 = vector.load %arg8[%c2_159, %c0_160, %c0_161] : memref<4x32x8xbf16, #tpu.memory_space<vmem>>, vector<1x32x8xbf16>
      %241 = vector.shape_cast %240 : vector<1x32x8xbf16> to vector<32x8xbf16>
      %cst_162 = arith.constant dense<0.000000e+00> : vector<16x8xf32>
      %242 = tpu.matmul %195, %241, %cst_162 {dimension_numbers = #tpu.dot_dimension_numbers<[1], [0], [0], [1], [0, 0, 1, 1], [], []>} : vector<16x32xbf16>, vector<32x8xbf16>, vector<16x8xf32> -> vector<16x8xf32>
      %c2_163 = arith.constant 2 : index
      %c0_164 = arith.constant 0 : index
      %c0_165 = arith.constant 0 : index
      %243 = vector.load %arg9[%c2_163, %c0_164, %c0_165] : memref<4x1x8xf32, #tpu.memory_space<vmem>>, vector<1x1x8xf32>
      %244 = vector.shape_cast %243 : vector<1x1x8xf32> to vector<1x8xf32>
      %245 = vector.broadcast %244 : vector<1x8xf32> to vector<16x8xf32>
      %246 = arith.addf %242, %245 : vector<16x8xf32>
      %c2_166 = arith.constant 2 : index
      %c0_167 = arith.constant 0 : index
      %c0_168 = arith.constant 0 : index
      %247 = vector.load %arg10[%c2_166, %c0_167, %c0_168] : memref<4x32x8xbf16, #tpu.memory_space<vmem>>, vector<1x32x8xbf16>
      %248 = vector.shape_cast %247 : vector<1x32x8xbf16> to vector<32x8xbf16>
      %cst_169 = arith.constant dense<0.000000e+00> : vector<16x8xf32>
      %249 = tpu.matmul %195, %248, %cst_169 {dimension_numbers = #tpu.dot_dimension_numbers<[1], [0], [0], [1], [0, 0, 1, 1], [], []>} : vector<16x32xbf16>, vector<32x8xbf16>, vector<16x8xf32> -> vector<16x8xf32>
      %c2_170 = arith.constant 2 : index
      %c0_171 = arith.constant 0 : index
      %c0_172 = arith.constant 0 : index
      %250 = vector.load %arg11[%c2_170, %c0_171, %c0_172] : memref<4x1x8xf32, #tpu.memory_space<vmem>>, vector<1x1x8xf32>
      %251 = vector.shape_cast %250 : vector<1x1x8xf32> to vector<1x8xf32>
      %252 = vector.broadcast %251 : vector<1x8xf32> to vector<16x8xf32>
      %253 = arith.addf %249, %252 : vector<16x8xf32>
      %254 = arith.truncf %246 : vector<16x8xf32> to vector<16x8xbf16>
      %c2_173 = arith.constant 2 : index
      %c0_174 = arith.constant 0 : index
      %c0_175 = arith.constant 0 : index
      %255 = vector.load %arg20[%c2_173, %c0_174, %c0_175] : memref<4x16x8xbf16, #tpu.memory_space<vmem>>, vector<1x16x8xbf16>
      %256 = vector.shape_cast %255 : vector<1x16x8xbf16> to vector<16x8xbf16>
      %257 = vector.shape_cast %254 : vector<16x8xbf16> to vector<1x16x8xbf16>
      tpu.vector_store %arg20[%c2_173, %c0_174, %c0_175], %257 {strides = array<i32>} : memref<4x16x8xbf16, #tpu.memory_space<vmem>>, vector<1x16x8xbf16>,
      %258 = arith.truncf %253 : vector<16x8xf32> to vector<16x8xbf16>
      %c2_176 = arith.constant 2 : index
      %c0_177 = arith.constant 0 : index
      %c0_178 = arith.constant 0 : index
      %259 = vector.load %arg21[%c2_176, %c0_177, %c0_178] : memref<4x16x8xbf16, #tpu.memory_space<vmem>>, vector<1x16x8xbf16>
      %260 = vector.shape_cast %259 : vector<1x16x8xbf16> to vector<16x8xbf16>
      %261 = vector.shape_cast %258 : vector<16x8xbf16> to vector<1x16x8xbf16>
      tpu.vector_store %arg21[%c2_176, %c0_177, %c0_178], %261 {strides = array<i32>} : memref<4x16x8xbf16, #tpu.memory_space<vmem>>, vector<1x16x8xbf16>,
      %c3_179 = arith.constant 3 : index
      %c0_180 = arith.constant 0 : index
      %c0_181 = arith.constant 0 : index
      %262 = vector.load %arg8[%c3_179, %c0_180, %c0_181] : memref<4x32x8xbf16, #tpu.memory_space<vmem>>, vector<1x32x8xbf16>
      %263 = vector.shape_cast %262 : vector<1x32x8xbf16> to vector<32x8xbf16>
      %cst_182 = arith.constant dense<0.000000e+00> : vector<16x8xf32>
      %264 = tpu.matmul %195, %263, %cst_182 {dimension_numbers = #tpu.dot_dimension_numbers<[1], [0], [0], [1], [0, 0, 1, 1], [], []>} : vector<16x32xbf16>, vector<32x8xbf16>, vector<16x8xf32> -> vector<16x8xf32>
      %c3_183 = arith.constant 3 : index
      %c0_184 = arith.constant 0 : index
      %c0_185 = arith.constant 0 : index
      %265 = vector.load %arg9[%c3_183, %c0_184, %c0_185] : memref<4x1x8xf32, #tpu.memory_space<vmem>>, vector<1x1x8xf32>
      %266 = vector.shape_cast %265 : vector<1x1x8xf32> to vector<1x8xf32>
      %267 = vector.broadcast %266 : vector<1x8xf32> to vector<16x8xf32>
      %268 = arith.addf %264, %267 : vector<16x8xf32>
      %c3_186 = arith.constant 3 : index
      %c0_187 = arith.constant 0 : index
      %c0_188 = arith.constant 0 : index
      %269 = vector.load %arg10[%c3_186, %c0_187, %c0_188] : memref<4x32x8xbf16, #tpu.memory_space<vmem>>, vector<1x32x8xbf16>
      %270 = vector.shape_cast %269 : vector<1x32x8xbf16> to vector<32x8xbf16>
      %cst_189 = arith.constant dense<0.000000e+00> : vector<16x8xf32>
      %271 = tpu.matmul %195, %270, %cst_189 {dimension_numbers = #tpu.dot_dimension_numbers<[1], [0], [0], [1], [0, 0, 1, 1], [], []>} : vector<16x32xbf16>, vector<32x8xbf16>, vector<16x8xf32> -> vector<16x8xf32>
      %c3_190 = arith.constant 3 : index
      %c0_191 = arith.constant 0 : index
      %c0_192 = arith.constant 0 : index
      %272 = vector.load %arg11[%c3_190, %c0_191, %c0_192] : memref<4x1x8xf32, #tpu.memory_space<vmem>>, vector<1x1x8xf32>
      %273 = vector.shape_cast %272 : vector<1x1x8xf32> to vector<1x8xf32>
      %274 = vector.broadcast %273 : vector<1x8xf32> to vector<16x8xf32>
      %275 = arith.addf %271, %274 : vector<16x8xf32>
      %276 = arith.truncf %268 : vector<16x8xf32> to vector<16x8xbf16>
      %c3_193 = arith.constant 3 : index
      %c0_194 = arith.constant 0 : index
      %c0_195 = arith.constant 0 : index
      %277 = vector.load %arg20[%c3_193, %c0_194, %c0_195] : memref<4x16x8xbf16, #tpu.memory_space<vmem>>, vector<1x16x8xbf16>
      %278 = vector.shape_cast %277 : vector<1x16x8xbf16> to vector<16x8xbf16>
      %279 = vector.shape_cast %276 : vector<16x8xbf16> to vector<1x16x8xbf16>
      tpu.vector_store %arg20[%c3_193, %c0_194, %c0_195], %279 {strides = array<i32>} : memref<4x16x8xbf16, #tpu.memory_space<vmem>>, vector<1x16x8xbf16>,
      %280 = arith.truncf %275 : vector<16x8xf32> to vector<16x8xbf16>
      %c3_196 = arith.constant 3 : index
      %c0_197 = arith.constant 0 : index
      %c0_198 = arith.constant 0 : index
      %281 = vector.load %arg21[%c3_196, %c0_197, %c0_198] : memref<4x16x8xbf16, #tpu.memory_space<vmem>>, vector<1x16x8xbf16>
      %282 = vector.shape_cast %281 : vector<1x16x8xbf16> to vector<16x8xbf16>
      %283 = vector.shape_cast %280 : vector<16x8xbf16> to vector<1x16x8xbf16>
      tpu.vector_store %arg21[%c3_196, %c0_197, %c0_198], %283 {strides = array<i32>} : memref<4x16x8xbf16, #tpu.memory_space<vmem>>, vector<1x16x8xbf16>,
    } else {
    }
    %c0 = arith.constant 0 : index
    %c0_1 = arith.constant 0 : index
    %c0_2 = arith.constant 0 : index
    %3 = vector.load %arg2[%c0, %c0_1, %c0_2] : memref<1x8x32xf32, #tpu.memory_space<vmem>>, vector<1x8x32xf32>
    %4 = vector.shape_cast %3 : vector<1x8x32xf32> to vector<8x32xf32>
    %c0_3 = arith.constant 0 : index
    %c0_4 = arith.constant 0 : index
    %c0_5 = arith.constant 0 : index
    %5 = vector.load %arg4[%c0_3, %c0_4, %c0_5] : memref<1x1x16xf32, #tpu.memory_space<vmem>>, vector<1x1x16xf32>
    %6 = vector.shape_cast %5 : vector<1x1x16xf32> to vector<1x16xf32>
    %c0_6 = arith.constant 0 : index
    %c0_7 = arith.constant 0 : index
    %7 = vector.load %arg5[%c0_6, %c0_7] : memref<1x32xf32, #tpu.memory_space<vmem>>, vector<1x32xf32>
    %8 = arith.mulf %4, %4 : vector<8x32xf32>
    %cst = arith.constant dense<0.000000e+00> : vector<8xf32>
    %9 = vector.multi_reduction <add>, %8, %cst [1] : vector<8x32xf32> to vector<8xf32>
    %10 = vector.shape_cast %9 : vector<8xf32> to vector<8x1xf32>
    %cst_8 = arith.constant 3.200000e+01 : f32
    %11 = vector.broadcast %cst_8 : f32 to vector<8x1xf32>
    %12 = arith.divf %10, %11 : vector<8x1xf32>
    %cst_9 = arith.constant 1.1920929E-7 : f32
    %13 = vector.broadcast %cst_9 : f32 to vector<8x1xf32>
    %14 = arith.addf %12, %13 : vector<8x1xf32>
    %15 = math.rsqrt %14 : vector<8x1xf32>
    %16 = vector.broadcast %15 : vector<8x1xf32> to vector<8x32xf32>
    %17 = arith.mulf %4, %16 : vector<8x32xf32>
    %18 = vector.broadcast %7 : vector<1x32xf32> to vector<8x32xf32>
    %19 = arith.mulf %17, %18 : vector<8x32xf32>
    %20 = arith.truncf %19 : vector<8x32xf32> to vector<8x32xbf16>
    %cst_10 = arith.constant 0.000000e+00 : f32
    %21 = vector.broadcast %cst_10 : f32 to vector<1x16xf32>
    %22 = arith.cmpf ogt, %6, %21 : vector<1x16xf32>
    %cst_11 = arith.constant 0.000000e+00 : f32
    %cst_12 = arith.constant -1.000000e+30 : f32
    %23 = vector.broadcast %cst_11 : f32 to vector<1x16xf32>
    %24 = vector.broadcast %cst_12 : f32 to vector<1x16xf32>
    %25 = arith.select %22, %23, %24 : vector<1x16xi1>, vector<1x16xf32>
    %cst_13 = arith.constant 0.000000e+00 : f32
    %26 = vector.broadcast %cst_13 : f32 to vector<8x32xf32>
    %c0_14 = arith.constant 0 : index
    %c0_15 = arith.constant 0 : index
    %c0_16 = arith.constant 0 : index
    %27 = vector.load %arg6[%c0_14, %c0_15, %c0_16] : memref<4x32x8xbf16, #tpu.memory_space<vmem>>, vector<1x32x8xbf16>
    %28 = vector.shape_cast %27 : vector<1x32x8xbf16> to vector<32x8xbf16>
    %cst_17 = arith.constant dense<0.000000e+00> : vector<8x8xf32>
    %29 = tpu.matmul %20, %28, %cst_17 {dimension_numbers = #tpu.dot_dimension_numbers<[1], [0], [0], [1], [0, 0, 1, 1], [], []>} : vector<8x32xbf16>, vector<32x8xbf16>, vector<8x8xf32> -> vector<8x8xf32>
    %c0_18 = arith.constant 0 : index
    %c0_19 = arith.constant 0 : index
    %c0_20 = arith.constant 0 : index
    %30 = vector.load %arg7[%c0_18, %c0_19, %c0_20] : memref<4x1x8xf32, #tpu.memory_space<vmem>>, vector<1x1x8xf32>
    %31 = vector.shape_cast %30 : vector<1x1x8xf32> to vector<1x8xf32>
    %32 = vector.broadcast %31 : vector<1x8xf32> to vector<8x8xf32>
    %33 = arith.addf %29, %32 : vector<8x8xf32>
    %c0_21 = arith.constant 0 : index
    %c0_22 = arith.constant 0 : index
    %c0_23 = arith.constant 0 : index
    %34 = vector.load %arg20[%c0_21, %c0_22, %c0_23] : memref<4x16x8xbf16, #tpu.memory_space<vmem>>, vector<1x16x8xbf16>
    %35 = vector.shape_cast %34 : vector<1x16x8xbf16> to vector<16x8xbf16>
    %c0_24 = arith.constant 0 : index
    %c0_25 = arith.constant 0 : index
    %c0_26 = arith.constant 0 : index
    %36 = vector.load %arg21[%c0_24, %c0_25, %c0_26] : memref<4x16x8xbf16, #tpu.memory_space<vmem>>, vector<1x16x8xbf16>
    %37 = vector.shape_cast %36 : vector<1x16x8xbf16> to vector<16x8xbf16>
    %38 = arith.truncf %33 : vector<8x8xf32> to vector<8x8xbf16>
    "tpu.trace_start"() <{level = 10 : i32, message = "le,se->ls"}> : () -> ()
    %cst_27 = arith.constant dense<0.000000e+00> : vector<8x16xf32>
    %39 = tpu.matmul %38, %35, %cst_27 {dimension_numbers = #tpu.dot_dimension_numbers<[1], [1], [0], [0], [0, 0, 1, 0], [], []>} : vector<8x8xbf16>, vector<16x8xbf16>, vector<8x16xf32> -> vector<8x16xf32>
    "tpu.trace_stop"() : () -> ()
    %40 = vector.broadcast %25 : vector<1x16xf32> to vector<8x16xf32>
    %41 = arith.addf %39, %40 : vector<8x16xf32>
    %cst_28 = arith.constant dense<0xFF800000> : vector<8xf32>
    %42 = vector.multi_reduction <maximumf>, %41, %cst_28 [1] : vector<8x16xf32> to vector<8xf32>
    %43 = vector.shape_cast %42 : vector<8xf32> to vector<8x1xf32>
    %44 = vector.broadcast %43 : vector<8x1xf32> to vector<8x16xf32>
    %45 = arith.subf %41, %44 : vector<8x16xf32>
    %46 = math.exp %45 : vector<8x16xf32>
    %cst_29 = arith.constant dense<0.000000e+00> : vector<8xf32>
    %47 = vector.multi_reduction <add>, %46, %cst_29 [1] : vector<8x16xf32> to vector<8xf32>
    %48 = vector.shape_cast %47 : vector<8xf32> to vector<8x1xf32>
    %49 = tpu.reciprocal %48 {approx = true} : vector<8x1xf32> -> vector<8x1xf32>
    %50 = vector.broadcast %49 : vector<8x1xf32> to vector<8x16xf32>
    %51 = arith.mulf %46, %50 : vector<8x16xf32>
    %52 = arith.truncf %51 : vector<8x16xf32> to vector<8x16xbf16>
    %cst_30 = arith.constant dense<0.000000e+00> : vector<8x8xf32>
    %53 = tpu.matmul %52, %37, %cst_30 {dimension_numbers = #tpu.dot_dimension_numbers<[1], [0], [0], [1], [0, 0, 1, 1], [], []>} : vector<8x16xbf16>, vector<16x8xbf16>, vector<8x8xf32> -> vector<8x8xf32>
    %54 = arith.truncf %53 : vector<8x8xf32> to vector<8x8xbf16>
    %c0_31 = arith.constant 0 : index
    %c0_32 = arith.constant 0 : index
    %c0_33 = arith.constant 0 : index
    %55 = vector.load %arg12[%c0_31, %c0_32, %c0_33] : memref<4x8x32xbf16, #tpu.memory_space<vmem>>, vector<1x8x32xbf16>
    %56 = vector.shape_cast %55 : vector<1x8x32xbf16> to vector<8x32xbf16>
    %cst_34 = arith.constant dense<0.000000e+00> : vector<8x32xf32>
    %57 = tpu.matmul %54, %56, %cst_34 {dimension_numbers = #tpu.dot_dimension_numbers<[1], [0], [0], [1], [0, 0, 1, 1], [], []>} : vector<8x8xbf16>, vector<8x32xbf16>, vector<8x32xf32> -> vector<8x32xf32>
    %58 = arith.addf %26, %57 : vector<8x32xf32>
    %c1 = arith.constant 1 : index
    %c0_35 = arith.constant 0 : index
    %c0_36 = arith.constant 0 : index
    %59 = vector.load %arg6[%c1, %c0_35, %c0_36] : memref<4x32x8xbf16, #tpu.memory_space<vmem>>, vector<1x32x8xbf16>
    %60 = vector.shape_cast %59 : vector<1x32x8xbf16> to vector<32x8xbf16>
    %cst_37 = arith.constant dense<0.000000e+00> : vector<8x8xf32>
    %61 = tpu.matmul %20, %60, %cst_37 {dimension_numbers = #tpu.dot_dimension_numbers<[1], [0], [0], [1], [0, 0, 1, 1], [], []>} : vector<8x32xbf16>, vector<32x8xbf16>, vector<8x8xf32> -> vector<8x8xf32>
    %c1_38 = arith.constant 1 : index
    %c0_39 = arith.constant 0 : index
    %c0_40 = arith.constant 0 : index
    %62 = vector.load %arg7[%c1_38, %c0_39, %c0_40] : memref<4x1x8xf32, #tpu.memory_space<vmem>>, vector<1x1x8xf32>
    %63 = vector.shape_cast %62 : vector<1x1x8xf32> to vector<1x8xf32>
    %64 = vector.broadcast %63 : vector<1x8xf32> to vector<8x8xf32>
    %65 = arith.addf %61, %64 : vector<8x8xf32>
    %c1_41 = arith.constant 1 : index
    %c0_42 = arith.constant 0 : index
    %c0_43 = arith.constant 0 : index
    %66 = vector.load %arg20[%c1_41, %c0_42, %c0_43] : memref<4x16x8xbf16, #tpu.memory_space<vmem>>, vector<1x16x8xbf16>
    %67 = vector.shape_cast %66 : vector<1x16x8xbf16> to vector<16x8xbf16>
    %c1_44 = arith.constant 1 : index
    %c0_45 = arith.constant 0 : index
    %c0_46 = arith.constant 0 : index
    %68 = vector.load %arg21[%c1_44, %c0_45, %c0_46] : memref<4x16x8xbf16, #tpu.memory_space<vmem>>, vector<1x16x8xbf16>
    %69 = vector.shape_cast %68 : vector<1x16x8xbf16> to vector<16x8xbf16>
    %70 = arith.truncf %65 : vector<8x8xf32> to vector<8x8xbf16>
    "tpu.trace_start"() <{level = 10 : i32, message = "le,se->ls"}> : () -> ()
    %cst_47 = arith.constant dense<0.000000e+00> : vector<8x16xf32>
    %71 = tpu.matmul %70, %67, %cst_47 {dimension_numbers = #tpu.dot_dimension_numbers<[1], [1], [0], [0], [0, 0, 1, 0], [], []>} : vector<8x8xbf16>, vector<16x8xbf16>, vector<8x16xf32> -> vector<8x16xf32>
    "tpu.trace_stop"() : () -> ()
    %72 = vector.broadcast %25 : vector<1x16xf32> to vector<8x16xf32>
    %73 = arith.addf %71, %72 : vector<8x16xf32>
    %cst_48 = arith.constant dense<0xFF800000> : vector<8xf32>
    %74 = vector.multi_reduction <maximumf>, %73, %cst_48 [1] : vector<8x16xf32> to vector<8xf32>
    %75 = vector.shape_cast %74 : vector<8xf32> to vector<8x1xf32>
    %76 = vector.broadcast %75 : vector<8x1xf32> to vector<8x16xf32>
    %77 = arith.subf %73, %76 : vector<8x16xf32>
    %78 = math.exp %77 : vector<8x16xf32>
    %cst_49 = arith.constant dense<0.000000e+00> : vector<8xf32>
    %79 = vector.multi_reduction <add>, %78, %cst_49 [1] : vector<8x16xf32> to vector<8xf32>
    %80 = vector.shape_cast %79 : vector<8xf32> to vector<8x1xf32>
    %81 = tpu.reciprocal %80 {approx = true} : vector<8x1xf32> -> vector<8x1xf32>
    %82 = vector.broadcast %81 : vector<8x1xf32> to vector<8x16xf32>
    %83 = arith.mulf %78, %82 : vector<8x16xf32>
    %84 = arith.truncf %83 : vector<8x16xf32> to vector<8x16xbf16>
    %cst_50 = arith.constant dense<0.000000e+00> : vector<8x8xf32>
    %85 = tpu.matmul %84, %69, %cst_50 {dimension_numbers = #tpu.dot_dimension_numbers<[1], [0], [0], [1], [0, 0, 1, 1], [], []>} : vector<8x16xbf16>, vector<16x8xbf16>, vector<8x8xf32> -> vector<8x8xf32>
    %86 = arith.truncf %85 : vector<8x8xf32> to vector<8x8xbf16>
    %c1_51 = arith.constant 1 : index
    %c0_52 = arith.constant 0 : index
    %c0_53 = arith.constant 0 : index
    %87 = vector.load %arg12[%c1_51, %c0_52, %c0_53] : memref<4x8x32xbf16, #tpu.memory_space<vmem>>, vector<1x8x32xbf16>
    %88 = vector.shape_cast %87 : vector<1x8x32xbf16> to vector<8x32xbf16>
    %cst_54 = arith.constant dense<0.000000e+00> : vector<8x32xf32>
    %89 = tpu.matmul %86, %88, %cst_54 {dimension_numbers = #tpu.dot_dimension_numbers<[1], [0], [0], [1], [0, 0, 1, 1], [], []>} : vector<8x8xbf16>, vector<8x32xbf16>, vector<8x32xf32> -> vector<8x32xf32>
    %90 = arith.addf %58, %89 : vector<8x32xf32>
    %c2 = arith.constant 2 : index
    %c0_55 = arith.constant 0 : index
    %c0_56 = arith.constant 0 : index
    %91 = vector.load %arg6[%c2, %c0_55, %c0_56] : memref<4x32x8xbf16, #tpu.memory_space<vmem>>, vector<1x32x8xbf16>
    %92 = vector.shape_cast %91 : vector<1x32x8xbf16> to vector<32x8xbf16>
    %cst_57 = arith.constant dense<0.000000e+00> : vector<8x8xf32>
    %93 = tpu.matmul %20, %92, %cst_57 {dimension_numbers = #tpu.dot_dimension_numbers<[1], [0], [0], [1], [0, 0, 1, 1], [], []>} : vector<8x32xbf16>, vector<32x8xbf16>, vector<8x8xf32> -> vector<8x8xf32>
    %c2_58 = arith.constant 2 : index
    %c0_59 = arith.constant 0 : index
    %c0_60 = arith.constant 0 : index
    %94 = vector.load %arg7[%c2_58, %c0_59, %c0_60] : memref<4x1x8xf32, #tpu.memory_space<vmem>>, vector<1x1x8xf32>
    %95 = vector.shape_cast %94 : vector<1x1x8xf32> to vector<1x8xf32>
    %96 = vector.broadcast %95 : vector<1x8xf32> to vector<8x8xf32>
    %97 = arith.addf %93, %96 : vector<8x8xf32>
    %c2_61 = arith.constant 2 : index
    %c0_62 = arith.constant 0 : index
    %c0_63 = arith.constant 0 : index
    %98 = vector.load %arg20[%c2_61, %c0_62, %c0_63] : memref<4x16x8xbf16, #tpu.memory_space<vmem>>, vector<1x16x8xbf16>
    %99 = vector.shape_cast %98 : vector<1x16x8xbf16> to vector<16x8xbf16>
    %c2_64 = arith.constant 2 : index
    %c0_65 = arith.constant 0 : index
    %c0_66 = arith.constant 0 : index
    %100 = vector.load %arg21[%c2_64, %c0_65, %c0_66] : memref<4x16x8xbf16, #tpu.memory_space<vmem>>, vector<1x16x8xbf16>
    %101 = vector.shape_cast %100 : vector<1x16x8xbf16> to vector<16x8xbf16>
    %102 = arith.truncf %97 : vector<8x8xf32> to vector<8x8xbf16>
    "tpu.trace_start"() <{level = 10 : i32, message = "le,se->ls"}> : () -> ()
    %cst_67 = arith.constant dense<0.000000e+00> : vector<8x16xf32>
    %103 = tpu.matmul %102, %99, %cst_67 {dimension_numbers = #tpu.dot_dimension_numbers<[1], [1], [0], [0], [0, 0, 1, 0], [], []>} : vector<8x8xbf16>, vector<16x8xbf16>, vector<8x16xf32> -> vector<8x16xf32>
    "tpu.trace_stop"() : () -> ()
    %104 = vector.broadcast %25 : vector<1x16xf32> to vector<8x16xf32>
    %105 = arith.addf %103, %104 : vector<8x16xf32>
    %cst_68 = arith.constant dense<0xFF800000> : vector<8xf32>
    %106 = vector.multi_reduction <maximumf>, %105, %cst_68 [1] : vector<8x16xf32> to vector<8xf32>
    %107 = vector.shape_cast %106 : vector<8xf32> to vector<8x1xf32>
    %108 = vector.broadcast %107 : vector<8x1xf32> to vector<8x16xf32>
    %109 = arith.subf %105, %108 : vector<8x16xf32>
    %110 = math.exp %109 : vector<8x16xf32>
    %cst_69 = arith.constant dense<0.000000e+00> : vector<8xf32>
    %111 = vector.multi_reduction <add>, %110, %cst_69 [1] : vector<8x16xf32> to vector<8xf32>
    %112 = vector.shape_cast %111 : vector<8xf32> to vector<8x1xf32>
    %113 = tpu.reciprocal %112 {approx = true} : vector<8x1xf32> -> vector<8x1xf32>
    %114 = vector.broadcast %113 : vector<8x1xf32> to vector<8x16xf32>
    %115 = arith.mulf %110, %114 : vector<8x16xf32>
    %116 = arith.truncf %115 : vector<8x16xf32> to vector<8x16xbf16>
    %cst_70 = arith.constant dense<0.000000e+00> : vector<8x8xf32>
    %117 = tpu.matmul %116, %101, %cst_70 {dimension_numbers = #tpu.dot_dimension_numbers<[1], [0], [0], [1], [0, 0, 1, 1], [], []>} : vector<8x16xbf16>, vector<16x8xbf16>, vector<8x8xf32> -> vector<8x8xf32>
    %118 = arith.truncf %117 : vector<8x8xf32> to vector<8x8xbf16>
    %c2_71 = arith.constant 2 : index
    %c0_72 = arith.constant 0 : index
    %c0_73 = arith.constant 0 : index
    %119 = vector.load %arg12[%c2_71, %c0_72, %c0_73] : memref<4x8x32xbf16, #tpu.memory_space<vmem>>, vector<1x8x32xbf16>
    %120 = vector.shape_cast %119 : vector<1x8x32xbf16> to vector<8x32xbf16>
    %cst_74 = arith.constant dense<0.000000e+00> : vector<8x32xf32>
    %121 = tpu.matmul %118, %120, %cst_74 {dimension_numbers = #tpu.dot_dimension_numbers<[1], [0], [0], [1], [0, 0, 1, 1], [], []>} : vector<8x8xbf16>, vector<8x32xbf16>, vector<8x32xf32> -> vector<8x32xf32>
    %122 = arith.addf %90, %121 : vector<8x32xf32>
    %c3 = arith.constant 3 : index
    %c0_75 = arith.constant 0 : index
    %c0_76 = arith.constant 0 : index
    %123 = vector.load %arg6[%c3, %c0_75, %c0_76] : memref<4x32x8xbf16, #tpu.memory_space<vmem>>, vector<1x32x8xbf16>
    %124 = vector.shape_cast %123 : vector<1x32x8xbf16> to vector<32x8xbf16>
    %cst_77 = arith.constant dense<0.000000e+00> : vector<8x8xf32>
    %125 = tpu.matmul %20, %124, %cst_77 {dimension_numbers = #tpu.dot_dimension_numbers<[1], [0], [0], [1], [0, 0, 1, 1], [], []>} : vector<8x32xbf16>, vector<32x8xbf16>, vector<8x8xf32> -> vector<8x8xf32>
    %c3_78 = arith.constant 3 : index
    %c0_79 = arith.constant 0 : index
    %c0_80 = arith.constant 0 : index
    %126 = vector.load %arg7[%c3_78, %c0_79, %c0_80] : memref<4x1x8xf32, #tpu.memory_space<vmem>>, vector<1x1x8xf32>
    %127 = vector.shape_cast %126 : vector<1x1x8xf32> to vector<1x8xf32>
    %128 = vector.broadcast %127 : vector<1x8xf32> to vector<8x8xf32>
    %129 = arith.addf %125, %128 : vector<8x8xf32>
    %c3_81 = arith.constant 3 : index
    %c0_82 = arith.constant 0 : index
    %c0_83 = arith.constant 0 : index
    %130 = vector.load %arg20[%c3_81, %c0_82, %c0_83] : memref<4x16x8xbf16, #tpu.memory_space<vmem>>, vector<1x16x8xbf16>
    %131 = vector.shape_cast %130 : vector<1x16x8xbf16> to vector<16x8xbf16>
    %c3_84 = arith.constant 3 : index
    %c0_85 = arith.constant 0 : index
    %c0_86 = arith.constant 0 : index
    %132 = vector.load %arg21[%c3_84, %c0_85, %c0_86] : memref<4x16x8xbf16, #tpu.memory_space<vmem>>, vector<1x16x8xbf16>
    %133 = vector.shape_cast %132 : vector<1x16x8xbf16> to vector<16x8xbf16>
    %134 = arith.truncf %129 : vector<8x8xf32> to vector<8x8xbf16>
    "tpu.trace_start"() <{level = 10 : i32, message = "le,se->ls"}> : () -> ()
    %cst_87 = arith.constant dense<0.000000e+00> : vector<8x16xf32>
    %135 = tpu.matmul %134, %131, %cst_87 {dimension_numbers = #tpu.dot_dimension_numbers<[1], [1], [0], [0], [0, 0, 1, 0], [], []>} : vector<8x8xbf16>, vector<16x8xbf16>, vector<8x16xf32> -> vector<8x16xf32>
    "tpu.trace_stop"() : () -> ()
    %136 = vector.broadcast %25 : vector<1x16xf32> to vector<8x16xf32>
    %137 = arith.addf %135, %136 : vector<8x16xf32>
    %cst_88 = arith.constant dense<0xFF800000> : vector<8xf32>
    %138 = vector.multi_reduction <maximumf>, %137, %cst_88 [1] : vector<8x16xf32> to vector<8xf32>
    %139 = vector.shape_cast %138 : vector<8xf32> to vector<8x1xf32>
    %140 = vector.broadcast %139 : vector<8x1xf32> to vector<8x16xf32>
    %141 = arith.subf %137, %140 : vector<8x16xf32>
    %142 = math.exp %141 : vector<8x16xf32>
    %cst_89 = arith.constant dense<0.000000e+00> : vector<8xf32>
    %143 = vector.multi_reduction <add>, %142, %cst_89 [1] : vector<8x16xf32> to vector<8xf32>
    %144 = vector.shape_cast %143 : vector<8xf32> to vector<8x1xf32>
    %145 = tpu.reciprocal %144 {approx = true} : vector<8x1xf32> -> vector<8x1xf32>
    %146 = vector.broadcast %145 : vector<8x1xf32> to vector<8x16xf32>
    %147 = arith.mulf %142, %146 : vector<8x16xf32>
    %148 = arith.truncf %147 : vector<8x16xf32> to vector<8x16xbf16>
    %cst_90 = arith.constant dense<0.000000e+00> : vector<8x8xf32>
    %149 = tpu.matmul %148, %133, %cst_90 {dimension_numbers = #tpu.dot_dimension_numbers<[1], [0], [0], [1], [0, 0, 1, 1], [], []>} : vector<8x16xbf16>, vector<16x8xbf16>, vector<8x8xf32> -> vector<8x8xf32>
    %150 = arith.truncf %149 : vector<8x8xf32> to vector<8x8xbf16>
    %c3_91 = arith.constant 3 : index
    %c0_92 = arith.constant 0 : index
    %c0_93 = arith.constant 0 : index
    %151 = vector.load %arg12[%c3_91, %c0_92, %c0_93] : memref<4x8x32xbf16, #tpu.memory_space<vmem>>, vector<1x8x32xbf16>
    %152 = vector.shape_cast %151 : vector<1x8x32xbf16> to vector<8x32xbf16>
    %cst_94 = arith.constant dense<0.000000e+00> : vector<8x32xf32>
    %153 = tpu.matmul %150, %152, %cst_94 {dimension_numbers = #tpu.dot_dimension_numbers<[1], [0], [0], [1], [0, 0, 1, 1], [], []>} : vector<8x8xbf16>, vector<8x32xbf16>, vector<8x32xf32> -> vector<8x32xf32>
    %154 = arith.addf %122, %153 : vector<8x32xf32>
    %c0_95 = arith.constant 0 : index
    %c0_96 = arith.constant 0 : index
    %155 = vector.load %arg13[%c0_95, %c0_96] : memref<1x32xf32, #tpu.memory_space<vmem>>, vector<1x32xf32>
    %156 = vector.broadcast %155 : vector<1x32xf32> to vector<8x32xf32>
    %157 = arith.addf %154, %156 : vector<8x32xf32>
    %158 = arith.addf %157, %19 : vector<8x32xf32>
    %c0_97 = arith.constant 0 : index
    %c0_98 = arith.constant 0 : index
    %159 = vector.load %arg14[%c0_97, %c0_98] : memref<1x32xf32, #tpu.memory_space<vmem>>, vector<1x32xf32>
    %160 = arith.mulf %158, %158 : vector<8x32xf32>
    %cst_99 = arith.constant dense<0.000000e+00> : vector<8xf32>
    %161 = vector.multi_reduction <add>, %160, %cst_99 [1] : vector<8x32xf32> to vector<8xf32>
    %162 = vector.shape_cast %161 : vector<8xf32> to vector<8x1xf32>
    %cst_100 = arith.constant 3.200000e+01 : f32
    %163 = vector.broadcast %cst_100 : f32 to vector<8x1xf32>
    %164 = arith.divf %162, %163 : vector<8x1xf32>
    %cst_101 = arith.constant 1.1920929E-7 : f32
    %165 = vector.broadcast %cst_101 : f32 to vector<8x1xf32>
    %166 = arith.addf %164, %165 : vector<8x1xf32>
    %167 = math.rsqrt %166 : vector<8x1xf32>
    %168 = vector.broadcast %167 : vector<8x1xf32> to vector<8x32xf32>
    %169 = arith.mulf %158, %168 : vector<8x32xf32>
    %170 = vector.broadcast %159 : vector<1x32xf32> to vector<8x32xf32>
    %171 = arith.mulf %169, %170 : vector<8x32xf32>
    %172 = arith.truncf %171 : vector<8x32xf32> to vector<8x32xbf16>
    %c0_102 = arith.constant 0 : index
    %c0_103 = arith.constant 0 : index
    %173 = vector.load %arg15[%c0_102, %c0_103] : memref<32x64xbf16, #tpu.memory_space<vmem>>, vector<32x64xbf16>
    %cst_104 = arith.constant dense<0.000000e+00> : vector<8x64xf32>
    %174 = tpu.matmul %172, %173, %cst_104 {dimension_numbers = #tpu.dot_dimension_numbers<[1], [0], [0], [1], [0, 0, 1, 1], [], []>} : vector<8x32xbf16>, vector<32x64xbf16>, vector<8x64xf32> -> vector<8x64xf32>
    %c0_105 = arith.constant 0 : index
    %c0_106 = arith.constant 0 : index
    %175 = vector.load %arg16[%c0_105, %c0_106] : memref<1x64xf32, #tpu.memory_space<vmem>>, vector<1x64xf32>
    %176 = vector.broadcast %175 : vector<1x64xf32> to vector<8x64xf32>
    %177 = arith.addf %174, %176 : vector<8x64xf32>
    %178 = arith.negf %177 : vector<8x64xf32>
    %179 = math.exp %178 : vector<8x64xf32>
    %cst_107 = arith.constant 1.000000e+00 : f32
    %180 = vector.broadcast %cst_107 : f32 to vector<8x64xf32>
    %181 = arith.addf %180, %179 : vector<8x64xf32>
    %182 = arith.divf %180, %181 : vector<8x64xf32>
    %183 = arith.mulf %177, %182 : vector<8x64xf32>
    %184 = arith.truncf %183 : vector<8x64xf32> to vector<8x64xbf16>
    %c0_108 = arith.constant 0 : index
    %c0_109 = arith.constant 0 : index
    %185 = vector.load %arg17[%c0_108, %c0_109] : memref<64x32xbf16, #tpu.memory_space<vmem>>, vector<64x32xbf16>
    %cst_110 = arith.constant dense<0.000000e+00> : vector<8x32xf32>
    %186 = tpu.matmul %184, %185, %cst_110 {dimension_numbers = #tpu.dot_dimension_numbers<[1], [0], [0], [1], [0, 0, 1, 1], [], []>} : vector<8x64xbf16>, vector<64x32xbf16>, vector<8x32xf32> -> vector<8x32xf32>
    %c0_111 = arith.constant 0 : index
    %c0_112 = arith.constant 0 : index
    %187 = vector.load %arg18[%c0_111, %c0_112] : memref<1x32xf32, #tpu.memory_space<vmem>>, vector<1x32xf32>
    %188 = vector.broadcast %187 : vector<1x32xf32> to vector<8x32xf32>
    %189 = arith.addf %186, %188 : vector<8x32xf32>
    %190 = arith.addf %189, %171 : vector<8x32xf32>
    %c0_113 = arith.constant 0 : index
    %c0_114 = arith.constant 0 : index
    %c0_115 = arith.constant 0 : index
    %191 = vector.load %arg19[%c0_113, %c0_114, %c0_115] : memref<1x8x32xf32, #tpu.memory_space<vmem>>, vector<1x8x32xf32>
    %192 = vector.shape_cast %191 : vector<1x8x32xf32> to vector<8x32xf32>
    %193 = vector.shape_cast %190 : vector<8x32xf32> to vector<1x8x32xf32>
    tpu.vector_store %arg19[%c0_113, %c0_114, %c0_115], %193 {strides = array<i32>} : memref<1x8x32xf32, #tpu.memory_space<vmem>>, vector<1x8x32xf32>,
    return
  }
  func.func @transform_0(%arg0: i32, %arg1: i32) -> (i32, i32, i32) {
    %c0_i32 = arith.constant 0 : i32
    %c0_i32_0 = arith.constant 0 : i32
    return %arg0, %arg1, %c0_i32 : i32, i32, i32
  }
  func.func @transform_1(%arg0: i32, %arg1: i32) -> (i32, i32, i32) {
    %c0_i32 = arith.constant 0 : i32
    %c0_i32_0 = arith.constant 0 : i32
    %c0_i32_1 = arith.constant 0 : i32
    return %arg0, %c0_i32, %c0_i32_0 : i32, i32, i32
  }
  func.func @transform_2(%arg0: i32, %arg1: i32) -> (i32, i32, i32) {
    %c0_i32 = arith.constant 0 : i32
    %c0_i32_0 = arith.constant 0 : i32
    %c0_i32_1 = arith.constant 0 : i32
    return %arg0, %c0_i32, %c0_i32_0 : i32, i32, i32
  }
  func.func @transform_3(%arg0: i32, %arg1: i32) -> (i32, i32) {
    %c0_i32 = arith.constant 0 : i32
    %c0_i32_0 = arith.constant 0 : i32
    %c0_i32_1 = arith.constant 0 : i32
    return %c0_i32, %c0_i32_0 : i32, i32
  }
  func.func @transform_4(%arg0: i32, %arg1: i32) -> (i32, i32, i32) {
    %c0_i32 = arith.constant 0 : i32
    %c0_i32_0 = arith.constant 0 : i32
    %c0_i32_1 = arith.constant 0 : i32
    %c0_i32_2 = arith.constant 0 : i32
    return %c0_i32, %c0_i32_0, %c0_i32_1 : i32, i32, i32
  }
  func.func @transform_5(%arg0: i32, %arg1: i32) -> (i32, i32, i32) {
    %c0_i32 = arith.constant 0 : i32
    %c0_i32_0 = arith.constant 0 : i32
    %c0_i32_1 = arith.constant 0 : i32
    %c0_i32_2 = arith.constant 0 : i32
    return %c0_i32, %c0_i32_0, %c0_i32_1 : i32, i32, i32
  }
  func.func @transform_6(%arg0: i32, %arg1: i32) -> (i32, i32, i32) {
    %c0_i32 = arith.constant 0 : i32
    %c0_i32_0 = arith.constant 0 : i32
    %c0_i32_1 = arith.constant 0 : i32
    %c0_i32_2 = arith.constant 0 : i32
    return %c0_i32, %c0_i32_0, %c0_i32_1 : i32, i32, i32
  }
  func.func @transform_7(%arg0: i32, %arg1: i32) -> (i32, i32, i32) {
    %c0_i32 = arith.constant 0 : i32
    %c0_i32_0 = arith.constant 0 : i32
    %c0_i32_1 = arith.constant 0 : i32
    %c0_i32_2 = arith.constant 0 : i32
    return %c0_i32, %c0_i32_0, %c0_i32_1 : i32, i32, i32
  }
  func.func @transform_8(%arg0: i32, %arg1: i32) -> (i32, i32, i32) {
    %c0_i32 = arith.constant 0 : i32
    %c0_i32_0 = arith.constant 0 : i32
    %c0_i32_1 = arith.constant 0 : i32
    %c0_i32_2 = arith.constant 0 : i32
    return %c0_i32, %c0_i32_0, %c0_i32_1 : i32, i32, i32
  }
  func.func @transform_9(%arg0: i32, %arg1: i32) -> (i32, i32, i32) {
    %c0_i32 = arith.constant 0 : i32
    %c0_i32_0 = arith.constant 0 : i32
    %c0_i32_1 = arith.constant 0 : i32
    %c0_i32_2 = arith.constant 0 : i32
    return %c0_i32, %c0_i32_0, %c0_i32_1 : i32, i32, i32
  }
  func.func @transform_10(%arg0: i32, %arg1: i32) -> (i32, i32, i32) {
    %c0_i32 = arith.constant 0 : i32
    %c0_i32_0 = arith.constant 0 : i32
    %c0_i32_1 = arith.constant 0 : i32
    %c0_i32_2 = arith.constant 0 : i32
    return %c0_i32, %c0_i32_0, %c0_i32_1 : i32, i32, i32
  }
  func.func @transform_11(%arg0: i32, %arg1: i32) -> (i32, i32) {
    %c0_i32 = arith.constant 0 : i32
    %c0_i32_0 = arith.constant 0 : i32
    %c0_i32_1 = arith.constant 0 : i32
    return %c0_i32, %c0_i32_0 : i32, i32
  }
  func.func @transform_12(%arg0: i32, %arg1: i32) -> (i32, i32) {
    %c0_i32 = arith.constant 0 : i32
    %c0_i32_0 = arith.constant 0 : i32
    %c0_i32_1 = arith.constant 0 : i32
    return %c0_i32, %c0_i32_0 : i32, i32
  }
  func.func @transform_13(%arg0: i32, %arg1: i32) -> (i32, i32) {
    %c0_i32 = arith.constant 0 : i32
    %c0_i32_0 = arith.constant 0 : i32
    %c0_i32_1 = arith.constant 0 : i32
    return %c0_i32, %c0_i32_0 : i32, i32
  }
  func.func @transform_14(%arg0: i32, %arg1: i32) -> (i32, i32) {
    %c0_i32 = arith.constant 0 : i32
    %c0_i32_0 = arith.constant 0 : i32
    %c0_i32_1 = arith.constant 0 : i32
    return %c0_i32, %c0_i32_0 : i32, i32
  }
  func.func @transform_15(%arg0: i32, %arg1: i32) -> (i32, i32) {
    %c0_i32 = arith.constant 0 : i32
    %c0_i32_0 = arith.constant 0 : i32
    %c0_i32_1 = arith.constant 0 : i32
    return %c0_i32, %c0_i32_0 : i32, i32
  }
  func.func @transform_16(%arg0: i32, %arg1: i32) -> (i32, i32) {
    %c0_i32 = arith.constant 0 : i32
    %c0_i32_0 = arith.constant 0 : i32
    %c0_i32_1 = arith.constant 0 : i32
    return %c0_i32, %c0_i32_0 : i32, i32
  }
  func.func @transform_17(%arg0: i32, %arg1: i32) -> (i32, i32, i32) {
    %c0_i32 = arith.constant 0 : i32
    %c0_i32_0 = arith.constant 0 : i32
    return %arg0, %arg1, %c0_i32 : i32, i32, i32
  }
}

</mosaic_0001>

<llo_original>
// kernel: tpu_custom_call.1
$region0: #{tpu_custom_call.1}
  #allocation0 [shape = 'u32[]', space=smem, size = 0x4, offset = 0x4, fixed_abs, tag = 'smem constant byte address 0x4 - core index']
  #allocation1 [shape = 'u32[144,128]{1,0:T(1,128)}', space=vmem, size = 0x12000, scoped, tag = 'internal scratch']
  #allocation2 [shape = 'bf16[4,16,8]{2,1,0:T(16,128)(2,1)}', space=vmem, size = 0x4000, scoped, tag = 'scratch operand']
  #allocation3 [shape = 'bf16[4,16,8]{2,1,0:T(16,128)(2,1)}', space=vmem, size = 0x4000, scoped, tag = 'scratch operand']
  %s0 = inlined_call_operand.hbm [shape: f32[2,8,32], index: 0, kind: input, shape index: {}]
  %s1 = inlined_call_operand.hbm [shape: bf16[2,16,32], index: 1, kind: input, shape index: {}]
  %s2 = inlined_call_operand.hbm [shape: f32[2,1,16], index: 2, kind: input, shape index: {}]
  %s3 = inlined_call_operand.hbm [shape: f32[1,32], index: 3, kind: input, shape index: {}]
  %s4 = inlined_call_operand.hbm [shape: bf16[4,32,8], index: 4, kind: input, shape index: {}]
  %s5 = inlined_call_operand.hbm [shape: f32[4,1,8], index: 5, kind: input, shape index: {}]
  %s6 = inlined_call_operand.hbm [shape: bf16[4,32,8], index: 6, kind: input, shape index: {}]
  %s7 = inlined_call_operand.hbm [shape: f32[4,1,8], index: 7, kind: input, shape index: {}]
  %s8 = inlined_call_operand.hbm [shape: bf16[4,32,8], index: 8, kind: input, shape index: {}]
  %s9 = inlined_call_operand.hbm [shape: f32[4,1,8], index: 9, kind: input, shape index: {}]
  %s10 = inlined_call_operand.hbm [shape: bf16[4,8,32], index: 10, kind: input, shape index: {}]
  %s11 = inlined_call_operand.hbm [shape: f32[1,32], index: 11, kind: input, shape index: {}]
  %s12 = inlined_call_operand.hbm [shape: f32[1,32], index: 12, kind: input, shape index: {}]
  %s13 = inlined_call_operand.hbm [shape: bf16[32,64], index: 13, kind: input, shape index: {}]
  %s14 = inlined_call_operand.hbm [shape: f32[1,64], index: 14, kind: input, shape index: {}]
  %s15 = inlined_call_operand.hbm [shape: bf16[64,32], index: 15, kind: input, shape index: {}]
  %s16 = inlined_call_operand.hbm [shape: f32[1,32], index: 16, kind: input, shape index: {}]
  %s17 = inlined_call_operand.hbm [shape: f32[2,8,32], index: 17, kind: output, shape index: {}]
  %s18 = sld [smem:[#allocation0]]
  $region173: #{tpu_custom_call.1} parent=0
    _
  %s20 = ssub.s32 1, %s18
  %s21 = scalar_select 0, %s20, %s18
  $region1: #{tpu_custom_call.1} parent=0
    #allocation4 [shape = 'u8[8192]{0}', space=vmem, size = 0x2000, scoped, tag = 'input window, operand 0']
    #allocation5 [shape = 's32[2]{0}', space=sflag, size = 0x8, scoped, tag = 'scoped memory for tpu_custom_call.1']
    #allocation6 [shape = 's32[2]{0}', space=sflag, size = 0x8, scoped, tag = 'scoped memory for tpu_custom_call.1']
    #allocation7 [shape = 'u8[8192]{0}', space=vmem, size = 0x2000, scoped, tag = 'input window, operand 1']
    #allocation8 [shape = 's32[2]{0}', space=sflag, size = 0x8, scoped, tag = 'scoped memory for tpu_custom_call.1']
    #allocation9 [shape = 'u8[1024]{0}', space=vmem, size = 0x400, scoped, tag = 'input window, operand 2']
    #allocation10 [shape = 'u8[512]{0}', space=vmem, size = 0x400, scoped, tag = 'input window, operand 3, single buffered']
    #allocation11 [shape = 's32[1]{0}', space=sflag, size = 0x4, scoped, tag = 'scoped memory for tpu_custom_call.1']
    #allocation12 [shape = 'u8[32768]{0}', space=vmem, size = 0x8000, scoped, tag = 'input window, operand 4, single buffered']
    #allocation13 [shape = 'u8[2048]{0}', space=vmem, size = 0x800, scoped, tag = 'input window, operand 5, single buffered']
    #allocation14 [shape = 's32[1]{0}', space=sflag, size = 0x4, scoped, tag = 'scoped memory for tpu_custom_call.1']
    #allocation15 [shape = 'u8[32768]{0}', space=vmem, size = 0x8000, scoped, tag = 'input window, operand 6, single buffered']
    #allocation16 [shape = 'u8[2048]{0}', space=vmem, size = 0x800, scoped, tag = 'input window, operand 7, single buffered']
    #allocation17 [shape = 's32[1]{0}', space=sflag, size = 0x4, scoped, tag = 'scoped memory for tpu_custom_call.1']
    #allocation18 [shape = 'u8[32768]{0}', space=vmem, size = 0x8000, scoped, tag = 'input window, operand 8, single buffered']
    #allocation19 [shape = 'u8[2048]{0}', space=vmem, size = 0x800, scoped, tag = 'input window, operand 9, single buffered']
    #allocation20 [shape = 's32[1]{0}', space=sflag, size = 0x4, scoped, tag = 'scoped memory for tpu_custom_call.1']
    #allocation21 [shape = 'u8[8192]{0}', space=vmem, size = 0x2000, scoped, tag = 'input window, operand 10, single buffered']
    #allocation22 [shape = 'u8[512]{0}', space=vmem, size = 0x400, scoped, tag = 'input window, operand 11, single buffered']
    #allocation23 [shape = 's32[1]{0}', space=sflag, size = 0x4, scoped, tag = 'scoped memory for tpu_custom_call.1']
    #allocation24 [shape = 'u8[512]{0}', space=vmem, size = 0x400, scoped, tag = 'input window, operand 12, single buffered']
    #allocation25 [shape = 'u8[8192]{0}', space=vmem, size = 0x2000, scoped, tag = 'input window, operand 13, single buffered']
    #allocation26 [shape = 's32[1]{0}', space=sflag, size = 0x4, scoped, tag = 'scoped memory for tpu_custom_call.1']
    #allocation27 [shape = 'u8[512]{0}', space=vmem, size = 0x400, scoped, tag = 'input window, operand 14, single buffered']
    #allocation28 [shape = 'u8[16384]{0}', space=vmem, size = 0x4000, scoped, tag = 'input window, operand 15, single buffered']
    #allocation29 [shape = 's32[1]{0}', space=sflag, size = 0x4, scoped, tag = 'scoped memory for tpu_custom_call.1']
    #allocation30 [shape = 'u8[512]{0}', space=vmem, size = 0x400, scoped, tag = 'input window, operand 16, single buffered']
    #allocation31 [shape = 'u8[8192]{0}', space=vmem, size = 0x2000, scoped, tag = 'output window, operand 0']
    %22 = vsyncpa [#allocation5], 0
    %s23 = scalar_lea.sflag [#allocation5], 1
    %24 = vsyncpa %s23, 0
    %25 = vsyncpa [#allocation8], 0
    %s26 = scalar_lea.sflag [#allocation8], 1
    %27 = vsyncpa %s26, 0
    %28 = vsyncpa [#allocation11], 0
    %29 = vsyncpa [#allocation14], 0
    %30 = vsyncpa [#allocation17], 0
    %31 = vsyncpa [#allocation20], 0
    %32 = vsyncpa [#allocation23], 0
    %33 = vsyncpa [#allocation26], 0
    %34 = vsyncpa [#allocation29], 0
    %35 = vsyncpa [#allocation6], 0
    %s36 = scalar_lea.sflag [#allocation6], 1
    %37 = vsyncpa %s36, 0
    loop: start=0, step=1, limit=4
    $region2: #{tpu_custom_call.1} parent=1 // loop_pre_header
      _
    $region3: #{tpu_custom_call.1} parent=1 // loop_header
      %s39 = sphi 0, %s43
      %p40 = scmp.ge.s32.totalorder %s39, 4
      %s46 = sphi 0, %s58
      %s47 = sphi 0, %s54
      %s48 = sphi 0, %s46
      %s49 = sphi 0, %s47
      %s50 = sphi 0, %s48
      %s51 = sphi 0, %s49
      %s63 = sphi 0, %s65
      %s66 = sphi 0, %s63
      %s67 = sphi 0, %s66
      %s83 = sphi 0, %s67
      %s89 = sphi 0, %s91
      %s92 = sphi 0, %s89
      %s93 = sphi 0, %s92
      %s109 = sphi 0, %s93
      %s115 = sphi 0, %s117
      %s118 = sphi 0, %s115
      %s119 = sphi 0, %s118
      %s135 = sphi 0, %s119
      %s139 = sphi 0, %s139
      %s141 = sphi 0, %s139
      %s142 = sphi 0, %s141
      %s156 = sphi 0, %s142
      %s160 = sphi 0, %s160
      %s162 = sphi 0, %s160
      %s163 = sphi 0, %s162
      %s177 = sphi 0, %s163
      %s181 = sphi 0, %s181
      %s183 = sphi 0, %s181
      %s184 = sphi 0, %s183
      %s198 = sphi 0, %s184
      %s202 = sphi 0, %s202
      %s204 = sphi 0, %s202
      %s205 = sphi 0, %s204
      %s219 = sphi 0, %s205
      %s223 = sphi 0, %s223
      %s225 = sphi 0, %s223
      %s226 = sphi 0, %s225
      %s240 = sphi 0, %s226
      %s244 = sphi 0, %s244
      %s246 = sphi 0, %s244
      %s247 = sphi 0, %s246
      %s261 = sphi 0, %s247
      %s265 = sphi 0, %s265
      %s267 = sphi 0, %s265
      %s268 = sphi 0, %s267
      %s282 = sphi 0, %s268
      %s286 = sphi 0, %s286
      %s288 = sphi 0, %s286
      %s289 = sphi 0, %s288
      %s303 = sphi 0, %s289
      %s307 = sphi 0, %s307
      %s309 = sphi 0, %s307
      %s310 = sphi 0, %s309
      %s324 = sphi 0, %s310
      %s328 = sphi 0, %s328
      %s330 = sphi 0, %s328
      %s331 = sphi 0, %s330
      %s345 = sphi 0, %s331
      %s349 = sphi 0, %s349
      %s351 = sphi 0, %s349
      %s352 = sphi 0, %s351
      %s366 = sphi 0, %s352
      %s370 = sphi 0, %s370
      %s372 = sphi 0, %s370
      %s373 = sphi 0, %s372
      %s387 = sphi 0, %s373
      %s391 = sphi 0, %s391
      %s393 = sphi 0, %s391
      %s394 = sphi 0, %s393
      %s408 = sphi 0, %s394
      %s412 = sphi 0, %s412
      %s414 = sphi 0, %s412
      %s415 = sphi 0, %s414
      %s429 = sphi 0, %s415
      %s437 = sphi 0, %s439
      %s440 = sphi 0, %s437
      %s441 = sphi 0, %s440
      %s457 = sphi 0, %s441
    $region4: #{tpu_custom_call.1} parent=1 // loop_header_branch
      %42 = sbr.rel (%p40) target = $region8
    $region5: #{tpu_custom_call.1} parent=1 // loop_body
      %s44 = ssub.s32 %s39, 1
      %s45 = ssub.s32 %s39, 2
      %s52 = sadd.s32 1, %s47
      %p53 = scmp.ge.s32.totalorder %s52, 1
      %s54 = scalar_select %p53, 0, %s52
      %s55 = sadd.s32 1, %s46
      %s56 = scalar_select %p53, %s55, %s46
      %p57 = scmp.ge.s32.totalorder %s56, 2
      %s58 = scalar_select %p57, 0, %s56
      %s59 = ssub.s32 %s46, %s58
      %s60 = ssub.s32 %s47, %s54
      %s61 = sor.u32 %s59, %s60
      %p62 = scmp.eq.s32.totalorder %s61, 0
      %s64 = sadd.s32 %s63, 1
      %s65 = scalar_select %p62, %s63, %s64
      %p68 = pneg %p62
      %p69 = scmp.eq.s32.totalorder %s39, 1
      %p70 = por %p68, %p69
      %p71 = scmp.ne.s32.totalorder %s63, %s66
      %p72 = scmp.eq.s32.totalorder %s39, 0
      %p73 = por %p71, %p72
      %p74 = scmp.ne.s32.totalorder %s63, %s66
      %p75 = scmp.eq.s32.totalorder %s44, 1
      %p76 = por %p74, %p75
      %p77 = scmp.ne.s32.totalorder %s66, %s67
      %p78 = scmp.eq.s32.totalorder %s44, 0
      %p79 = por %p77, %p78
      %p80 = scmp.ne.s32.totalorder %s66, %s67
      %p81 = scmp.eq.s32.totalorder %s45, 1
      %p82 = por %p80, %p81
      %p84 = scmp.ne.s32.totalorder %s67, %s83
      %p85 = scmp.eq.s32.totalorder %s45, 0
      %p86 = por %p84, %p85
      %s87 = ssub.s32 %s46, %s58
      %p88 = scmp.eq.s32.totalorder %s87, 0
      %s90 = sadd.s32 %s89, 1
      %s91 = scalar_select %p88, %s89, %s90
      %p94 = pneg %p88
      %p95 = scmp.eq.s32.totalorder %s39, 1
      %p96 = por %p94, %p95
      %p97 = scmp.ne.s32.totalorder %s89, %s92
      %p98 = scmp.eq.s32.totalorder %s39, 0
      %p99 = por %p97, %p98
      %p100 = scmp.ne.s32.totalorder %s89, %s92
      %p101 = scmp.eq.s32.totalorder %s44, 1
      %p102 = por %p100, %p101
      %p103 = scmp.ne.s32.totalorder %s92, %s93
      %p104 = scmp.eq.s32.totalorder %s44, 0
      %p105 = por %p103, %p104
      %p106 = scmp.ne.s32.totalorder %s92, %s93
      %p107 = scmp.eq.s32.totalorder %s45, 1
      %p108 = por %p106, %p107
      %p110 = scmp.ne.s32.totalorder %s93, %s109
      %p111 = scmp.eq.s32.totalorder %s45, 0
      %p112 = por %p110, %p111
      %s113 = ssub.s32 %s46, %s58
      %p114 = scmp.eq.s32.totalorder %s113, 0
      %s116 = sadd.s32 %s115, 1
      %s117 = scalar_select %p114, %s115, %s116
      %p120 = pneg %p114
      %p121 = scmp.eq.s32.totalorder %s39, 1
      %p122 = por %p120, %p121
      %p123 = scmp.ne.s32.totalorder %s115, %s118
      %p124 = scmp.eq.s32.totalorder %s39, 0
      %p125 = por %p123, %p124
      %p126 = scmp.ne.s32.totalorder %s115, %s118
      %p127 = scmp.eq.s32.totalorder %s44, 1
      %p128 = por %p126, %p127
      %p129 = scmp.ne.s32.totalorder %s118, %s119
      %p130 = scmp.eq.s32.totalorder %s44, 0
      %p131 = por %p129, %p130
      %p132 = scmp.ne.s32.totalorder %s118, %s119
      %p133 = scmp.eq.s32.totalorder %s45, 1
      %p134 = por %p132, %p133
      %p136 = scmp.ne.s32.totalorder %s119, %s135
      %p137 = scmp.eq.s32.totalorder %s45, 0
      %p138 = por %p136, %p137
      %s140 = sadd.s32 %s139, 1
      %p143 = scmp.eq.s32.totalorder %s39, 1
      %p144 = scmp.ne.s32.totalorder %s139, %s141
      %p145 = scmp.eq.s32.totalorder %s39, 0
      %p146 = por %p144, %p145
      %p147 = scmp.ne.s32.totalorder %s139, %s141
      %p148 = scmp.eq.s32.totalorder %s44, 1
      %p149 = por %p147, %p148
      %p150 = scmp.ne.s32.totalorder %s141, %s142
      %p151 = scmp.eq.s32.totalorder %s44, 0
      %p152 = por %p150, %p151
      %p153 = scmp.ne.s32.totalorder %s141, %s142
      %p154 = scmp.eq.s32.totalorder %s45, 1
      %p155 = por %p153, %p154
      %p157 = scmp.ne.s32.totalorder %s142, %s156
      %p158 = scmp.eq.s32.totalorder %s45, 0
      %p159 = por %p157, %p158
      %s161 = sadd.s32 %s160, 1
      %p164 = scmp.eq.s32.totalorder %s39, 1
      %p165 = scmp.ne.s32.totalorder %s160, %s162
      %p166 = scmp.eq.s32.totalorder %s39, 0
      %p167 = por %p165, %p166
      %p168 = scmp.ne.s32.totalorder %s160, %s162
      %p169 = scmp.eq.s32.totalorder %s44, 1
      %p170 = por %p168, %p169
      %p171 = scmp.ne.s32.totalorder %s162, %s163
      %p172 = scmp.eq.s32.totalorder %s44, 0
      %p173 = por %p171, %p172
      %p174 = scmp.ne.s32.totalorder %s162, %s163
      %p175 = scmp.eq.s32.totalorder %s45, 1
      %p176 = por %p174, %p175
      %p178 = scmp.ne.s32.totalorder %s163, %s177
      %p179 = scmp.eq.s32.totalorder %s45, 0
      %p180 = por %p178, %p179
      %s182 = sadd.s32 %s181, 1
      %p185 = scmp.eq.s32.totalorder %s39, 1
      %p186 = scmp.ne.s32.totalorder %s181, %s183
      %p187 = scmp.eq.s32.totalorder %s39, 0
      %p188 = por %p186, %p187
      %p189 = scmp.ne.s32.totalorder %s181, %s183
      %p190 = scmp.eq.s32.totalorder %s44, 1
      %p191 = por %p189, %p190
      %p192 = scmp.ne.s32.totalorder %s183, %s184
      %p193 = scmp.eq.s32.totalorder %s44, 0
      %p194 = por %p192, %p193
      %p195 = scmp.ne.s32.totalorder %s183, %s184
      %p196 = scmp.eq.s32.totalorder %s45, 1
      %p197 = por %p195, %p196
      %p199 = scmp.ne.s32.totalorder %s184, %s198
      %p200 = scmp.eq.s32.totalorder %s45, 0
      %p201 = por %p199, %p200
      %s203 = sadd.s32 %s202, 1
      %p206 = scmp.eq.s32.totalorder %s39, 1
      %p207 = scmp.ne.s32.totalorder %s202, %s204
      %p208 = scmp.eq.s32.totalorder %s39, 0
      %p209 = por %p207, %p208
      %p210 = scmp.ne.s32.totalorder %s202, %s204
      %p211 = scmp.eq.s32.totalorder %s44, 1
      %p212 = por %p210, %p211
      %p213 = scmp.ne.s32.totalorder %s204, %s205
      %p214 = scmp.eq.s32.totalorder %s44, 0
      %p215 = por %p213, %p214
      %p216 = scmp.ne.s32.totalorder %s204, %s205
      %p217 = scmp.eq.s32.totalorder %s45, 1
      %p218 = por %p216, %p217
      %p220 = scmp.ne.s32.totalorder %s205, %s219
      %p221 = scmp.eq.s32.totalorder %s45, 0
      %p222 = por %p220, %p221
      %s224 = sadd.s32 %s223, 1
      %p227 = scmp.eq.s32.totalorder %s39, 1
      %p228 = scmp.ne.s32.totalorder %s223, %s225
      %p229 = scmp.eq.s32.totalorder %s39, 0
      %p230 = por %p228, %p229
      %p231 = scmp.ne.s32.totalorder %s223, %s225
      %p232 = scmp.eq.s32.totalorder %s44, 1
      %p233 = por %p231, %p232
      %p234 = scmp.ne.s32.totalorder %s225, %s226
      %p235 = scmp.eq.s32.totalorder %s44, 0
      %p236 = por %p234, %p235
      %p237 = scmp.ne.s32.totalorder %s225, %s226
      %p238 = scmp.eq.s32.totalorder %s45, 1
      %p239 = por %p237, %p238
      %p241 = scmp.ne.s32.totalorder %s226, %s240
      %p242 = scmp.eq.s32.totalorder %s45, 0
      %p243 = por %p241, %p242
      %s245 = sadd.s32 %s244, 1
      %p248 = scmp.eq.s32.totalorder %s39, 1
      %p249 = scmp.ne.s32.totalorder %s244, %s246
      %p250 = scmp.eq.s32.totalorder %s39, 0
      %p251 = por %p249, %p250
      %p252 = scmp.ne.s32.totalorder %s244, %s246
      %p253 = scmp.eq.s32.totalorder %s44, 1
      %p254 = por %p252, %p253
      %p255 = scmp.ne.s32.totalorder %s246, %s247
      %p256 = scmp.eq.s32.totalorder %s44, 0
      %p257 = por %p255, %p256
      %p258 = scmp.ne.s32.totalorder %s246, %s247
      %p259 = scmp.eq.s32.totalorder %s45, 1
      %p260 = por %p258, %p259
      %p262 = scmp.ne.s32.totalorder %s247, %s261
      %p263 = scmp.eq.s32.totalorder %s45, 0
      %p264 = por %p262, %p263
      %s266 = sadd.s32 %s265, 1
      %p269 = scmp.eq.s32.totalorder %s39, 1
      %p270 = scmp.ne.s32.totalorder %s265, %s267
      %p271 = scmp.eq.s32.totalorder %s39, 0
      %p272 = por %p270, %p271
      %p273 = scmp.ne.s32.totalorder %s265, %s267
      %p274 = scmp.eq.s32.totalorder %s44, 1
      %p275 = por %p273, %p274
      %p276 = scmp.ne.s32.totalorder %s267, %s268
      %p277 = scmp.eq.s32.totalorder %s44, 0
      %p278 = por %p276, %p277
      %p279 = scmp.ne.s32.totalorder %s267, %s268
      %p280 = scmp.eq.s32.totalorder %s45, 1
      %p281 = por %p279, %p280
      %p283 = scmp.ne.s32.totalorder %s268, %s282
      %p284 = scmp.eq.s32.totalorder %s45, 0
      %p285 = por %p283, %p284
      %s287 = sadd.s32 %s286, 1
      %p290 = scmp.eq.s32.totalorder %s39, 1
      %p291 = scmp.ne.s32.totalorder %s286, %s288
      %p292 = scmp.eq.s32.totalorder %s39, 0
      %p293 = por %p291, %p292
      %p294 = scmp.ne.s32.totalorder %s286, %s288
      %p295 = scmp.eq.s32.totalorder %s44, 1
      %p296 = por %p294, %p295
      %p297 = scmp.ne.s32.totalorder %s288, %s289
      %p298 = scmp.eq.s32.totalorder %s44, 0
      %p299 = por %p297, %p298
      %p300 = scmp.ne.s32.totalorder %s288, %s289
      %p301 = scmp.eq.s32.totalorder %s45, 1
      %p302 = por %p300, %p301
      %p304 = scmp.ne.s32.totalorder %s289, %s303
      %p305 = scmp.eq.s32.totalorder %s45, 0
      %p306 = por %p304, %p305
      %s308 = sadd.s32 %s307, 1
      %p311 = scmp.eq.s32.totalorder %s39, 1
      %p312 = scmp.ne.s32.totalorder %s307, %s309
      %p313 = scmp.eq.s32.totalorder %s39, 0
      %p314 = por %p312, %p313
      %p315 = scmp.ne.s32.totalorder %s307, %s309
      %p316 = scmp.eq.s32.totalorder %s44, 1
      %p317 = por %p315, %p316
      %p318 = scmp.ne.s32.totalorder %s309, %s310
      %p319 = scmp.eq.s32.totalorder %s44, 0
      %p320 = por %p318, %p319
      %p321 = scmp.ne.s32.totalorder %s309, %s310
      %p322 = scmp.eq.s32.totalorder %s45, 1
      %p323 = por %p321, %p322
      %p325 = scmp.ne.s32.totalorder %s310, %s324
      %p326 = scmp.eq.s32.totalorder %s45, 0
      %p327 = por %p325, %p326
      %s329 = sadd.s32 %s328, 1
      %p332 = scmp.eq.s32.totalorder %s39, 1
      %p333 = scmp.ne.s32.totalorder %s328, %s330
      %p334 = scmp.eq.s32.totalorder %s39, 0
      %p335 = por %p333, %p334
      %p336 = scmp.ne.s32.totalorder %s328, %s330
      %p337 = scmp.eq.s32.totalorder %s44, 1
      %p338 = por %p336, %p337
      %p339 = scmp.ne.s32.totalorder %s330, %s331
      %p340 = scmp.eq.s32.totalorder %s44, 0
      %p341 = por %p339, %p340
      %p342 = scmp.ne.s32.totalorder %s330, %s331
      %p343 = scmp.eq.s32.totalorder %s45, 1
      %p344 = por %p342, %p343
      %p346 = scmp.ne.s32.totalorder %s331, %s345
      %p347 = scmp.eq.s32.totalorder %s45, 0
      %p348 = por %p346, %p347
      %s350 = sadd.s32 %s349, 1
      %p353 = scmp.eq.s32.totalorder %s39, 1
      %p354 = scmp.ne.s32.totalorder %s349, %s351
      %p355 = scmp.eq.s32.totalorder %s39, 0
      %p356 = por %p354, %p355
      %p357 = scmp.ne.s32.totalorder %s349, %s351
      %p358 = scmp.eq.s32.totalorder %s44, 1
      %p359 = por %p357, %p358
      %p360 = scmp.ne.s32.totalorder %s351, %s352
      %p361 = scmp.eq.s32.totalorder %s44, 0
      %p362 = por %p360, %p361
      %p363 = scmp.ne.s32.totalorder %s351, %s352
      %p364 = scmp.eq.s32.totalorder %s45, 1
      %p365 = por %p363, %p364
      %p367 = scmp.ne.s32.totalorder %s352, %s366
      %p368 = scmp.eq.s32.totalorder %s45, 0
      %p369 = por %p367, %p368
      %s371 = sadd.s32 %s370, 1
      %p374 = scmp.eq.s32.totalorder %s39, 1
      %p375 = scmp.ne.s32.totalorder %s370, %s372
      %p376 = scmp.eq.s32.totalorder %s39, 0
      %p377 = por %p375, %p376
      %p378 = scmp.ne.s32.totalorder %s370, %s372
      %p379 = scmp.eq.s32.totalorder %s44, 1
      %p380 = por %p378, %p379
      %p381 = scmp.ne.s32.totalorder %s372, %s373
      %p382 = scmp.eq.s32.totalorder %s44, 0
      %p383 = por %p381, %p382
      %p384 = scmp.ne.s32.totalorder %s372, %s373
      %p385 = scmp.eq.s32.totalorder %s45, 1
      %p386 = por %p384, %p385
      %p388 = scmp.ne.s32.totalorder %s373, %s387
      %p389 = scmp.eq.s32.totalorder %s45, 0
      %p390 = por %p388, %p389
      %s392 = sadd.s32 %s391, 1
      %p395 = scmp.eq.s32.totalorder %s39, 1
      %p396 = scmp.ne.s32.totalorder %s391, %s393
      %p397 = scmp.eq.s32.totalorder %s39, 0
      %p398 = por %p396, %p397
      %p399 = scmp.ne.s32.totalorder %s391, %s393
      %p400 = scmp.eq.s32.totalorder %s44, 1
      %p401 = por %p399, %p400
      %p402 = scmp.ne.s32.totalorder %s393, %s394
      %p403 = scmp.eq.s32.totalorder %s44, 0
      %p404 = por %p402, %p403
      %p405 = scmp.ne.s32.totalorder %s393, %s394
      %p406 = scmp.eq.s32.totalorder %s45, 1
      %p407 = por %p405, %p406
      %p409 = scmp.ne.s32.totalorder %s394, %s408
      %p410 = scmp.eq.s32.totalorder %s45, 0
      %p411 = por %p409, %p410
      %s413 = sadd.s32 %s412, 1
      %p416 = scmp.eq.s32.totalorder %s39, 1
      %p417 = scmp.ne.s32.totalorder %s412, %s414
      %p418 = scmp.eq.s32.totalorder %s39, 0
      %p419 = por %p417, %p418
      %p420 = scmp.ne.s32.totalorder %s412, %s414
      %p421 = scmp.eq.s32.totalorder %s44, 1
      %p422 = por %p420, %p421
      %p423 = scmp.ne.s32.totalorder %s414, %s415
      %p424 = scmp.eq.s32.totalorder %s44, 0
      %p425 = por %p423, %p424
      %p426 = scmp.ne.s32.totalorder %s414, %s415
      %p427 = scmp.eq.s32.totalorder %s45, 1
      %p428 = por %p426, %p427
      %p430 = scmp.ne.s32.totalorder %s415, %s429
      %p431 = scmp.eq.s32.totalorder %s45, 0
      %p432 = por %p430, %p431
      %s433 = ssub.s32 %s46, %s58
      %s434 = ssub.s32 %s47, %s54
      %s435 = sor.u32 %s433, %s434
      %p436 = scmp.eq.s32.totalorder %s435, 0
      %s438 = sadd.s32 %s437, 1
      %s439 = scalar_select %p436, %s437, %s438
      %p442 = pneg %p436
      %p443 = scmp.eq.s32.totalorder %s39, 1
      %p444 = por %p442, %p443
      %p445 = scmp.ne.s32.totalorder %s437, %s440
      %p446 = scmp.eq.s32.totalorder %s39, 0
      %p447 = por %p445, %p446
      %p448 = scmp.ne.s32.totalorder %s437, %s440
      %p449 = scmp.eq.s32.totalorder %s44, 1
      %p450 = por %p448, %p449
      %p451 = scmp.ne.s32.totalorder %s440, %s441
      %p452 = scmp.eq.s32.totalorder %s44, 0
      %p453 = por %p451, %p452
      %p454 = scmp.ne.s32.totalorder %s440, %s441
      %p455 = scmp.eq.s32.totalorder %s45, 1
      %p456 = por %p454, %p455
      %p458 = scmp.ne.s32.totalorder %s441, %s457
      %p459 = scmp.eq.s32.totalorder %s45, 0
      %p460 = por %p458, %p459
      %p461 = scmp.le.s32.totalorder 1, %s39
      %p462 = scmp.lt.s32.totalorder %s39, 3
      %p463 = pnand %p461, %p462
      %p464 = pneg %p463
      // Predicated region
      $region9: #{tpu_custom_call.1} parent=5 // pred_check
        _
      $region10: #{tpu_custom_call.1} parent=5 // pred_check_branch
        %466 = sbr.rel (%p463) target = $region12
      $region11: #{tpu_custom_call.1} parent=5 // pred_region
        %s467 = ssub.s32 %s39, 1
        // Predicated region
        $region13: #{tpu_custom_call.1} parent=11 // pred_check
          %p468 = pneg %p152
        $region14: #{tpu_custom_call.1} parent=11 // pred_check_branch
          %470 = sbr.rel (%p468) target = $region16
        $region15: #{tpu_custom_call.1} parent=11 // pred_region
          %s472 = ssub.s32 16, 16
          %473 = vsyncadd [#allocation11], %s472
          %s475 = sshll.u32 [#allocation10], 4
          %s476 = int_to_ptr.vmem [resolvable:$true] %s475
          %478 = dma.hbm_to_vmem [thread:$0]  %s3, 16, %s476, [#allocation11]
        $region16: #{tpu_custom_call.1} parent=11 // pred_fallthru
          _
        // Predicated region
        $region17: #{tpu_custom_call.1} parent=11 // pred_check
          %p479 = pneg %p173
        $region18: #{tpu_custom_call.1} parent=11 // pred_check_branch
          %481 = sbr.rel (%p479) target = $region20
        $region19: #{tpu_custom_call.1} parent=11 // pred_region
          %s483 = ssub.s32 1024, 1024
          %484 = vsyncadd [#allocation11], %s483
          %s485 = sshll.u32 [#allocation12], 4
          %s486 = int_to_ptr.vmem [resolvable:$true] %s485
          %491 = dma.hbm_to_vmem [thread:$0]  %s4, 1024, %s486, [#allocation11], 64, 64, 4
        $region20: #{tpu_custom_call.1} parent=11 // pred_fallthru
          _
        // Predicated region
        $region21: #{tpu_custom_call.1} parent=11 // pred_check
          %p492 = pneg %p194
        $region22: #{tpu_custom_call.1} parent=11 // pred_check_branch
          %494 = sbr.rel (%p492) target = $region24
        $region23: #{tpu_custom_call.1} parent=11 // pred_region
          %s496 = ssub.s32 64, 64
          %497 = vsyncadd [#allocation14], %s496
          %s498 = sshll.u32 [#allocation13], 4
          %s499 = int_to_ptr.vmem [resolvable:$true] %s498
          %504 = dma.hbm_to_vmem [thread:$0]  %s5, 64, %s499, [#allocation14], 16, 16, 1
        $region24: #{tpu_custom_call.1} parent=11 // pred_fallthru
          _
        // Predicated region
        $region25: #{tpu_custom_call.1} parent=11 // pred_check
          %p505 = pneg %p215
        $region26: #{tpu_custom_call.1} parent=11 // pred_check_branch
          %507 = sbr.rel (%p505) target = $region28
        $region27: #{tpu_custom_call.1} parent=11 // pred_region
          %s509 = ssub.s32 1024, 1024
          %510 = vsyncadd [#allocation14], %s509
          %s511 = sshll.u32 [#allocation15], 4
          %s512 = int_to_ptr.vmem [resolvable:$true] %s511
          %517 = dma.hbm_to_vmem [thread:$0]  %s6, 1024, %s512, [#allocation14], 64, 64, 4
        $region28: #{tpu_custom_call.1} parent=11 // pred_fallthru
          _
        // Predicated region
        $region29: #{tpu_custom_call.1} parent=11 // pred_check
          %p518 = pneg %p236
        $region30: #{tpu_custom_call.1} parent=11 // pred_check_branch
          %520 = sbr.rel (%p518) target = $region32
        $region31: #{tpu_custom_call.1} parent=11 // pred_region
          %s522 = ssub.s32 64, 64
          %523 = vsyncadd [#allocation17], %s522
          %s524 = sshll.u32 [#allocation16], 4
          %s525 = int_to_ptr.vmem [resolvable:$true] %s524
          %530 = dma.hbm_to_vmem [thread:$0]  %s7, 64, %s525, [#allocation17], 16, 16, 1
        $region32: #{tpu_custom_call.1} parent=11 // pred_fallthru
          _
        // Predicated region
        $region33: #{tpu_custom_call.1} parent=11 // pred_check
          %p531 = pneg %p257
        $region34: #{tpu_custom_call.1} parent=11 // pred_check_branch
          %533 = sbr.rel (%p531) target = $region36
        $region35: #{tpu_custom_call.1} parent=11 // pred_region
          %s535 = ssub.s32 1024, 1024
          %536 = vsyncadd [#allocation17], %s535
          %s537 = sshll.u32 [#allocation18], 4
          %s538 = int_to_ptr.vmem [resolvable:$true] %s537
          %543 = dma.hbm_to_vmem [thread:$0]  %s8, 1024, %s538, [#allocation17], 64, 64, 4
        $region36: #{tpu_custom_call.1} parent=11 // pred_fallthru
          _
        // Predicated region
        $region37: #{tpu_custom_call.1} parent=11 // pred_check
          %p544 = pneg %p278
        $region38: #{tpu_custom_call.1} parent=11 // pred_check_branch
          %546 = sbr.rel (%p544) target = $region40
        $region39: #{tpu_custom_call.1} parent=11 // pred_region
          %s548 = ssub.s32 64, 64
          %549 = vsyncadd [#allocation20], %s548
          %s550 = sshll.u32 [#allocation19], 4
          %s551 = int_to_ptr.vmem [resolvable:$true] %s550
          %556 = dma.hbm_to_vmem [thread:$0]  %s9, 64, %s551, [#allocation20], 16, 16, 1
        $region40: #{tpu_custom_call.1} parent=11 // pred_fallthru
          _
        // Predicated region
        $region41: #{tpu_custom_call.1} parent=11 // pred_check
          %p557 = pneg %p299
        $region42: #{tpu_custom_call.1} parent=11 // pred_check_branch
          %559 = sbr.rel (%p557) target = $region44
        $region43: #{tpu_custom_call.1} parent=11 // pred_region
          %s561 = ssub.s32 256, 256
          %562 = vsyncadd [#allocation20], %s561
          %s563 = sshll.u32 [#allocation21], 4
          %s564 = int_to_ptr.vmem [resolvable:$true] %s563
          %569 = dma.hbm_to_vmem [thread:$0]  %s10, 256, %s564, [#allocation20], 64, 64, 4
        $region44: #{tpu_custom_call.1} parent=11 // pred_fallthru
          _
        // Predicated region
        $region45: #{tpu_custom_call.1} parent=11 // pred_check
          %p570 = pneg %p320
        $region46: #{tpu_custom_call.1} parent=11 // pred_check_branch
          %572 = sbr.rel (%p570) target = $region48
        $region47: #{tpu_custom_call.1} parent=11 // pred_region
          %s574 = ssub.s32 16, 16
          %575 = vsyncadd [#allocation23], %s574
          %s577 = sshll.u32 [#allocation22], 4
          %s578 = int_to_ptr.vmem [resolvable:$true] %s577
          %580 = dma.hbm_to_vmem [thread:$0]  %s11, 16, %s578, [#allocation23]
        $region48: #{tpu_custom_call.1} parent=11 // pred_fallthru
          _
        // Predicated region
        $region49: #{tpu_custom_call.1} parent=11 // pred_check
          %p581 = pneg %p341
        $region50: #{tpu_custom_call.1} parent=11 // pred_check_branch
          %583 = sbr.rel (%p581) target = $region52
        $region51: #{tpu_custom_call.1} parent=11 // pred_region
          %s585 = ssub.s32 16, 16
          %586 = vsyncadd [#allocation23], %s585
          %s588 = sshll.u32 [#allocation24], 4
          %s589 = int_to_ptr.vmem [resolvable:$true] %s588
          %591 = dma.hbm_to_vmem [thread:$0]  %s12, 16, %s589, [#allocation23]
        $region52: #{tpu_custom_call.1} parent=11 // pred_fallthru
          _
        // Predicated region
        $region53: #{tpu_custom_call.1} parent=11 // pred_check
          %p592 = pneg %p362
        $region54: #{tpu_custom_call.1} parent=11 // pred_check_branch
          %594 = sbr.rel (%p592) target = $region56
        $region55: #{tpu_custom_call.1} parent=11 // pred_region
          %s596 = ssub.s32 256, 256
          %597 = vsyncadd [#allocation26], %s596
          %s598 = sshll.u32 [#allocation25], 4
          %s599 = int_to_ptr.vmem [resolvable:$true] %s598
          %604 = dma.hbm_to_vmem [thread:$0]  %s13, 256, %s599, [#allocation26], 64, 64, 4
        $region56: #{tpu_custom_call.1} parent=11 // pred_fallthru
          _
        // Predicated region
        $region57: #{tpu_custom_call.1} parent=11 // pred_check
          %p605 = pneg %p383
        $region58: #{tpu_custom_call.1} parent=11 // pred_check_branch
          %607 = sbr.rel (%p605) target = $region60
        $region59: #{tpu_custom_call.1} parent=11 // pred_region
          %s609 = ssub.s32 16, 16
          %610 = vsyncadd [#allocation26], %s609
          %s612 = sshll.u32 [#allocation27], 4
          %s613 = int_to_ptr.vmem [resolvable:$true] %s612
          %615 = dma.hbm_to_vmem [thread:$0]  %s14, 16, %s613, [#allocation26]
        $region60: #{tpu_custom_call.1} parent=11 // pred_fallthru
          _
        // Predicated region
        $region61: #{tpu_custom_call.1} parent=11 // pred_check
          %p616 = pneg %p404
        $region62: #{tpu_custom_call.1} parent=11 // pred_check_branch
          %618 = sbr.rel (%p616) target = $region64
        $region63: #{tpu_custom_call.1} parent=11 // pred_region
          %s620 = ssub.s32 512, 512
          %621 = vsyncadd [#allocation29], %s620
          %s622 = sshll.u32 [#allocation28], 4
          %s623 = int_to_ptr.vmem [resolvable:$true] %s622
          %628 = dma.hbm_to_vmem [thread:$0]  %s15, 512, %s623, [#allocation29], 64, 64, 4
        $region64: #{tpu_custom_call.1} parent=11 // pred_fallthru
          _
        // Predicated region
        $region65: #{tpu_custom_call.1} parent=11 // pred_check
          %p629 = pneg %p425
        $region66: #{tpu_custom_call.1} parent=11 // pred_check_branch
          %631 = sbr.rel (%p629) target = $region68
        $region67: #{tpu_custom_call.1} parent=11 // pred_region
          %s633 = ssub.s32 16, 16
          %634 = vsyncadd [#allocation29], %s633
          %s636 = sshll.u32 [#allocation30], 4
          %s637 = int_to_ptr.vmem [resolvable:$true] %s636
          %639 = dma.hbm_to_vmem [thread:$0]  %s16, 16, %s637, [#allocation29]
        $region68: #{tpu_custom_call.1} parent=11 // pred_fallthru
          _
      $region12: #{tpu_custom_call.1} parent=5 // pred_fallthru
        _
      %p640 = scmp.lt.s32.totalorder %s39, 2
      // Predicated region
      $region69: #{tpu_custom_call.1} parent=5 // pred_check
        %p641 = pneg %p640
      $region70: #{tpu_custom_call.1} parent=5 // pred_check_branch
        %643 = sbr.rel (%p641) target = $region72
      $region71: #{tpu_custom_call.1} parent=5 // pred_region
        // Predicated region
        $region73: #{tpu_custom_call.1} parent=71 // pred_check
          %p644 = pneg %p73
        $region74: #{tpu_custom_call.1} parent=71 // pred_check_branch
          %646 = sbr.rel (%p644) target = $region76
        $region75: #{tpu_custom_call.1} parent=71 // pred_region
          %s647 = sand.u32 %s63, 1
          %s648 = scalar_lea.sflag [#allocation5], %s647
          %s649 = sand.u32 %s63, 1
          %s650 = smul.addr %s649, 8
          %s651 = scalar_lea.vmem [#allocation4], %s650
          %s653 = ssub.s32 128, 128
          %654 = vsyncadd %s648, %s653
          %s655 = sadd.s32 %s47, %s46
          %s656 = smul.addr %s655, 128
          %s657 = scalar_lea.hbm %s0, %s656
          %s659 = sshll.u32 %s651, 4
          %s660 = int_to_ptr.vmem [resolvable:$true] %s659
          %662 = dma.hbm_to_vmem [thread:$0]  %s657, 128, %s660, %s648
        $region76: #{tpu_custom_call.1} parent=71 // pred_fallthru
          _
        // Predicated region
        $region77: #{tpu_custom_call.1} parent=71 // pred_check
          %p663 = pneg %p99
        $region78: #{tpu_custom_call.1} parent=71 // pred_check_branch
          %665 = sbr.rel (%p663) target = $region80
        $region79: #{tpu_custom_call.1} parent=71 // pred_region
          %s666 = sand.u32 %s39, 1
          %s667 = scalar_lea.sflag [#allocation8], %s666
          %s668 = sand.u32 %s89, 1
          %s669 = smul.addr %s668, 8
          %s670 = scalar_lea.vmem [#allocation7], %s669
          %s672 = ssub.s32 128, 128
          %673 = vsyncadd %s667, %s672
          %s674 = smul.addr %s46, 2
          %s675 = smul.addr %s674, 64
          %s676 = scalar_lea.hbm %s1, %s675
          %s677 = sshll.u32 %s670, 4
          %s678 = int_to_ptr.vmem [resolvable:$true] %s677
          %683 = dma.hbm_to_vmem [thread:$0]  %s676, 128, %s678, %s667, 64, 64, 4
        $region80: #{tpu_custom_call.1} parent=71 // pred_fallthru
          _
        // Predicated region
        $region81: #{tpu_custom_call.1} parent=71 // pred_check
          %p684 = pneg %p125
        $region82: #{tpu_custom_call.1} parent=71 // pred_check_branch
          %686 = sbr.rel (%p684) target = $region84
        $region83: #{tpu_custom_call.1} parent=71 // pred_region
          %s687 = sand.u32 %s39, 1
          %s688 = scalar_lea.sflag [#allocation8], %s687
          %s689 = sand.u32 %s115, 1
          %s690 = scalar_lea.vmem [#allocation9], %s689
          %s692 = ssub.s32 16, 16
          %693 = vsyncadd %s688, %s692
          %s694 = smul.addr %s46, 16
          %s695 = scalar_lea.hbm %s2, %s694
          %s697 = sshll.u32 %s690, 4
          %s698 = int_to_ptr.vmem [resolvable:$true] %s697
          %700 = dma.hbm_to_vmem [thread:$0]  %s695, 16, %s698, %s688
        $region84: #{tpu_custom_call.1} parent=71 // pred_fallthru
          _
      $region72: #{tpu_custom_call.1} parent=5 // pred_fallthru
        _
      %p701 = scmp.le.s32.totalorder 1, %s39
      %p702 = scmp.lt.s32.totalorder %s39, 3
      %p703 = pnand %p701, %p702
      %p704 = pneg %p703
      // Predicated region
      $region85: #{tpu_custom_call.1} parent=5 // pred_check
        _
      $region86: #{tpu_custom_call.1} parent=5 // pred_check_branch
        %706 = sbr.rel (%p703) target = $region88
      $region87: #{tpu_custom_call.1} parent=5 // pred_region
        %s707 = ssub.s32 %s39, 1
        %s708 = sand.u32 %s66, 1
        %s709 = scalar_lea.sflag [#allocation5], %s708
        %s710 = sand.u32 %s66, 1
        %s711 = smul.addr %s710, 8
        %s712 = scalar_lea.vmem [#allocation4], %s711
        // Predicated region
        $region89: #{tpu_custom_call.1} parent=87 // pred_check
          %p713 = pneg %p79
        $region90: #{tpu_custom_call.1} parent=87 // pred_check_branch
          %715 = sbr.rel (%p713) target = $region92
        $region91: #{tpu_custom_call.1} parent=87 // pred_region
          %716 = dma.done %s709, 128
        $region92: #{tpu_custom_call.1} parent=87 // pred_fallthru
          _
        %s717 = sand.u32 %s44, 1
        %s718 = scalar_lea.sflag [#allocation8], %s717
        %s719 = sand.u32 %s92, 1
        %s720 = smul.addr %s719, 8
        %s721 = scalar_lea.vmem [#allocation7], %s720
        // Predicated region
        $region93: #{tpu_custom_call.1} parent=87 // pred_check
          %p722 = pneg %p105
        $region94: #{tpu_custom_call.1} parent=87 // pred_check_branch
          %724 = sbr.rel (%p722) target = $region96
        $region95: #{tpu_custom_call.1} parent=87 // pred_region
          %725 = dma.done %s718, 128
        $region96: #{tpu_custom_call.1} parent=87 // pred_fallthru
          _
        %s726 = sand.u32 %s44, 1
        %s727 = scalar_lea.sflag [#allocation8], %s726
        %s728 = sand.u32 %s118, 1
        %s729 = scalar_lea.vmem [#allocation9], %s728
        // Predicated region
        $region97: #{tpu_custom_call.1} parent=87 // pred_check
          %p730 = pneg %p131
        $region98: #{tpu_custom_call.1} parent=87 // pred_check_branch
          %732 = sbr.rel (%p730) target = $region100
        $region99: #{tpu_custom_call.1} parent=87 // pred_region
          %733 = dma.done %s727, 16
        $region100: #{tpu_custom_call.1} parent=87 // pred_fallthru
          _
        // Predicated region
        $region101: #{tpu_custom_call.1} parent=87 // pred_check
          %p734 = pneg %p152
        $region102: #{tpu_custom_call.1} parent=87 // pred_check_branch
          %736 = sbr.rel (%p734) target = $region104
        $region103: #{tpu_custom_call.1} parent=87 // pred_region
          %737 = dma.done [#allocation11], 16
        $region104: #{tpu_custom_call.1} parent=87 // pred_fallthru
          _
        // Predicated region
        $region105: #{tpu_custom_call.1} parent=87 // pred_check
          %p738 = pneg %p173
        $region106: #{tpu_custom_call.1} parent=87 // pred_check_branch
          %740 = sbr.rel (%p738) target = $region108
        $region107: #{tpu_custom_call.1} parent=87 // pred_region
          %741 = dma.done [#allocation11], 1024
        $region108: #{tpu_custom_call.1} parent=87 // pred_fallthru
          _
        // Predicated region
        $region109: #{tpu_custom_call.1} parent=87 // pred_check
          %p742 = pneg %p194
        $region110: #{tpu_custom_call.1} parent=87 // pred_check_branch
          %744 = sbr.rel (%p742) target = $region112
        $region111: #{tpu_custom_call.1} parent=87 // pred_region
          %745 = dma.done [#allocation14], 64
        $region112: #{tpu_custom_call.1} parent=87 // pred_fallthru
          _
        // Predicated region
        $region113: #{tpu_custom_call.1} parent=87 // pred_check
          %p746 = pneg %p215
        $region114: #{tpu_custom_call.1} parent=87 // pred_check_branch
          %748 = sbr.rel (%p746) target = $region116
        $region115: #{tpu_custom_call.1} parent=87 // pred_region
          %749 = dma.done [#allocation14], 1024
        $region116: #{tpu_custom_call.1} parent=87 // pred_fallthru
          _
        // Predicated region
        $region117: #{tpu_custom_call.1} parent=87 // pred_check
          %p750 = pneg %p236
        $region118: #{tpu_custom_call.1} parent=87 // pred_check_branch
          %752 = sbr.rel (%p750) target = $region120
        $region119: #{tpu_custom_call.1} parent=87 // pred_region
          %753 = dma.done [#allocation17], 64
        $region120: #{tpu_custom_call.1} parent=87 // pred_fallthru
          _
        // Predicated region
        $region121: #{tpu_custom_call.1} parent=87 // pred_check
          %p754 = pneg %p257
        $region122: #{tpu_custom_call.1} parent=87 // pred_check_branch
          %756 = sbr.rel (%p754) target = $region124
        $region123: #{tpu_custom_call.1} parent=87 // pred_region
          %757 = dma.done [#allocation17], 1024
        $region124: #{tpu_custom_call.1} parent=87 // pred_fallthru
          _
        // Predicated region
        $region125: #{tpu_custom_call.1} parent=87 // pred_check
          %p758 = pneg %p278
        $region126: #{tpu_custom_call.1} parent=87 // pred_check_branch
          %760 = sbr.rel (%p758) target = $region128
        $region127: #{tpu_custom_call.1} parent=87 // pred_region
          %761 = dma.done [#allocation20], 64
        $region128: #{tpu_custom_call.1} parent=87 // pred_fallthru
          _
        // Predicated region
        $region129: #{tpu_custom_call.1} parent=87 // pred_check
          %p762 = pneg %p299
        $region130: #{tpu_custom_call.1} parent=87 // pred_check_branch
          %764 = sbr.rel (%p762) target = $region132
        $region131: #{tpu_custom_call.1} parent=87 // pred_region
          %765 = dma.done [#allocation20], 256
        $region132: #{tpu_custom_call.1} parent=87 // pred_fallthru
          _
        // Predicated region
        $region133: #{tpu_custom_call.1} parent=87 // pred_check
          %p766 = pneg %p320
        $region134: #{tpu_custom_call.1} parent=87 // pred_check_branch
          %768 = sbr.rel (%p766) target = $region136
        $region135: #{tpu_custom_call.1} parent=87 // pred_region
          %769 = dma.done [#allocation23], 16
        $region136: #{tpu_custom_call.1} parent=87 // pred_fallthru
          _
        // Predicated region
        $region137: #{tpu_custom_call.1} parent=87 // pred_check
          %p770 = pneg %p341
        $region138: #{tpu_custom_call.1} parent=87 // pred_check_branch
          %772 = sbr.rel (%p770) target = $region140
        $region139: #{tpu_custom_call.1} parent=87 // pred_region
          %773 = dma.done [#allocation23], 16
        $region140: #{tpu_custom_call.1} parent=87 // pred_fallthru
          _
        // Predicated region
        $region141: #{tpu_custom_call.1} parent=87 // pred_check
          %p774 = pneg %p362
        $region142: #{tpu_custom_call.1} parent=87 // pred_check_branch
          %776 = sbr.rel (%p774) target = $region144
        $region143: #{tpu_custom_call.1} parent=87 // pred_region
          %777 = dma.done [#allocation26], 256
        $region144: #{tpu_custom_call.1} parent=87 // pred_fallthru
          _
        // Predicated region
        $region145: #{tpu_custom_call.1} parent=87 // pred_check
          %p778 = pneg %p383
        $region146: #{tpu_custom_call.1} parent=87 // pred_check_branch
          %780 = sbr.rel (%p778) target = $region148
        $region147: #{tpu_custom_call.1} parent=87 // pred_region
          %781 = dma.done [#allocation26], 16
        $region148: #{tpu_custom_call.1} parent=87 // pred_fallthru
          _
        // Predicated region
        $region149: #{tpu_custom_call.1} parent=87 // pred_check
          %p782 = pneg %p404
        $region150: #{tpu_custom_call.1} parent=87 // pred_check_branch
          %784 = sbr.rel (%p782) target = $region152
        $region151: #{tpu_custom_call.1} parent=87 // pred_region
          %785 = dma.done [#allocation29], 512
        $region152: #{tpu_custom_call.1} parent=87 // pred_fallthru
          _
        // Predicated region
        $region153: #{tpu_custom_call.1} parent=87 // pred_check
          %p786 = pneg %p425
        $region154: #{tpu_custom_call.1} parent=87 // pred_check_branch
          %788 = sbr.rel (%p786) target = $region156
        $region155: #{tpu_custom_call.1} parent=87 // pred_region
          %789 = dma.done [#allocation29], 16
        $region156: #{tpu_custom_call.1} parent=87 // pred_fallthru
          _
        %s790 = sand.u32 %s66, 1
        %s791 = scalar_lea.sflag [#allocation5], %s790
        %s792 = sand.u32 %s66, 1
        %s793 = smul.addr %s792, 8
        %s794 = scalar_lea.vmem [#allocation4], %s793
        %p795 = pneg %p79
        %p796 = pneg %p76
        %s797 = sand.u32 %s44, 1
        %s798 = scalar_lea.sflag [#allocation8], %s797
        %s799 = sand.u32 %s92, 1
        %s800 = smul.addr %s799, 8
        %s801 = scalar_lea.vmem [#allocation7], %s800
        %p802 = pneg %p105
        %p803 = pneg %p102
        %s804 = sand.u32 %s44, 1
        %s805 = scalar_lea.sflag [#allocation8], %s804
        %s806 = sand.u32 %s118, 1
        %s807 = scalar_lea.vmem [#allocation9], %s806
        %p808 = pneg %p131
        %p809 = pneg %p128
        %p810 = pneg %p152
        %p811 = pneg %p149
        %p812 = pneg %p173
        %p813 = pneg %p170
        %p814 = pneg %p194
        %p815 = pneg %p191
        %p816 = pneg %p215
        %p817 = pneg %p212
        %p818 = pneg %p236
        %p819 = pneg %p233
        %p820 = pneg %p257
        %p821 = pneg %p254
        %p822 = pneg %p278
        %p823 = pneg %p275
        %p824 = pneg %p299
        %p825 = pneg %p296
        %p826 = pneg %p320
        %p827 = pneg %p317
        %p828 = pneg %p341
        %p829 = pneg %p338
        %p830 = pneg %p362
        %p831 = pneg %p359
        %p832 = pneg %p383
        %p833 = pneg %p380
        %p834 = pneg %p404
        %p835 = pneg %p401
        %p836 = pneg %p425
        %p837 = pneg %p422
        %p838 = pneg %p453
        %p839 = pneg %p450
        %s840 = sand.u32 %s440, 1
        %s841 = scalar_lea.sflag [#allocation6], %s840
        %s842 = sand.u32 %s440, 1
        %s843 = smul.addr %s842, 8
        %s844 = scalar_lea.vmem [#allocation31], %s843
        %p846 = scmp.eq.s32.totalorder %s49, 0
        // Predicated region
        $region157: #{tpu_custom_call.1} parent=87 // pred_check
          %p847 = pneg %p846
        $region158: #{tpu_custom_call.1} parent=87 // pred_check_branch
          %849 = sbr.rel (%p847) target = $region160
        $region159: #{tpu_custom_call.1} parent=87 // pred_region
          %v850 = vld [vmem:[%s721] sm:$0xf]
          %v851 = vld [vmem:[%s721 + $0x4] sm:$0xf]
          %v852 = vld [vmem:[#allocation15] sm:$0xf]
          %v853 = vld [vmem:[#allocation15 + $0x4] sm:$0xf]
          %v854 = vld [vmem:[#allocation15 + $0x8] sm:$0xf]
          %v855 = vld [vmem:[#allocation15 + $0xc] sm:$0xf]
          %v856 = vld [vmem:[#allocation16] sm:$0x1]
          %v858 = vlaneseq
          %v859 = vshrl.u32 %v858, 7
          %v860 = vsub.s32 0, %v859
          %v861 = vrot.slane %v856, %v860
          %v865 = vunpack.c.l.b16 %v850
          %v866 = vunpack.c.l.b16 %v851
          %v867 = vpack.c.b16 %v866, %v865
          %v872 = vunpack.c.l.b16 %v852
          %v873 = vunpack.c.l.b16 %v853
          %v874 = vunpack.c.l.b16 %v854
          %v875 = vunpack.c.l.b16 %v855
          %v876 = vpack.c.b16 %v873, %v872
          %v877 = vpack.c.b16 %v875, %v874
          %vm880 = vcmask 261120
          %v882 = vsel %vm880, %v867, 0
          %884 = vmatprep.subr.bf16.mxu0 0
          %885 = vmatpush1.bf16.msra.mxu0 %v876
          %886 = vmatprep.subr.bf16.mxu0 0
          %887 = vmatpush1.bf16.msra.mxu0 %v877
          %888 = vmatprep.subr.bf16.mxu0 0
          %889 = vmatpush1.bf16.msra.mxu0 0
          %890 = vmatprep.subr.bf16.mxu0 0
          %891 = vmatpush1.bf16.msra.mxu0 0
          %892 = vmatprep.subr.bf16.mxu0 0
          %893 = vmatpush1.bf16.msra.mxu0 0
          %894 = vmatprep.subr.bf16.mxu0 0
          %895 = vmatpush1.bf16.msra.mxu0 0
          %896 = vmatprep.subr.bf16.mxu0 0
          %897 = vmatpush1.bf16.msra.mxu0 0
          %898 = vmatprep.subr.bf16.mxu0 0
          %899 = vmatpush1.bf16.msra.mxu0 0
          %900 = vmatprep.subr.bf16.mxu0 0
          %901 = vmatpush1.bf16.msra.mxu0 0
          %902 = vmatprep.subr.bf16.mxu0 0
          %903 = vmatpush1.bf16.msra.mxu0 0
          %904 = vmatprep.subr.bf16.mxu0 0
          %905 = vmatpush1.bf16.msra.mxu0 0
          %906 = vmatprep.subr.bf16.mxu0 0
          %907 = vmatpush1.bf16.msra.mxu0 0
          %908 = vmatprep.subr.bf16.mxu0 0
          %909 = vmatpush1.bf16.msra.mxu0 0
          %910 = vmatprep.subr.bf16.mxu0 0
          %911 = vmatpush1.bf16.msra.mxu0 0
          %912 = vmatprep.subr.bf16.mxu0 0
          %913 = vmatpush1.bf16.msra.mxu0 0
          %914 = vmatprep.subr.bf16.mxu0 0
          %915 = vmatpush1.bf16.msra.mxu0 0
          %916 = vmatprep.mubr.bf16.mxu0 0
          %917 = vmatmul.mubr.bf16.gmra.mrb[0].mxu0 %v882
          %v918 = vpop.f32.mrb[0].mxu0
          %v919 = vadd.f32 %v861, %v918
          %v920 = vpop.f32.mrb[0].mxu0
          %v921 = vpop.f32.mrb[0].mxu0
          %v922 = vadd.f32 %v861, %v921
          %v923 = vpop.f32.mrb[0].mxu0
          %924 = vdwg.mxu0
          %v925 = vld [vmem:[#allocation18] sm:$0xf]
          %v926 = vld [vmem:[#allocation18 + $0x4] sm:$0xf]
          %v927 = vld [vmem:[#allocation18 + $0x8] sm:$0xf]
          %v928 = vld [vmem:[#allocation18 + $0xc] sm:$0xf]
          %v929 = vld [vmem:[#allocation19] sm:$0x1]
          %v931 = vlaneseq
          %v932 = vshrl.u32 %v931, 7
          %v933 = vsub.s32 0, %v932
          %v934 = vrot.slane %v929, %v933
          %v940 = vunpack.c.l.b16 %v925
          %v941 = vunpack.c.l.b16 %v926
          %v942 = vunpack.c.l.b16 %v927
          %v943 = vunpack.c.l.b16 %v928
          %v944 = vpack.c.b16 %v941, %v940
          %v945 = vpack.c.b16 %v943, %v942
          %948 = vmatprep.subr.bf16.mxu0 0
          %949 = vmatpush1.bf16.msra.mxu0 %v944
          %950 = vmatprep.subr.bf16.mxu0 0
          %951 = vmatpush1.bf16.msra.mxu0 %v945
          %952 = vmatprep.subr.bf16.mxu0 0
          %953 = vmatpush1.bf16.msra.mxu0 0
          %954 = vmatprep.subr.bf16.mxu0 0
          %955 = vmatpush1.bf16.msra.mxu0 0
          %956 = vmatprep.subr.bf16.mxu0 0
          %957 = vmatpush1.bf16.msra.mxu0 0
          %958 = vmatprep.subr.bf16.mxu0 0
          %959 = vmatpush1.bf16.msra.mxu0 0
          %960 = vmatprep.subr.bf16.mxu0 0
          %961 = vmatpush1.bf16.msra.mxu0 0
          %962 = vmatprep.subr.bf16.mxu0 0
          %963 = vmatpush1.bf16.msra.mxu0 0
          %964 = vmatprep.subr.bf16.mxu0 0
          %965 = vmatpush1.bf16.msra.mxu0 0
          %966 = vmatprep.subr.bf16.mxu0 0
          %967 = vmatpush1.bf16.msra.mxu0 0
          %968 = vmatprep.subr.bf16.mxu0 0
          %969 = vmatpush1.bf16.msra.mxu0 0
          %970 = vmatprep.subr.bf16.mxu0 0
          %971 = vmatpush1.bf16.msra.mxu0 0
          %972 = vmatprep.subr.bf16.mxu0 0
          %973 = vmatpush1.bf16.msra.mxu0 0
          %974 = vmatprep.subr.bf16.mxu0 0
          %975 = vmatpush1.bf16.msra.mxu0 0
          %976 = vmatprep.subr.bf16.mxu0 0
          %977 = vmatpush1.bf16.msra.mxu0 0
          %978 = vmatprep.subr.bf16.mxu0 0
          %979 = vmatpush1.bf16.msra.mxu0 0
          %980 = vmatprep.mubr.bf16.mxu0 0
          %981 = vmatmul.mubr.bf16.gmra.mrb[0].mxu0 %v882
          %v982 = vpop.f32.mrb[0].mxu0
          %v983 = vadd.f32 %v934, %v982
          %v984 = vpop.f32.mrb[0].mxu0
          %v985 = vpop.f32.mrb[0].mxu0
          %v986 = vadd.f32 %v934, %v985
          %v987 = vpop.f32.mrb[0].mxu0
          %988 = vdwg.mxu0
          %v989 = vpack.c.bf16 %v922, %v919
          %vm990 = vcmask 64512
          %991 = vst.msk [vmem:[#allocation2] sm:$0xff] %vm990, %v989
          %v992 = vpack.c.bf16 %v986, %v983
          %993 = vst.msk [vmem:[#allocation3] sm:$0xff] %vm990, %v992
          %s994 = scalar_lea.vmem [#allocation15], 16
          %v995 = vld [vmem:[%s994] sm:$0xf]
          %v996 = vld [vmem:[%s994 + $0x4] sm:$0xf]
          %v997 = vld [vmem:[%s994 + $0x8] sm:$0xf]
          %v998 = vld [vmem:[%s994 + $0xc] sm:$0xf]
          %s999 = scalar_lea.vmem [#allocation16], 1
          %v1000 = vld [vmem:[%s999] sm:$0x1]
          %v1002 = vlaneseq
          %v1003 = vshrl.u32 %v1002, 7
          %v1004 = vsub.s32 0, %v1003
          %v1005 = vrot.slane %v1000, %v1004
          %v1011 = vunpack.c.l.b16 %v995
          %v1012 = vunpack.c.l.b16 %v996
          %v1013 = vunpack.c.l.b16 %v997
          %v1014 = vunpack.c.l.b16 %v998
          %v1015 = vpack.c.b16 %v1012, %v1011
          %v1016 = vpack.c.b16 %v1014, %v1013
          %1019 = vmatprep.subr.bf16.mxu0 0
          %1020 = vmatpush1.bf16.msra.mxu0 %v1015
          %1021 = vmatprep.subr.bf16.mxu0 0
          %1022 = vmatpush1.bf16.msra.mxu0 %v1016
          %1023 = vmatprep.subr.bf16.mxu0 0
          %1024 = vmatpush1.bf16.msra.mxu0 0
          %1025 = vmatprep.subr.bf16.mxu0 0
          %1026 = vmatpush1.bf16.msra.mxu0 0
          %1027 = vmatprep.subr.bf16.mxu0 0
          %1028 = vmatpush1.bf16.msra.mxu0 0
          %1029 = vmatprep.subr.bf16.mxu0 0
          %1030 = vmatpush1.bf16.msra.mxu0 0
          %1031 = vmatprep.subr.bf16.mxu0 0
          %1032 = vmatpush1.bf16.msra.mxu0 0
          %1033 = vmatprep.subr.bf16.mxu0 0
          %1034 = vmatpush1.bf16.msra.mxu0 0
          %1035 = vmatprep.subr.bf16.mxu0 0
          %1036 = vmatpush1.bf16.msra.mxu0 0
          %1037 = vmatprep.subr.bf16.mxu0 0
          %1038 = vmatpush1.bf16.msra.mxu0 0
          %1039 = vmatprep.subr.bf16.mxu0 0
          %1040 = vmatpush1.bf16.msra.mxu0 0
          %1041 = vmatprep.subr.bf16.mxu0 0
          %1042 = vmatpush1.bf16.msra.mxu0 0
          %1043 = vmatprep.subr.bf16.mxu0 0
          %1044 = vmatpush1.bf16.msra.mxu0 0
          %1045 = vmatprep.subr.bf16.mxu0 0
          %1046 = vmatpush1.bf16.msra.mxu0 0
          %1047 = vmatprep.subr.bf16.mxu0 0
          %1048 = vmatpush1.bf16.msra.mxu0 0
          %1049 = vmatprep.subr.bf16.mxu0 0
          %1050 = vmatpush1.bf16.msra.mxu0 0
          %1051 = vmatprep.mubr.bf16.mxu0 0
          %1052 = vmatmul.mubr.bf16.gmra.mrb[0].mxu0 %v882
          %v1053 = vpop.f32.mrb[0].mxu0
          %v1054 = vadd.f32 %v1005, %v1053
          %v1055 = vpop.f32.mrb[0].mxu0
          %v1056 = vpop.f32.mrb[0].mxu0
          %v1057 = vadd.f32 %v1005, %v1056
          %v1058 = vpop.f32.mrb[0].mxu0
          %1059 = vdwg.mxu0
          %s1060 = scalar_lea.vmem [#allocation18], 16
          %v1061 = vld [vmem:[%s1060] sm:$0xf]
          %v1062 = vld [vmem:[%s1060 + $0x4] sm:$0xf]
          %v1063 = vld [vmem:[%s1060 + $0x8] sm:$0xf]
          %v1064 = vld [vmem:[%s1060 + $0xc] sm:$0xf]
          %s1065 = scalar_lea.vmem [#allocation19], 1
          %v1066 = vld [vmem:[%s1065] sm:$0x1]
          %v1068 = vlaneseq
          %v1069 = vshrl.u32 %v1068, 7
          %v1070 = vsub.s32 0, %v1069
          %v1071 = vrot.slane %v1066, %v1070
          %v1077 = vunpack.c.l.b16 %v1061
          %v1078 = vunpack.c.l.b16 %v1062
          %v1079 = vunpack.c.l.b16 %v1063
          %v1080 = vunpack.c.l.b16 %v1064
          %v1081 = vpack.c.b16 %v1078, %v1077
          %v1082 = vpack.c.b16 %v1080, %v1079
          %1085 = vmatprep.subr.bf16.mxu0 0
          %1086 = vmatpush1.bf16.msra.mxu0 %v1081
          %1087 = vmatprep.subr.bf16.mxu0 0
          %1088 = vmatpush1.bf16.msra.mxu0 %v1082
          %1089 = vmatprep.subr.bf16.mxu0 0
          %1090 = vmatpush1.bf16.msra.mxu0 0
          %1091 = vmatprep.subr.bf16.mxu0 0
          %1092 = vmatpush1.bf16.msra.mxu0 0
          %1093 = vmatprep.subr.bf16.mxu0 0
          %1094 = vmatpush1.bf16.msra.mxu0 0
          %1095 = vmatprep.subr.bf16.mxu0 0
          %1096 = vmatpush1.bf16.msra.mxu0 0
          %1097 = vmatprep.subr.bf16.mxu0 0
          %1098 = vmatpush1.bf16.msra.mxu0 0
          %1099 = vmatprep.subr.bf16.mxu0 0
          %1100 = vmatpush1.bf16.msra.mxu0 0
          %1101 = vmatprep.subr.bf16.mxu0 0
          %1102 = vmatpush1.bf16.msra.mxu0 0
          %1103 = vmatprep.subr.bf16.mxu0 0
          %1104 = vmatpush1.bf16.msra.mxu0 0
          %1105 = vmatprep.subr.bf16.mxu0 0
          %1106 = vmatpush1.bf16.msra.mxu0 0
          %1107 = vmatprep.subr.bf16.mxu0 0
          %1108 = vmatpush1.bf16.msra.mxu0 0
          %1109 = vmatprep.subr.bf16.mxu0 0
          %1110 = vmatpush1.bf16.msra.mxu0 0
          %1111 = vmatprep.subr.bf16.mxu0 0
          %1112 = vmatpush1.bf16.msra.mxu0 0
          %1113 = vmatprep.subr.bf16.mxu0 0
          %1114 = vmatpush1.bf16.msra.mxu0 0
          %1115 = vmatprep.subr.bf16.mxu0 0
          %1116 = vmatpush1.bf16.msra.mxu0 0
          %1117 = vmatprep.mubr.bf16.mxu0 0
          %1118 = vmatmul.mubr.bf16.gmra.mrb[0].mxu0 %v882
          %v1119 = vpop.f32.mrb[0].mxu0
          %v1120 = vadd.f32 %v1071, %v1119
          %v1121 = vpop.f32.mrb[0].mxu0
          %v1122 = vpop.f32.mrb[0].mxu0
          %v1123 = vadd.f32 %v1071, %v1122
          %v1124 = vpop.f32.mrb[0].mxu0
          %1125 = vdwg.mxu0
          %v1126 = vpack.c.bf16 %v1057, %v1054
          %s1127 = scalar_lea.vmem [#allocation2], 8
          %1128 = vst.msk [vmem:[%s1127] sm:$0xff] %vm990, %v1126
          %v1129 = vpack.c.bf16 %v1123, %v1120
          %s1130 = scalar_lea.vmem [#allocation3], 8
          %1131 = vst.msk [vmem:[%s1130] sm:$0xff] %vm990, %v1129
          %s1132 = scalar_lea.vmem [#allocation15], 32
          %v1133 = vld [vmem:[%s1132] sm:$0xf]
          %v1134 = vld [vmem:[%s1132 + $0x4] sm:$0xf]
          %v1135 = vld [vmem:[%s1132 + $0x8] sm:$0xf]
          %v1136 = vld [vmem:[%s1132 + $0xc] sm:$0xf]
          %s1137 = scalar_lea.vmem [#allocation16], 2
          %v1138 = vld [vmem:[%s1137] sm:$0x1]
          %v1140 = vlaneseq
          %v1141 = vshrl.u32 %v1140, 7
          %v1142 = vsub.s32 0, %v1141
          %v1143 = vrot.slane %v1138, %v1142
          %v1149 = vunpack.c.l.b16 %v1133
          %v1150 = vunpack.c.l.b16 %v1134
          %v1151 = vunpack.c.l.b16 %v1135
          %v1152 = vunpack.c.l.b16 %v1136
          %v1153 = vpack.c.b16 %v1150, %v1149
          %v1154 = vpack.c.b16 %v1152, %v1151
          %1157 = vmatprep.subr.bf16.mxu0 0
          %1158 = vmatpush1.bf16.msra.mxu0 %v1153
          %1159 = vmatprep.subr.bf16.mxu0 0
          %1160 = vmatpush1.bf16.msra.mxu0 %v1154
          %1161 = vmatprep.subr.bf16.mxu0 0
          %1162 = vmatpush1.bf16.msra.mxu0 0
          %1163 = vmatprep.subr.bf16.mxu0 0
          %1164 = vmatpush1.bf16.msra.mxu0 0
          %1165 = vmatprep.subr.bf16.mxu0 0
          %1166 = vmatpush1.bf16.msra.mxu0 0
          %1167 = vmatprep.subr.bf16.mxu0 0
          %1168 = vmatpush1.bf16.msra.mxu0 0
          %1169 = vmatprep.subr.bf16.mxu0 0
          %1170 = vmatpush1.bf16.msra.mxu0 0
          %1171 = vmatprep.subr.bf16.mxu0 0
          %1172 = vmatpush1.bf16.msra.mxu0 0
          %1173 = vmatprep.subr.bf16.mxu0 0
          %1174 = vmatpush1.bf16.msra.mxu0 0
          %1175 = vmatprep.subr.bf16.mxu0 0
          %1176 = vmatpush1.bf16.msra.mxu0 0
          %1177 = vmatprep.subr.bf16.mxu0 0
          %1178 = vmatpush1.bf16.msra.mxu0 0
          %1179 = vmatprep.subr.bf16.mxu0 0
          %1180 = vmatpush1.bf16.msra.mxu0 0
          %1181 = vmatprep.subr.bf16.mxu0 0
          %1182 = vmatpush1.bf16.msra.mxu0 0
          %1183 = vmatprep.subr.bf16.mxu0 0
          %1184 = vmatpush1.bf16.msra.mxu0 0
          %1185 = vmatprep.subr.bf16.mxu0 0
          %1186 = vmatpush1.bf16.msra.mxu0 0
          %1187 = vmatprep.subr.bf16.mxu0 0
          %1188 = vmatpush1.bf16.msra.mxu0 0
          %1189 = vmatprep.mubr.bf16.mxu0 0
          %1190 = vmatmul.mubr.bf16.gmra.mrb[0].mxu0 %v882
          %v1191 = vpop.f32.mrb[0].mxu0
          %v1192 = vadd.f32 %v1143, %v1191
          %v1193 = vpop.f32.mrb[0].mxu0
          %v1194 = vpop.f32.mrb[0].mxu0
          %v1195 = vadd.f32 %v1143, %v1194
          %v1196 = vpop.f32.mrb[0].mxu0
          %1197 = vdwg.mxu0
          %s1198 = scalar_lea.vmem [#allocation18], 32
          %v1199 = vld [vmem:[%s1198] sm:$0xf]
          %v1200 = vld [vmem:[%s1198 + $0x4] sm:$0xf]
          %v1201 = vld [vmem:[%s1198 + $0x8] sm:$0xf]
          %v1202 = vld [vmem:[%s1198 + $0xc] sm:$0xf]
          %s1203 = scalar_lea.vmem [#allocation19], 2
          %v1204 = vld [vmem:[%s1203] sm:$0x1]
          %v1206 = vlaneseq
          %v1207 = vshrl.u32 %v1206, 7
          %v1208 = vsub.s32 0, %v1207
          %v1209 = vrot.slane %v1204, %v1208
          %v1215 = vunpack.c.l.b16 %v1199
          %v1216 = vunpack.c.l.b16 %v1200
          %v1217 = vunpack.c.l.b16 %v1201
          %v1218 = vunpack.c.l.b16 %v1202
          %v1219 = vpack.c.b16 %v1216, %v1215
          %v1220 = vpack.c.b16 %v1218, %v1217
          %1223 = vmatprep.subr.bf16.mxu0 0
          %1224 = vmatpush1.bf16.msra.mxu0 %v1219
          %1225 = vmatprep.subr.bf16.mxu0 0
          %1226 = vmatpush1.bf16.msra.mxu0 %v1220
          %1227 = vmatprep.subr.bf16.mxu0 0
          %1228 = vmatpush1.bf16.msra.mxu0 0
          %1229 = vmatprep.subr.bf16.mxu0 0
          %1230 = vmatpush1.bf16.msra.mxu0 0
          %1231 = vmatprep.subr.bf16.mxu0 0
          %1232 = vmatpush1.bf16.msra.mxu0 0
          %1233 = vmatprep.subr.bf16.mxu0 0
          %1234 = vmatpush1.bf16.msra.mxu0 0
          %1235 = vmatprep.subr.bf16.mxu0 0
          %1236 = vmatpush1.bf16.msra.mxu0 0
          %1237 = vmatprep.subr.bf16.mxu0 0
          %1238 = vmatpush1.bf16.msra.mxu0 0
          %1239 = vmatprep.subr.bf16.mxu0 0
          %1240 = vmatpush1.bf16.msra.mxu0 0
          %1241 = vmatprep.subr.bf16.mxu0 0
          %1242 = vmatpush1.bf16.msra.mxu0 0
          %1243 = vmatprep.subr.bf16.mxu0 0
          %1244 = vmatpush1.bf16.msra.mxu0 0
          %1245 = vmatprep.subr.bf16.mxu0 0
          %1246 = vmatpush1.bf16.msra.mxu0 0
          %1247 = vmatprep.subr.bf16.mxu0 0
          %1248 = vmatpush1.bf16.msra.mxu0 0
          %1249 = vmatprep.subr.bf16.mxu0 0
          %1250 = vmatpush1.bf16.msra.mxu0 0
          %1251 = vmatprep.subr.bf16.mxu0 0
          %1252 = vmatpush1.bf16.msra.mxu0 0
          %1253 = vmatprep.subr.bf16.mxu0 0
          %1254 = vmatpush1.bf16.msra.mxu0 0
          %1255 = vmatprep.mubr.bf16.mxu0 0
          %1256 = vmatmul.mubr.bf16.gmra.mrb[0].mxu0 %v882
          %v1257 = vpop.f32.mrb[0].mxu0
          %v1258 = vadd.f32 %v1209, %v1257
          %v1259 = vpop.f32.mrb[0].mxu0
          %v1260 = vpop.f32.mrb[0].mxu0
          %v1261 = vadd.f32 %v1209, %v1260
          %v1262 = vpop.f32.mrb[0].mxu0
          %1263 = vdwg.mxu0
          %v1264 = vpack.c.bf16 %v1195, %v1192
          %s1265 = scalar_lea.vmem [#allocation2], 16
          %1266 = vst.msk [vmem:[%s1265] sm:$0xff] %vm990, %v1264
          %v1267 = vpack.c.bf16 %v1261, %v1258
          %s1268 = scalar_lea.vmem [#allocation3], 16
          %1269 = vst.msk [vmem:[%s1268] sm:$0xff] %vm990, %v1267
          %s1270 = scalar_lea.vmem [#allocation15], 48
          %v1271 = vld [vmem:[%s1270] sm:$0xf]
          %v1272 = vld [vmem:[%s1270 + $0x4] sm:$0xf]
          %v1273 = vld [vmem:[%s1270 + $0x8] sm:$0xf]
          %v1274 = vld [vmem:[%s1270 + $0xc] sm:$0xf]
          %s1275 = scalar_lea.vmem [#allocation16], 3
          %v1276 = vld [vmem:[%s1275] sm:$0x1]
          %v1278 = vlaneseq
          %v1279 = vshrl.u32 %v1278, 7
          %v1280 = vsub.s32 0, %v1279
          %v1281 = vrot.slane %v1276, %v1280
          %v1287 = vunpack.c.l.b16 %v1271
          %v1288 = vunpack.c.l.b16 %v1272
          %v1289 = vunpack.c.l.b16 %v1273
          %v1290 = vunpack.c.l.b16 %v1274
          %v1291 = vpack.c.b16 %v1288, %v1287
          %v1292 = vpack.c.b16 %v1290, %v1289
          %1295 = vmatprep.subr.bf16.mxu0 0
          %1296 = vmatpush1.bf16.msra.mxu0 %v1291
          %1297 = vmatprep.subr.bf16.mxu0 0
          %1298 = vmatpush1.bf16.msra.mxu0 %v1292
          %1299 = vmatprep.subr.bf16.mxu0 0
          %1300 = vmatpush1.bf16.msra.mxu0 0
          %1301 = vmatprep.subr.bf16.mxu0 0
          %1302 = vmatpush1.bf16.msra.mxu0 0
          %1303 = vmatprep.subr.bf16.mxu0 0
          %1304 = vmatpush1.bf16.msra.mxu0 0
          %1305 = vmatprep.subr.bf16.mxu0 0
          %1306 = vmatpush1.bf16.msra.mxu0 0
          %1307 = vmatprep.subr.bf16.mxu0 0
          %1308 = vmatpush1.bf16.msra.mxu0 0
          %1309 = vmatprep.subr.bf16.mxu0 0
          %1310 = vmatpush1.bf16.msra.mxu0 0
          %1311 = vmatprep.subr.bf16.mxu0 0
          %1312 = vmatpush1.bf16.msra.mxu0 0
          %1313 = vmatprep.subr.bf16.mxu0 0
          %1314 = vmatpush1.bf16.msra.mxu0 0
          %1315 = vmatprep.subr.bf16.mxu0 0
          %1316 = vmatpush1.bf16.msra.mxu0 0
          %1317 = vmatprep.subr.bf16.mxu0 0
          %1318 = vmatpush1.bf16.msra.mxu0 0
          %1319 = vmatprep.subr.bf16.mxu0 0
          %1320 = vmatpush1.bf16.msra.mxu0 0
          %1321 = vmatprep.subr.bf16.mxu0 0
          %1322 = vmatpush1.bf16.msra.mxu0 0
          %1323 = vmatprep.subr.bf16.mxu0 0
          %1324 = vmatpush1.bf16.msra.mxu0 0
          %1325 = vmatprep.subr.bf16.mxu0 0
          %1326 = vmatpush1.bf16.msra.mxu0 0
          %1327 = vmatprep.mubr.bf16.mxu0 0
          %1328 = vmatmul.mubr.bf16.gmra.mrb[0].mxu0 %v882
          %v1329 = vpop.f32.mrb[0].mxu0
          %v1330 = vadd.f32 %v1281, %v1329
          %v1331 = vpop.f32.mrb[0].mxu0
          %v1332 = vpop.f32.mrb[0].mxu0
          %v1333 = vadd.f32 %v1281, %v1332
          %v1334 = vpop.f32.mrb[0].mxu0
          %1335 = vdwg.mxu0
          %s1336 = scalar_lea.vmem [#allocation18], 48
          %v1337 = vld [vmem:[%s1336] sm:$0xf]
          %v1338 = vld [vmem:[%s1336 + $0x4] sm:$0xf]
          %v1339 = vld [vmem:[%s1336 + $0x8] sm:$0xf]
          %v1340 = vld [vmem:[%s1336 + $0xc] sm:$0xf]
          %s1341 = scalar_lea.vmem [#allocation19], 3
          %v1342 = vld [vmem:[%s1341] sm:$0x1]
          %v1344 = vlaneseq
          %v1345 = vshrl.u32 %v1344, 7
          %v1346 = vsub.s32 0, %v1345
          %v1347 = vrot.slane %v1342, %v1346
          %v1353 = vunpack.c.l.b16 %v1337
          %v1354 = vunpack.c.l.b16 %v1338
          %v1355 = vunpack.c.l.b16 %v1339
          %v1356 = vunpack.c.l.b16 %v1340
          %v1357 = vpack.c.b16 %v1354, %v1353
          %v1358 = vpack.c.b16 %v1356, %v1355
          %1361 = vmatprep.subr.bf16.mxu0 0
          %1362 = vmatpush1.bf16.msra.mxu0 %v1357
          %1363 = vmatprep.subr.bf16.mxu0 0
          %1364 = vmatpush1.bf16.msra.mxu0 %v1358
          %1365 = vmatprep.subr.bf16.mxu0 0
          %1366 = vmatpush1.bf16.msra.mxu0 0
          %1367 = vmatprep.subr.bf16.mxu0 0
          %1368 = vmatpush1.bf16.msra.mxu0 0
          %1369 = vmatprep.subr.bf16.mxu0 0
          %1370 = vmatpush1.bf16.msra.mxu0 0
          %1371 = vmatprep.subr.bf16.mxu0 0
          %1372 = vmatpush1.bf16.msra.mxu0 0
          %1373 = vmatprep.subr.bf16.mxu0 0
          %1374 = vmatpush1.bf16.msra.mxu0 0
          %1375 = vmatprep.subr.bf16.mxu0 0
          %1376 = vmatpush1.bf16.msra.mxu0 0
          %1377 = vmatprep.subr.bf16.mxu0 0
          %1378 = vmatpush1.bf16.msra.mxu0 0
          %1379 = vmatprep.subr.bf16.mxu0 0
          %1380 = vmatpush1.bf16.msra.mxu0 0
          %1381 = vmatprep.subr.bf16.mxu0 0
          %1382 = vmatpush1.bf16.msra.mxu0 0
          %1383 = vmatprep.subr.bf16.mxu0 0
          %1384 = vmatpush1.bf16.msra.mxu0 0
          %1385 = vmatprep.subr.bf16.mxu0 0
          %1386 = vmatpush1.bf16.msra.mxu0 0
          %1387 = vmatprep.subr.bf16.mxu0 0
          %1388 = vmatpush1.bf16.msra.mxu0 0
          %1389 = vmatprep.subr.bf16.mxu0 0
          %1390 = vmatpush1.bf16.msra.mxu0 0
          %1391 = vmatprep.subr.bf16.mxu0 0
          %1392 = vmatpush1.bf16.msra.mxu0 0
          %1393 = vmatprep.mubr.bf16.mxu0 0
          %1394 = vmatmul.mubr.bf16.gmra.mrb[0].mxu0 %v882
          %v1395 = vpop.f32.mrb[0].mxu0
          %v1396 = vadd.f32 %v1347, %v1395
          %v1397 = vpop.f32.mrb[0].mxu0
          %v1398 = vpop.f32.mrb[0].mxu0
          %v1399 = vadd.f32 %v1347, %v1398
          %v1400 = vpop.f32.mrb[0].mxu0
          %1401 = vdwg.mxu0
          %v1402 = vpack.c.bf16 %v1333, %v1330
          %s1403 = scalar_lea.vmem [#allocation2], 24
          %1404 = vst.msk [vmem:[%s1403] sm:$0xff] %vm990, %v1402
          %v1405 = vpack.c.bf16 %v1399, %v1396
          %s1406 = scalar_lea.vmem [#allocation3], 24
          %1407 = vst.msk [vmem:[%s1406] sm:$0xff] %vm990, %v1405
        $region160: #{tpu_custom_call.1} parent=87 // pred_fallthru
          _
        %v1408 = vld [vmem:[%s712] sm:$0xff]
        %v1409 = vld [vmem:[%s729] sm:$0x1]
        %v1410 = vld [vmem:[#allocation10] sm:$0x1]
        %v1411 = vmul.f32 %v1408, %v1408
        %vm1412 = vcmask 261120
        %v1413 = vsel %vm1412, %v1411, 0.0
        %1414 = vadd.xlane.f32.xlu0 %v1413
        %v1415 = vpop.xlane.xlu0 %1414
        %v1416 = vrcp.pop 32.0
        %v1417 = vmul.f32 %v1415, %v1416
        %v1418 = vadd.f32 %v1417, 1.1920929e-07
        %v1419 = vrsqrt.pop %v1418
        %v1420 = vmul.f32 %v1408, %v1419
        %v1422 = vlaneseq
        %v1423 = vshrl.u32 %v1422, 7
        %v1424 = vsub.s32 0, %v1423
        %v1425 = vrot.slane %v1410, %v1424
        %v1427 = vmul.f32 %v1420, %v1425
        %v1428 = vpack.c.bf16 %v1427, %v1427
        %vm1429 = vcmp.gt.f32.partialorder %v1409, 0.0
        %v1430 = vsel %vm1429, 0.0, -1e+30
        %v1431 = vld [vmem:[#allocation12] sm:$0xf]
        %v1432 = vld [vmem:[#allocation12 + $0x4] sm:$0xf]
        %v1433 = vld [vmem:[#allocation12 + $0x8] sm:$0xf]
        %v1434 = vld [vmem:[#allocation12 + $0xc] sm:$0xf]
        %v1435 = vld [vmem:[#allocation13] sm:$0x1]
        %v1437 = vlaneseq
        %v1438 = vshrl.u32 %v1437, 7
        %v1439 = vsub.s32 0, %v1438
        %v1440 = vrot.slane %v1435, %v1439
        %v1446 = vunpack.c.l.b16 %v1431
        %v1447 = vunpack.c.l.b16 %v1432
        %v1448 = vunpack.c.l.b16 %v1433
        %v1449 = vunpack.c.l.b16 %v1434
        %v1450 = vpack.c.b16 %v1447, %v1446
        %v1451 = vpack.c.b16 %v1449, %v1448
        %v1455 = vsel %vm1412, %v1428, 0
        %1457 = vmatprep.subr.bf16.mxu0 0
        %1458 = vmatpush1.bf16.msra.mxu0 %v1450
        %1459 = vmatprep.subr.bf16.mxu0 0
        %1460 = vmatpush1.bf16.msra.mxu0 %v1451
        %1461 = vmatprep.subr.bf16.mxu0 0
        %1462 = vmatpush1.bf16.msra.mxu0 0
        %1463 = vmatprep.subr.bf16.mxu0 0
        %1464 = vmatpush1.bf16.msra.mxu0 0
        %1465 = vmatprep.subr.bf16.mxu0 0
        %1466 = vmatpush1.bf16.msra.mxu0 0
        %1467 = vmatprep.subr.bf16.mxu0 0
        %1468 = vmatpush1.bf16.msra.mxu0 0
        %1469 = vmatprep.subr.bf16.mxu0 0
        %1470 = vmatpush1.bf16.msra.mxu0 0
        %1471 = vmatprep.subr.bf16.mxu0 0
        %1472 = vmatpush1.bf16.msra.mxu0 0
        %1473 = vmatprep.subr.bf16.mxu0 0
        %1474 = vmatpush1.bf16.msra.mxu0 0
        %1475 = vmatprep.subr.bf16.mxu0 0
        %1476 = vmatpush1.bf16.msra.mxu0 0
        %1477 = vmatprep.subr.bf16.mxu0 0
        %1478 = vmatpush1.bf16.msra.mxu0 0
        %1479 = vmatprep.subr.bf16.mxu0 0
        %1480 = vmatpush1.bf16.msra.mxu0 0
        %1481 = vmatprep.subr.bf16.mxu0 0
        %1482 = vmatpush1.bf16.msra.mxu0 0
        %1483 = vmatprep.subr.bf16.mxu0 0
        %1484 = vmatpush1.bf16.msra.mxu0 0
        %1485 = vmatprep.subr.bf16.mxu0 0
        %1486 = vmatpush1.bf16.msra.mxu0 0
        %1487 = vmatprep.subr.bf16.mxu0 0
        %1488 = vmatpush1.bf16.msra.mxu0 0
        %1489 = vmatprep.mubr.bf16.mxu0 0
        %1490 = vmatmul.mubr.bf16.gmra.mrb[0].mxu0 %v1455
        %v1491 = vpop.f32.mrb[0].mxu0
        %v1492 = vadd.f32 %v1440, %v1491
        %v1493 = vpop.f32.mrb[0].mxu0
        %v1494 = vpop.f32.mrb[0].mxu0
        %v1495 = vpop.f32.mrb[0].mxu0
        %1496 = vdwg.mxu0
        %v1497 = vld [vmem:[#allocation2] sm:$0xff]
        %v1498 = vld [vmem:[#allocation3] sm:$0xff]
        %v1499 = vpack.c.bf16 %v1492, %v1492
        %v1501 = vlaneseq
        %v1502 = vshrl.u32 %v1501, 7
        %v1503 = vsub.s32 0, %v1502
        %v1504 = vrot.slane %v1430, %v1503
        %vm1506 = vcmask 64512
        %v1508 = vsel %vm1506, %v1499, 0
        %v1511 = vsel %vm1506, %v1497, 0
        %1513 = vmatprep.subr.bf16.mxu0 0
        %1514 = vmatpush1.bf16.xpose.msra.mxu0 %v1511
        %1515 = vmatprep.subr.bf16.mxu0 0
        %1516 = vmatpush1.bf16.xpose.msra.mxu0 0
        %1517 = vmatprep.subr.bf16.mxu0 0
        %1518 = vmatpush1.bf16.xpose.msra.mxu0 0
        %1519 = vmatprep.subr.bf16.mxu0 0
        %1520 = vmatpush1.bf16.xpose.msra.mxu0 0
        %1521 = vmatprep.subr.bf16.mxu0 0
        %1522 = vmatpush1.bf16.xpose.msra.mxu0 0
        %1523 = vmatprep.subr.bf16.mxu0 0
        %1524 = vmatpush1.bf16.xpose.msra.mxu0 0
        %1525 = vmatprep.subr.bf16.mxu0 0
        %1526 = vmatpush1.bf16.xpose.msra.mxu0 0
        %1527 = vmatprep.subr.bf16.mxu0 0
        %1528 = vmatpush1.bf16.xpose.msra.mxu0 0
        %1529 = vmatprep.subr.bf16.mxu0 0
        %1530 = vmatpush1.bf16.xpose.msra.mxu0 0
        %1531 = vmatprep.subr.bf16.mxu0 0
        %1532 = vmatpush1.bf16.xpose.msra.mxu0 0
        %1533 = vmatprep.subr.bf16.mxu0 0
        %1534 = vmatpush1.bf16.xpose.msra.mxu0 0
        %1535 = vmatprep.subr.bf16.mxu0 0
        %1536 = vmatpush1.bf16.xpose.msra.mxu0 0
        %1537 = vmatprep.subr.bf16.mxu0 0
        %1538 = vmatpush1.bf16.xpose.msra.mxu0 0
        %1539 = vmatprep.subr.bf16.mxu0 0
        %1540 = vmatpush1.bf16.xpose.msra.mxu0 0
        %1541 = vmatprep.subr.bf16.mxu0 0
        %1542 = vmatpush1.bf16.xpose.msra.mxu0 0
        %1543 = vmatprep.subr.bf16.mxu0 0
        %1544 = vmatpush1.bf16.xpose.msra.mxu0 0
        %1545 = vmatprep.mubr.bf16.mxu0 0
        %1546 = vmatmul.mubr.bf16.gmra.mrb[0].mxu0 %v1508
        %v1547 = vpop.f32.mrb[0].mxu0
        %v1548 = vadd.f32 %v1504, %v1547
        %v1549 = vpop.f32.mrb[0].mxu0
        %v1550 = vpop.f32.mrb[0].mxu0
        %v1551 = vpop.f32.mrb[0].mxu0
        %1552 = vdwg.mxu0
        %vm1553 = vcmask 130048
        %v1554 = vsel %vm1553, %v1548, -inf
        %1555 = vmax.xlane.f32.xlu0 %v1554
        %v1556 = vpop.xlane.xlu0 %1555
        %v1557 = vsub.f32 %v1548, %v1556
        %v1558 = vmul.f32 %v1557, 1.442695
        %v1559 = vpow.pop %v1558
        %v1560 = vsel %vm1553, %v1559, 0.0
        %1561 = vadd.xlane.f32.xlu0 %v1560
        %v1562 = vpop.xlane.xlu0 %1561
        %v1563 = vrcp.pop %v1562
        %v1564 = vmul.f32 %v1559, %v1563
        %v1565 = vpack.c.bf16 %v1564, %v1564
        %v1567 = vsel %vm1553, %v1565, 0
        %1569 = vmatprep.subr.bf16.mxu0 0
        %1570 = vmatpush1.bf16.msra.mxu0 %v1498
        %1571 = vmatprep.subr.bf16.mxu0 0
        %1572 = vmatpush1.bf16.msra.mxu0 0
        %1573 = vmatprep.subr.bf16.mxu0 0
        %1574 = vmatpush1.bf16.msra.mxu0 0
        %1575 = vmatprep.subr.bf16.mxu0 0
        %1576 = vmatpush1.bf16.msra.mxu0 0
        %1577 = vmatprep.subr.bf16.mxu0 0
        %1578 = vmatpush1.bf16.msra.mxu0 0
        %1579 = vmatprep.subr.bf16.mxu0 0
        %1580 = vmatpush1.bf16.msra.mxu0 0
        %1581 = vmatprep.subr.bf16.mxu0 0
        %1582 = vmatpush1.bf16.msra.mxu0 0
        %1583 = vmatprep.subr.bf16.mxu0 0
        %1584 = vmatpush1.bf16.msra.mxu0 0
        %1585 = vmatprep.subr.bf16.mxu0 0
        %1586 = vmatpush1.bf16.msra.mxu0 0
        %1587 = vmatprep.subr.bf16.mxu0 0
        %1588 = vmatpush1.bf16.msra.mxu0 0
        %1589 = vmatprep.subr.bf16.mxu0 0
        %1590 = vmatpush1.bf16.msra.mxu0 0
        %1591 = vmatprep.subr.bf16.mxu0 0
        %1592 = vmatpush1.bf16.msra.mxu0 0
        %1593 = vmatprep.subr.bf16.mxu0 0
        %1594 = vmatpush1.bf16.msra.mxu0 0
        %1595 = vmatprep.subr.bf16.mxu0 0
        %1596 = vmatpush1.bf16.msra.mxu0 0
        %1597 = vmatprep.subr.bf16.mxu0 0
        %1598 = vmatpush1.bf16.msra.mxu0 0
        %1599 = vmatprep.subr.bf16.mxu0 0
        %1600 = vmatpush1.bf16.msra.mxu0 0
        %1601 = vmatprep.mubr.bf16.mxu0 0
        %1602 = vmatmul.mubr.bf16.gmra.mrb[0].mxu0 %v1567
        %v1603 = vpop.f32.mrb[0].mxu0
        %v1604 = vadd.f32 0.0, %v1603
        %v1605 = vpop.f32.mrb[0].mxu0
        %v1606 = vpop.f32.mrb[0].mxu0
        %v1607 = vpop.f32.mrb[0].mxu0
        %1608 = vdwg.mxu0
        %v1609 = vpack.c.bf16 %v1604, %v1604
        %v1610 = vld [vmem:[#allocation21] sm:$0xf]
        %s1611 = scalar_lea.vmem [#allocation12], 16
        %v1612 = vld [vmem:[%s1611] sm:$0xf]
        %v1613 = vld [vmem:[%s1611 + $0x4] sm:$0xf]
        %v1614 = vld [vmem:[%s1611 + $0x8] sm:$0xf]
        %v1615 = vld [vmem:[%s1611 + $0xc] sm:$0xf]
        %s1616 = scalar_lea.vmem [#allocation13], 1
        %v1617 = vld [vmem:[%s1616] sm:$0x1]
        %v1619 = vlaneseq
        %v1620 = vshrl.u32 %v1619, 7
        %v1621 = vsub.s32 0, %v1620
        %v1622 = vrot.slane %v1617, %v1621
        %v1628 = vunpack.c.l.b16 %v1612
        %v1629 = vunpack.c.l.b16 %v1613
        %v1630 = vunpack.c.l.b16 %v1614
        %v1631 = vunpack.c.l.b16 %v1615
        %v1632 = vpack.c.b16 %v1629, %v1628
        %v1633 = vpack.c.b16 %v1631, %v1630
        %1636 = vmatprep.subr.bf16.mxu0 0
        %1637 = vmatpush1.bf16.msra.mxu0 %v1632
        %1638 = vmatprep.subr.bf16.mxu0 0
        %1639 = vmatpush1.bf16.msra.mxu0 %v1633
        %1640 = vmatprep.subr.bf16.mxu0 0
        %1641 = vmatpush1.bf16.msra.mxu0 0
        %1642 = vmatprep.subr.bf16.mxu0 0
        %1643 = vmatpush1.bf16.msra.mxu0 0
        %1644 = vmatprep.subr.bf16.mxu0 0
        %1645 = vmatpush1.bf16.msra.mxu0 0
        %1646 = vmatprep.subr.bf16.mxu0 0
        %1647 = vmatpush1.bf16.msra.mxu0 0
        %1648 = vmatprep.subr.bf16.mxu0 0
        %1649 = vmatpush1.bf16.msra.mxu0 0
        %1650 = vmatprep.subr.bf16.mxu0 0
        %1651 = vmatpush1.bf16.msra.mxu0 0
        %1652 = vmatprep.subr.bf16.mxu0 0
        %1653 = vmatpush1.bf16.msra.mxu0 0
        %1654 = vmatprep.subr.bf16.mxu0 0
        %1655 = vmatpush1.bf16.msra.mxu0 0
        %1656 = vmatprep.subr.bf16.mxu0 0
        %1657 = vmatpush1.bf16.msra.mxu0 0
        %1658 = vmatprep.subr.bf16.mxu0 0
        %1659 = vmatpush1.bf16.msra.mxu0 0
        %1660 = vmatprep.subr.bf16.mxu0 0
        %1661 = vmatpush1.bf16.msra.mxu0 0
        %1662 = vmatprep.subr.bf16.mxu0 0
        %1663 = vmatpush1.bf16.msra.mxu0 0
        %1664 = vmatprep.subr.bf16.mxu0 0
        %1665 = vmatpush1.bf16.msra.mxu0 0
        %1666 = vmatprep.subr.bf16.mxu0 0
        %1667 = vmatpush1.bf16.msra.mxu0 0
        %1668 = vmatprep.mubr.bf16.mxu0 0
        %1669 = vmatmul.mubr.bf16.gmra.mrb[0].mxu0 %v1455
        %v1670 = vpop.f32.mrb[0].mxu0
        %v1671 = vadd.f32 %v1622, %v1670
        %v1672 = vpop.f32.mrb[0].mxu0
        %v1673 = vpop.f32.mrb[0].mxu0
        %v1674 = vpop.f32.mrb[0].mxu0
        %1675 = vdwg.mxu0
        %s1676 = scalar_lea.vmem [#allocation2], 8
        %v1677 = vld [vmem:[%s1676] sm:$0xff]
        %s1678 = scalar_lea.vmem [#allocation3], 8
        %v1679 = vld [vmem:[%s1678] sm:$0xff]
        %v1680 = vpack.c.bf16 %v1671, %v1671
        %v1682 = vsel %vm1506, %v1680, 0
        %v1685 = vsel %vm1506, %v1677, 0
        %1687 = vmatprep.subr.bf16.mxu0 0
        %1688 = vmatpush1.bf16.xpose.msra.mxu0 %v1685
        %1689 = vmatprep.subr.bf16.mxu0 0
        %1690 = vmatpush1.bf16.xpose.msra.mxu0 0
        %1691 = vmatprep.subr.bf16.mxu0 0
        %1692 = vmatpush1.bf16.xpose.msra.mxu0 0
        %1693 = vmatprep.subr.bf16.mxu0 0
        %1694 = vmatpush1.bf16.xpose.msra.mxu0 0
        %1695 = vmatprep.subr.bf16.mxu0 0
        %1696 = vmatpush1.bf16.xpose.msra.mxu0 0
        %1697 = vmatprep.subr.bf16.mxu0 0
        %1698 = vmatpush1.bf16.xpose.msra.mxu0 0
        %1699 = vmatprep.subr.bf16.mxu0 0
        %1700 = vmatpush1.bf16.xpose.msra.mxu0 0
        %1701 = vmatprep.subr.bf16.mxu0 0
        %1702 = vmatpush1.bf16.xpose.msra.mxu0 0
        %1703 = vmatprep.subr.bf16.mxu0 0
        %1704 = vmatpush1.bf16.xpose.msra.mxu0 0
        %1705 = vmatprep.subr.bf16.mxu0 0
        %1706 = vmatpush1.bf16.xpose.msra.mxu0 0
        %1707 = vmatprep.subr.bf16.mxu0 0
        %1708 = vmatpush1.bf16.xpose.msra.mxu0 0
        %1709 = vmatprep.subr.bf16.mxu0 0
        %1710 = vmatpush1.bf16.xpose.msra.mxu0 0
        %1711 = vmatprep.subr.bf16.mxu0 0
        %1712 = vmatpush1.bf16.xpose.msra.mxu0 0
        %1713 = vmatprep.subr.bf16.mxu0 0
        %1714 = vmatpush1.bf16.xpose.msra.mxu0 0
        %1715 = vmatprep.subr.bf16.mxu0 0
        %1716 = vmatpush1.bf16.xpose.msra.mxu0 0
        %1717 = vmatprep.subr.bf16.mxu0 0
        %1718 = vmatpush1.bf16.xpose.msra.mxu0 0
        %1719 = vmatprep.mubr.bf16.mxu0 0
        %1720 = vmatmul.mubr.bf16.gmra.mrb[0].mxu0 %v1682
        %v1721 = vpop.f32.mrb[0].mxu0
        %v1722 = vadd.f32 %v1504, %v1721
        %v1723 = vpop.f32.mrb[0].mxu0
        %v1724 = vpop.f32.mrb[0].mxu0
        %v1725 = vpop.f32.mrb[0].mxu0
        %1726 = vdwg.mxu0
        %v1727 = vsel %vm1553, %v1722, -inf
        %1728 = vmax.xlane.f32.xlu0 %v1727
        %v1729 = vpop.xlane.xlu0 %1728
        %v1730 = vsub.f32 %v1722, %v1729
        %v1731 = vmul.f32 %v1730, 1.442695
        %v1732 = vpow.pop %v1731
        %v1733 = vsel %vm1553, %v1732, 0.0
        %1734 = vadd.xlane.f32.xlu0 %v1733
        %v1735 = vpop.xlane.xlu0 %1734
        %v1736 = vrcp.pop %v1735
        %v1737 = vmul.f32 %v1732, %v1736
        %v1738 = vpack.c.bf16 %v1737, %v1737
        %v1740 = vsel %vm1553, %v1738, 0
        %1742 = vmatprep.subr.bf16.mxu0 0
        %1743 = vmatpush1.bf16.msra.mxu0 %v1679
        %1744 = vmatprep.subr.bf16.mxu0 0
        %1745 = vmatpush1.bf16.msra.mxu0 0
        %1746 = vmatprep.subr.bf16.mxu0 0
        %1747 = vmatpush1.bf16.msra.mxu0 0
        %1748 = vmatprep.subr.bf16.mxu0 0
        %1749 = vmatpush1.bf16.msra.mxu0 0
        %1750 = vmatprep.subr.bf16.mxu0 0
        %1751 = vmatpush1.bf16.msra.mxu0 0
        %1752 = vmatprep.subr.bf16.mxu0 0
        %1753 = vmatpush1.bf16.msra.mxu0 0
        %1754 = vmatprep.subr.bf16.mxu0 0
        %1755 = vmatpush1.bf16.msra.mxu0 0
        %1756 = vmatprep.subr.bf16.mxu0 0
        %1757 = vmatpush1.bf16.msra.mxu0 0
        %1758 = vmatprep.subr.bf16.mxu0 0
        %1759 = vmatpush1.bf16.msra.mxu0 0
        %1760 = vmatprep.subr.bf16.mxu0 0
        %1761 = vmatpush1.bf16.msra.mxu0 0
        %1762 = vmatprep.subr.bf16.mxu0 0
        %1763 = vmatpush1.bf16.msra.mxu0 0
        %1764 = vmatprep.subr.bf16.mxu0 0
        %1765 = vmatpush1.bf16.msra.mxu0 0
        %1766 = vmatprep.subr.bf16.mxu0 0
        %1767 = vmatpush1.bf16.msra.mxu0 0
        %1768 = vmatprep.subr.bf16.mxu0 0
        %1769 = vmatpush1.bf16.msra.mxu0 0
        %1770 = vmatprep.subr.bf16.mxu0 0
        %1771 = vmatpush1.bf16.msra.mxu0 0
        %1772 = vmatprep.subr.bf16.mxu0 0
        %1773 = vmatpush1.bf16.msra.mxu0 0
        %1774 = vmatprep.mubr.bf16.mxu0 0
        %1775 = vmatmul.mubr.bf16.gmra.mrb[0].mxu0 %v1740
        %v1776 = vpop.f32.mrb[0].mxu0
        %v1777 = vadd.f32 0.0, %v1776
        %v1778 = vpop.f32.mrb[0].mxu0
        %v1779 = vpop.f32.mrb[0].mxu0
        %v1780 = vpop.f32.mrb[0].mxu0
        %1781 = vdwg.mxu0
        %v1782 = vpack.c.bf16 %v1777, %v1777
        %s1783 = scalar_lea.vmem [#allocation21], 4
        %v1784 = vld [vmem:[%s1783] sm:$0xf]
        %v1786 = vsel %vm1506, %v1782, 0
        %vm1788 = vcmask 1043456
        %v1790 = vsel %vm1788, %v1784, 0
        %1792 = vmatprep.subr.bf16.mxu0 0
        %1793 = vmatpush1.bf16.msra.mxu0 %v1790
        %1794 = vmatprep.subr.bf16.mxu0 0
        %1795 = vmatpush1.bf16.msra.mxu0 0
        %1796 = vmatprep.subr.bf16.mxu0 0
        %1797 = vmatpush1.bf16.msra.mxu0 0
        %1798 = vmatprep.subr.bf16.mxu0 0
        %1799 = vmatpush1.bf16.msra.mxu0 0
        %1800 = vmatprep.subr.bf16.mxu0 0
        %1801 = vmatpush1.bf16.msra.mxu0 0
        %1802 = vmatprep.subr.bf16.mxu0 0
        %1803 = vmatpush1.bf16.msra.mxu0 0
        %1804 = vmatprep.subr.bf16.mxu0 0
        %1805 = vmatpush1.bf16.msra.mxu0 0
        %1806 = vmatprep.subr.bf16.mxu0 0
        %1807 = vmatpush1.bf16.msra.mxu0 0
        %1808 = vmatprep.subr.bf16.mxu0 0
        %1809 = vmatpush1.bf16.msra.mxu0 0
        %1810 = vmatprep.subr.bf16.mxu0 0
        %1811 = vmatpush1.bf16.msra.mxu0 0
        %1812 = vmatprep.subr.bf16.mxu0 0
        %1813 = vmatpush1.bf16.msra.mxu0 0
        %1814 = vmatprep.subr.bf16.mxu0 0
        %1815 = vmatpush1.bf16.msra.mxu0 0
        %1816 = vmatprep.subr.bf16.mxu0 0
        %1817 = vmatpush1.bf16.msra.mxu0 0
        %1818 = vmatprep.subr.bf16.mxu0 0
        %1819 = vmatpush1.bf16.msra.mxu0 0
        %1820 = vmatprep.subr.bf16.mxu0 0
        %1821 = vmatpush1.bf16.msra.mxu0 0
        %1822 = vmatprep.subr.bf16.mxu0 0
        %1823 = vmatpush1.bf16.msra.mxu0 0
        %1824 = vmatprep.mubr.bf16.mxu0 0
        %1825 = vmatmul.mubr.bf16.gmra.mrb[0].mxu0 %v1786
        %v1826 = vpop.f32.mrb[0].mxu0
        %v1827 = vadd.f32 0.0, %v1826
        %v1828 = vpop.f32.mrb[0].mxu0
        %v1829 = vpop.f32.mrb[0].mxu0
        %v1830 = vpop.f32.mrb[0].mxu0
        %1831 = vdwg.mxu0
        %v1833 = vsel %vm1506, %v1609, 0
        %v1836 = vsel %vm1788, %v1610, 0
        %1838 = vmatprep.subr.bf16.mxu0 0
        %1839 = vmatpush1.bf16.msra.mxu0 %v1836
        %1840 = vmatprep.subr.bf16.mxu0 0
        %1841 = vmatpush1.bf16.msra.mxu0 0
        %1842 = vmatprep.subr.bf16.mxu0 0
        %1843 = vmatpush1.bf16.msra.mxu0 0
        %1844 = vmatprep.subr.bf16.mxu0 0
        %1845 = vmatpush1.bf16.msra.mxu0 0
        %1846 = vmatprep.subr.bf16.mxu0 0
        %1847 = vmatpush1.bf16.msra.mxu0 0
        %1848 = vmatprep.subr.bf16.mxu0 0
        %1849 = vmatpush1.bf16.msra.mxu0 0
        %1850 = vmatprep.subr.bf16.mxu0 0
        %1851 = vmatpush1.bf16.msra.mxu0 0
        %1852 = vmatprep.subr.bf16.mxu0 0
        %1853 = vmatpush1.bf16.msra.mxu0 0
        %1854 = vmatprep.subr.bf16.mxu0 0
        %1855 = vmatpush1.bf16.msra.mxu0 0
        %1856 = vmatprep.subr.bf16.mxu0 0
        %1857 = vmatpush1.bf16.msra.mxu0 0
        %1858 = vmatprep.subr.bf16.mxu0 0
        %1859 = vmatpush1.bf16.msra.mxu0 0
        %1860 = vmatprep.subr.bf16.mxu0 0
        %1861 = vmatpush1.bf16.msra.mxu0 0
        %1862 = vmatprep.subr.bf16.mxu0 0
        %1863 = vmatpush1.bf16.msra.mxu0 0
        %1864 = vmatprep.subr.bf16.mxu0 0
        %1865 = vmatpush1.bf16.msra.mxu0 0
        %1866 = vmatprep.subr.bf16.mxu0 0
        %1867 = vmatpush1.bf16.msra.mxu0 0
        %1868 = vmatprep.subr.bf16.mxu0 0
        %1869 = vmatpush1.bf16.msra.mxu0 0
        %1870 = vmatprep.mubr.bf16.mxu0 0
        %1871 = vmatmul.mubr.bf16.gmra.mrb[0].mxu0 %v1833
        %v1872 = vpop.f32.mrb[0].mxu0
        %v1873 = vadd.f32 %v1827, %v1872
        %v1874 = vpop.f32.mrb[0].mxu0
        %v1875 = vpop.f32.mrb[0].mxu0
        %v1876 = vpop.f32.mrb[0].mxu0
        %1877 = vdwg.mxu0
        %s1878 = scalar_lea.vmem [#allocation12], 32
        %v1879 = vld [vmem:[%s1878] sm:$0xf]
        %v1880 = vld [vmem:[%s1878 + $0x4] sm:$0xf]
        %v1881 = vld [vmem:[%s1878 + $0x8] sm:$0xf]
        %v1882 = vld [vmem:[%s1878 + $0xc] sm:$0xf]
        %s1883 = scalar_lea.vmem [#allocation13], 2
        %v1884 = vld [vmem:[%s1883] sm:$0x1]
        %v1886 = vlaneseq
        %v1887 = vshrl.u32 %v1886, 7
        %v1888 = vsub.s32 0, %v1887
        %v1889 = vrot.slane %v1884, %v1888
        %v1895 = vunpack.c.l.b16 %v1879
        %v1896 = vunpack.c.l.b16 %v1880
        %v1897 = vunpack.c.l.b16 %v1881
        %v1898 = vunpack.c.l.b16 %v1882
        %v1899 = vpack.c.b16 %v1896, %v1895
        %v1900 = vpack.c.b16 %v1898, %v1897
        %1903 = vmatprep.subr.bf16.mxu0 0
        %1904 = vmatpush1.bf16.msra.mxu0 %v1899
        %1905 = vmatprep.subr.bf16.mxu0 0
        %1906 = vmatpush1.bf16.msra.mxu0 %v1900
        %1907 = vmatprep.subr.bf16.mxu0 0
        %1908 = vmatpush1.bf16.msra.mxu0 0
        %1909 = vmatprep.subr.bf16.mxu0 0
        %1910 = vmatpush1.bf16.msra.mxu0 0
        %1911 = vmatprep.subr.bf16.mxu0 0
        %1912 = vmatpush1.bf16.msra.mxu0 0
        %1913 = vmatprep.subr.bf16.mxu0 0
        %1914 = vmatpush1.bf16.msra.mxu0 0
        %1915 = vmatprep.subr.bf16.mxu0 0
        %1916 = vmatpush1.bf16.msra.mxu0 0
        %1917 = vmatprep.subr.bf16.mxu0 0
        %1918 = vmatpush1.bf16.msra.mxu0 0
        %1919 = vmatprep.subr.bf16.mxu0 0
        %1920 = vmatpush1.bf16.msra.mxu0 0
        %1921 = vmatprep.subr.bf16.mxu0 0
        %1922 = vmatpush1.bf16.msra.mxu0 0
        %1923 = vmatprep.subr.bf16.mxu0 0
        %1924 = vmatpush1.bf16.msra.mxu0 0
        %1925 = vmatprep.subr.bf16.mxu0 0
        %1926 = vmatpush1.bf16.msra.mxu0 0
        %1927 = vmatprep.subr.bf16.mxu0 0
        %1928 = vmatpush1.bf16.msra.mxu0 0
        %1929 = vmatprep.subr.bf16.mxu0 0
        %1930 = vmatpush1.bf16.msra.mxu0 0
        %1931 = vmatprep.subr.bf16.mxu0 0
        %1932 = vmatpush1.bf16.msra.mxu0 0
        %1933 = vmatprep.subr.bf16.mxu0 0
        %1934 = vmatpush1.bf16.msra.mxu0 0
        %1935 = vmatprep.mubr.bf16.mxu0 0
        %1936 = vmatmul.mubr.bf16.gmra.mrb[0].mxu0 %v1455
        %v1937 = vpop.f32.mrb[0].mxu0
        %v1938 = vadd.f32 %v1889, %v1937
        %v1939 = vpop.f32.mrb[0].mxu0
        %v1940 = vpop.f32.mrb[0].mxu0
        %v1941 = vpop.f32.mrb[0].mxu0
        %1942 = vdwg.mxu0
        %s1943 = scalar_lea.vmem [#allocation2], 16
        %v1944 = vld [vmem:[%s1943] sm:$0xff]
        %s1945 = scalar_lea.vmem [#allocation3], 16
        %v1946 = vld [vmem:[%s1945] sm:$0xff]
        %v1947 = vpack.c.bf16 %v1938, %v1938
        %v1949 = vsel %vm1506, %v1947, 0
        %v1952 = vsel %vm1506, %v1944, 0
        %1954 = vmatprep.subr.bf16.mxu0 0
        %1955 = vmatpush1.bf16.xpose.msra.mxu0 %v1952
        %1956 = vmatprep.subr.bf16.mxu0 0
        %1957 = vmatpush1.bf16.xpose.msra.mxu0 0
        %1958 = vmatprep.subr.bf16.mxu0 0
        %1959 = vmatpush1.bf16.xpose.msra.mxu0 0
        %1960 = vmatprep.subr.bf16.mxu0 0
        %1961 = vmatpush1.bf16.xpose.msra.mxu0 0
        %1962 = vmatprep.subr.bf16.mxu0 0
        %1963 = vmatpush1.bf16.xpose.msra.mxu0 0
        %1964 = vmatprep.subr.bf16.mxu0 0
        %1965 = vmatpush1.bf16.xpose.msra.mxu0 0
        %1966 = vmatprep.subr.bf16.mxu0 0
        %1967 = vmatpush1.bf16.xpose.msra.mxu0 0
        %1968 = vmatprep.subr.bf16.mxu0 0
        %1969 = vmatpush1.bf16.xpose.msra.mxu0 0
        %1970 = vmatprep.subr.bf16.mxu0 0
        %1971 = vmatpush1.bf16.xpose.msra.mxu0 0
        %1972 = vmatprep.subr.bf16.mxu0 0
        %1973 = vmatpush1.bf16.xpose.msra.mxu0 0
        %1974 = vmatprep.subr.bf16.mxu0 0
        %1975 = vmatpush1.bf16.xpose.msra.mxu0 0
        %1976 = vmatprep.subr.bf16.mxu0 0
        %1977 = vmatpush1.bf16.xpose.msra.mxu0 0
        %1978 = vmatprep.subr.bf16.mxu0 0
        %1979 = vmatpush1.bf16.xpose.msra.mxu0 0
        %1980 = vmatprep.subr.bf16.mxu0 0
        %1981 = vmatpush1.bf16.xpose.msra.mxu0 0
        %1982 = vmatprep.subr.bf16.mxu0 0
        %1983 = vmatpush1.bf16.xpose.msra.mxu0 0
        %1984 = vmatprep.subr.bf16.mxu0 0
        %1985 = vmatpush1.bf16.xpose.msra.mxu0 0
        %1986 = vmatprep.mubr.bf16.mxu0 0
        %1987 = vmatmul.mubr.bf16.gmra.mrb[0].mxu0 %v1949
        %v1988 = vpop.f32.mrb[0].mxu0
        %v1989 = vadd.f32 %v1504, %v1988
        %v1990 = vpop.f32.mrb[0].mxu0
        %v1991 = vpop.f32.mrb[0].mxu0
        %v1992 = vpop.f32.mrb[0].mxu0
        %1993 = vdwg.mxu0
        %v1994 = vsel %vm1553, %v1989, -inf
        %1995 = vmax.xlane.f32.xlu0 %v1994
        %v1996 = vpop.xlane.xlu0 %1995
        %v1997 = vsub.f32 %v1989, %v1996
        %v1998 = vmul.f32 %v1997, 1.442695
        %v1999 = vpow.pop %v1998
        %v2000 = vsel %vm1553, %v1999, 0.0
        %2001 = vadd.xlane.f32.xlu0 %v2000
        %v2002 = vpop.xlane.xlu0 %2001
        %v2003 = vrcp.pop %v2002
        %v2004 = vmul.f32 %v1999, %v2003
        %v2005 = vpack.c.bf16 %v2004, %v2004
        %v2007 = vsel %vm1553, %v2005, 0
        %2009 = vmatprep.subr.bf16.mxu0 0
        %2010 = vmatpush1.bf16.msra.mxu0 %v1946
        %2011 = vmatprep.subr.bf16.mxu0 0
        %2012 = vmatpush1.bf16.msra.mxu0 0
        %2013 = vmatprep.subr.bf16.mxu0 0
        %2014 = vmatpush1.bf16.msra.mxu0 0
        %2015 = vmatprep.subr.bf16.mxu0 0
        %2016 = vmatpush1.bf16.msra.mxu0 0
        %2017 = vmatprep.subr.bf16.mxu0 0
        %2018 = vmatpush1.bf16.msra.mxu0 0
        %2019 = vmatprep.subr.bf16.mxu0 0
        %2020 = vmatpush1.bf16.msra.mxu0 0
        %2021 = vmatprep.subr.bf16.mxu0 0
        %2022 = vmatpush1.bf16.msra.mxu0 0
        %2023 = vmatprep.subr.bf16.mxu0 0
        %2024 = vmatpush1.bf16.msra.mxu0 0
        %2025 = vmatprep.subr.bf16.mxu0 0
        %2026 = vmatpush1.bf16.msra.mxu0 0
        %2027 = vmatprep.subr.bf16.mxu0 0
        %2028 = vmatpush1.bf16.msra.mxu0 0
        %2029 = vmatprep.subr.bf16.mxu0 0
        %2030 = vmatpush1.bf16.msra.mxu0 0
        %2031 = vmatprep.subr.bf16.mxu0 0
        %2032 = vmatpush1.bf16.msra.mxu0 0
        %2033 = vmatprep.subr.bf16.mxu0 0
        %2034 = vmatpush1.bf16.msra.mxu0 0
        %2035 = vmatprep.subr.bf16.mxu0 0
        %2036 = vmatpush1.bf16.msra.mxu0 0
        %2037 = vmatprep.subr.bf16.mxu0 0
        %2038 = vmatpush1.bf16.msra.mxu0 0
        %2039 = vmatprep.subr.bf16.mxu0 0
        %2040 = vmatpush1.bf16.msra.mxu0 0
        %2041 = vmatprep.mubr.bf16.mxu0 0
        %2042 = vmatmul.mubr.bf16.gmra.mrb[0].mxu0 %v2007
        %v2043 = vpop.f32.mrb[0].mxu0
        %v2044 = vadd.f32 0.0, %v2043
        %v2045 = vpop.f32.mrb[0].mxu0
        %v2046 = vpop.f32.mrb[0].mxu0
        %v2047 = vpop.f32.mrb[0].mxu0
        %2048 = vdwg.mxu0
        %v2049 = vpack.c.bf16 %v2044, %v2044
        %s2050 = scalar_lea.vmem [#allocation21], 8
        %v2051 = vld [vmem:[%s2050] sm:$0xf]
        %v2053 = vsel %vm1506, %v2049, 0
        %v2056 = vsel %vm1788, %v2051, 0
        %2058 = vmatprep.subr.bf16.mxu0 0
        %2059 = vmatpush1.bf16.msra.mxu0 %v2056
        %2060 = vmatprep.subr.bf16.mxu0 0
        %2061 = vmatpush1.bf16.msra.mxu0 0
        %2062 = vmatprep.subr.bf16.mxu0 0
        %2063 = vmatpush1.bf16.msra.mxu0 0
        %2064 = vmatprep.subr.bf16.mxu0 0
        %2065 = vmatpush1.bf16.msra.mxu0 0
        %2066 = vmatprep.subr.bf16.mxu0 0
        %2067 = vmatpush1.bf16.msra.mxu0 0
        %2068 = vmatprep.subr.bf16.mxu0 0
        %2069 = vmatpush1.bf16.msra.mxu0 0
        %2070 = vmatprep.subr.bf16.mxu0 0
        %2071 = vmatpush1.bf16.msra.mxu0 0
        %2072 = vmatprep.subr.bf16.mxu0 0
        %2073 = vmatpush1.bf16.msra.mxu0 0
        %2074 = vmatprep.subr.bf16.mxu0 0
        %2075 = vmatpush1.bf16.msra.mxu0 0
        %2076 = vmatprep.subr.bf16.mxu0 0
        %2077 = vmatpush1.bf16.msra.mxu0 0
        %2078 = vmatprep.subr.bf16.mxu0 0
        %2079 = vmatpush1.bf16.msra.mxu0 0
        %2080 = vmatprep.subr.bf16.mxu0 0
        %2081 = vmatpush1.bf16.msra.mxu0 0
        %2082 = vmatprep.subr.bf16.mxu0 0
        %2083 = vmatpush1.bf16.msra.mxu0 0
        %2084 = vmatprep.subr.bf16.mxu0 0
        %2085 = vmatpush1.bf16.msra.mxu0 0
        %2086 = vmatprep.subr.bf16.mxu0 0
        %2087 = vmatpush1.bf16.msra.mxu0 0
        %2088 = vmatprep.subr.bf16.mxu0 0
        %2089 = vmatpush1.bf16.msra.mxu0 0
        %2090 = vmatprep.mubr.bf16.mxu0 0
        %2091 = vmatmul.mubr.bf16.gmra.mrb[0].mxu0 %v2053
        %v2092 = vpop.f32.mrb[0].mxu0
        %v2093 = vadd.f32 0.0, %v2092
        %v2094 = vpop.f32.mrb[0].mxu0
        %v2095 = vpop.f32.mrb[0].mxu0
        %v2096 = vpop.f32.mrb[0].mxu0
        %2097 = vdwg.mxu0
        %v2098 = vadd.f32 %v1873, %v2093
        %s2099 = scalar_lea.vmem [#allocation12], 48
        %v2100 = vld [vmem:[%s2099] sm:$0xf]
        %v2101 = vld [vmem:[%s2099 + $0x4] sm:$0xf]
        %v2102 = vld [vmem:[%s2099 + $0x8] sm:$0xf]
        %v2103 = vld [vmem:[%s2099 + $0xc] sm:$0xf]
        %s2104 = scalar_lea.vmem [#allocation13], 3
        %v2105 = vld [vmem:[%s2104] sm:$0x1]
        %v2107 = vlaneseq
        %v2108 = vshrl.u32 %v2107, 7
        %v2109 = vsub.s32 0, %v2108
        %v2110 = vrot.slane %v2105, %v2109
        %v2116 = vunpack.c.l.b16 %v2100
        %v2117 = vunpack.c.l.b16 %v2101
        %v2118 = vunpack.c.l.b16 %v2102
        %v2119 = vunpack.c.l.b16 %v2103
        %v2120 = vpack.c.b16 %v2117, %v2116
        %v2121 = vpack.c.b16 %v2119, %v2118
        %2124 = vmatprep.subr.bf16.mxu0 0
        %2125 = vmatpush1.bf16.msra.mxu0 %v2120
        %2126 = vmatprep.subr.bf16.mxu0 0
        %2127 = vmatpush1.bf16.msra.mxu0 %v2121
        %2128 = vmatprep.subr.bf16.mxu0 0
        %2129 = vmatpush1.bf16.msra.mxu0 0
        %2130 = vmatprep.subr.bf16.mxu0 0
        %2131 = vmatpush1.bf16.msra.mxu0 0
        %2132 = vmatprep.subr.bf16.mxu0 0
        %2133 = vmatpush1.bf16.msra.mxu0 0
        %2134 = vmatprep.subr.bf16.mxu0 0
        %2135 = vmatpush1.bf16.msra.mxu0 0
        %2136 = vmatprep.subr.bf16.mxu0 0
        %2137 = vmatpush1.bf16.msra.mxu0 0
        %2138 = vmatprep.subr.bf16.mxu0 0
        %2139 = vmatpush1.bf16.msra.mxu0 0
        %2140 = vmatprep.subr.bf16.mxu0 0
        %2141 = vmatpush1.bf16.msra.mxu0 0
        %2142 = vmatprep.subr.bf16.mxu0 0
        %2143 = vmatpush1.bf16.msra.mxu0 0
        %2144 = vmatprep.subr.bf16.mxu0 0
        %2145 = vmatpush1.bf16.msra.mxu0 0
        %2146 = vmatprep.subr.bf16.mxu0 0
        %2147 = vmatpush1.bf16.msra.mxu0 0
        %2148 = vmatprep.subr.bf16.mxu0 0
        %2149 = vmatpush1.bf16.msra.mxu0 0
        %2150 = vmatprep.subr.bf16.mxu0 0
        %2151 = vmatpush1.bf16.msra.mxu0 0
        %2152 = vmatprep.subr.bf16.mxu0 0
        %2153 = vmatpush1.bf16.msra.mxu0 0
        %2154 = vmatprep.subr.bf16.mxu0 0
        %2155 = vmatpush1.bf16.msra.mxu0 0
        %2156 = vmatprep.mubr.bf16.mxu0 0
        %2157 = vmatmul.mubr.bf16.gmra.mrb[0].mxu0 %v1455
        %v2158 = vpop.f32.mrb[0].mxu0
        %v2159 = vadd.f32 %v2110, %v2158
        %v2160 = vpop.f32.mrb[0].mxu0
        %v2161 = vpop.f32.mrb[0].mxu0
        %v2162 = vpop.f32.mrb[0].mxu0
        %2163 = vdwg.mxu0
        %s2164 = scalar_lea.vmem [#allocation2], 24
        %v2165 = vld [vmem:[%s2164] sm:$0xff]
        %s2166 = scalar_lea.vmem [#allocation3], 24
        %v2167 = vld [vmem:[%s2166] sm:$0xff]
        %v2168 = vpack.c.bf16 %v2159, %v2159
        %v2170 = vsel %vm1506, %v2168, 0
        %v2173 = vsel %vm1506, %v2165, 0
        %2175 = vmatprep.subr.bf16.mxu0 0
        %2176 = vmatpush1.bf16.xpose.msra.mxu0 %v2173
        %2177 = vmatprep.subr.bf16.mxu0 0
        %2178 = vmatpush1.bf16.xpose.msra.mxu0 0
        %2179 = vmatprep.subr.bf16.mxu0 0
        %2180 = vmatpush1.bf16.xpose.msra.mxu0 0
        %2181 = vmatprep.subr.bf16.mxu0 0
        %2182 = vmatpush1.bf16.xpose.msra.mxu0 0
        %2183 = vmatprep.subr.bf16.mxu0 0
        %2184 = vmatpush1.bf16.xpose.msra.mxu0 0
        %2185 = vmatprep.subr.bf16.mxu0 0
        %2186 = vmatpush1.bf16.xpose.msra.mxu0 0
        %2187 = vmatprep.subr.bf16.mxu0 0
        %2188 = vmatpush1.bf16.xpose.msra.mxu0 0
        %2189 = vmatprep.subr.bf16.mxu0 0
        %2190 = vmatpush1.bf16.xpose.msra.mxu0 0
        %2191 = vmatprep.subr.bf16.mxu0 0
        %2192 = vmatpush1.bf16.xpose.msra.mxu0 0
        %2193 = vmatprep.subr.bf16.mxu0 0
        %2194 = vmatpush1.bf16.xpose.msra.mxu0 0
        %2195 = vmatprep.subr.bf16.mxu0 0
        %2196 = vmatpush1.bf16.xpose.msra.mxu0 0
        %2197 = vmatprep.subr.bf16.mxu0 0
        %2198 = vmatpush1.bf16.xpose.msra.mxu0 0
        %2199 = vmatprep.subr.bf16.mxu0 0
        %2200 = vmatpush1.bf16.xpose.msra.mxu0 0
        %2201 = vmatprep.subr.bf16.mxu0 0
        %2202 = vmatpush1.bf16.xpose.msra.mxu0 0
        %2203 = vmatprep.subr.bf16.mxu0 0
        %2204 = vmatpush1.bf16.xpose.msra.mxu0 0
        %2205 = vmatprep.subr.bf16.mxu0 0
        %2206 = vmatpush1.bf16.xpose.msra.mxu0 0
        %2207 = vmatprep.mubr.bf16.mxu0 0
        %2208 = vmatmul.mubr.bf16.gmra.mrb[0].mxu0 %v2170
        %v2209 = vpop.f32.mrb[0].mxu0
        %v2210 = vadd.f32 %v1504, %v2209
        %v2211 = vpop.f32.mrb[0].mxu0
        %v2212 = vpop.f32.mrb[0].mxu0
        %v2213 = vpop.f32.mrb[0].mxu0
        %2214 = vdwg.mxu0
        %v2215 = vsel %vm1553, %v2210, -inf
        %2216 = vmax.xlane.f32.xlu0 %v2215
        %v2217 = vpop.xlane.xlu0 %2216
        %v2218 = vsub.f32 %v2210, %v2217
        %v2219 = vmul.f32 %v2218, 1.442695
        %v2220 = vpow.pop %v2219
        %v2221 = vsel %vm1553, %v2220, 0.0
        %2222 = vadd.xlane.f32.xlu0 %v2221
        %v2223 = vpop.xlane.xlu0 %2222
        %v2224 = vrcp.pop %v2223
        %v2225 = vmul.f32 %v2220, %v2224
        %v2226 = vpack.c.bf16 %v2225, %v2225
        %v2228 = vsel %vm1553, %v2226, 0
        %2230 = vmatprep.subr.bf16.mxu0 0
        %2231 = vmatpush1.bf16.msra.mxu0 %v2167
        %2232 = vmatprep.subr.bf16.mxu0 0
        %2233 = vmatpush1.bf16.msra.mxu0 0
        %2234 = vmatprep.subr.bf16.mxu0 0
        %2235 = vmatpush1.bf16.msra.mxu0 0
        %2236 = vmatprep.subr.bf16.mxu0 0
        %2237 = vmatpush1.bf16.msra.mxu0 0
        %2238 = vmatprep.subr.bf16.mxu0 0
        %2239 = vmatpush1.bf16.msra.mxu0 0
        %2240 = vmatprep.subr.bf16.mxu0 0
        %2241 = vmatpush1.bf16.msra.mxu0 0
        %2242 = vmatprep.subr.bf16.mxu0 0
        %2243 = vmatpush1.bf16.msra.mxu0 0
        %2244 = vmatprep.subr.bf16.mxu0 0
        %2245 = vmatpush1.bf16.msra.mxu0 0
        %2246 = vmatprep.subr.bf16.mxu0 0
        %2247 = vmatpush1.bf16.msra.mxu0 0
        %2248 = vmatprep.subr.bf16.mxu0 0
        %2249 = vmatpush1.bf16.msra.mxu0 0
        %2250 = vmatprep.subr.bf16.mxu0 0
        %2251 = vmatpush1.bf16.msra.mxu0 0
        %2252 = vmatprep.subr.bf16.mxu0 0
        %2253 = vmatpush1.bf16.msra.mxu0 0
        %2254 = vmatprep.subr.bf16.mxu0 0
        %2255 = vmatpush1.bf16.msra.mxu0 0
        %2256 = vmatprep.subr.bf16.mxu0 0
        %2257 = vmatpush1.bf16.msra.mxu0 0
        %2258 = vmatprep.subr.bf16.mxu0 0
        %2259 = vmatpush1.bf16.msra.mxu0 0
        %2260 = vmatprep.subr.bf16.mxu0 0
        %2261 = vmatpush1.bf16.msra.mxu0 0
        %2262 = vmatprep.mubr.bf16.mxu0 0
        %2263 = vmatmul.mubr.bf16.gmra.mrb[0].mxu0 %v2228
        %v2264 = vpop.f32.mrb[0].mxu0
        %v2265 = vadd.f32 0.0, %v2264
        %v2266 = vpop.f32.mrb[0].mxu0
        %v2267 = vpop.f32.mrb[0].mxu0
        %v2268 = vpop.f32.mrb[0].mxu0
        %2269 = vdwg.mxu0
        %v2270 = vpack.c.bf16 %v2265, %v2265
        %s2271 = scalar_lea.vmem [#allocation21], 12
        %v2272 = vld [vmem:[%s2271] sm:$0xf]
        %v2274 = vsel %vm1506, %v2270, 0
        %v2277 = vsel %vm1788, %v2272, 0
        %2279 = vmatprep.subr.bf16.mxu0 0
        %2280 = vmatpush1.bf16.msra.mxu0 %v2277
        %2281 = vmatprep.subr.bf16.mxu0 0
        %2282 = vmatpush1.bf16.msra.mxu0 0
        %2283 = vmatprep.subr.bf16.mxu0 0
        %2284 = vmatpush1.bf16.msra.mxu0 0
        %2285 = vmatprep.subr.bf16.mxu0 0
        %2286 = vmatpush1.bf16.msra.mxu0 0
        %2287 = vmatprep.subr.bf16.mxu0 0
        %2288 = vmatpush1.bf16.msra.mxu0 0
        %2289 = vmatprep.subr.bf16.mxu0 0
        %2290 = vmatpush1.bf16.msra.mxu0 0
        %2291 = vmatprep.subr.bf16.mxu0 0
        %2292 = vmatpush1.bf16.msra.mxu0 0
        %2293 = vmatprep.subr.bf16.mxu0 0
        %2294 = vmatpush1.bf16.msra.mxu0 0
        %2295 = vmatprep.subr.bf16.mxu0 0
        %2296 = vmatpush1.bf16.msra.mxu0 0
        %2297 = vmatprep.subr.bf16.mxu0 0
        %2298 = vmatpush1.bf16.msra.mxu0 0
        %2299 = vmatprep.subr.bf16.mxu0 0
        %2300 = vmatpush1.bf16.msra.mxu0 0
        %2301 = vmatprep.subr.bf16.mxu0 0
        %2302 = vmatpush1.bf16.msra.mxu0 0
        %2303 = vmatprep.subr.bf16.mxu0 0
        %2304 = vmatpush1.bf16.msra.mxu0 0
        %2305 = vmatprep.subr.bf16.mxu0 0
        %2306 = vmatpush1.bf16.msra.mxu0 0
        %2307 = vmatprep.subr.bf16.mxu0 0
        %2308 = vmatpush1.bf16.msra.mxu0 0
        %2309 = vmatprep.subr.bf16.mxu0 0
        %2310 = vmatpush1.bf16.msra.mxu0 0
        %2311 = vmatprep.mubr.bf16.mxu0 0
        %2312 = vmatmul.mubr.bf16.gmra.mrb[0].mxu0 %v2274
        %v2313 = vpop.f32.mrb[0].mxu0
        %v2314 = vadd.f32 0.0, %v2313
        %v2315 = vpop.f32.mrb[0].mxu0
        %v2316 = vpop.f32.mrb[0].mxu0
        %v2317 = vpop.f32.mrb[0].mxu0
        %2318 = vdwg.mxu0
        %v2319 = vadd.f32 %v2098, %v2314
        %v2320 = vld [vmem:[#allocation22] sm:$0x1]
        %v2322 = vlaneseq
        %v2323 = vshrl.u32 %v2322, 7
        %v2324 = vsub.s32 0, %v2323
        %v2325 = vrot.slane %v2320, %v2324
        %v2327 = vadd.f32 %v2319, %v2325
        %v2328 = vadd.f32 %v2327, %v1427
        %v2329 = vld [vmem:[#allocation24] sm:$0x1]
        %v2330 = vmul.f32 %v2328, %v2328
        %v2331 = vsel %vm1412, %v2330, 0.0
        %2332 = vadd.xlane.f32.xlu0 %v2331
        %v2333 = vpop.xlane.xlu0 %2332
        %v2334 = vmul.f32 %v2333, %v1416
        %v2335 = vadd.f32 %v2334, 1.1920929e-07
        %v2336 = vrsqrt.pop %v2335
        %v2337 = vmul.f32 %v2328, %v2336
        %v2339 = vlaneseq
        %v2340 = vshrl.u32 %v2339, 7
        %v2341 = vsub.s32 0, %v2340
        %v2342 = vrot.slane %v2329, %v2341
        %v2344 = vmul.f32 %v2337, %v2342
        %v2345 = vpack.c.bf16 %v2344, %v2344
        %v2346 = vld [vmem:[#allocation25] sm:$0xf]
        %v2347 = vld [vmem:[#allocation25 + $0x4] sm:$0xf]
        %v2348 = vld [vmem:[#allocation25 + $0x8] sm:$0xf]
        %v2349 = vld [vmem:[#allocation25 + $0xc] sm:$0xf]
        %v2350 = vld [vmem:[#allocation27] sm:$0x1]
        %v2352 = vlaneseq
        %v2353 = vshrl.u32 %v2352, 7
        %v2354 = vsub.s32 0, %v2353
        %v2355 = vrot.slane %v2350, %v2354
        %v2361 = vunpack.c.l.b16 %v2346
        %v2362 = vunpack.c.l.b16 %v2347
        %v2363 = vunpack.c.l.b16 %v2348
        %v2364 = vunpack.c.l.b16 %v2349
        %v2365 = vpack.c.b16 %v2362, %v2361
        %v2366 = vpack.c.b16 %v2364, %v2363
        %v2370 = vsel %vm1412, %v2345, 0
        %2372 = vmatprep.subr.bf16.mxu0 0
        %2373 = vmatpush1.bf16.msra.mxu0 %v2365
        %2374 = vmatprep.subr.bf16.mxu0 0
        %2375 = vmatpush1.bf16.msra.mxu0 %v2366
        %2376 = vmatprep.subr.bf16.mxu0 0
        %2377 = vmatpush1.bf16.msra.mxu0 0
        %2378 = vmatprep.subr.bf16.mxu0 0
        %2379 = vmatpush1.bf16.msra.mxu0 0
        %2380 = vmatprep.subr.bf16.mxu0 0
        %2381 = vmatpush1.bf16.msra.mxu0 0
        %2382 = vmatprep.subr.bf16.mxu0 0
        %2383 = vmatpush1.bf16.msra.mxu0 0
        %2384 = vmatprep.subr.bf16.mxu0 0
        %2385 = vmatpush1.bf16.msra.mxu0 0
        %2386 = vmatprep.subr.bf16.mxu0 0
        %2387 = vmatpush1.bf16.msra.mxu0 0
        %2388 = vmatprep.subr.bf16.mxu0 0
        %2389 = vmatpush1.bf16.msra.mxu0 0
        %2390 = vmatprep.subr.bf16.mxu0 0
        %2391 = vmatpush1.bf16.msra.mxu0 0
        %2392 = vmatprep.subr.bf16.mxu0 0
        %2393 = vmatpush1.bf16.msra.mxu0 0
        %2394 = vmatprep.subr.bf16.mxu0 0
        %2395 = vmatpush1.bf16.msra.mxu0 0
        %2396 = vmatprep.subr.bf16.mxu0 0
        %2397 = vmatpush1.bf16.msra.mxu0 0
        %2398 = vmatprep.subr.bf16.mxu0 0
        %2399 = vmatpush1.bf16.msra.mxu0 0
        %2400 = vmatprep.subr.bf16.mxu0 0
        %2401 = vmatpush1.bf16.msra.mxu0 0
        %2402 = vmatprep.subr.bf16.mxu0 0
        %2403 = vmatpush1.bf16.msra.mxu0 0
        %2404 = vmatprep.mubr.bf16.mxu0 0
        %2405 = vmatmul.mubr.bf16.gmra.mrb[0].mxu0 %v2370
        %v2406 = vpop.f32.mrb[0].mxu0
        %v2407 = vadd.f32 %v2355, %v2406
        %v2408 = vpop.f32.mrb[0].mxu0
        %v2409 = vpop.f32.mrb[0].mxu0
        %v2410 = vpop.f32.mrb[0].mxu0
        %2411 = vdwg.mxu0
        %v2412 = vxor.u32 %v2407, 2147483648
        %v2413 = vmul.f32 %v2412, 1.442695
        %v2414 = vpow.pop %v2413
        %v2415 = vadd.f32 %v2414, 1.0
        %v2416 = vrcp.pop %v2415
        %v2417 = vmul.f32 1.0, %v2416
        %v2418 = vmul.f32 %v2407, %v2417
        %v2419 = vpack.c.bf16 %v2418, %v2418
        %v2420 = vld [vmem:[#allocation28] sm:$0xf]
        %v2421 = vld [vmem:[#allocation28 + $0x4] sm:$0xf]
        %v2422 = vld [vmem:[#allocation28 + $0x8] sm:$0xf]
        %v2423 = vld [vmem:[#allocation28 + $0xc] sm:$0xf]
        %v2424 = vld [vmem:[#allocation28 + $0x10] sm:$0xf]
        %v2425 = vld [vmem:[#allocation28 + $0x14] sm:$0xf]
        %v2426 = vld [vmem:[#allocation28 + $0x18] sm:$0xf]
        %v2427 = vld [vmem:[#allocation28 + $0x1c] sm:$0xf]
        %v2428 = vld [vmem:[#allocation30] sm:$0x1]
        %v2430 = vlaneseq
        %v2431 = vshrl.u32 %v2430, 7
        %v2432 = vsub.s32 0, %v2431
        %v2433 = vrot.slane %v2428, %v2432
        %v2443 = vunpack.c.l.b16 %v2420
        %v2444 = vunpack.c.l.b16 %v2421
        %v2445 = vunpack.c.l.b16 %v2422
        %v2446 = vunpack.c.l.b16 %v2423
        %v2447 = vunpack.c.l.b16 %v2424
        %v2448 = vunpack.c.l.b16 %v2425
        %v2449 = vunpack.c.l.b16 %v2426
        %v2450 = vunpack.c.l.b16 %v2427
        %v2451 = vpack.c.b16 %v2444, %v2443
        %v2452 = vpack.c.b16 %v2446, %v2445
        %v2453 = vpack.c.b16 %v2448, %v2447
        %v2454 = vpack.c.b16 %v2450, %v2449
        %vm2459 = vcmask 523264
        %v2461 = vsel %vm2459, %v2419, 0
        %2463 = vmatprep.subr.bf16.mxu0 0
        %2464 = vmatpush1.bf16.msra.mxu0 %v2451
        %2465 = vmatprep.subr.bf16.mxu0 0
        %2466 = vmatpush1.bf16.msra.mxu0 %v2452
        %2467 = vmatprep.subr.bf16.mxu0 0
        %2468 = vmatpush1.bf16.msra.mxu0 %v2453
        %2469 = vmatprep.subr.bf16.mxu0 0
        %2470 = vmatpush1.bf16.msra.mxu0 %v2454
        %2471 = vmatprep.subr.bf16.mxu0 0
        %2472 = vmatpush1.bf16.msra.mxu0 0
        %2473 = vmatprep.subr.bf16.mxu0 0
        %2474 = vmatpush1.bf16.msra.mxu0 0
        %2475 = vmatprep.subr.bf16.mxu0 0
        %2476 = vmatpush1.bf16.msra.mxu0 0
        %2477 = vmatprep.subr.bf16.mxu0 0
        %2478 = vmatpush1.bf16.msra.mxu0 0
        %2479 = vmatprep.subr.bf16.mxu0 0
        %2480 = vmatpush1.bf16.msra.mxu0 0
        %2481 = vmatprep.subr.bf16.mxu0 0
        %2482 = vmatpush1.bf16.msra.mxu0 0
        %2483 = vmatprep.subr.bf16.mxu0 0
        %2484 = vmatpush1.bf16.msra.mxu0 0
        %2485 = vmatprep.subr.bf16.mxu0 0
        %2486 = vmatpush1.bf16.msra.mxu0 0
        %2487 = vmatprep.subr.bf16.mxu0 0
        %2488 = vmatpush1.bf16.msra.mxu0 0
        %2489 = vmatprep.subr.bf16.mxu0 0
        %2490 = vmatpush1.bf16.msra.mxu0 0
        %2491 = vmatprep.subr.bf16.mxu0 0
        %2492 = vmatpush1.bf16.msra.mxu0 0
        %2493 = vmatprep.subr.bf16.mxu0 0
        %2494 = vmatpush1.bf16.msra.mxu0 0
        %2495 = vmatprep.mubr.bf16.mxu0 0
        %2496 = vmatmul.mubr.bf16.gmra.mrb[0].mxu0 %v2461
        %v2497 = vpop.f32.mrb[0].mxu0
        %v2498 = vadd.f32 %v2433, %v2497
        %v2499 = vpop.f32.mrb[0].mxu0
        %v2500 = vpop.f32.mrb[0].mxu0
        %v2501 = vpop.f32.mrb[0].mxu0
        %2502 = vdwg.mxu0
        %v2503 = vadd.f32 %v2498, %v2344
        %2504 = vst.msk [vmem:[%s844] sm:$0xff] %vm1412, %v2503
        %s2505 = sand.u32 %s440, 1
        %s2506 = scalar_lea.sflag [#allocation6], %s2505
        %s2507 = sand.u32 %s440, 1
        %s2508 = smul.addr %s2507, 8
        %s2509 = scalar_lea.vmem [#allocation31], %s2508
        // Predicated region
        $region161: #{tpu_custom_call.1} parent=87 // pred_check
          %p2510 = pneg %p450
        $region162: #{tpu_custom_call.1} parent=87 // pred_check_branch
          %2512 = sbr.rel (%p2510) target = $region164
        $region163: #{tpu_custom_call.1} parent=87 // pred_region
          %s2514 = ssub.s32 128, 128
          %2515 = vsyncadd %s2506, %s2514
          %s2516 = sadd.s32 %s49, %s48
          %s2517 = smul.addr %s2516, 128
          %s2518 = scalar_lea.hbm %s17, %s2517
          %s2520 = sshll.u32 %s2509, 4
          %s2521 = int_to_ptr.vmem [resolvable:$true] %s2520
          %2523 = dma.vmem_to_hbm [thread:$0]  %s2521, 128, %s2518, %s2506
        $region164: #{tpu_custom_call.1} parent=87 // pred_fallthru
          _
      $region88: #{tpu_custom_call.1} parent=5 // pred_fallthru
        _
      %p2524 = scmp.le.s32.totalorder 2, %s39
      // Predicated region
      $region165: #{tpu_custom_call.1} parent=5 // pred_check
        %p2525 = pneg %p2524
      $region166: #{tpu_custom_call.1} parent=5 // pred_check_branch
        %2527 = sbr.rel (%p2525) target = $region168
      $region167: #{tpu_custom_call.1} parent=5 // pred_region
        %s2528 = ssub.s32 %s39, 2
        // Predicated region
        $region169: #{tpu_custom_call.1} parent=167 // pred_check
          %p2529 = pneg %p456
        $region170: #{tpu_custom_call.1} parent=167 // pred_check_branch
          %2531 = sbr.rel (%p2529) target = $region172
        $region171: #{tpu_custom_call.1} parent=167 // pred_region
          %s2532 = sand.u32 %s441, 1
          %s2533 = scalar_lea.sflag [#allocation6], %s2532
          %s2534 = sand.u32 %s441, 1
          %s2535 = smul.addr %s2534, 8
          %s2536 = scalar_lea.vmem [#allocation31], %s2535
          %2537 = dma.done %s2533, 128
        $region172: #{tpu_custom_call.1} parent=167 // pred_fallthru
          _
      $region168: #{tpu_custom_call.1} parent=5 // pred_fallthru
        _
    $region6: #{tpu_custom_call.1} parent=1 // loop_footer
      %s43 = sadd.s32 1, %s39
    $region7: #{tpu_custom_call.1} parent=1 // loop_footer_branch
      %38 = sbr.rel target = $region3
    $region8: #{tpu_custom_call.1} parent=1 // loop_exit
      _
    %2538 = vsyncpa [#allocation5], 1
    %s2539 = scalar_lea.sflag [#allocation5], 1
    %2540 = vsyncpa %s2539, 1
    %2541 = vsyncpa [#allocation8], 1
    %s2542 = scalar_lea.sflag [#allocation8], 1
    %2543 = vsyncpa %s2542, 1
    %2544 = vsyncpa [#allocation11], 1
    %2545 = vsyncpa [#allocation14], 1
    %2546 = vsyncpa [#allocation17], 1
    %2547 = vsyncpa [#allocation20], 1
    %2548 = vsyncpa [#allocation23], 1
    %2549 = vsyncpa [#allocation26], 1
    %2550 = vsyncpa [#allocation29], 1
    %2551 = vsyncpa [#allocation6], 1
    %s2552 = scalar_lea.sflag [#allocation6], 1
    %2553 = vsyncpa %s2552, 1

// kernel: tpu_custom_call.1
$region0: #{tpu_custom_call.1}
  #allocation0 [shape = 'u32[]', space=smem, size = 0x4, offset = 0x4, fixed_abs, tag = 'smem constant byte address 0x4 - core index']
  #allocation1 [shape = 'u32[144,128]{1,0:T(1,128)}', space=vmem, size = 0x12000, scoped, tag = 'internal scratch']
  #allocation2 [shape = 'bf16[4,16,8]{2,1,0:T(16,128)(2,1)}', space=vmem, size = 0x4000, scoped, tag = 'scratch operand']
  #allocation3 [shape = 'bf16[4,16,8]{2,1,0:T(16,128)(2,1)}', space=vmem, size = 0x4000, scoped, tag = 'scratch operand']
  %s0 = inlined_call_operand.hbm [shape: f32[2,8,32], index: 0, kind: input, shape index: {}]
  %s1 = inlined_call_operand.hbm [shape: bf16[2,16,32], index: 1, kind: input, shape index: {}]
  %s2 = inlined_call_operand.hbm [shape: f32[2,1,16], index: 2, kind: input, shape index: {}]
  %s3 = inlined_call_operand.hbm [shape: f32[1,32], index: 3, kind: input, shape index: {}]
  %s4 = inlined_call_operand.hbm [shape: bf16[4,32,8], index: 4, kind: input, shape index: {}]
  %s5 = inlined_call_operand.hbm [shape: f32[4,1,8], index: 5, kind: input, shape index: {}]
  %s6 = inlined_call_operand.hbm [shape: bf16[4,32,8], index: 6, kind: input, shape index: {}]
  %s7 = inlined_call_operand.hbm [shape: f32[4,1,8], index: 7, kind: input, shape index: {}]
  %s8 = inlined_call_operand.hbm [shape: bf16[4,32,8], index: 8, kind: input, shape index: {}]
  %s9 = inlined_call_operand.hbm [shape: f32[4,1,8], index: 9, kind: input, shape index: {}]
  %s10 = inlined_call_operand.hbm [shape: bf16[4,8,32], index: 10, kind: input, shape index: {}]
  %s11 = inlined_call_operand.hbm [shape: f32[1,32], index: 11, kind: input, shape index: {}]
  %s12 = inlined_call_operand.hbm [shape: f32[1,32], index: 12, kind: input, shape index: {}]
  %s13 = inlined_call_operand.hbm [shape: bf16[32,64], index: 13, kind: input, shape index: {}]
  %s14 = inlined_call_operand.hbm [shape: f32[1,64], index: 14, kind: input, shape index: {}]
  %s15 = inlined_call_operand.hbm [shape: bf16[64,32], index: 15, kind: input, shape index: {}]
  %s16 = inlined_call_operand.hbm [shape: f32[1,32], index: 16, kind: input, shape index: {}]
  %s17 = inlined_call_operand.hbm [shape: f32[2,8,32], index: 17, kind: output, shape index: {}]
  %s18 = sld [smem:[#allocation0]]
  $region173: #{tpu_custom_call.1} parent=0
    _
  %s20 = ssub.s32 1, %s18
  %s21 = scalar_select 0, %s20, %s18
  $region1: #{tpu_custom_call.1} parent=0
    #allocation4 [shape = 'u8[8192]{0}', space=vmem, size = 0x2000, scoped, tag = 'input window, operand 0']
    #allocation5 [shape = 's32[2]{0}', space=sflag, size = 0x8, scoped, tag = 'scoped memory for tpu_custom_call.1']
    #allocation6 [shape = 's32[2]{0}', space=sflag, size = 0x8, scoped, tag = 'scoped memory for tpu_custom_call.1']
    #allocation7 [shape = 'u8[8192]{0}', space=vmem, size = 0x2000, scoped, tag = 'input window, operand 1']
    #allocation8 [shape = 's32[2]{0}', space=sflag, size = 0x8, scoped, tag = 'scoped memory for tpu_custom_call.1']
    #allocation9 [shape = 'u8[1024]{0}', space=vmem, size = 0x400, scoped, tag = 'input window, operand 2']
    #allocation10 [shape = 'u8[512]{0}', space=vmem, size = 0x400, scoped, tag = 'input window, operand 3, single buffered']
    #allocation11 [shape = 's32[1]{0}', space=sflag, size = 0x4, scoped, tag = 'scoped memory for tpu_custom_call.1']
    #allocation12 [shape = 'u8[32768]{0}', space=vmem, size = 0x8000, scoped, tag = 'input window, operand 4, single buffered']
    #allocation13 [shape = 'u8[2048]{0}', space=vmem, size = 0x800, scoped, tag = 'input window, operand 5, single buffered']
    #allocation14 [shape = 's32[1]{0}', space=sflag, size = 0x4, scoped, tag = 'scoped memory for tpu_custom_call.1']
    #allocation15 [shape = 'u8[32768]{0}', space=vmem, size = 0x8000, scoped, tag = 'input window, operand 6, single buffered']
    #allocation16 [shape = 'u8[2048]{0}', space=vmem, size = 0x800, scoped, tag = 'input window, operand 7, single buffered']
    #allocation17 [shape = 's32[1]{0}', space=sflag, size = 0x4, scoped, tag = 'scoped memory for tpu_custom_call.1']
    #allocation18 [shape = 'u8[32768]{0}', space=vmem, size = 0x8000, scoped, tag = 'input window, operand 8, single buffered']
    #allocation19 [shape = 'u8[2048]{0}', space=vmem, size = 0x800, scoped, tag = 'input window, operand 9, single buffered']
    #allocation20 [shape = 's32[1]{0}', space=sflag, size = 0x4, scoped, tag = 'scoped memory for tpu_custom_call.1']
    #allocation21 [shape = 'u8[8192]{0}', space=vmem, size = 0x2000, scoped, tag = 'input window, operand 10, single buffered']
    #allocation22 [shape = 'u8[512]{0}', space=vmem, size = 0x400, scoped, tag = 'input window, operand 11, single buffered']
    #allocation23 [shape = 's32[1]{0}', space=sflag, size = 0x4, scoped, tag = 'scoped memory for tpu_custom_call.1']
    #allocation24 [shape = 'u8[512]{0}', space=vmem, size = 0x400, scoped, tag = 'input window, operand 12, single buffered']
    #allocation25 [shape = 'u8[8192]{0}', space=vmem, size = 0x2000, scoped, tag = 'input window, operand 13, single buffered']
    #allocation26 [shape = 's32[1]{0}', space=sflag, size = 0x4, scoped, tag = 'scoped memory for tpu_custom_call.1']
    #allocation27 [shape = 'u8[512]{0}', space=vmem, size = 0x400, scoped, tag = 'input window, operand 14, single buffered']
    #allocation28 [shape = 'u8[16384]{0}', space=vmem, size = 0x4000, scoped, tag = 'input window, operand 15, single buffered']
    #allocation29 [shape = 's32[1]{0}', space=sflag, size = 0x4, scoped, tag = 'scoped memory for tpu_custom_call.1']
    #allocation30 [shape = 'u8[512]{0}', space=vmem, size = 0x400, scoped, tag = 'input window, operand 16, single buffered']
    #allocation31 [shape = 'u8[8192]{0}', space=vmem, size = 0x2000, scoped, tag = 'output window, operand 0']
    %22 = vsyncpa [#allocation5], 0
    %s23 = scalar_lea.sflag [#allocation5], 1
    %24 = vsyncpa %s23, 0
    %25 = vsyncpa [#allocation8], 0
    %s26 = scalar_lea.sflag [#allocation8], 1
    %27 = vsyncpa %s26, 0
    %28 = vsyncpa [#allocation11], 0
    %29 = vsyncpa [#allocation14], 0
    %30 = vsyncpa [#allocation17], 0
    %31 = vsyncpa [#allocation20], 0
    %32 = vsyncpa [#allocation23], 0
    %33 = vsyncpa [#allocation26], 0
    %34 = vsyncpa [#allocation29], 0
    %35 = vsyncpa [#allocation6], 0
    %s36 = scalar_lea.sflag [#allocation6], 1
    %37 = vsyncpa %s36, 0
    loop: start=0, step=1, limit=4
    $region2: #{tpu_custom_call.1} parent=1 // loop_pre_header
      _
    $region3: #{tpu_custom_call.1} parent=1 // loop_header
      %s39 = sphi 0, %s43
      %p40 = scmp.ge.s32.totalorder %s39, 4
      %s46 = sphi 0, %s58
      %s47 = sphi 0, %s54
      %s48 = sphi 0, %s46
      %s49 = sphi 0, %s47
      %s50 = sphi 0, %s48
      %s51 = sphi 0, %s49
      %s63 = sphi 0, %s65
      %s66 = sphi 0, %s63
      %s67 = sphi 0, %s66
      %s83 = sphi 0, %s67
      %s89 = sphi 0, %s91
      %s92 = sphi 0, %s89
      %s93 = sphi 0, %s92
      %s109 = sphi 0, %s93
      %s115 = sphi 0, %s117
      %s118 = sphi 0, %s115
      %s119 = sphi 0, %s118
      %s135 = sphi 0, %s119
      %s139 = sphi 0, %s139
      %s141 = sphi 0, %s139
      %s142 = sphi 0, %s141
      %s156 = sphi 0, %s142
      %s160 = sphi 0, %s160
      %s162 = sphi 0, %s160
      %s163 = sphi 0, %s162
      %s177 = sphi 0, %s163
      %s181 = sphi 0, %s181
      %s183 = sphi 0, %s181
      %s184 = sphi 0, %s183
      %s198 = sphi 0, %s184
      %s202 = sphi 0, %s202
      %s204 = sphi 0, %s202
      %s205 = sphi 0, %s204
      %s219 = sphi 0, %s205
      %s223 = sphi 0, %s223
      %s225 = sphi 0, %s223
      %s226 = sphi 0, %s225
      %s240 = sphi 0, %s226
      %s244 = sphi 0, %s244
      %s246 = sphi 0, %s244
      %s247 = sphi 0, %s246
      %s261 = sphi 0, %s247
      %s265 = sphi 0, %s265
      %s267 = sphi 0, %s265
      %s268 = sphi 0, %s267
      %s282 = sphi 0, %s268
      %s286 = sphi 0, %s286
      %s288 = sphi 0, %s286
      %s289 = sphi 0, %s288
      %s303 = sphi 0, %s289
      %s307 = sphi 0, %s307
      %s309 = sphi 0, %s307
      %s310 = sphi 0, %s309
      %s324 = sphi 0, %s310
      %s328 = sphi 0, %s328
      %s330 = sphi 0, %s328
      %s331 = sphi 0, %s330
      %s345 = sphi 0, %s331
      %s349 = sphi 0, %s349
      %s351 = sphi 0, %s349
      %s352 = sphi 0, %s351
      %s366 = sphi 0, %s352
      %s370 = sphi 0, %s370
      %s372 = sphi 0, %s370
      %s373 = sphi 0, %s372
      %s387 = sphi 0, %s373
      %s391 = sphi 0, %s391
      %s393 = sphi 0, %s391
      %s394 = sphi 0, %s393
      %s408 = sphi 0, %s394
      %s412 = sphi 0, %s412
      %s414 = sphi 0, %s412
      %s415 = sphi 0, %s414
      %s429 = sphi 0, %s415
      %s437 = sphi 0, %s439
      %s440 = sphi 0, %s437
      %s441 = sphi 0, %s440
      %s457 = sphi 0, %s441
    $region4: #{tpu_custom_call.1} parent=1 // loop_header_branch
      %42 = sbr.rel (%p40) target = $region8
    $region5: #{tpu_custom_call.1} parent=1 // loop_body
      %s44 = ssub.s32 %s39, 1
      %s45 = ssub.s32 %s39, 2
      %s52 = sadd.s32 1, %s47
      %p53 = scmp.ge.s32.totalorder %s52, 1
      %s54 = scalar_select %p53, 0, %s52
      %s55 = sadd.s32 1, %s46
      %s56 = scalar_select %p53, %s55, %s46
      %p57 = scmp.ge.s32.totalorder %s56, 2
      %s58 = scalar_select %p57, 0, %s56
      %s59 = ssub.s32 %s46, %s58
      %s60 = ssub.s32 %s47, %s54
      %s61 = sor.u32 %s59, %s60
      %p62 = scmp.eq.s32.totalorder %s61, 0
      %s64 = sadd.s32 %s63, 1
      %s65 = scalar_select %p62, %s63, %s64
      %p68 = pneg %p62
      %p69 = scmp.eq.s32.totalorder %s39, 1
      %p70 = por %p68, %p69
      %p71 = scmp.ne.s32.totalorder %s63, %s66
      %p72 = scmp.eq.s32.totalorder %s39, 0
      %p73 = por %p71, %p72
      %p74 = scmp.ne.s32.totalorder %s63, %s66
      %p75 = scmp.eq.s32.totalorder %s44, 1
      %p76 = por %p74, %p75
      %p77 = scmp.ne.s32.totalorder %s66, %s67
      %p78 = scmp.eq.s32.totalorder %s44, 0
      %p79 = por %p77, %p78
      %p80 = scmp.ne.s32.totalorder %s66, %s67
      %p81 = scmp.eq.s32.totalorder %s45, 1
      %p82 = por %p80, %p81
      %p84 = scmp.ne.s32.totalorder %s67, %s83
      %p85 = scmp.eq.s32.totalorder %s45, 0
      %p86 = por %p84, %p85
      %s87 = ssub.s32 %s46, %s58
      %p88 = scmp.eq.s32.totalorder %s87, 0
      %s90 = sadd.s32 %s89, 1
      %s91 = scalar_select %p88, %s89, %s90
      %p94 = pneg %p88
      %p95 = scmp.eq.s32.totalorder %s39, 1
      %p96 = por %p94, %p95
      %p97 = scmp.ne.s32.totalorder %s89, %s92
      %p98 = scmp.eq.s32.totalorder %s39, 0
      %p99 = por %p97, %p98
      %p100 = scmp.ne.s32.totalorder %s89, %s92
      %p101 = scmp.eq.s32.totalorder %s44, 1
      %p102 = por %p100, %p101
      %p103 = scmp.ne.s32.totalorder %s92, %s93
      %p104 = scmp.eq.s32.totalorder %s44, 0
      %p105 = por %p103, %p104
      %p106 = scmp.ne.s32.totalorder %s92, %s93
      %p107 = scmp.eq.s32.totalorder %s45, 1
      %p108 = por %p106, %p107
      %p110 = scmp.ne.s32.totalorder %s93, %s109
      %p111 = scmp.eq.s32.totalorder %s45, 0
      %p112 = por %p110, %p111
      %s113 = ssub.s32 %s46, %s58
      %p114 = scmp.eq.s32.totalorder %s113, 0
      %s116 = sadd.s32 %s115, 1
      %s117 = scalar_select %p114, %s115, %s116
      %p120 = pneg %p114
      %p121 = scmp.eq.s32.totalorder %s39, 1
      %p122 = por %p120, %p121
      %p123 = scmp.ne.s32.totalorder %s115, %s118
      %p124 = scmp.eq.s32.totalorder %s39, 0
      %p125 = por %p123, %p124
      %p126 = scmp.ne.s32.totalorder %s115, %s118
      %p127 = scmp.eq.s32.totalorder %s44, 1
      %p128 = por %p126, %p127
      %p129 = scmp.ne.s32.totalorder %s118, %s119
      %p130 = scmp.eq.s32.totalorder %s44, 0
      %p131 = por %p129, %p130
      %p132 = scmp.ne.s32.totalorder %s118, %s119
      %p133 = scmp.eq.s32.totalorder %s45, 1
      %p134 = por %p132, %p133
      %p136 = scmp.ne.s32.totalorder %s119, %s135
      %p137 = scmp.eq.s32.totalorder %s45, 0
      %p138 = por %p136, %p137
      %s140 = sadd.s32 %s139, 1
      %p143 = scmp.eq.s32.totalorder %s39, 1
      %p144 = scmp.ne.s32.totalorder %s139, %s141
      %p145 = scmp.eq.s32.totalorder %s39, 0
      %p146 = por %p144, %p145
      %p147 = scmp.ne.s32.totalorder %s139, %s141
      %p148 = scmp.eq.s32.totalorder %s44, 1
      %p149 = por %p147, %p148
      %p150 = scmp.ne.s32.totalorder %s141, %s142
      %p151 = scmp.eq.s32.totalorder %s44, 0
      %p152 = por %p150, %p151
      %p153 = scmp.ne.s32.totalorder %s141, %s142
      %p154 = scmp.eq.s32.totalorder %s45, 1
      %p155 = por %p153, %p154
      %p157 = scmp.ne.s32.totalorder %s142, %s156
      %p158 = scmp.eq.s32.totalorder %s45, 0
      %p159 = por %p157, %p158
      %s161 = sadd.s32 %s160, 1
      %p164 = scmp.eq.s32.totalorder %s39, 1
      %p165 = scmp.ne.s32.totalorder %s160, %s162
      %p166 = scmp.eq.s32.totalorder %s39, 0
      %p167 = por %p165, %p166
      %p168 = scmp.ne.s32.totalorder %s160, %s162
      %p169 = scmp.eq.s32.totalorder %s44, 1
      %p170 = por %p168, %p169
      %p171 = scmp.ne.s32.totalorder %s162, %s163
      %p172 = scmp.eq.s32.totalorder %s44, 0
      %p173 = por %p171, %p172
      %p174 = scmp.ne.s32.totalorder %s162, %s163
      %p175 = scmp.eq.s32.totalorder %s45, 1
      %p176 = por %p174, %p175
      %p178 = scmp.ne.s32.totalorder %s163, %s177
      %p179 = scmp.eq.s32.totalorder %s45, 0
      %p180 = por %p178, %p179
      %s182 = sadd.s32 %s181, 1
      %p185 = scmp.eq.s32.totalorder %s39, 1
      %p186 = scmp.ne.s32.totalorder %s181, %s183
      %p187 = scmp.eq.s32.totalorder %s39, 0
      %p188 = por %p186, %p187
      %p189 = scmp.ne.s32.totalorder %s181, %s183
      %p190 = scmp.eq.s32.totalorder %s44, 1
      %p191 = por %p189, %p190
      %p192 = scmp.ne.s32.totalorder %s183, %s184
      %p193 = scmp.eq.s32.totalorder %s44, 0
      %p194 = por %p192, %p193
      %p195 = scmp.ne.s32.totalorder %s183, %s184
      %p196 = scmp.eq.s32.totalorder %s45, 1
      %p197 = por %p195, %p196
      %p199 = scmp.ne.s32.totalorder %s184, %s198
      %p200 = scmp.eq.s32.totalorder %s45, 0
      %p201 = por %p199, %p200
      %s203 = sadd.s32 %s202, 1
      %p206 = scmp.eq.s32.totalorder %s39, 1
      %p207 = scmp.ne.s32.totalorder %s202, %s204
      %p208 = scmp.eq.s32.totalorder %s39, 0
      %p209 = por %p207, %p208
      %p210 = scmp.ne.s32.totalorder %s202, %s204
      %p211 = scmp.eq.s32.totalorder %s44, 1
      %p212 = por %p210, %p211
      %p213 = scmp.ne.s32.totalorder %s204, %s205
      %p214 = scmp.eq.s32.totalorder %s44, 0
      %p215 = por %p213, %p214
      %p216 = scmp.ne.s32.totalorder %s204, %s205
      %p217 = scmp.eq.s32.totalorder %s45, 1
      %p218 = por %p216, %p217
      %p220 = scmp.ne.s32.totalorder %s205, %s219
      %p221 = scmp.eq.s32.totalorder %s45, 0
      %p222 = por %p220, %p221
      %s224 = sadd.s32 %s223, 1
      %p227 = scmp.eq.s32.totalorder %s39, 1
      %p228 = scmp.ne.s32.totalorder %s223, %s225
      %p229 = scmp.eq.s32.totalorder %s39, 0
      %p230 = por %p228, %p229
      %p231 = scmp.ne.s32.totalorder %s223, %s225
      %p232 = scmp.eq.s32.totalorder %s44, 1
      %p233 = por %p231, %p232
      %p234 = scmp.ne.s32.totalorder %s225, %s226
      %p235 = scmp.eq.s32.totalorder %s44, 0
      %p236 = por %p234, %p235
      %p237 = scmp.ne.s32.totalorder %s225, %s226
      %p238 = scmp.eq.s32.totalorder %s45, 1
      %p239 = por %p237, %p238
      %p241 = scmp.ne.s32.totalorder %s226, %s240
      %p242 = scmp.eq.s32.totalorder %s45, 0
      %p243 = por %p241, %p242
      %s245 = sadd.s32 %s244, 1
      %p248 = scmp.eq.s32.totalorder %s39, 1
      %p249 = scmp.ne.s32.totalorder %s244, %s246
      %p250 = scmp.eq.s32.totalorder %s39, 0
      %p251 = por %p249, %p250
      %p252 = scmp.ne.s32.totalorder %s244, %s246
      %p253 = scmp.eq.s32.totalorder %s44, 1
      %p254 = por %p252, %p253
      %p255 = scmp.ne.s32.totalorder %s246, %s247
      %p256 = scmp.eq.s32.totalorder %s44, 0
      %p257 = por %p255, %p256
      %p258 = scmp.ne.s32.totalorder %s246, %s247
      %p259 = scmp.eq.s32.totalorder %s45, 1
      %p260 = por %p258, %p259
      %p262 = scmp.ne.s32.totalorder %s247, %s261
      %p263 = scmp.eq.s32.totalorder %s45, 0
      %p264 = por %p262, %p263
      %s266 = sadd.s32 %s265, 1
      %p269 = scmp.eq.s32.totalorder %s39, 1
      %p270 = scmp.ne.s32.totalorder %s265, %s267
      %p271 = scmp.eq.s32.totalorder %s39, 0
      %p272 = por %p270, %p271
      %p273 = scmp.ne.s32.totalorder %s265, %s267
      %p274 = scmp.eq.s32.totalorder %s44, 1
      %p275 = por %p273, %p274
      %p276 = scmp.ne.s32.totalorder %s267, %s268
      %p277 = scmp.eq.s32.totalorder %s44, 0
      %p278 = por %p276, %p277
      %p279 = scmp.ne.s32.totalorder %s267, %s268
      %p280 = scmp.eq.s32.totalorder %s45, 1
      %p281 = por %p279, %p280
      %p283 = scmp.ne.s32.totalorder %s268, %s282
      %p284 = scmp.eq.s32.totalorder %s45, 0
      %p285 = por %p283, %p284
      %s287 = sadd.s32 %s286, 1
      %p290 = scmp.eq.s32.totalorder %s39, 1
      %p291 = scmp.ne.s32.totalorder %s286, %s288
      %p292 = scmp.eq.s32.totalorder %s39, 0
      %p293 = por %p291, %p292
      %p294 = scmp.ne.s32.totalorder %s286, %s288
      %p295 = scmp.eq.s32.totalorder %s44, 1
      %p296 = por %p294, %p295
      %p297 = scmp.ne.s32.totalorder %s288, %s289
      %p298 = scmp.eq.s32.totalorder %s44, 0
      %p299 = por %p297, %p298
      %p300 = scmp.ne.s32.totalorder %s288, %s289
      %p301 = scmp.eq.s32.totalorder %s45, 1
      %p302 = por %p300, %p301
      %p304 = scmp.ne.s32.totalorder %s289, %s303
      %p305 = scmp.eq.s32.totalorder %s45, 0
      %p306 = por %p304, %p305
      %s308 = sadd.s32 %s307, 1
      %p311 = scmp.eq.s32.totalorder %s39, 1
      %p312 = scmp.ne.s32.totalorder %s307, %s309
      %p313 = scmp.eq.s32.totalorder %s39, 0
      %p314 = por %p312, %p313
      %p315 = scmp.ne.s32.totalorder %s307, %s309
      %p316 = scmp.eq.s32.totalorder %s44, 1
      %p317 = por %p315, %p316
      %p318 = scmp.ne.s32.totalorder %s309, %s310
      %p319 = scmp.eq.s32.totalorder %s44, 0
      %p320 = por %p318, %p319
      %p321 = scmp.ne.s32.totalorder %s309, %s310
      %p322 = scmp.eq.s32.totalorder %s45, 1
      %p323 = por %p321, %p322
      %p325 = scmp.ne.s32.totalorder %s310, %s324
      %p326 = scmp.eq.s32.totalorder %s45, 0
      %p327 = por %p325, %p326
      %s329 = sadd.s32 %s328, 1
      %p332 = scmp.eq.s32.totalorder %s39, 1
      %p333 = scmp.ne.s32.totalorder %s328, %s330
      %p334 = scmp.eq.s32.totalorder %s39, 0
      %p335 = por %p333, %p334
      %p336 = scmp.ne.s32.totalorder %s328, %s330
      %p337 = scmp.eq.s32.totalorder %s44, 1
      %p338 = por %p336, %p337
      %p339 = scmp.ne.s32.totalorder %s330, %s331
      %p340 = scmp.eq.s32.totalorder %s44, 0
      %p341 = por %p339, %p340
      %p342 = scmp.ne.s32.totalorder %s330, %s331
      %p343 = scmp.eq.s32.totalorder %s45, 1
      %p344 = por %p342, %p343
      %p346 = scmp.ne.s32.totalorder %s331, %s345
      %p347 = scmp.eq.s32.totalorder %s45, 0
      %p348 = por %p346, %p347
      %s350 = sadd.s32 %s349, 1
      %p353 = scmp.eq.s32.totalorder %s39, 1
      %p354 = scmp.ne.s32.totalorder %s349, %s351
      %p355 = scmp.eq.s32.totalorder %s39, 0
      %p356 = por %p354, %p355
      %p357 = scmp.ne.s32.totalorder %s349, %s351
      %p358 = scmp.eq.s32.totalorder %s44, 1
      %p359 = por %p357, %p358
      %p360 = scmp.ne.s32.totalorder %s351, %s352
      %p361 = scmp.eq.s32.totalorder %s44, 0
      %p362 = por %p360, %p361
      %p363 = scmp.ne.s32.totalorder %s351, %s352
      %p364 = scmp.eq.s32.totalorder %s45, 1
      %p365 = por %p363, %p364
      %p367 = scmp.ne.s32.totalorder %s352, %s366
      %p368 = scmp.eq.s32.totalorder %s45, 0
      %p369 = por %p367, %p368
      %s371 = sadd.s32 %s370, 1
      %p374 = scmp.eq.s32.totalorder %s39, 1
      %p375 = scmp.ne.s32.totalorder %s370, %s372
      %p376 = scmp.eq.s32.totalorder %s39, 0
      %p377 = por %p375, %p376
      %p378 = scmp.ne.s32.totalorder %s370, %s372
      %p379 = scmp.eq.s32.totalorder %s44, 1
      %p380 = por %p378, %p379
      %p381 = scmp.ne.s32.totalorder %s372, %s373
      %p382 = scmp.eq.s32.totalorder %s44, 0
      %p383 = por %p381, %p382
      %p384 = scmp.ne.s32.totalorder %s372, %s373
      %p385 = scmp.eq.s32.totalorder %s45, 1
      %p386 = por %p384, %p385
      %p388 = scmp.ne.s32.totalorder %s373, %s387
      %p389 = scmp.eq.s32.totalorder %s45, 0
      %p390 = por %p388, %p389
      %s392 = sadd.s32 %s391, 1
      %p395 = scmp.eq.s32.totalorder %s39, 1
      %p396 = scmp.ne.s32.totalorder %s391, %s393
      %p397 = scmp.eq.s32.totalorder %s39, 0
      %p398 = por %p396, %p397
      %p399 = scmp.ne.s32.totalorder %s391, %s393
      %p400 = scmp.eq.s32.totalorder %s44, 1
      %p401 = por %p399, %p400
      %p402 = scmp.ne.s32.totalorder %s393, %s394
      %p403 = scmp.eq.s32.totalorder %s44, 0
      %p404 = por %p402, %p403
      %p405 = scmp.ne.s32.totalorder %s393, %s394
      %p406 = scmp.eq.s32.totalorder %s45, 1
      %p407 = por %p405, %p406
      %p409 = scmp.ne.s32.totalorder %s394, %s408
      %p410 = scmp.eq.s32.totalorder %s45, 0
      %p411 = por %p409, %p410
      %s413 = sadd.s32 %s412, 1
      %p416 = scmp.eq.s32.totalorder %s39, 1
      %p417 = scmp.ne.s32.totalorder %s412, %s414
      %p418 = scmp.eq.s32.totalorder %s39, 0
      %p419 = por %p417, %p418
      %p420 = scmp.ne.s32.totalorder %s412, %s414
      %p421 = scmp.eq.s32.totalorder %s44, 1
      %p422 = por %p420, %p421
      %p423 = scmp.ne.s32.totalorder %s414, %s415
      %p424 = scmp.eq.s32.totalorder %s44, 0
      %p425 = por %p423, %p424
      %p426 = scmp.ne.s32.totalorder %s414, %s415
      %p427 = scmp.eq.s32.totalorder %s45, 1
      %p428 = por %p426, %p427
      %p430 = scmp.ne.s32.totalorder %s415, %s429
      %p431 = scmp.eq.s32.totalorder %s45, 0
      %p432 = por %p430, %p431
      %s433 = ssub.s32 %s46, %s58
      %s434 = ssub.s32 %s47, %s54
      %s435 = sor.u32 %s433, %s434
      %p436 = scmp.eq.s32.totalorder %s435, 0
      %s438 = sadd.s32 %s437, 1
      %s439 = scalar_select %p436, %s437, %s438
      %p442 = pneg %p436
      %p443 = scmp.eq.s32.totalorder %s39, 1
      %p444 = por %p442, %p443
      %p445 = scmp.ne.s32.totalorder %s437, %s440
      %p446 = scmp.eq.s32.totalorder %s39, 0
      %p447 = por %p445, %p446
      %p448 = scmp.ne.s32.totalorder %s437, %s440
      %p449 = scmp.eq.s32.totalorder %s44, 1
      %p450 = por %p448, %p449
      %p451 = scmp.ne.s32.totalorder %s440, %s441
      %p452 = scmp.eq.s32.totalorder %s44, 0
      %p453 = por %p451, %p452
      %p454 = scmp.ne.s32.totalorder %s440, %s441
      %p455 = scmp.eq.s32.totalorder %s45, 1
      %p456 = por %p454, %p455
      %p458 = scmp.ne.s32.totalorder %s441, %s457
      %p459 = scmp.eq.s32.totalorder %s45, 0
      %p460 = por %p458, %p459
      %p461 = scmp.le.s32.totalorder 1, %s39
      %p462 = scmp.lt.s32.totalorder %s39, 3
      %p463 = pnand %p461, %p462
      %p464 = pneg %p463
      // Predicated region
      $region9: #{tpu_custom_call.1} parent=5 // pred_check
        _
      $region10: #{tpu_custom_call.1} parent=5 // pred_check_branch
        %466 = sbr.rel (%p463) target = $region12
      $region11: #{tpu_custom_call.1} parent=5 // pred_region
        %s467 = ssub.s32 %s39, 1
        // Predicated region
        $region13: #{tpu_custom_call.1} parent=11 // pred_check
          %p468 = pneg %p152
        $region14: #{tpu_custom_call.1} parent=11 // pred_check_branch
          %470 = sbr.rel (%p468) target = $region16
        $region15: #{tpu_custom_call.1} parent=11 // pred_region
          %s472 = ssub.s32 16, 16
          %473 = vsyncadd [#allocation11], %s472
          %s475 = sshll.u32 [#allocation10], 4
          %s476 = int_to_ptr.vmem [resolvable:$true] %s475
          %478 = dma.hbm_to_vmem [thread:$0]  %s3, 16, %s476, [#allocation11]
        $region16: #{tpu_custom_call.1} parent=11 // pred_fallthru
          _
        // Predicated region
        $region17: #{tpu_custom_call.1} parent=11 // pred_check
          %p479 = pneg %p173
        $region18: #{tpu_custom_call.1} parent=11 // pred_check_branch
          %481 = sbr.rel (%p479) target = $region20
        $region19: #{tpu_custom_call.1} parent=11 // pred_region
          %s483 = ssub.s32 1024, 1024
          %484 = vsyncadd [#allocation11], %s483
          %s485 = sshll.u32 [#allocation12], 4
          %s486 = int_to_ptr.vmem [resolvable:$true] %s485
          %491 = dma.hbm_to_vmem [thread:$0]  %s4, 1024, %s486, [#allocation11], 64, 64, 4
        $region20: #{tpu_custom_call.1} parent=11 // pred_fallthru
          _
        // Predicated region
        $region21: #{tpu_custom_call.1} parent=11 // pred_check
          %p492 = pneg %p194
        $region22: #{tpu_custom_call.1} parent=11 // pred_check_branch
          %494 = sbr.rel (%p492) target = $region24
        $region23: #{tpu_custom_call.1} parent=11 // pred_region
          %s496 = ssub.s32 64, 64
          %497 = vsyncadd [#allocation14], %s496
          %s498 = sshll.u32 [#allocation13], 4
          %s499 = int_to_ptr.vmem [resolvable:$true] %s498
          %504 = dma.hbm_to_vmem [thread:$0]  %s5, 64, %s499, [#allocation14], 16, 16, 1
        $region24: #{tpu_custom_call.1} parent=11 // pred_fallthru
          _
        // Predicated region
        $region25: #{tpu_custom_call.1} parent=11 // pred_check
          %p505 = pneg %p215
        $region26: #{tpu_custom_call.1} parent=11 // pred_check_branch
          %507 = sbr.rel (%p505) target = $region28
        $region27: #{tpu_custom_call.1} parent=11 // pred_region
          %s509 = ssub.s32 1024, 1024
          %510 = vsyncadd [#allocation14], %s509
          %s511 = sshll.u32 [#allocation15], 4
          %s512 = int_to_ptr.vmem [resolvable:$true] %s511
          %517 = dma.hbm_to_vmem [thread:$0]  %s6, 1024, %s512, [#allocation14], 64, 64, 4
        $region28: #{tpu_custom_call.1} parent=11 // pred_fallthru
          _
        // Predicated region
        $region29: #{tpu_custom_call.1} parent=11 // pred_check
          %p518 = pneg %p236
        $region30: #{tpu_custom_call.1} parent=11 // pred_check_branch
          %520 = sbr.rel (%p518) target = $region32
        $region31: #{tpu_custom_call.1} parent=11 // pred_region
          %s522 = ssub.s32 64, 64
          %523 = vsyncadd [#allocation17], %s522
          %s524 = sshll.u32 [#allocation16], 4
          %s525 = int_to_ptr.vmem [resolvable:$true] %s524
          %530 = dma.hbm_to_vmem [thread:$0]  %s7, 64, %s525, [#allocation17], 16, 16, 1
        $region32: #{tpu_custom_call.1} parent=11 // pred_fallthru
          _
        // Predicated region
        $region33: #{tpu_custom_call.1} parent=11 // pred_check
          %p531 = pneg %p257
        $region34: #{tpu_custom_call.1} parent=11 // pred_check_branch
          %533 = sbr.rel (%p531) target = $region36
        $region35: #{tpu_custom_call.1} parent=11 // pred_region
          %s535 = ssub.s32 1024, 1024
          %536 = vsyncadd [#allocation17], %s535
          %s537 = sshll.u32 [#allocation18], 4
          %s538 = int_to_ptr.vmem [resolvable:$true] %s537
          %543 = dma.hbm_to_vmem [thread:$0]  %s8, 1024, %s538, [#allocation17], 64, 64, 4
        $region36: #{tpu_custom_call.1} parent=11 // pred_fallthru
          _
        // Predicated region
        $region37: #{tpu_custom_call.1} parent=11 // pred_check
          %p544 = pneg %p278
        $region38: #{tpu_custom_call.1} parent=11 // pred_check_branch
          %546 = sbr.rel (%p544) target = $region40
        $region39: #{tpu_custom_call.1} parent=11 // pred_region
          %s548 = ssub.s32 64, 64
          %549 = vsyncadd [#allocation20], %s548
          %s550 = sshll.u32 [#allocation19], 4
          %s551 = int_to_ptr.vmem [resolvable:$true] %s550
          %556 = dma.hbm_to_vmem [thread:$0]  %s9, 64, %s551, [#allocation20], 16, 16, 1
        $region40: #{tpu_custom_call.1} parent=11 // pred_fallthru
          _
        // Predicated region
        $region41: #{tpu_custom_call.1} parent=11 // pred_check
          %p557 = pneg %p299
        $region42: #{tpu_custom_call.1} parent=11 // pred_check_branch
          %559 = sbr.rel (%p557) target = $region44
        $region43: #{tpu_custom_call.1} parent=11 // pred_region
          %s561 = ssub.s32 256, 256
          %562 = vsyncadd [#allocation20], %s561
          %s563 = sshll.u32 [#allocation21], 4
          %s564 = int_to_ptr.vmem [resolvable:$true] %s563
          %569 = dma.hbm_to_vmem [thread:$0]  %s10, 256, %s564, [#allocation20], 64, 64, 4
        $region44: #{tpu_custom_call.1} parent=11 // pred_fallthru
          _
        // Predicated region
        $region45: #{tpu_custom_call.1} parent=11 // pred_check
          %p570 = pneg %p320
        $region46: #{tpu_custom_call.1} parent=11 // pred_check_branch
          %572 = sbr.rel (%p570) target = $region48
        $region47: #{tpu_custom_call.1} parent=11 // pred_region
          %s574 = ssub.s32 16, 16
          %575 = vsyncadd [#allocation23], %s574
          %s577 = sshll.u32 [#allocation22], 4
          %s578 = int_to_ptr.vmem [resolvable:$true] %s577
          %580 = dma.hbm_to_vmem [thread:$0]  %s11, 16, %s578, [#allocation23]
        $region48: #{tpu_custom_call.1} parent=11 // pred_fallthru
          _
        // Predicated region
        $region49: #{tpu_custom_call.1} parent=11 // pred_check
          %p581 = pneg %p341
        $region50: #{tpu_custom_call.1} parent=11 // pred_check_branch
          %583 = sbr.rel (%p581) target = $region52
        $region51: #{tpu_custom_call.1} parent=11 // pred_region
          %s585 = ssub.s32 16, 16
          %586 = vsyncadd [#allocation23], %s585
          %s588 = sshll.u32 [#allocation24], 4
          %s589 = int_to_ptr.vmem [resolvable:$true] %s588
          %591 = dma.hbm_to_vmem [thread:$0]  %s12, 16, %s589, [#allocation23]
        $region52: #{tpu_custom_call.1} parent=11 // pred_fallthru
          _
        // Predicated region
        $region53: #{tpu_custom_call.1} parent=11 // pred_check
          %p592 = pneg %p362
        $region54: #{tpu_custom_call.1} parent=11 // pred_check_branch
          %594 = sbr.rel (%p592) target = $region56
        $region55: #{tpu_custom_call.1} parent=11 // pred_region
          %s596 = ssub.s32 256, 256
          %597 = vsyncadd [#allocation26], %s596
          %s598 = sshll.u32 [#allocation25], 4
          %s599 = int_to_ptr.vmem [resolvable:$true] %s598
          %604 = dma.hbm_to_vmem [thread:$0]  %s13, 256, %s599, [#allocation26], 64, 64, 4
        $region56: #{tpu_custom_call.1} parent=11 // pred_fallthru
          _
        // Predicated region
        $region57: #{tpu_custom_call.1} parent=11 // pred_check
          %p605 = pneg %p383
        $region58: #{tpu_custom_call.1} parent=11 // pred_check_branch
          %607 = sbr.rel (%p605) target = $region60
        $region59: #{tpu_custom_call.1} parent=11 // pred_region
          %s609 = ssub.s32 16, 16
          %610 = vsyncadd [#allocation26], %s609
          %s612 = sshll.u32 [#allocation27], 4
          %s613 = int_to_ptr.vmem [resolvable:$true] %s612
          %615 = dma.hbm_to_vmem [thread:$0]  %s14, 16, %s613, [#allocation26]
        $region60: #{tpu_custom_call.1} parent=11 // pred_fallthru
          _
        // Predicated region
        $region61: #{tpu_custom_call.1} parent=11 // pred_check
          %p616 = pneg %p404
        $region62: #{tpu_custom_call.1} parent=11 // pred_check_branch
          %618 = sbr.rel (%p616) target = $region64
        $region63: #{tpu_custom_call.1} parent=11 // pred_region
          %s620 = ssub.s32 512, 512
          %621 = vsyncadd [#allocation29], %s620
          %s622 = sshll.u32 [#allocation28], 4
          %s623 = int_to_ptr.vmem [resolvable:$true] %s622
          %628 = dma.hbm_to_vmem [thread:$0]  %s15, 512, %s623, [#allocation29], 64, 64, 4
        $region64: #{tpu_custom_call.1} parent=11 // pred_fallthru
          _
        // Predicated region
        $region65: #{tpu_custom_call.1} parent=11 // pred_check
          %p629 = pneg %p425
        $region66: #{tpu_custom_call.1} parent=11 // pred_check_branch
          %631 = sbr.rel (%p629) target = $region68
        $region67: #{tpu_custom_call.1} parent=11 // pred_region
          %s633 = ssub.s32 16, 16
          %634 = vsyncadd [#allocation29], %s633
          %s636 = sshll.u32 [#allocation30], 4
          %s637 = int_to_ptr.vmem [resolvable:$true] %s636
          %639 = dma.hbm_to_vmem [thread:$0]  %s16, 16, %s637, [#allocation29]
        $region68: #{tpu_custom_call.1} parent=11 // pred_fallthru
          _
      $region12: #{tpu_custom_call.1} parent=5 // pred_fallthru
        _
      %p640 = scmp.lt.s32.totalorder %s39, 2
      // Predicated region
      $region69: #{tpu_custom_call.1} parent=5 // pred_check
        %p641 = pneg %p640
      $region70: #{tpu_custom_call.1} parent=5 // pred_check_branch
        %643 = sbr.rel (%p641) target = $region72
      $region71: #{tpu_custom_call.1} parent=5 // pred_region
        // Predicated region
        $region73: #{tpu_custom_call.1} parent=71 // pred_check
          %p644 = pneg %p73
        $region74: #{tpu_custom_call.1} parent=71 // pred_check_branch
          %646 = sbr.rel (%p644) target = $region76
        $region75: #{tpu_custom_call.1} parent=71 // pred_region
          %s647 = sand.u32 %s63, 1
          %s648 = scalar_lea.sflag [#allocation5], %s647
          %s649 = sand.u32 %s63, 1
          %s650 = smul.addr %s649, 8
          %s651 = scalar_lea.vmem [#allocation4], %s650
          %s653 = ssub.s32 128, 128
          %654 = vsyncadd %s648, %s653
          %s655 = sadd.s32 %s47, %s46
          %s656 = smul.addr %s655, 128
          %s657 = scalar_lea.hbm %s0, %s656
          %s659 = sshll.u32 %s651, 4
          %s660 = int_to_ptr.vmem [resolvable:$true] %s659
          %662 = dma.hbm_to_vmem [thread:$0]  %s657, 128, %s660, %s648
        $region76: #{tpu_custom_call.1} parent=71 // pred_fallthru
          _
        // Predicated region
        $region77: #{tpu_custom_call.1} parent=71 // pred_check
          %p663 = pneg %p99
        $region78: #{tpu_custom_call.1} parent=71 // pred_check_branch
          %665 = sbr.rel (%p663) target = $region80
        $region79: #{tpu_custom_call.1} parent=71 // pred_region
          %s666 = sand.u32 %s39, 1
          %s667 = scalar_lea.sflag [#allocation8], %s666
          %s668 = sand.u32 %s89, 1
          %s669 = smul.addr %s668, 8
          %s670 = scalar_lea.vmem [#allocation7], %s669
          %s672 = ssub.s32 128, 128
          %673 = vsyncadd %s667, %s672
          %s674 = smul.addr %s46, 2
          %s675 = smul.addr %s674, 64
          %s676 = scalar_lea.hbm %s1, %s675
          %s677 = sshll.u32 %s670, 4
          %s678 = int_to_ptr.vmem [resolvable:$true] %s677
          %683 = dma.hbm_to_vmem [thread:$0]  %s676, 128, %s678, %s667, 64, 64, 4
        $region80: #{tpu_custom_call.1} parent=71 // pred_fallthru
          _
        // Predicated region
        $region81: #{tpu_custom_call.1} parent=71 // pred_check
          %p684 = pneg %p125
        $region82: #{tpu_custom_call.1} parent=71 // pred_check_branch
          %686 = sbr.rel (%p684) target = $region84
        $region83: #{tpu_custom_call.1} parent=71 // pred_region
          %s687 = sand.u32 %s39, 1
          %s688 = scalar_lea.sflag [#allocation8], %s687
          %s689 = sand.u32 %s115, 1
          %s690 = scalar_lea.vmem [#allocation9], %s689
          %s692 = ssub.s32 16, 16
          %693 = vsyncadd %s688, %s692
          %s694 = smul.addr %s46, 16
          %s695 = scalar_lea.hbm %s2, %s694
          %s697 = sshll.u32 %s690, 4
          %s698 = int_to_ptr.vmem [resolvable:$true] %s697
          %700 = dma.hbm_to_vmem [thread:$0]  %s695, 16, %s698, %s688
        $region84: #{tpu_custom_call.1} parent=71 // pred_fallthru
          _
      $region72: #{tpu_custom_call.1} parent=5 // pred_fallthru
        _
      %p701 = scmp.le.s32.totalorder 1, %s39
      %p702 = scmp.lt.s32.totalorder %s39, 3
      %p703 = pnand %p701, %p702
      %p704 = pneg %p703
      // Predicated region
      $region85: #{tpu_custom_call.1} parent=5 // pred_check
        _
      $region86: #{tpu_custom_call.1} parent=5 // pred_check_branch
        %706 = sbr.rel (%p703) target = $region88
      $region87: #{tpu_custom_call.1} parent=5 // pred_region
        %s707 = ssub.s32 %s39, 1
        %s708 = sand.u32 %s66, 1
        %s709 = scalar_lea.sflag [#allocation5], %s708
        %s710 = sand.u32 %s66, 1
        %s711 = smul.addr %s710, 8
        %s712 = scalar_lea.vmem [#allocation4], %s711
        // Predicated region
        $region89: #{tpu_custom_call.1} parent=87 // pred_check
          %p713 = pneg %p79
        $region90: #{tpu_custom_call.1} parent=87 // pred_check_branch
          %715 = sbr.rel (%p713) target = $region92
        $region91: #{tpu_custom_call.1} parent=87 // pred_region
          %716 = dma.done %s709, 128
        $region92: #{tpu_custom_call.1} parent=87 // pred_fallthru
          _
        %s717 = sand.u32 %s44, 1
        %s718 = scalar_lea.sflag [#allocation8], %s717
        %s719 = sand.u32 %s92, 1
        %s720 = smul.addr %s719, 8
        %s721 = scalar_lea.vmem [#allocation7], %s720
        // Predicated region
        $region93: #{tpu_custom_call.1} parent=87 // pred_check
          %p722 = pneg %p105
        $region94: #{tpu_custom_call.1} parent=87 // pred_check_branch
          %724 = sbr.rel (%p722) target = $region96
        $region95: #{tpu_custom_call.1} parent=87 // pred_region
          %725 = dma.done %s718, 128
        $region96: #{tpu_custom_call.1} parent=87 // pred_fallthru
          _
        %s726 = sand.u32 %s44, 1
        %s727 = scalar_lea.sflag [#allocation8], %s726
        %s728 = sand.u32 %s118, 1
        %s729 = scalar_lea.vmem [#allocation9], %s728
        // Predicated region
        $region97: #{tpu_custom_call.1} parent=87 // pred_check
          %p730 = pneg %p131
        $region98: #{tpu_custom_call.1} parent=87 // pred_check_branch
          %732 = sbr.rel (%p730) target = $region100
        $region99: #{tpu_custom_call.1} parent=87 // pred_region
          %733 = dma.done %s727, 16
        $region100: #{tpu_custom_call.1} parent=87 // pred_fallthru
          _
        // Predicated region
        $region101: #{tpu_custom_call.1} parent=87 // pred_check
          %p734 = pneg %p152
        $region102: #{tpu_custom_call.1} parent=87 // pred_check_branch
          %736 = sbr.rel (%p734) target = $region104
        $region103: #{tpu_custom_call.1} parent=87 // pred_region
          %737 = dma.done [#allocation11], 16
        $region104: #{tpu_custom_call.1} parent=87 // pred_fallthru
          _
        // Predicated region
        $region105: #{tpu_custom_call.1} parent=87 // pred_check
          %p738 = pneg %p173
        $region106: #{tpu_custom_call.1} parent=87 // pred_check_branch
          %740 = sbr.rel (%p738) target = $region108
        $region107: #{tpu_custom_call.1} parent=87 // pred_region
          %741 = dma.done [#allocation11], 1024
        $region108: #{tpu_custom_call.1} parent=87 // pred_fallthru
          _
        // Predicated region
        $region109: #{tpu_custom_call.1} parent=87 // pred_check
          %p742 = pneg %p194
        $region110: #{tpu_custom_call.1} parent=87 // pred_check_branch
          %744 = sbr.rel (%p742) target = $region112
        $region111: #{tpu_custom_call.1} parent=87 // pred_region
          %745 = dma.done [#allocation14], 64
        $region112: #{tpu_custom_call.1} parent=87 // pred_fallthru
          _
        // Predicated region
        $region113: #{tpu_custom_call.1} parent=87 // pred_check
          %p746 = pneg %p215
        $region114: #{tpu_custom_call.1} parent=87 // pred_check_branch
          %748 = sbr.rel (%p746) target = $region116
        $region115: #{tpu_custom_call.1} parent=87 // pred_region
          %749 = dma.done [#allocation14], 1024
        $region116: #{tpu_custom_call.1} parent=87 // pred_fallthru
          _
        // Predicated region
        $region117: #{tpu_custom_call.1} parent=87 // pred_check
          %p750 = pneg %p236
        $region118: #{tpu_custom_call.1} parent=87 // pred_check_branch
          %752 = sbr.rel (%p750) target = $region120
        $region119: #{tpu_custom_call.1} parent=87 // pred_region
          %753 = dma.done [#allocation17], 64
        $region120: #{tpu_custom_call.1} parent=87 // pred_fallthru
          _
        // Predicated region
        $region121: #{tpu_custom_call.1} parent=87 // pred_check
          %p754 = pneg %p257
        $region122: #{tpu_custom_call.1} parent=87 // pred_check_branch
          %756 = sbr.rel (%p754) target = $region124
        $region123: #{tpu_custom_call.1} parent=87 // pred_region
          %757 = dma.done [#allocation17], 1024
        $region124: #{tpu_custom_call.1} parent=87 // pred_fallthru
          _
        // Predicated region
        $region125: #{tpu_custom_call.1} parent=87 // pred_check
          %p758 = pneg %p278
        $region126: #{tpu_custom_call.1} parent=87 // pred_check_branch
          %760 = sbr.rel (%p758) target = $region128
        $region127: #{tpu_custom_call.1} parent=87 // pred_region
          %761 = dma.done [#allocation20], 64
        $region128: #{tpu_custom_call.1} parent=87 // pred_fallthru
          _
        // Predicated region
        $region129: #{tpu_custom_call.1} parent=87 // pred_check
          %p762 = pneg %p299
        $region130: #{tpu_custom_call.1} parent=87 // pred_check_branch
          %764 = sbr.rel (%p762) target = $region132
        $region131: #{tpu_custom_call.1} parent=87 // pred_region
          %765 = dma.done [#allocation20], 256
        $region132: #{tpu_custom_call.1} parent=87 // pred_fallthru
          _
        // Predicated region
        $region133: #{tpu_custom_call.1} parent=87 // pred_check
          %p766 = pneg %p320
        $region134: #{tpu_custom_call.1} parent=87 // pred_check_branch
          %768 = sbr.rel (%p766) target = $region136
        $region135: #{tpu_custom_call.1} parent=87 // pred_region
          %769 = dma.done [#allocation23], 16
        $region136: #{tpu_custom_call.1} parent=87 // pred_fallthru
          _
        // Predicated region
        $region137: #{tpu_custom_call.1} parent=87 // pred_check
          %p770 = pneg %p341
        $region138: #{tpu_custom_call.1} parent=87 // pred_check_branch
          %772 = sbr.rel (%p770) target = $region140
        $region139: #{tpu_custom_call.1} parent=87 // pred_region
          %773 = dma.done [#allocation23], 16
        $region140: #{tpu_custom_call.1} parent=87 // pred_fallthru
          _
        // Predicated region
        $region141: #{tpu_custom_call.1} parent=87 // pred_check
          %p774 = pneg %p362
        $region142: #{tpu_custom_call.1} parent=87 // pred_check_branch
          %776 = sbr.rel (%p774) target = $region144
        $region143: #{tpu_custom_call.1} parent=87 // pred_region
          %777 = dma.done [#allocation26], 256
        $region144: #{tpu_custom_call.1} parent=87 // pred_fallthru
          _
        // Predicated region
        $region145: #{tpu_custom_call.1} parent=87 // pred_check
          %p778 = pneg %p383
        $region146: #{tpu_custom_call.1} parent=87 // pred_check_branch
          %780 = sbr.rel (%p778) target = $region148
        $region147: #{tpu_custom_call.1} parent=87 // pred_region
          %781 = dma.done [#allocation26], 16
        $region148: #{tpu_custom_call.1} parent=87 // pred_fallthru
          _
        // Predicated region
        $region149: #{tpu_custom_call.1} parent=87 // pred_check
          %p782 = pneg %p404
        $region150: #{tpu_custom_call.1} parent=87 // pred_check_branch
          %784 = sbr.rel (%p782) target = $region152
        $region151: #{tpu_custom_call.1} parent=87 // pred_region
          %785 = dma.done [#allocation29], 512
        $region152: #{tpu_custom_call.1} parent=87 // pred_fallthru
          _
        // Predicated region
        $region153: #{tpu_custom_call.1} parent=87 // pred_check
          %p786 = pneg %p425
        $region154: #{tpu_custom_call.1} parent=87 // pred_check_branch
          %788 = sbr.rel (%p786) target = $region156
        $region155: #{tpu_custom_call.1} parent=87 // pred_region
          %789 = dma.done [#allocation29], 16
        $region156: #{tpu_custom_call.1} parent=87 // pred_fallthru
          _
        %s790 = sand.u32 %s66, 1
        %s791 = scalar_lea.sflag [#allocation5], %s790
        %s792 = sand.u32 %s66, 1
        %s793 = smul.addr %s792, 8
        %s794 = scalar_lea.vmem [#allocation4], %s793
        %p795 = pneg %p79
        %p796 = pneg %p76
        %s797 = sand.u32 %s44, 1
        %s798 = scalar_lea.sflag [#allocation8], %s797
        %s799 = sand.u32 %s92, 1
        %s800 = smul.addr %s799, 8
        %s801 = scalar_lea.vmem [#allocation7], %s800
        %p802 = pneg %p105
        %p803 = pneg %p102
        %s804 = sand.u32 %s44, 1
        %s805 = scalar_lea.sflag [#allocation8], %s804
        %s806 = sand.u32 %s118, 1
        %s807 = scalar_lea.vmem [#allocation9], %s806
        %p808 = pneg %p131
        %p809 = pneg %p128
        %p810 = pneg %p152
        %p811 = pneg %p149
        %p812 = pneg %p173
        %p813 = pneg %p170
        %p814 = pneg %p194
        %p815 = pneg %p191
        %p816 = pneg %p215
        %p817 = pneg %p212
        %p818 = pneg %p236
        %p819 = pneg %p233
        %p820 = pneg %p257
        %p821 = pneg %p254
        %p822 = pneg %p278
        %p823 = pneg %p275
        %p824 = pneg %p299
        %p825 = pneg %p296
        %p826 = pneg %p320
        %p827 = pneg %p317
        %p828 = pneg %p341
        %p829 = pneg %p338
        %p830 = pneg %p362
        %p831 = pneg %p359
        %p832 = pneg %p383
        %p833 = pneg %p380
        %p834 = pneg %p404
        %p835 = pneg %p401
        %p836 = pneg %p425
        %p837 = pneg %p422
        %p838 = pneg %p453
        %p839 = pneg %p450
        %s840 = sand.u32 %s440, 1
        %s841 = scalar_lea.sflag [#allocation6], %s840
        %s842 = sand.u32 %s440, 1
        %s843 = smul.addr %s842, 8
        %s844 = scalar_lea.vmem [#allocation31], %s843
        %p846 = scmp.eq.s32.totalorder %s49, 0
        // Predicated region
        $region157: #{tpu_custom_call.1} parent=87 // pred_check
          %p847 = pneg %p846
        $region158: #{tpu_custom_call.1} parent=87 // pred_check_branch
          %849 = sbr.rel (%p847) target = $region160
        $region159: #{tpu_custom_call.1} parent=87 // pred_region
          %v850 = vld [vmem:[%s721] sm:$0xf]
          %v851 = vld [vmem:[%s721 + $0x4] sm:$0xf]
          %v852 = vld [vmem:[#allocation15] sm:$0xf]
          %v853 = vld [vmem:[#allocation15 + $0x4] sm:$0xf]
          %v854 = vld [vmem:[#allocation15 + $0x8] sm:$0xf]
          %v855 = vld [vmem:[#allocation15 + $0xc] sm:$0xf]
          %v856 = vld [vmem:[#allocation16] sm:$0x1]
          %v858 = vlaneseq
          %v859 = vshrl.u32 %v858, 7
          %v860 = vsub.s32 0, %v859
          %v861 = vrot.slane %v856, %v860
          %v865 = vunpack.c.l.b16 %v850
          %v866 = vunpack.c.l.b16 %v851
          %v867 = vpack.c.b16 %v866, %v865
          %v872 = vunpack.c.l.b16 %v852
          %v873 = vunpack.c.l.b16 %v853
          %v874 = vunpack.c.l.b16 %v854
          %v875 = vunpack.c.l.b16 %v855
          %v876 = vpack.c.b16 %v873, %v872
          %v877 = vpack.c.b16 %v875, %v874
          %vm880 = vcmask 261120
          %v882 = vsel %vm880, %v867, 0
          %884 = vmatprep.subr.bf16.mxu0 0
          %885 = vmatpush1.bf16.msra.mxu0 %v876
          %886 = vmatprep.subr.bf16.mxu0 0
          %887 = vmatpush1.bf16.msra.mxu0 %v877
          %888 = vmatprep.subr.bf16.mxu0 0
          %889 = vmatpush1.bf16.msra.mxu0 0
          %890 = vmatprep.subr.bf16.mxu0 0
          %891 = vmatpush1.bf16.msra.mxu0 0
          %892 = vmatprep.subr.bf16.mxu0 0
          %893 = vmatpush1.bf16.msra.mxu0 0
          %894 = vmatprep.subr.bf16.mxu0 0
          %895 = vmatpush1.bf16.msra.mxu0 0
          %896 = vmatprep.subr.bf16.mxu0 0
          %897 = vmatpush1.bf16.msra.mxu0 0
          %898 = vmatprep.subr.bf16.mxu0 0
          %899 = vmatpush1.bf16.msra.mxu0 0
          %900 = vmatprep.subr.bf16.mxu0 0
          %901 = vmatpush1.bf16.msra.mxu0 0
          %902 = vmatprep.subr.bf16.mxu0 0
          %903 = vmatpush1.bf16.msra.mxu0 0
          %904 = vmatprep.subr.bf16.mxu0 0
          %905 = vmatpush1.bf16.msra.mxu0 0
          %906 = vmatprep.subr.bf16.mxu0 0
          %907 = vmatpush1.bf16.msra.mxu0 0
          %908 = vmatprep.subr.bf16.mxu0 0
          %909 = vmatpush1.bf16.msra.mxu0 0
          %910 = vmatprep.subr.bf16.mxu0 0
          %911 = vmatpush1.bf16.msra.mxu0 0
          %912 = vmatprep.subr.bf16.mxu0 0
          %913 = vmatpush1.bf16.msra.mxu0 0
          %914 = vmatprep.subr.bf16.mxu0 0
          %915 = vmatpush1.bf16.msra.mxu0 0
          %916 = vmatprep.mubr.bf16.mxu0 0
          %917 = vmatmul.mubr.bf16.gmra.mrb[0].mxu0 %v882
          %v918 = vpop.f32.mrb[0].mxu0
          %v919 = vadd.f32 %v861, %v918
          %v920 = vpop.f32.mrb[0].mxu0
          %v921 = vpop.f32.mrb[0].mxu0
          %v922 = vadd.f32 %v861, %v921
          %v923 = vpop.f32.mrb[0].mxu0
          %924 = vdwg.mxu0
          %v925 = vld [vmem:[#allocation18] sm:$0xf]
          %v926 = vld [vmem:[#allocation18 + $0x4] sm:$0xf]
          %v927 = vld [vmem:[#allocation18 + $0x8] sm:$0xf]
          %v928 = vld [vmem:[#allocation18 + $0xc] sm:$0xf]
          %v929 = vld [vmem:[#allocation19] sm:$0x1]
          %v931 = vlaneseq
          %v932 = vshrl.u32 %v931, 7
          %v933 = vsub.s32 0, %v932
          %v934 = vrot.slane %v929, %v933
          %v940 = vunpack.c.l.b16 %v925
          %v941 = vunpack.c.l.b16 %v926
          %v942 = vunpack.c.l.b16 %v927
          %v943 = vunpack.c.l.b16 %v928
          %v944 = vpack.c.b16 %v941, %v940
          %v945 = vpack.c.b16 %v943, %v942
          %948 = vmatprep.subr.bf16.mxu0 0
          %949 = vmatpush1.bf16.msra.mxu0 %v944
          %950 = vmatprep.subr.bf16.mxu0 0
          %951 = vmatpush1.bf16.msra.mxu0 %v945
          %952 = vmatprep.subr.bf16.mxu0 0
          %953 = vmatpush1.bf16.msra.mxu0 0
          %954 = vmatprep.subr.bf16.mxu0 0
          %955 = vmatpush1.bf16.msra.mxu0 0
          %956 = vmatprep.subr.bf16.mxu0 0
          %957 = vmatpush1.bf16.msra.mxu0 0
          %958 = vmatprep.subr.bf16.mxu0 0
          %959 = vmatpush1.bf16.msra.mxu0 0
          %960 = vmatprep.subr.bf16.mxu0 0
          %961 = vmatpush1.bf16.msra.mxu0 0
          %962 = vmatprep.subr.bf16.mxu0 0
          %963 = vmatpush1.bf16.msra.mxu0 0
          %964 = vmatprep.subr.bf16.mxu0 0
          %965 = vmatpush1.bf16.msra.mxu0 0
          %966 = vmatprep.subr.bf16.mxu0 0
          %967 = vmatpush1.bf16.msra.mxu0 0
          %968 = vmatprep.subr.bf16.mxu0 0
          %969 = vmatpush1.bf16.msra.mxu0 0
          %970 = vmatprep.subr.bf16.mxu0 0
          %971 = vmatpush1.bf16.msra.mxu0 0
          %972 = vmatprep.subr.bf16.mxu0 0
          %973 = vmatpush1.bf16.msra.mxu0 0
          %974 = vmatprep.subr.bf16.mxu0 0
          %975 = vmatpush1.bf16.msra.mxu0 0
          %976 = vmatprep.subr.bf16.mxu0 0
          %977 = vmatpush1.bf16.msra.mxu0 0
          %978 = vmatprep.subr.bf16.mxu0 0
          %979 = vmatpush1.bf16.msra.mxu0 0
          %980 = vmatprep.mubr.bf16.mxu0 0
          %981 = vmatmul.mubr.bf16.gmra.mrb[0].mxu0 %v882
          %v982 = vpop.f32.mrb[0].mxu0
          %v983 = vadd.f32 %v934, %v982
          %v984 = vpop.f32.mrb[0].mxu0
          %v985 = vpop.f32.mrb[0].mxu0
          %v986 = vadd.f32 %v934, %v985
          %v987 = vpop.f32.mrb[0].mxu0
          %988 = vdwg.mxu0
          %v989 = vpack.c.bf16 %v922, %v919
          %vm990 = vcmask 64512
          %991 = vst.msk [vmem:[#allocation2] sm:$0xff] %vm990, %v989
          %v992 = vpack.c.bf16 %v986, %v983
          %993 = vst.msk [vmem:[#allocation3] sm:$0xff] %vm990, %v992
          %s994 = scalar_lea.vmem [#allocation15], 16
          %v995 = vld [vmem:[%s994] sm:$0xf]
          %v996 = vld [vmem:[%s994 + $0x4] sm:$0xf]
          %v997 = vld [vmem:[%s994 + $0x8] sm:$0xf]
          %v998 = vld [vmem:[%s994 + $0xc] sm:$0xf]
          %s999 = scalar_lea.vmem [#allocation16], 1
          %v1000 = vld [vmem:[%s999] sm:$0x1]
          %v1002 = vlaneseq
          %v1003 = vshrl.u32 %v1002, 7
          %v1004 = vsub.s32 0, %v1003
          %v1005 = vrot.slane %v1000, %v1004
          %v1011 = vunpack.c.l.b16 %v995
          %v1012 = vunpack.c.l.b16 %v996
          %v1013 = vunpack.c.l.b16 %v997
          %v1014 = vunpack.c.l.b16 %v998
          %v1015 = vpack.c.b16 %v1012, %v1011
          %v1016 = vpack.c.b16 %v1014, %v1013
          %1019 = vmatprep.subr.bf16.mxu0 0
          %1020 = vmatpush1.bf16.msra.mxu0 %v1015
          %1021 = vmatprep.subr.bf16.mxu0 0
          %1022 = vmatpush1.bf16.msra.mxu0 %v1016
          %1023 = vmatprep.subr.bf16.mxu0 0
          %1024 = vmatpush1.bf16.msra.mxu0 0
          %1025 = vmatprep.subr.bf16.mxu0 0
          %1026 = vmatpush1.bf16.msra.mxu0 0
          %1027 = vmatprep.subr.bf16.mxu0 0
          %1028 = vmatpush1.bf16.msra.mxu0 0
          %1029 = vmatprep.subr.bf16.mxu0 0
          %1030 = vmatpush1.bf16.msra.mxu0 0
          %1031 = vmatprep.subr.bf16.mxu0 0
          %1032 = vmatpush1.bf16.msra.mxu0 0
          %1033 = vmatprep.subr.bf16.mxu0 0
          %1034 = vmatpush1.bf16.msra.mxu0 0
          %1035 = vmatprep.subr.bf16.mxu0 0
          %1036 = vmatpush1.bf16.msra.mxu0 0
          %1037 = vmatprep.subr.bf16.mxu0 0
          %1038 = vmatpush1.bf16.msra.mxu0 0
          %1039 = vmatprep.subr.bf16.mxu0 0
          %1040 = vmatpush1.bf16.msra.mxu0 0
          %1041 = vmatprep.subr.bf16.mxu0 0
          %1042 = vmatpush1.bf16.msra.mxu0 0
          %1043 = vmatprep.subr.bf16.mxu0 0
          %1044 = vmatpush1.bf16.msra.mxu0 0
          %1045 = vmatprep.subr.bf16.mxu0 0
          %1046 = vmatpush1.bf16.msra.mxu0 0
          %1047 = vmatprep.subr.bf16.mxu0 0
          %1048 = vmatpush1.bf16.msra.mxu0 0
          %1049 = vmatprep.subr.bf16.mxu0 0
          %1050 = vmatpush1.bf16.msra.mxu0 0
          %1051 = vmatprep.mubr.bf16.mxu0 0
          %1052 = vmatmul.mubr.bf16.gmra.mrb[0].mxu0 %v882
          %v1053 = vpop.f32.mrb[0].mxu0
          %v1054 = vadd.f32 %v1005, %v1053
          %v1055 = vpop.f32.mrb[0].mxu0
          %v1056 = vpop.f32.mrb[0].mxu0
          %v1057 = vadd.f32 %v1005, %v1056
          %v1058 = vpop.f32.mrb[0].mxu0
          %1059 = vdwg.mxu0
          %s1060 = scalar_lea.vmem [#allocation18], 16
          %v1061 = vld [vmem:[%s1060] sm:$0xf]
          %v1062 = vld [vmem:[%s1060 + $0x4] sm:$0xf]
          %v1063 = vld [vmem:[%s1060 + $0x8] sm:$0xf]
          %v1064 = vld [vmem:[%s1060 + $0xc] sm:$0xf]
          %s1065 = scalar_lea.vmem [#allocation19], 1
          %v1066 = vld [vmem:[%s1065] sm:$0x1]
          %v1068 = vlaneseq
          %v1069 = vshrl.u32 %v1068, 7
          %v1070 = vsub.s32 0, %v1069
          %v1071 = vrot.slane %v1066, %v1070
          %v1077 = vunpack.c.l.b16 %v1061
          %v1078 = vunpack.c.l.b16 %v1062
          %v1079 = vunpack.c.l.b16 %v1063
          %v1080 = vunpack.c.l.b16 %v1064
          %v1081 = vpack.c.b16 %v1078, %v1077
          %v1082 = vpack.c.b16 %v1080, %v1079
          %1085 = vmatprep.subr.bf16.mxu0 0
          %1086 = vmatpush1.bf16.msra.mxu0 %v1081
          %1087 = vmatprep.subr.bf16.mxu0 0
          %1088 = vmatpush1.bf16.msra.mxu0 %v1082
          %1089 = vmatprep.subr.bf16.mxu0 0
          %1090 = vmatpush1.bf16.msra.mxu0 0
          %1091 = vmatprep.subr.bf16.mxu0 0
          %1092 = vmatpush1.bf16.msra.mxu0 0
          %1093 = vmatprep.subr.bf16.mxu0 0
          %1094 = vmatpush1.bf16.msra.mxu0 0
          %1095 = vmatprep.subr.bf16.mxu0 0
          %1096 = vmatpush1.bf16.msra.mxu0 0
          %1097 = vmatprep.subr.bf16.mxu0 0
          %1098 = vmatpush1.bf16.msra.mxu0 0
          %1099 = vmatprep.subr.bf16.mxu0 0
          %1100 = vmatpush1.bf16.msra.mxu0 0
          %1101 = vmatprep.subr.bf16.mxu0 0
          %1102 = vmatpush1.bf16.msra.mxu0 0
          %1103 = vmatprep.subr.bf16.mxu0 0
          %1104 = vmatpush1.bf16.msra.mxu0 0
          %1105 = vmatprep.subr.bf16.mxu0 0
          %1106 = vmatpush1.bf16.msra.mxu0 0
          %1107 = vmatprep.subr.bf16.mxu0 0
          %1108 = vmatpush1.bf16.msra.mxu0 0
          %1109 = vmatprep.subr.bf16.mxu0 0
          %1110 = vmatpush1.bf16.msra.mxu0 0
          %1111 = vmatprep.subr.bf16.mxu0 0
          %1112 = vmatpush1.bf16.msra.mxu0 0
          %1113 = vmatprep.subr.bf16.mxu0 0
          %1114 = vmatpush1.bf16.msra.mxu0 0
          %1115 = vmatprep.subr.bf16.mxu0 0
          %1116 = vmatpush1.bf16.msra.mxu0 0
          %1117 = vmatprep.mubr.bf16.mxu0 0
          %1118 = vmatmul.mubr.bf16.gmra.mrb[0].mxu0 %v882
          %v1119 = vpop.f32.mrb[0].mxu0
          %v1120 = vadd.f32 %v1071, %v1119
          %v1121 = vpop.f32.mrb[0].mxu0
          %v1122 = vpop.f32.mrb[0].mxu0
          %v1123 = vadd.f32 %v1071, %v1122
          %v1124 = vpop.f32.mrb[0].mxu0
          %1125 = vdwg.mxu0
          %v1126 = vpack.c.bf16 %v1057, %v1054
          %s1127 = scalar_lea.vmem [#allocation2], 8
          %1128 = vst.msk [vmem:[%s1127] sm:$0xff] %vm990, %v1126
          %v1129 = vpack.c.bf16 %v1123, %v1120
          %s1130 = scalar_lea.vmem [#allocation3], 8
          %1131 = vst.msk [vmem:[%s1130] sm:$0xff] %vm990, %v1129
          %s1132 = scalar_lea.vmem [#allocation15], 32
          %v1133 = vld [vmem:[%s1132] sm:$0xf]
          %v1134 = vld [vmem:[%s1132 + $0x4] sm:$0xf]
          %v1135 = vld [vmem:[%s1132 + $0x8] sm:$0xf]
          %v1136 = vld [vmem:[%s1132 + $0xc] sm:$0xf]
          %s1137 = scalar_lea.vmem [#allocation16], 2
          %v1138 = vld [vmem:[%s1137] sm:$0x1]
          %v1140 = vlaneseq
          %v1141 = vshrl.u32 %v1140, 7
          %v1142 = vsub.s32 0, %v1141
          %v1143 = vrot.slane %v1138, %v1142
          %v1149 = vunpack.c.l.b16 %v1133
          %v1150 = vunpack.c.l.b16 %v1134
          %v1151 = vunpack.c.l.b16 %v1135
          %v1152 = vunpack.c.l.b16 %v1136
          %v1153 = vpack.c.b16 %v1150, %v1149
          %v1154 = vpack.c.b16 %v1152, %v1151
          %1157 = vmatprep.subr.bf16.mxu0 0
          %1158 = vmatpush1.bf16.msra.mxu0 %v1153
          %1159 = vmatprep.subr.bf16.mxu0 0
          %1160 = vmatpush1.bf16.msra.mxu0 %v1154
          %1161 = vmatprep.subr.bf16.mxu0 0
          %1162 = vmatpush1.bf16.msra.mxu0 0
          %1163 = vmatprep.subr.bf16.mxu0 0
          %1164 = vmatpush1.bf16.msra.mxu0 0
          %1165 = vmatprep.subr.bf16.mxu0 0
          %1166 = vmatpush1.bf16.msra.mxu0 0
          %1167 = vmatprep.subr.bf16.mxu0 0
          %1168 = vmatpush1.bf16.msra.mxu0 0
          %1169 = vmatprep.subr.bf16.mxu0 0
          %1170 = vmatpush1.bf16.msra.mxu0 0
          %1171 = vmatprep.subr.bf16.mxu0 0
          %1172 = vmatpush1.bf16.msra.mxu0 0
          %1173 = vmatprep.subr.bf16.mxu0 0
          %1174 = vmatpush1.bf16.msra.mxu0 0
          %1175 = vmatprep.subr.bf16.mxu0 0
          %1176 = vmatpush1.bf16.msra.mxu0 0
          %1177 = vmatprep.subr.bf16.mxu0 0
          %1178 = vmatpush1.bf16.msra.mxu0 0
          %1179 = vmatprep.subr.bf16.mxu0 0
          %1180 = vmatpush1.bf16.msra.mxu0 0
          %1181 = vmatprep.subr.bf16.mxu0 0
          %1182 = vmatpush1.bf16.msra.mxu0 0
          %1183 = vmatprep.subr.bf16.mxu0 0
          %1184 = vmatpush1.bf16.msra.mxu0 0
          %1185 = vmatprep.subr.bf16.mxu0 0
          %1186 = vmatpush1.bf16.msra.mxu0 0
          %1187 = vmatprep.subr.bf16.mxu0 0
          %1188 = vmatpush1.bf16.msra.mxu0 0
          %1189 = vmatprep.mubr.bf16.mxu0 0
          %1190 = vmatmul.mubr.bf16.gmra.mrb[0].mxu0 %v882
          %v1191 = vpop.f32.mrb[0].mxu0
          %v1192 = vadd.f32 %v1143, %v1191
          %v1193 = vpop.f32.mrb[0].mxu0
          %v1194 = vpop.f32.mrb[0].mxu0
          %v1195 = vadd.f32 %v1143, %v1194
          %v1196 = vpop.f32.mrb[0].mxu0
          %1197 = vdwg.mxu0
          %s1198 = scalar_lea.vmem [#allocation18], 32
          %v1199 = vld [vmem:[%s1198] sm:$0xf]
          %v1200 = vld [vmem:[%s1198 + $0x4] sm:$0xf]
          %v1201 = vld [vmem:[%s1198 + $0x8] sm:$0xf]
          %v1202 = vld [vmem:[%s1198 + $0xc] sm:$0xf]
          %s1203 = scalar_lea.vmem [#allocation19], 2
          %v1204 = vld [vmem:[%s1203] sm:$0x1]
          %v1206 = vlaneseq
          %v1207 = vshrl.u32 %v1206, 7
          %v1208 = vsub.s32 0, %v1207
          %v1209 = vrot.slane %v1204, %v1208
          %v1215 = vunpack.c.l.b16 %v1199
          %v1216 = vunpack.c.l.b16 %v1200
          %v1217 = vunpack.c.l.b16 %v1201
          %v1218 = vunpack.c.l.b16 %v1202
          %v1219 = vpack.c.b16 %v1216, %v1215
          %v1220 = vpack.c.b16 %v1218, %v1217
          %1223 = vmatprep.subr.bf16.mxu0 0
          %1224 = vmatpush1.bf16.msra.mxu0 %v1219
          %1225 = vmatprep.subr.bf16.mxu0 0
          %1226 = vmatpush1.bf16.msra.mxu0 %v1220
          %1227 = vmatprep.subr.bf16.mxu0 0
          %1228 = vmatpush1.bf16.msra.mxu0 0
          %1229 = vmatprep.subr.bf16.mxu0 0
          %1230 = vmatpush1.bf16.msra.mxu0 0
          %1231 = vmatprep.subr.bf16.mxu0 0
          %1232 = vmatpush1.bf16.msra.mxu0 0
          %1233 = vmatprep.subr.bf16.mxu0 0
          %1234 = vmatpush1.bf16.msra.mxu0 0
          %1235 = vmatprep.subr.bf16.mxu0 0
          %1236 = vmatpush1.bf16.msra.mxu0 0
          %1237 = vmatprep.subr.bf16.mxu0 0
          %1238 = vmatpush1.bf16.msra.mxu0 0
          %1239 = vmatprep.subr.bf16.mxu0 0
          %1240 = vmatpush1.bf16.msra.mxu0 0
          %1241 = vmatprep.subr.bf16.mxu0 0
          %1242 = vmatpush1.bf16.msra.mxu0 0
          %1243 = vmatprep.subr.bf16.mxu0 0
          %1244 = vmatpush1.bf16.msra.mxu0 0
          %1245 = vmatprep.subr.bf16.mxu0 0
          %1246 = vmatpush1.bf16.msra.mxu0 0
          %1247 = vmatprep.subr.bf16.mxu0 0
          %1248 = vmatpush1.bf16.msra.mxu0 0
          %1249 = vmatprep.subr.bf16.mxu0 0
          %1250 = vmatpush1.bf16.msra.mxu0 0
          %1251 = vmatprep.subr.bf16.mxu0 0
          %1252 = vmatpush1.bf16.msra.mxu0 0
          %1253 = vmatprep.subr.bf16.mxu0 0
          %1254 = vmatpush1.bf16.msra.mxu0 0
          %1255 = vmatprep.mubr.bf16.mxu0 0
          %1256 = vmatmul.mubr.bf16.gmra.mrb[0].mxu0 %v882
          %v1257 = vpop.f32.mrb[0].mxu0
          %v1258 = vadd.f32 %v1209, %v1257
          %v1259 = vpop.f32.mrb[0].mxu0
          %v1260 = vpop.f32.mrb[0].mxu0
          %v1261 = vadd.f32 %v1209, %v1260
          %v1262 = vpop.f32.mrb[0].mxu0
          %1263 = vdwg.mxu0
          %v1264 = vpack.c.bf16 %v1195, %v1192
          %s1265 = scalar_lea.vmem [#allocation2], 16
          %1266 = vst.msk [vmem:[%s1265] sm:$0xff] %vm990, %v1264
          %v1267 = vpack.c.bf16 %v1261, %v1258
          %s1268 = scalar_lea.vmem [#allocation3], 16
          %1269 = vst.msk [vmem:[%s1268] sm:$0xff] %vm990, %v1267
          %s1270 = scalar_lea.vmem [#allocation15], 48
          %v1271 = vld [vmem:[%s1270] sm:$0xf]
          %v1272 = vld [vmem:[%s1270 + $0x4] sm:$0xf]
          %v1273 = vld [vmem:[%s1270 + $0x8] sm:$0xf]
          %v1274 = vld [vmem:[%s1270 + $0xc] sm:$0xf]
          %s1275 = scalar_lea.vmem [#allocation16], 3
          %v1276 = vld [vmem:[%s1275] sm:$0x1]
          %v1278 = vlaneseq
          %v1279 = vshrl.u32 %v1278, 7
          %v1280 = vsub.s32 0, %v1279
          %v1281 = vrot.slane %v1276, %v1280
          %v1287 = vunpack.c.l.b16 %v1271
          %v1288 = vunpack.c.l.b16 %v1272
          %v1289 = vunpack.c.l.b16 %v1273
          %v1290 = vunpack.c.l.b16 %v1274
          %v1291 = vpack.c.b16 %v1288, %v1287
          %v1292 = vpack.c.b16 %v1290, %v1289
          %1295 = vmatprep.subr.bf16.mxu0 0
          %1296 = vmatpush1.bf16.msra.mxu0 %v1291
          %1297 = vmatprep.subr.bf16.mxu0 0
          %1298 = vmatpush1.bf16.msra.mxu0 %v1292
          %1299 = vmatprep.subr.bf16.mxu0 0
          %1300 = vmatpush1.bf16.msra.mxu0 0
          %1301 = vmatprep.subr.bf16.mxu0 0
          %1302 = vmatpush1.bf16.msra.mxu0 0
          %1303 = vmatprep.subr.bf16.mxu0 0
          %1304 = vmatpush1.bf16.msra.mxu0 0
          %1305 = vmatprep.subr.bf16.mxu0 0
          %1306 = vmatpush1.bf16.msra.mxu0 0
          %1307 = vmatprep.subr.bf16.mxu0 0
          %1308 = vmatpush1.bf16.msra.mxu0 0
          %1309 = vmatprep.subr.bf16.mxu0 0
          %1310 = vmatpush1.bf16.msra.mxu0 0
          %1311 = vmatprep.subr.bf16.mxu0 0
          %1312 = vmatpush1.bf16.msra.mxu0 0
          %1313 = vmatprep.subr.bf16.mxu0 0
          %1314 = vmatpush1.bf16.msra.mxu0 0
          %1315 = vmatprep.subr.bf16.mxu0 0
          %1316 = vmatpush1.bf16.msra.mxu0 0
          %1317 = vmatprep.subr.bf16.mxu0 0
          %1318 = vmatpush1.bf16.msra.mxu0 0
          %1319 = vmatprep.subr.bf16.mxu0 0
          %1320 = vmatpush1.bf16.msra.mxu0 0
          %1321 = vmatprep.subr.bf16.mxu0 0
          %1322 = vmatpush1.bf16.msra.mxu0 0
          %1323 = vmatprep.subr.bf16.mxu0 0
          %1324 = vmatpush1.bf16.msra.mxu0 0
          %1325 = vmatprep.subr.bf16.mxu0 0
          %1326 = vmatpush1.bf16.msra.mxu0 0
          %1327 = vmatprep.mubr.bf16.mxu0 0
          %1328 = vmatmul.mubr.bf16.gmra.mrb[0].mxu0 %v882
          %v1329 = vpop.f32.mrb[0].mxu0
          %v1330 = vadd.f32 %v1281, %v1329
          %v1331 = vpop.f32.mrb[0].mxu0
          %v1332 = vpop.f32.mrb[0].mxu0
          %v1333 = vadd.f32 %v1281, %v1332
          %v1334 = vpop.f32.mrb[0].mxu0
          %1335 = vdwg.mxu0
          %s1336 = scalar_lea.vmem [#allocation18], 48
          %v1337 = vld [vmem:[%s1336] sm:$0xf]
          %v1338 = vld [vmem:[%s1336 + $0x4] sm:$0xf]
          %v1339 = vld [vmem:[%s1336 + $0x8] sm:$0xf]
          %v1340 = vld [vmem:[%s1336 + $0xc] sm:$0xf]
          %s1341 = scalar_lea.vmem [#allocation19], 3
          %v1342 = vld [vmem:[%s1341] sm:$0x1]
          %v1344 = vlaneseq
          %v1345 = vshrl.u32 %v1344, 7
          %v1346 = vsub.s32 0, %v1345
          %v1347 = vrot.slane %v1342, %v1346
          %v1353 = vunpack.c.l.b16 %v1337
          %v1354 = vunpack.c.l.b16 %v1338
          %v1355 = vunpack.c.l.b16 %v1339
          %v1356 = vunpack.c.l.b16 %v1340
          %v1357 = vpack.c.b16 %v1354, %v1353
          %v1358 = vpack.c.b16 %v1356, %v1355
          %1361 = vmatprep.subr.bf16.mxu0 0
          %1362 = vmatpush1.bf16.msra.mxu0 %v1357
          %1363 = vmatprep.subr.bf16.mxu0 0
          %1364 = vmatpush1.bf16.msra.mxu0 %v1358
          %1365 = vmatprep.subr.bf16.mxu0 0
          %1366 = vmatpush1.bf16.msra.mxu0 0
          %1367 = vmatprep.subr.bf16.mxu0 0
          %1368 = vmatpush1.bf16.msra.mxu0 0
          %1369 = vmatprep.subr.bf16.mxu0 0
          %1370 = vmatpush1.bf16.msra.mxu0 0
          %1371 = vmatprep.subr.bf16.mxu0 0
          %1372 = vmatpush1.bf16.msra.mxu0 0
          %1373 = vmatprep.subr.bf16.mxu0 0
          %1374 = vmatpush1.bf16.msra.mxu0 0
          %1375 = vmatprep.subr.bf16.mxu0 0
          %1376 = vmatpush1.bf16.msra.mxu0 0
          %1377 = vmatprep.subr.bf16.mxu0 0
          %1378 = vmatpush1.bf16.msra.mxu0 0
          %1379 = vmatprep.subr.bf16.mxu0 0
          %1380 = vmatpush1.bf16.msra.mxu0 0
          %1381 = vmatprep.subr.bf16.mxu0 0
          %1382 = vmatpush1.bf16.msra.mxu0 0
          %1383 = vmatprep.subr.bf16.mxu0 0
          %1384 = vmatpush1.bf16.msra.mxu0 0
          %1385 = vmatprep.subr.bf16.mxu0 0
          %1386 = vmatpush1.bf16.msra.mxu0 0
          %1387 = vmatprep.subr.bf16.mxu0 0
          %1388 = vmatpush1.bf16.msra.mxu0 0
          %1389 = vmatprep.subr.bf16.mxu0 0
          %1390 = vmatpush1.bf16.msra.mxu0 0
          %1391 = vmatprep.subr.bf16.mxu0 0
          %1392 = vmatpush1.bf16.msra.mxu0 0
          %1393 = vmatprep.mubr.bf16.mxu0 0
          %1394 = vmatmul.mubr.bf16.gmra.mrb[0].mxu0 %v882
          %v1395 = vpop.f32.mrb[0].mxu0
          %v1396 = vadd.f32 %v1347, %v1395
          %v1397 = vpop.f32.mrb[0].mxu0
          %v1398 = vpop.f32.mrb[0].mxu0
          %v1399 = vadd.f32 %v1347, %v1398
          %v1400 = vpop.f32.mrb[0].mxu0
          %1401 = vdwg.mxu0
          %v1402 = vpack.c.bf16 %v1333, %v1330
          %s1403 = scalar_lea.vmem [#allocation2], 24
          %1404 = vst.msk [vmem:[%s1403] sm:$0xff] %vm990, %v1402
          %v1405 = vpack.c.bf16 %v1399, %v1396
          %s1406 = scalar_lea.vmem [#allocation3], 24
          %1407 = vst.msk [vmem:[%s1406] sm:$0xff] %vm990, %v1405
        $region160: #{tpu_custom_call.1} parent=87 // pred_fallthru
          _
        %v1408 = vld [vmem:[%s712] sm:$0xff]
        %v1409 = vld [vmem:[%s729] sm:$0x1]
        %v1410 = vld [vmem:[#allocation10] sm:$0x1]
        %v1411 = vmul.f32 %v1408, %v1408
        %vm1412 = vcmask 261120
        %v1413 = vsel %vm1412, %v1411, 0.0
        %1414 = vadd.xlane.f32.xlu0 %v1413
        %v1415 = vpop.xlane.xlu0 %1414
        %v1416 = vrcp.pop 32.0
        %v1417 = vmul.f32 %v1415, %v1416
        %v1418 = vadd.f32 %v1417, 1.1920929e-07
        %v1419 = vrsqrt.pop %v1418
        %v1420 = vmul.f32 %v1408, %v1419
        %v1422 = vlaneseq
        %v1423 = vshrl.u32 %v1422, 7
        %v1424 = vsub.s32 0, %v1423
        %v1425 = vrot.slane %v1410, %v1424
        %v1427 = vmul.f32 %v1420, %v1425
        %v1428 = vpack.c.bf16 %v1427, %v1427
        %vm1429 = vcmp.gt.f32.partialorder %v1409, 0.0
        %v1430 = vsel %vm1429, 0.0, -1e+30
        %v1431 = vld [vmem:[#allocation12] sm:$0xf]
        %v1432 = vld [vmem:[#allocation12 + $0x4] sm:$0xf]
        %v1433 = vld [vmem:[#allocation12 + $0x8] sm:$0xf]
        %v1434 = vld [vmem:[#allocation12 + $0xc] sm:$0xf]
        %v1435 = vld [vmem:[#allocation13] sm:$0x1]
        %v1437 = vlaneseq
        %v1438 = vshrl.u32 %v1437, 7
        %v1439 = vsub.s32 0, %v1438
        %v1440 = vrot.slane %v1435, %v1439
        %v1446 = vunpack.c.l.b16 %v1431
        %v1447 = vunpack.c.l.b16 %v1432
        %v1448 = vunpack.c.l.b16 %v1433
        %v1449 = vunpack.c.l.b16 %v1434
        %v1450 = vpack.c.b16 %v1447, %v1446
        %v1451 = vpack.c.b16 %v1449, %v1448
        %v1455 = vsel %vm1412, %v1428, 0
        %1457 = vmatprep.subr.bf16.mxu0 0
        %1458 = vmatpush1.bf16.msra.mxu0 %v1450
        %1459 = vmatprep.subr.bf16.mxu0 0
        %1460 = vmatpush1.bf16.msra.mxu0 %v1451
        %1461 = vmatprep.subr.bf16.mxu0 0
        %1462 = vmatpush1.bf16.msra.mxu0 0
        %1463 = vmatprep.subr.bf16.mxu0 0
        %1464 = vmatpush1.bf16.msra.mxu0 0
        %1465 = vmatprep.subr.bf16.mxu0 0
        %1466 = vmatpush1.bf16.msra.mxu0 0
        %1467 = vmatprep.subr.bf16.mxu0 0
        %1468 = vmatpush1.bf16.msra.mxu0 0
        %1469 = vmatprep.subr.bf16.mxu0 0
        %1470 = vmatpush1.bf16.msra.mxu0 0
        %1471 = vmatprep.subr.bf16.mxu0 0
        %1472 = vmatpush1.bf16.msra.mxu0 0
        %1473 = vmatprep.subr.bf16.mxu0 0
        %1474 = vmatpush1.bf16.msra.mxu0 0
        %1475 = vmatprep.subr.bf16.mxu0 0
        %1476 = vmatpush1.bf16.msra.mxu0 0
        %1477 = vmatprep.subr.bf16.mxu0 0
        %1478 = vmatpush1.bf16.msra.mxu0 0
        %1479 = vmatprep.subr.bf16.mxu0 0
        %1480 = vmatpush1.bf16.msra.mxu0 0
        %1481 = vmatprep.subr.bf16.mxu0 0
        %1482 = vmatpush1.bf16.msra.mxu0 0
        %1483 = vmatprep.subr.bf16.mxu0 0
        %1484 = vmatpush1.bf16.msra.mxu0 0
        %1485 = vmatprep.subr.bf16.mxu0 0
        %1486 = vmatpush1.bf16.msra.mxu0 0
        %1487 = vmatprep.subr.bf16.mxu0 0
        %1488 = vmatpush1.bf16.msra.mxu0 0
        %1489 = vmatprep.mubr.bf16.mxu0 0
        %1490 = vmatmul.mubr.bf16.gmra.mrb[0].mxu0 %v1455
        %v1491 = vpop.f32.mrb[0].mxu0
        %v1492 = vadd.f32 %v1440, %v1491
        %v1493 = vpop.f32.mrb[0].mxu0
        %v1494 = vpop.f32.mrb[0].mxu0
        %v1495 = vpop.f32.mrb[0].mxu0
        %1496 = vdwg.mxu0
        %v1497 = vld [vmem:[#allocation2] sm:$0xff]
        %v1498 = vld [vmem:[#allocation3] sm:$0xff]
        %v1499 = vpack.c.bf16 %v1492, %v1492
        %v1501 = vlaneseq
        %v1502 = vshrl.u32 %v1501, 7
        %v1503 = vsub.s32 0, %v1502
        %v1504 = vrot.slane %v1430, %v1503
        %vm1506 = vcmask 64512
        %v1508 = vsel %vm1506, %v1499, 0
        %v1511 = vsel %vm1506, %v1497, 0
        %1513 = vmatprep.subr.bf16.mxu0 0
        %1514 = vmatpush1.bf16.xpose.msra.mxu0 %v1511
        %1515 = vmatprep.subr.bf16.mxu0 0
        %1516 = vmatpush1.bf16.xpose.msra.mxu0 0
        %1517 = vmatprep.subr.bf16.mxu0 0
        %1518 = vmatpush1.bf16.xpose.msra.mxu0 0
        %1519 = vmatprep.subr.bf16.mxu0 0
        %1520 = vmatpush1.bf16.xpose.msra.mxu0 0
        %1521 = vmatprep.subr.bf16.mxu0 0
        %1522 = vmatpush1.bf16.xpose.msra.mxu0 0
        %1523 = vmatprep.subr.bf16.mxu0 0
        %1524 = vmatpush1.bf16.xpose.msra.mxu0 0
        %1525 = vmatprep.subr.bf16.mxu0 0
        %1526 = vmatpush1.bf16.xpose.msra.mxu0 0
        %1527 = vmatprep.subr.bf16.mxu0 0
        %1528 = vmatpush1.bf16.xpose.msra.mxu0 0
        %1529 = vmatprep.subr.bf16.mxu0 0
        %1530 = vmatpush1.bf16.xpose.msra.mxu0 0
        %1531 = vmatprep.subr.bf16.mxu0 0
        %1532 = vmatpush1.bf16.xpose.msra.mxu0 0
        %1533 = vmatprep.subr.bf16.mxu0 0
        %1534 = vmatpush1.bf16.xpose.msra.mxu0 0
        %1535 = vmatprep.subr.bf16.mxu0 0
        %1536 = vmatpush1.bf16.xpose.msra.mxu0 0
        %1537 = vmatprep.subr.bf16.mxu0 0
        %1538 = vmatpush1.bf16.xpose.msra.mxu0 0
        %1539 = vmatprep.subr.bf16.mxu0 0
        %1540 = vmatpush1.bf16.xpose.msra.mxu0 0
        %1541 = vmatprep.subr.bf16.mxu0 0
        %1542 = vmatpush1.bf16.xpose.msra.mxu0 0
        %1543 = vmatprep.subr.bf16.mxu0 0
        %1544 = vmatpush1.bf16.xpose.msra.mxu0 0
        %1545 = vmatprep.mubr.bf16.mxu0 0
        %1546 = vmatmul.mubr.bf16.gmra.mrb[0].mxu0 %v1508
        %v1547 = vpop.f32.mrb[0].mxu0
        %v1548 = vadd.f32 %v1504, %v1547
        %v1549 = vpop.f32.mrb[0].mxu0
        %v1550 = vpop.f32.mrb[0].mxu0
        %v1551 = vpop.f32.mrb[0].mxu0
        %1552 = vdwg.mxu0
        %vm1553 = vcmask 130048
        %v1554 = vsel %vm1553, %v1548, -inf
        %1555 = vmax.xlane.f32.xlu0 %v1554
        %v1556 = vpop.xlane.xlu0 %1555
        %v1557 = vsub.f32 %v1548, %v1556
        %v1558 = vmul.f32 %v1557, 1.442695
        %v1559 = vpow.pop %v1558
        %v1560 = vsel %vm1553, %v1559, 0.0
        %1561 = vadd.xlane.f32.xlu0 %v1560
        %v1562 = vpop.xlane.xlu0 %1561
        %v1563 = vrcp.pop %v1562
        %v1564 = vmul.f32 %v1559, %v1563
        %v1565 = vpack.c.bf16 %v1564, %v1564
        %v1567 = vsel %vm1553, %v1565, 0
        %1569 = vmatprep.subr.bf16.mxu0 0
        %1570 = vmatpush1.bf16.msra.mxu0 %v1498
        %1571 = vmatprep.subr.bf16.mxu0 0
        %1572 = vmatpush1.bf16.msra.mxu0 0
        %1573 = vmatprep.subr.bf16.mxu0 0
        %1574 = vmatpush1.bf16.msra.mxu0 0
        %1575 = vmatprep.subr.bf16.mxu0 0
        %1576 = vmatpush1.bf16.msra.mxu0 0
        %1577 = vmatprep.subr.bf16.mxu0 0
        %1578 = vmatpush1.bf16.msra.mxu0 0
        %1579 = vmatprep.subr.bf16.mxu0 0
        %1580 = vmatpush1.bf16.msra.mxu0 0
        %1581 = vmatprep.subr.bf16.mxu0 0
        %1582 = vmatpush1.bf16.msra.mxu0 0
        %1583 = vmatprep.subr.bf16.mxu0 0
        %1584 = vmatpush1.bf16.msra.mxu0 0
        %1585 = vmatprep.subr.bf16.mxu0 0
        %1586 = vmatpush1.bf16.msra.mxu0 0
        %1587 = vmatprep.subr.bf16.mxu0 0
        %1588 = vmatpush1.bf16.msra.mxu0 0
        %1589 = vmatprep.subr.bf16.mxu0 0
        %1590 = vmatpush1.bf16.msra.mxu0 0
        %1591 = vmatprep.subr.bf16.mxu0 0
        %1592 = vmatpush1.bf16.msra.mxu0 0
        %1593 = vmatprep.subr.bf16.mxu0 0
        %1594 = vmatpush1.bf16.msra.mxu0 0
        %1595 = vmatprep.subr.bf16.mxu0 0
        %1596 = vmatpush1.bf16.msra.mxu0 0
        %1597 = vmatprep.subr.bf16.mxu0 0
        %1598 = vmatpush1.bf16.msra.mxu0 0
        %1599 = vmatprep.subr.bf16.mxu0 0
        %1600 = vmatpush1.bf16.msra.mxu0 0
        %1601 = vmatprep.mubr.bf16.mxu0 0
        %1602 = vmatmul.mubr.bf16.gmra.mrb[0].mxu0 %v1567
        %v1603 = vpop.f32.mrb[0].mxu0
        %v1604 = vadd.f32 0.0, %v1603
        %v1605 = vpop.f32.mrb[0].mxu0
        %v1606 = vpop.f32.mrb[0].mxu0
        %v1607 = vpop.f32.mrb[0].mxu0
        %1608 = vdwg.mxu0
        %v1609 = vpack.c.bf16 %v1604, %v1604
        %v1610 = vld [vmem:[#allocation21] sm:$0xf]
        %s1611 = scalar_lea.vmem [#allocation12], 16
        %v1612 = vld [vmem:[%s1611] sm:$0xf]
        %v1613 = vld [vmem:[%s1611 + $0x4] sm:$0xf]
        %v1614 = vld [vmem:[%s1611 + $0x8] sm:$0xf]
        %v1615 = vld [vmem:[%s1611 + $0xc] sm:$0xf]
        %s1616 = scalar_lea.vmem [#allocation13], 1
        %v1617 = vld [vmem:[%s1616] sm:$0x1]
        %v1619 = vlaneseq
        %v1620 = vshrl.u32 %v1619, 7
        %v1621 = vsub.s32 0, %v1620
        %v1622 = vrot.slane %v1617, %v1621
        %v1628 = vunpack.c.l.b16 %v1612
        %v1629 = vunpack.c.l.b16 %v1613
        %v1630 = vunpack.c.l.b16 %v1614
        %v1631 = vunpack.c.l.b16 %v1615
        %v1632 = vpack.c.b16 %v1629, %v1628
        %v1633 = vpack.c.b16 %v1631, %v1630
        %1636 = vmatprep.subr.bf16.mxu0 0
        %1637 = vmatpush1.bf16.msra.mxu0 %v1632
        %1638 = vmatprep.subr.bf16.mxu0 0
        %1639 = vmatpush1.bf16.msra.mxu0 %v1633
        %1640 = vmatprep.subr.bf16.mxu0 0
        %1641 = vmatpush1.bf16.msra.mxu0 0
        %1642 = vmatprep.subr.bf16.mxu0 0
        %1643 = vmatpush1.bf16.msra.mxu0 0
        %1644 = vmatprep.subr.bf16.mxu0 0
        %1645 = vmatpush1.bf16.msra.mxu0 0
        %1646 = vmatprep.subr.bf16.mxu0 0
        %1647 = vmatpush1.bf16.msra.mxu0 0
        %1648 = vmatprep.subr.bf16.mxu0 0
        %1649 = vmatpush1.bf16.msra.mxu0 0
        %1650 = vmatprep.subr.bf16.mxu0 0
        %1651 = vmatpush1.bf16.msra.mxu0 0
        %1652 = vmatprep.subr.bf16.mxu0 0
        %1653 = vmatpush1.bf16.msra.mxu0 0
        %1654 = vmatprep.subr.bf16.mxu0 0
        %1655 = vmatpush1.bf16.msra.mxu0 0
        %1656 = vmatprep.subr.bf16.mxu0 0
        %1657 = vmatpush1.bf16.msra.mxu0 0
        %1658 = vmatprep.subr.bf16.mxu0 0
        %1659 = vmatpush1.bf16.msra.mxu0 0
        %1660 = vmatprep.subr.bf16.mxu0 0
        %1661 = vmatpush1.bf16.msra.mxu0 0
        %1662 = vmatprep.subr.bf16.mxu0 0
        %1663 = vmatpush1.bf16.msra.mxu0 0
        %1664 = vmatprep.subr.bf16.mxu0 0
        %1665 = vmatpush1.bf16.msra.mxu0 0
        %1666 = vmatprep.subr.bf16.mxu0 0
        %1667 = vmatpush1.bf16.msra.mxu0 0
        %1668 = vmatprep.mubr.bf16.mxu0 0
        %1669 = vmatmul.mubr.bf16.gmra.mrb[0].mxu0 %v1455
        %v1670 = vpop.f32.mrb[0].mxu0
        %v1671 = vadd.f32 %v1622, %v1670
        %v1672 = vpop.f32.mrb[0].mxu0
        %v1673 = vpop.f32.mrb[0].mxu0
        %v1674 = vpop.f32.mrb[0].mxu0
        %1675 = vdwg.mxu0
        %s1676 = scalar_lea.vmem [#allocation2], 8
        %v1677 = vld [vmem:[%s1676] sm:$0xff]
        %s1678 = scalar_lea.vmem [#allocation3], 8
        %v1679 = vld [vmem:[%s1678] sm:$0xff]
        %v1680 = vpack.c.bf16 %v1671, %v1671
        %v1682 = vsel %vm1506, %v1680, 0
        %v1685 = vsel %vm1506, %v1677, 0
        %1687 = vmatprep.subr.bf16.mxu0 0
        %1688 = vmatpush1.bf16.xpose.msra.mxu0 %v1685
        %1689 = vmatprep.subr.bf16.mxu0 0
        %1690 = vmatpush1.bf16.xpose.msra.mxu0 0
        %1691 = vmatprep.subr.bf16.mxu0 0
        %1692 = vmatpush1.bf16.xpose.msra.mxu0 0
        %1693 = vmatprep.subr.bf16.mxu0 0
        %1694 = vmatpush1.bf16.xpose.msra.mxu0 0
        %1695 = vmatprep.subr.bf16.mxu0 0
        %1696 = vmatpush1.bf16.xpose.msra.mxu0 0
        %1697 = vmatprep.subr.bf16.mxu0 0
        %1698 = vmatpush1.bf16.xpose.msra.mxu0 0
        %1699 = vmatprep.subr.bf16.mxu0 0
        %1700 = vmatpush1.bf16.xpose.msra.mxu0 0
        %1701 = vmatprep.subr.bf16.mxu0 0
        %1702 = vmatpush1.bf16.xpose.msra.mxu0 0
        %1703 = vmatprep.subr.bf16.mxu0 0
        %1704 = vmatpush1.bf16.xpose.msra.mxu0 0
        %1705 = vmatprep.subr.bf16.mxu0 0
        %1706 = vmatpush1.bf16.xpose.msra.mxu0 0
        %1707 = vmatprep.subr.bf16.mxu0 0
        %1708 = vmatpush1.bf16.xpose.msra.mxu0 0
        %1709 = vmatprep.subr.bf16.mxu0 0
        %1710 = vmatpush1.bf16.xpose.msra.mxu0 0
        %1711 = vmatprep.subr.bf16.mxu0 0
        %1712 = vmatpush1.bf16.xpose.msra.mxu0 0
        %1713 = vmatprep.subr.bf16.mxu0 0
        %1714 = vmatpush1.bf16.xpose.msra.mxu0 0
        %1715 = vmatprep.subr.bf16.mxu0 0
        %1716 = vmatpush1.bf16.xpose.msra.mxu0 0
        %1717 = vmatprep.subr.bf16.mxu0 0
        %1718 = vmatpush1.bf16.xpose.msra.mxu0 0
        %1719 = vmatprep.mubr.bf16.mxu0 0
        %1720 = vmatmul.mubr.bf16.gmra.mrb[0].mxu0 %v1682
        %v1721 = vpop.f32.mrb[0].mxu0
        %v1722 = vadd.f32 %v1504, %v1721
        %v1723 = vpop.f32.mrb[0].mxu0
        %v1724 = vpop.f32.mrb[0].mxu0
        %v1725 = vpop.f32.mrb[0].mxu0
        %1726 = vdwg.mxu0
        %v1727 = vsel %vm1553, %v1722, -inf
        %1728 = vmax.xlane.f32.xlu0 %v1727
        %v1729 = vpop.xlane.xlu0 %1728
        %v1730 = vsub.f32 %v1722, %v1729
        %v1731 = vmul.f32 %v1730, 1.442695
        %v1732 = vpow.pop %v1731
        %v1733 = vsel %vm1553, %v1732, 0.0
        %1734 = vadd.xlane.f32.xlu0 %v1733
        %v1735 = vpop.xlane.xlu0 %1734
        %v1736 = vrcp.pop %v1735
        %v1737 = vmul.f32 %v1732, %v1736
        %v1738 = vpack.c.bf16 %v1737, %v1737
        %v1740 = vsel %vm1553, %v1738, 0
        %1742 = vmatprep.subr.bf16.mxu0 0
        %1743 = vmatpush1.bf16.msra.mxu0 %v1679
        %1744 = vmatprep.subr.bf16.mxu0 0
        %1745 = vmatpush1.bf16.msra.mxu0 0
        %1746 = vmatprep.subr.bf16.mxu0 0
        %1747 = vmatpush1.bf16.msra.mxu0 0
        %1748 = vmatprep.subr.bf16.mxu0 0
        %1749 = vmatpush1.bf16.msra.mxu0 0
        %1750 = vmatprep.subr.bf16.mxu0 0
        %1751 = vmatpush1.bf16.msra.mxu0 0
        %1752 = vmatprep.subr.bf16.mxu0 0
        %1753 = vmatpush1.bf16.msra.mxu0 0
        %1754 = vmatprep.subr.bf16.mxu0 0
        %1755 = vmatpush1.bf16.msra.mxu0 0
        %1756 = vmatprep.subr.bf16.mxu0 0
        %1757 = vmatpush1.bf16.msra.mxu0 0
        %1758 = vmatprep.subr.bf16.mxu0 0
        %1759 = vmatpush1.bf16.msra.mxu0 0
        %1760 = vmatprep.subr.bf16.mxu0 0
        %1761 = vmatpush1.bf16.msra.mxu0 0
        %1762 = vmatprep.subr.bf16.mxu0 0
        %1763 = vmatpush1.bf16.msra.mxu0 0
        %1764 = vmatprep.subr.bf16.mxu0 0
        %1765 = vmatpush1.bf16.msra.mxu0 0
        %1766 = vmatprep.subr.bf16.mxu0 0
        %1767 = vmatpush1.bf16.msra.mxu0 0
        %1768 = vmatprep.subr.bf16.mxu0 0
        %1769 = vmatpush1.bf16.msra.mxu0 0
        %1770 = vmatprep.subr.bf16.mxu0 0
        %1771 = vmatpush1.bf16.msra.mxu0 0
        %1772 = vmatprep.subr.bf16.mxu0 0
        %1773 = vmatpush1.bf16.msra.mxu0 0
        %1774 = vmatprep.mubr.bf16.mxu0 0
        %1775 = vmatmul.mubr.bf16.gmra.mrb[0].mxu0 %v1740
        %v1776 = vpop.f32.mrb[0].mxu0
        %v1777 = vadd.f32 0.0, %v1776
        %v1778 = vpop.f32.mrb[0].mxu0
        %v1779 = vpop.f32.mrb[0].mxu0
        %v1780 = vpop.f32.mrb[0].mxu0
        %1781 = vdwg.mxu0
        %v1782 = vpack.c.bf16 %v1777, %v1777
        %s1783 = scalar_lea.vmem [#allocation21], 4
        %v1784 = vld [vmem:[%s1783] sm:$0xf]
        %v1786 = vsel %vm1506, %v1782, 0
        %vm1788 = vcmask 1043456
        %v1790 = vsel %vm1788, %v1784, 0
        %1792 = vmatprep.subr.bf16.mxu0 0
        %1793 = vmatpush1.bf16.msra.mxu0 %v1790
        %1794 = vmatprep.subr.bf16.mxu0 0
        %1795 = vmatpush1.bf16.msra.mxu0 0
        %1796 = vmatprep.subr.bf16.mxu0 0
        %1797 = vmatpush1.bf16.msra.mxu0 0
        %1798 = vmatprep.subr.bf16.mxu0 0
        %1799 = vmatpush1.bf16.msra.mxu0 0
        %1800 = vmatprep.subr.bf16.mxu0 0
        %1801 = vmatpush1.bf16.msra.mxu0 0
        %1802 = vmatprep.subr.bf16.mxu0 0
        %1803 = vmatpush1.bf16.msra.mxu0 0
        %1804 = vmatprep.subr.bf16.mxu0 0
        %1805 = vmatpush1.bf16.msra.mxu0 0
        %1806 = vmatprep.subr.bf16.mxu0 0
        %1807 = vmatpush1.bf16.msra.mxu0 0
        %1808 = vmatprep.subr.bf16.mxu0 0
        %1809 = vmatpush1.bf16.msra.mxu0 0
        %1810 = vmatprep.subr.bf16.mxu0 0
        %1811 = vmatpush1.bf16.msra.mxu0 0
        %1812 = vmatprep.subr.bf16.mxu0 0
        %1813 = vmatpush1.bf16.msra.mxu0 0
        %1814 = vmatprep.subr.bf16.mxu0 0
        %1815 = vmatpush1.bf16.msra.mxu0 0
        %1816 = vmatprep.subr.bf16.mxu0 0
        %1817 = vmatpush1.bf16.msra.mxu0 0
        %1818 = vmatprep.subr.bf16.mxu0 0
        %1819 = vmatpush1.bf16.msra.mxu0 0
        %1820 = vmatprep.subr.bf16.mxu0 0
        %1821 = vmatpush1.bf16.msra.mxu0 0
        %1822 = vmatprep.subr.bf16.mxu0 0
        %1823 = vmatpush1.bf16.msra.mxu0 0
        %1824 = vmatprep.mubr.bf16.mxu0 0
        %1825 = vmatmul.mubr.bf16.gmra.mrb[0].mxu0 %v1786
        %v1826 = vpop.f32.mrb[0].mxu0
        %v1827 = vadd.f32 0.0, %v1826
        %v1828 = vpop.f32.mrb[0].mxu0
        %v1829 = vpop.f32.mrb[0].mxu0
        %v1830 = vpop.f32.mrb[0].mxu0
        %1831 = vdwg.mxu0
        %v1833 = vsel %vm1506, %v1609, 0
        %v1836 = vsel %vm1788, %v1610, 0
        %1838 = vmatprep.subr.bf16.mxu0 0
        %1839 = vmatpush1.bf16.msra.mxu0 %v1836
        %1840 = vmatprep.subr.bf16.mxu0 0
        %1841 = vmatpush1.bf16.msra.mxu0 0
        %1842 = vmatprep.subr.bf16.mxu0 0
        %1843 = vmatpush1.bf16.msra.mxu0 0
        %1844 = vmatprep.subr.bf16.mxu0 0
        %1845 = vmatpush1.bf16.msra.mxu0 0
        %1846 = vmatprep.subr.bf16.mxu0 0
        %1847 = vmatpush1.bf16.msra.mxu0 0
        %1848 = vmatprep.subr.bf16.mxu0 0
        %1849 = vmatpush1.bf16.msra.mxu0 0
        %1850 = vmatprep.subr.bf16.mxu0 0
        %1851 = vmatpush1.bf16.msra.mxu0 0
        %1852 = vmatprep.subr.bf16.mxu0 0
        %1853 = vmatpush1.bf16.msra.mxu0 0
        %1854 = vmatprep.subr.bf16.mxu0 0
        %1855 = vmatpush1.bf16.msra.mxu0 0
        %1856 = vmatprep.subr.bf16.mxu0 0
        %1857 = vmatpush1.bf16.msra.mxu0 0
        %1858 = vmatprep.subr.bf16.mxu0 0
        %1859 = vmatpush1.bf16.msra.mxu0 0
        %1860 = vmatprep.subr.bf16.mxu0 0
        %1861 = vmatpush1.bf16.msra.mxu0 0
        %1862 = vmatprep.subr.bf16.mxu0 0
        %1863 = vmatpush1.bf16.msra.mxu0 0
        %1864 = vmatprep.subr.bf16.mxu0 0
        %1865 = vmatpush1.bf16.msra.mxu0 0
        %1866 = vmatprep.subr.bf16.mxu0 0
        %1867 = vmatpush1.bf16.msra.mxu0 0
        %1868 = vmatprep.subr.bf16.mxu0 0
        %1869 = vmatpush1.bf16.msra.mxu0 0
        %1870 = vmatprep.mubr.bf16.mxu0 0
        %1871 = vmatmul.mubr.bf16.gmra.mrb[0].mxu0 %v1833
        %v1872 = vpop.f32.mrb[0].mxu0
        %v1873 = vadd.f32 %v1827, %v1872
        %v1874 = vpop.f32.mrb[0].mxu0
        %v1875 = vpop.f32.mrb[0].mxu0
        %v1876 = vpop.f32.mrb[0].mxu0
        %1877 = vdwg.mxu0
        %s1878 = scalar_lea.vmem [#allocation12], 32
        %v1879 = vld [vmem:[%s1878] sm:$0xf]
        %v1880 = vld [vmem:[%s1878 + $0x4] sm:$0xf]
        %v1881 = vld [vmem:[%s1878 + $0x8] sm:$0xf]
        %v1882 = vld [vmem:[%s1878 + $0xc] sm:$0xf]
        %s1883 = scalar_lea.vmem [#allocation13], 2
        %v1884 = vld [vmem:[%s1883] sm:$0x1]
        %v1886 = vlaneseq
        %v1887 = vshrl.u32 %v1886, 7
        %v1888 = vsub.s32 0, %v1887
        %v1889 = vrot.slane %v1884, %v1888
        %v1895 = vunpack.c.l.b16 %v1879
        %v1896 = vunpack.c.l.b16 %v1880
        %v1897 = vunpack.c.l.b16 %v1881
        %v1898 = vunpack.c.l.b16 %v1882
        %v1899 = vpack.c.b16 %v1896, %v1895
        %v1900 = vpack.c.b16 %v1898, %v1897
        %1903 = vmatprep.subr.bf16.mxu0 0
        %1904 = vmatpush1.bf16.msra.mxu0 %v1899
        %1905 = vmatprep.subr.bf16.mxu0 0
        %1906 = vmatpush1.bf16.msra.mxu0 %v1900
        %1907 = vmatprep.subr.bf16.mxu0 0
        %1908 = vmatpush1.bf16.msra.mxu0 0
        %1909 = vmatprep.subr.bf16.mxu0 0
        %1910 = vmatpush1.bf16.msra.mxu0 0
        %1911 = vmatprep.subr.bf16.mxu0 0
        %1912 = vmatpush1.bf16.msra.mxu0 0
        %1913 = vmatprep.subr.bf16.mxu0 0
        %1914 = vmatpush1.bf16.msra.mxu0 0
        %1915 = vmatprep.subr.bf16.mxu0 0
        %1916 = vmatpush1.bf16.msra.mxu0 0
        %1917 = vmatprep.subr.bf16.mxu0 0
        %1918 = vmatpush1.bf16.msra.mxu0 0
        %1919 = vmatprep.subr.bf16.mxu0 0
        %1920 = vmatpush1.bf16.msra.mxu0 0
        %1921 = vmatprep.subr.bf16.mxu0 0
        %1922 = vmatpush1.bf16.msra.mxu0 0
        %1923 = vmatprep.subr.bf16.mxu0 0
        %1924 = vmatpush1.bf16.msra.mxu0 0
        %1925 = vmatprep.subr.bf16.mxu0 0
        %1926 = vmatpush1.bf16.msra.mxu0 0
        %1927 = vmatprep.subr.bf16.mxu0 0
        %1928 = vmatpush1.bf16.msra.mxu0 0
        %1929 = vmatprep.subr.bf16.mxu0 0
        %1930 = vmatpush1.bf16.msra.mxu0 0
        %1931 = vmatprep.subr.bf16.mxu0 0
        %1932 = vmatpush1.bf16.msra.mxu0 0
        %1933 = vmatprep.subr.bf16.mxu0 0
        %1934 = vmatpush1.bf16.msra.mxu0 0
        %1935 = vmatprep.mubr.bf16.mxu0 0
        %1936 = vmatmul.mubr.bf16.gmra.mrb[0].mxu0 %v1455
        %v1937 = vpop.f32.mrb[0].mxu0
        %v1938 = vadd.f32 %v1889, %v1937
        %v1939 = vpop.f32.mrb[0].mxu0
        %v1940 = vpop.f32.mrb[0].mxu0
        %v1941 = vpop.f32.mrb[0].mxu0
        %1942 = vdwg.mxu0
        %s1943 = scalar_lea.vmem [#allocation2], 16
        %v1944 = vld [vmem:[%s1943] sm:$0xff]
        %s1945 = scalar_lea.vmem [#allocation3], 16
        %v1946 = vld [vmem:[%s1945] sm:$0xff]
        %v1947 = vpack.c.bf16 %v1938, %v1938
        %v1949 = vsel %vm1506, %v1947, 0
        %v1952 = vsel %vm1506, %v1944, 0
        %1954 = vmatprep.subr.bf16.mxu0 0
        %1955 = vmatpush1.bf16.xpose.msra.mxu0 %v1952
        %1956 = vmatprep.subr.bf16.mxu0 0
        %1957 = vmatpush1.bf16.xpose.msra.mxu0 0
        %1958 = vmatprep.subr.bf16.mxu0 0
        %1959 = vmatpush1.bf16.xpose.msra.mxu0 0
        %1960 = vmatprep.subr.bf16.mxu0 0
        %1961 = vmatpush1.bf16.xpose.msra.mxu0 0
        %1962 = vmatprep.subr.bf16.mxu0 0
        %1963 = vmatpush1.bf16.xpose.msra.mxu0 0
        %1964 = vmatprep.subr.bf16.mxu0 0
        %1965 = vmatpush1.bf16.xpose.msra.mxu0 0
        %1966 = vmatprep.subr.bf16.mxu0 0
        %1967 = vmatpush1.bf16.xpose.msra.mxu0 0
        %1968 = vmatprep.subr.bf16.mxu0 0
        %1969 = vmatpush1.bf16.xpose.msra.mxu0 0
        %1970 = vmatprep.subr.bf16.mxu0 0
        %1971 = vmatpush1.bf16.xpose.msra.mxu0 0
        %1972 = vmatprep.subr.bf16.mxu0 0
        %1973 = vmatpush1.bf16.xpose.msra.mxu0 0
        %1974 = vmatprep.subr.bf16.mxu0 0
        %1975 = vmatpush1.bf16.xpose.msra.mxu0 0
        %1976 = vmatprep.subr.bf16.mxu0 0
        %1977 = vmatpush1.bf16.xpose.msra.mxu0 0
        %1978 = vmatprep.subr.bf16.mxu0 0
        %1979 = vmatpush1.bf16.xpose.msra.mxu0 0
        %1980 = vmatprep.subr.bf16.mxu0 0
        %1981 = vmatpush1.bf16.xpose.msra.mxu0 0
        %1982 = vmatprep.subr.bf16.mxu0 0
        %1983 = vmatpush1.bf16.xpose.msra.mxu0 0
        %1984 = vmatprep.subr.bf16.mxu0 0
        %1985 = vmatpush1.bf16.xpose.msra.mxu0 0
        %1986 = vmatprep.mubr.bf16.mxu0 0
        %1987 = vmatmul.mubr.bf16.gmra.mrb[0].mxu0 %v1949
        %v1988 = vpop.f32.mrb[0].mxu0
        %v1989 = vadd.f32 %v1504, %v1988
        %v1990 = vpop.f32.mrb[0].mxu0
        %v1991 = vpop.f32.mrb[0].mxu0
        %v1992 = vpop.f32.mrb[0].mxu0
        %1993 = vdwg.mxu0
        %v1994 = vsel %vm1553, %v1989, -inf
        %1995 = vmax.xlane.f32.xlu0 %v1994
        %v1996 = vpop.xlane.xlu0 %1995
        %v1997 = vsub.f32 %v1989, %v1996
        %v1998 = vmul.f32 %v1997, 1.442695
        %v1999 = vpow.pop %v1998
        %v2000 = vsel %vm1553, %v1999, 0.0
        %2001 = vadd.xlane.f32.xlu0 %v2000
        %v2002 = vpop.xlane.xlu0 %2001
        %v2003 = vrcp.pop %v2002
        %v2004 = vmul.f32 %v1999, %v2003
        %v2005 = vpack.c.bf16 %v2004, %v2004
        %v2007 = vsel %vm1553, %v2005, 0
        %2009 = vmatprep.subr.bf16.mxu0 0
        %2010 = vmatpush1.bf16.msra.mxu0 %v1946
        %2011 = vmatprep.subr.bf16.mxu0 0
        %2012 = vmatpush1.bf16.msra.mxu0 0
        %2013 = vmatprep.subr.bf16.mxu0 0
        %2014 = vmatpush1.bf16.msra.mxu0 0
        %2015 = vmatprep.subr.bf16.mxu0 0
        %2016 = vmatpush1.bf16.msra.mxu0 0
        %2017 = vmatprep.subr.bf16.mxu0 0
        %2018 = vmatpush1.bf16.msra.mxu0 0
        %2019 = vmatprep.subr.bf16.mxu0 0
        %2020 = vmatpush1.bf16.msra.mxu0 0
        %2021 = vmatprep.subr.bf16.mxu0 0
        %2022 = vmatpush1.bf16.msra.mxu0 0
        %2023 = vmatprep.subr.bf16.mxu0 0
        %2024 = vmatpush1.bf16.msra.mxu0 0
        %2025 = vmatprep.subr.bf16.mxu0 0
        %2026 = vmatpush1.bf16.msra.mxu0 0
        %2027 = vmatprep.subr.bf16.mxu0 0
        %2028 = vmatpush1.bf16.msra.mxu0 0
        %2029 = vmatprep.subr.bf16.mxu0 0
        %2030 = vmatpush1.bf16.msra.mxu0 0
        %2031 = vmatprep.subr.bf16.mxu0 0
        %2032 = vmatpush1.bf16.msra.mxu0 0
        %2033 = vmatprep.subr.bf16.mxu0 0
        %2034 = vmatpush1.bf16.msra.mxu0 0
        %2035 = vmatprep.subr.bf16.mxu0 0
        %2036 = vmatpush1.bf16.msra.mxu0 0
        %2037 = vmatprep.subr.bf16.mxu0 0
        %2038 = vmatpush1.bf16.msra.mxu0 0
        %2039 = vmatprep.subr.bf16.mxu0 0
        %2040 = vmatpush1.bf16.msra.mxu0 0
        %2041 = vmatprep.mubr.bf16.mxu0 0
        %2042 = vmatmul.mubr.bf16.gmra.mrb[0].mxu0 %v2007
        %v2043 = vpop.f32.mrb[0].mxu0
        %v2044 = vadd.f32 0.0, %v2043
        %v2045 = vpop.f32.mrb[0].mxu0
        %v2046 = vpop.f32.mrb[0].mxu0
        %v2047 = vpop.f32.mrb[0].mxu0
        %2048 = vdwg.mxu0
        %v2049 = vpack.c.bf16 %v2044, %v2044
        %s2050 = scalar_lea.vmem [#allocation21], 8
        %v2051 = vld [vmem:[%s2050] sm:$0xf]
        %v2053 = vsel %vm1506, %v2049, 0
        %v2056 = vsel %vm1788, %v2051, 0
        %2058 = vmatprep.subr.bf16.mxu0 0
        %2059 = vmatpush1.bf16.msra.mxu0 %v2056
        %2060 = vmatprep.subr.bf16.mxu0 0
        %2061 = vmatpush1.bf16.msra.mxu0 0
        %2062 = vmatprep.subr.bf16.mxu0 0
        %2063 = vmatpush1.bf16.msra.mxu0 0
        %2064 = vmatprep.subr.bf16.mxu0 0
        %2065 = vmatpush1.bf16.msra.mxu0 0
        %2066 = vmatprep.subr.bf16.mxu0 0
        %2067 = vmatpush1.bf16.msra.mxu0 0
        %2068 = vmatprep.subr.bf16.mxu0 0
        %2069 = vmatpush1.bf16.msra.mxu0 0
        %2070 = vmatprep.subr.bf16.mxu0 0
        %2071 = vmatpush1.bf16.msra.mxu0 0
        %2072 = vmatprep.subr.bf16.mxu0 0
        %2073 = vmatpush1.bf16.msra.mxu0 0
        %2074 = vmatprep.subr.bf16.mxu0 0
        %2075 = vmatpush1.bf16.msra.mxu0 0
        %2076 = vmatprep.subr.bf16.mxu0 0
        %2077 = vmatpush1.bf16.msra.mxu0 0
        %2078 = vmatprep.subr.bf16.mxu0 0
        %2079 = vmatpush1.bf16.msra.mxu0 0
        %2080 = vmatprep.subr.bf16.mxu0 0
        %2081 = vmatpush1.bf16.msra.mxu0 0
        %2082 = vmatprep.subr.bf16.mxu0 0
        %2083 = vmatpush1.bf16.msra.mxu0 0
        %2084 = vmatprep.subr.bf16.mxu0 0
        %2085 = vmatpush1.bf16.msra.mxu0 0
        %2086 = vmatprep.subr.bf16.mxu0 0
        %2087 = vmatpush1.bf16.msra.mxu0 0
        %2088 = vmatprep.subr.bf16.mxu0 0
        %2089 = vmatpush1.bf16.msra.mxu0 0
        %2090 = vmatprep.mubr.bf16.mxu0 0
        %2091 = vmatmul.mubr.bf16.gmra.mrb[0].mxu0 %v2053
        %v2092 = vpop.f32.mrb[0].mxu0
        %v2093 = vadd.f32 0.0, %v2092
        %v2094 = vpop.f32.mrb[0].mxu0
        %v2095 = vpop.f32.mrb[0].mxu0
        %v2096 = vpop.f32.mrb[0].mxu0
        %2097 = vdwg.mxu0
        %v2098 = vadd.f32 %v1873, %v2093
        %s2099 = scalar_lea.vmem [#allocation12], 48
        %v2100 = vld [vmem:[%s2099] sm:$0xf]
        %v2101 = vld [vmem:[%s2099 + $0x4] sm:$0xf]
        %v2102 = vld [vmem:[%s2099 + $0x8] sm:$0xf]
        %v2103 = vld [vmem:[%s2099 + $0xc] sm:$0xf]
        %s2104 = scalar_lea.vmem [#allocation13], 3
        %v2105 = vld [vmem:[%s2104] sm:$0x1]
        %v2107 = vlaneseq
        %v2108 = vshrl.u32 %v2107, 7
        %v2109 = vsub.s32 0, %v2108
        %v2110 = vrot.slane %v2105, %v2109
        %v2116 = vunpack.c.l.b16 %v2100
        %v2117 = vunpack.c.l.b16 %v2101
        %v2118 = vunpack.c.l.b16 %v2102
        %v2119 = vunpack.c.l.b16 %v2103
        %v2120 = vpack.c.b16 %v2117, %v2116
        %v2121 = vpack.c.b16 %v2119, %v2118
        %2124 = vmatprep.subr.bf16.mxu0 0
        %2125 = vmatpush1.bf16.msra.mxu0 %v2120
        %2126 = vmatprep.subr.bf16.mxu0 0
        %2127 = vmatpush1.bf16.msra.mxu0 %v2121
        %2128 = vmatprep.subr.bf16.mxu0 0
        %2129 = vmatpush1.bf16.msra.mxu0 0
        %2130 = vmatprep.subr.bf16.mxu0 0
        %2131 = vmatpush1.bf16.msra.mxu0 0
        %2132 = vmatprep.subr.bf16.mxu0 0
        %2133 = vmatpush1.bf16.msra.mxu0 0
        %2134 = vmatprep.subr.bf16.mxu0 0
        %2135 = vmatpush1.bf16.msra.mxu0 0
        %2136 = vmatprep.subr.bf16.mxu0 0
        %2137 = vmatpush1.bf16.msra.mxu0 0
        %2138 = vmatprep.subr.bf16.mxu0 0
        %2139 = vmatpush1.bf16.msra.mxu0 0
        %2140 = vmatprep.subr.bf16.mxu0 0
        %2141 = vmatpush1.bf16.msra.mxu0 0
        %2142 = vmatprep.subr.bf16.mxu0 0
        %2143 = vmatpush1.bf16.msra.mxu0 0
        %2144 = vmatprep.subr.bf16.mxu0 0
        %2145 = vmatpush1.bf16.msra.mxu0 0
        %2146 = vmatprep.subr.bf16.mxu0 0
        %2147 = vmatpush1.bf16.msra.mxu0 0
        %2148 = vmatprep.subr.bf16.mxu0 0
        %2149 = vmatpush1.bf16.msra.mxu0 0
        %2150 = vmatprep.subr.bf16.mxu0 0
        %2151 = vmatpush1.bf16.msra.mxu0 0
        %2152 = vmatprep.subr.bf16.mxu0 0
        %2153 = vmatpush1.bf16.msra.mxu0 0
        %2154 = vmatprep.subr.bf16.mxu0 0
        %2155 = vmatpush1.bf16.msra.mxu0 0
        %2156 = vmatprep.mubr.bf16.mxu0 0
        %2157 = vmatmul.mubr.bf16.gmra.mrb[0].mxu0 %v1455
        %v2158 = vpop.f32.mrb[0].mxu0
        %v2159 = vadd.f32 %v2110, %v2158
        %v2160 = vpop.f32.mrb[0].mxu0
        %v2161 = vpop.f32.mrb[0].mxu0
        %v2162 = vpop.f32.mrb[0].mxu0
        %2163 = vdwg.mxu0
        %s2164 = scalar_lea.vmem [#allocation2], 24
        %v2165 = vld [vmem:[%s2164] sm:$0xff]
        %s2166 = scalar_lea.vmem [#allocation3], 24
        %v2167 = vld [vmem:[%s2166] sm:$0xff]
        %v2168 = vpack.c.bf16 %v2159, %v2159
        %v2170 = vsel %vm1506, %v2168, 0
        %v2173 = vsel %vm1506, %v2165, 0
        %2175 = vmatprep.subr.bf16.mxu0 0
        %2176 = vmatpush1.bf16.xpose.msra.mxu0 %v2173
        %2177 = vmatprep.subr.bf16.mxu0 0
        %2178 = vmatpush1.bf16.xpose.msra.mxu0 0
        %2179 = vmatprep.subr.bf16.mxu0 0
        %2180 = vmatpush1.bf16.xpose.msra.mxu0 0
        %2181 = vmatprep.subr.bf16.mxu0 0
        %2182 = vmatpush1.bf16.xpose.msra.mxu0 0
        %2183 = vmatprep.subr.bf16.mxu0 0
        %2184 = vmatpush1.bf16.xpose.msra.mxu0 0
        %2185 = vmatprep.subr.bf16.mxu0 0
        %2186 = vmatpush1.bf16.xpose.msra.mxu0 0
        %2187 = vmatprep.subr.bf16.mxu0 0
        %2188 = vmatpush1.bf16.xpose.msra.mxu0 0
        %2189 = vmatprep.subr.bf16.mxu0 0
        %2190 = vmatpush1.bf16.xpose.msra.mxu0 0
        %2191 = vmatprep.subr.bf16.mxu0 0
        %2192 = vmatpush1.bf16.xpose.msra.mxu0 0
        %2193 = vmatprep.subr.bf16.mxu0 0
        %2194 = vmatpush1.bf16.xpose.msra.mxu0 0
        %2195 = vmatprep.subr.bf16.mxu0 0
        %2196 = vmatpush1.bf16.xpose.msra.mxu0 0
        %2197 = vmatprep.subr.bf16.mxu0 0
        %2198 = vmatpush1.bf16.xpose.msra.mxu0 0
        %2199 = vmatprep.subr.bf16.mxu0 0
        %2200 = vmatpush1.bf16.xpose.msra.mxu0 0
        %2201 = vmatprep.subr.bf16.mxu0 0
        %2202 = vmatpush1.bf16.xpose.msra.mxu0 0
        %2203 = vmatprep.subr.bf16.mxu0 0
        %2204 = vmatpush1.bf16.xpose.msra.mxu0 0
        %2205 = vmatprep.subr.bf16.mxu0 0
        %2206 = vmatpush1.bf16.xpose.msra.mxu0 0
        %2207 = vmatprep.mubr.bf16.mxu0 0
        %2208 = vmatmul.mubr.bf16.gmra.mrb[0].mxu0 %v2170
        %v2209 = vpop.f32.mrb[0].mxu0
        %v2210 = vadd.f32 %v1504, %v2209
        %v2211 = vpop.f32.mrb[0].mxu0
        %v2212 = vpop.f32.mrb[0].mxu0
        %v2213 = vpop.f32.mrb[0].mxu0
        %2214 = vdwg.mxu0
        %v2215 = vsel %vm1553, %v2210, -inf
        %2216 = vmax.xlane.f32.xlu0 %v2215
        %v2217 = vpop.xlane.xlu0 %2216
        %v2218 = vsub.f32 %v2210, %v2217
        %v2219 = vmul.f32 %v2218, 1.442695
        %v2220 = vpow.pop %v2219
        %v2221 = vsel %vm1553, %v2220, 0.0
        %2222 = vadd.xlane.f32.xlu0 %v2221
        %v2223 = vpop.xlane.xlu0 %2222
        %v2224 = vrcp.pop %v2223
        %v2225 = vmul.f32 %v2220, %v2224
        %v2226 = vpack.c.bf16 %v2225, %v2225
        %v2228 = vsel %vm1553, %v2226, 0
        %2230 = vmatprep.subr.bf16.mxu0 0
        %2231 = vmatpush1.bf16.msra.mxu0 %v2167
        %2232 = vmatprep.subr.bf16.mxu0 0
        %2233 = vmatpush1.bf16.msra.mxu0 0
        %2234 = vmatprep.subr.bf16.mxu0 0
        %2235 = vmatpush1.bf16.msra.mxu0 0
        %2236 = vmatprep.subr.bf16.mxu0 0
        %2237 = vmatpush1.bf16.msra.mxu0 0
        %2238 = vmatprep.subr.bf16.mxu0 0
        %2239 = vmatpush1.bf16.msra.mxu0 0
        %2240 = vmatprep.subr.bf16.mxu0 0
        %2241 = vmatpush1.bf16.msra.mxu0 0
        %2242 = vmatprep.subr.bf16.mxu0 0
        %2243 = vmatpush1.bf16.msra.mxu0 0
        %2244 = vmatprep.subr.bf16.mxu0 0
        %2245 = vmatpush1.bf16.msra.mxu0 0
        %2246 = vmatprep.subr.bf16.mxu0 0
        %2247 = vmatpush1.bf16.msra.mxu0 0
        %2248 = vmatprep.subr.bf16.mxu0 0
        %2249 = vmatpush1.bf16.msra.mxu0 0
        %2250 = vmatprep.subr.bf16.mxu0 0
        %2251 = vmatpush1.bf16.msra.mxu0 0
        %2252 = vmatprep.subr.bf16.mxu0 0
        %2253 = vmatpush1.bf16.msra.mxu0 0
        %2254 = vmatprep.subr.bf16.mxu0 0
        %2255 = vmatpush1.bf16.msra.mxu0 0
        %2256 = vmatprep.subr.bf16.mxu0 0
        %2257 = vmatpush1.bf16.msra.mxu0 0
        %2258 = vmatprep.subr.bf16.mxu0 0
        %2259 = vmatpush1.bf16.msra.mxu0 0
        %2260 = vmatprep.subr.bf16.mxu0 0
        %2261 = vmatpush1.bf16.msra.mxu0 0
        %2262 = vmatprep.mubr.bf16.mxu0 0
        %2263 = vmatmul.mubr.bf16.gmra.mrb[0].mxu0 %v2228
        %v2264 = vpop.f32.mrb[0].mxu0
        %v2265 = vadd.f32 0.0, %v2264
        %v2266 = vpop.f32.mrb[0].mxu0
        %v2267 = vpop.f32.mrb[0].mxu0
        %v2268 = vpop.f32.mrb[0].mxu0
        %2269 = vdwg.mxu0
        %v2270 = vpack.c.bf16 %v2265, %v2265
        %s2271 = scalar_lea.vmem [#allocation21], 12
        %v2272 = vld [vmem:[%s2271] sm:$0xf]
        %v2274 = vsel %vm1506, %v2270, 0
        %v2277 = vsel %vm1788, %v2272, 0
        %2279 = vmatprep.subr.bf16.mxu0 0
        %2280 = vmatpush1.bf16.msra.mxu0 %v2277
        %2281 = vmatprep.subr.bf16.mxu0 0
        %2282 = vmatpush1.bf16.msra.mxu0 0
        %2283 = vmatprep.subr.bf16.mxu0 0
        %2284 = vmatpush1.bf16.msra.mxu0 0
        %2285 = vmatprep.subr.bf16.mxu0 0
        %2286 = vmatpush1.bf16.msra.mxu0 0
        %2287 = vmatprep.subr.bf16.mxu0 0
        %2288 = vmatpush1.bf16.msra.mxu0 0
        %2289 = vmatprep.subr.bf16.mxu0 0
        %2290 = vmatpush1.bf16.msra.mxu0 0
        %2291 = vmatprep.subr.bf16.mxu0 0
        %2292 = vmatpush1.bf16.msra.mxu0 0
        %2293 = vmatprep.subr.bf16.mxu0 0
        %2294 = vmatpush1.bf16.msra.mxu0 0
        %2295 = vmatprep.subr.bf16.mxu0 0
        %2296 = vmatpush1.bf16.msra.mxu0 0
        %2297 = vmatprep.subr.bf16.mxu0 0
        %2298 = vmatpush1.bf16.msra.mxu0 0
        %2299 = vmatprep.subr.bf16.mxu0 0
        %2300 = vmatpush1.bf16.msra.mxu0 0
        %2301 = vmatprep.subr.bf16.mxu0 0
        %2302 = vmatpush1.bf16.msra.mxu0 0
        %2303 = vmatprep.subr.bf16.mxu0 0
        %2304 = vmatpush1.bf16.msra.mxu0 0
        %2305 = vmatprep.subr.bf16.mxu0 0
        %2306 = vmatpush1.bf16.msra.mxu0 0
        %2307 = vmatprep.subr.bf16.mxu0 0
        %2308 = vmatpush1.bf16.msra.mxu0 0
        %2309 = vmatprep.subr.bf16.mxu0 0
        %2310 = vmatpush1.bf16.msra.mxu0 0
        %2311 = vmatprep.mubr.bf16.mxu0 0
        %2312 = vmatmul.mubr.bf16.gmra.mrb[0].mxu0 %v2274
        %v2313 = vpop.f32.mrb[0].mxu0
        %v2314 = vadd.f32 0.0, %v2313
        %v2315 = vpop.f32.mrb[0].mxu0
        %v2316 = vpop.f32.mrb[0].mxu0
        %v2317 = vpop.f32.mrb[0].mxu0
        %2318 = vdwg.mxu0
        %v2319 = vadd.f32 %v2098, %v2314
        %v2320 = vld [vmem:[#allocation22] sm:$0x1]
        %v2322 = vlaneseq
        %v2323 = vshrl.u32 %v2322, 7
        %v2324 = vsub.s32 0, %v2323
        %v2325 = vrot.slane %v2320, %v2324
        %v2327 = vadd.f32 %v2319, %v2325
        %v2328 = vadd.f32 %v2327, %v1427
        %v2329 = vld [vmem:[#allocation24] sm:$0x1]
        %v2330 = vmul.f32 %v2328, %v2328
        %v2331 = vsel %vm1412, %v2330, 0.0
        %2332 = vadd.xlane.f32.xlu0 %v2331
        %v2333 = vpop.xlane.xlu0 %2332
        %v2334 = vmul.f32 %v2333, %v1416
        %v2335 = vadd.f32 %v2334, 1.1920929e-07
        %v2336 = vrsqrt.pop %v2335
        %v2337 = vmul.f32 %v2328, %v2336
        %v2339 = vlaneseq
        %v2340 = vshrl.u32 %v2339, 7
        %v2341 = vsub.s32 0, %v2340
        %v2342 = vrot.slane %v2329, %v2341
        %v2344 = vmul.f32 %v2337, %v2342
        %v2345 = vpack.c.bf16 %v2344, %v2344
        %v2346 = vld [vmem:[#allocation25] sm:$0xf]
        %v2347 = vld [vmem:[#allocation25 + $0x4] sm:$0xf]
        %v2348 = vld [vmem:[#allocation25 + $0x8] sm:$0xf]
        %v2349 = vld [vmem:[#allocation25 + $0xc] sm:$0xf]
        %v2350 = vld [vmem:[#allocation27] sm:$0x1]
        %v2352 = vlaneseq
        %v2353 = vshrl.u32 %v2352, 7
        %v2354 = vsub.s32 0, %v2353
        %v2355 = vrot.slane %v2350, %v2354
        %v2361 = vunpack.c.l.b16 %v2346
        %v2362 = vunpack.c.l.b16 %v2347
        %v2363 = vunpack.c.l.b16 %v2348
        %v2364 = vunpack.c.l.b16 %v2349
        %v2365 = vpack.c.b16 %v2362, %v2361
        %v2366 = vpack.c.b16 %v2364, %v2363
        %v2370 = vsel %vm1412, %v2345, 0
        %2372 = vmatprep.subr.bf16.mxu0 0
        %2373 = vmatpush1.bf16.msra.mxu0 %v2365
        %2374 = vmatprep.subr.bf16.mxu0 0
        %2375 = vmatpush1.bf16.msra.mxu0 %v2366
        %2376 = vmatprep.subr.bf16.mxu0 0
        %2377 = vmatpush1.bf16.msra.mxu0 0
        %2378 = vmatprep.subr.bf16.mxu0 0
        %2379 = vmatpush1.bf16.msra.mxu0 0
        %2380 = vmatprep.subr.bf16.mxu0 0
        %2381 = vmatpush1.bf16.msra.mxu0 0
        %2382 = vmatprep.subr.bf16.mxu0 0
        %2383 = vmatpush1.bf16.msra.mxu0 0
        %2384 = vmatprep.subr.bf16.mxu0 0
        %2385 = vmatpush1.bf16.msra.mxu0 0
        %2386 = vmatprep.subr.bf16.mxu0 0
        %2387 = vmatpush1.bf16.msra.mxu0 0
        %2388 = vmatprep.subr.bf16.mxu0 0
        %2389 = vmatpush1.bf16.msra.mxu0 0
        %2390 = vmatprep.subr.bf16.mxu0 0
        %2391 = vmatpush1.bf16.msra.mxu0 0
        %2392 = vmatprep.subr.bf16.mxu0 0
        %2393 = vmatpush1.bf16.msra.mxu0 0
        %2394 = vmatprep.subr.bf16.mxu0 0
        %2395 = vmatpush1.bf16.msra.mxu0 0
        %2396 = vmatprep.subr.bf16.mxu0 0
        %2397 = vmatpush1.bf16.msra.mxu0 0
        %2398 = vmatprep.subr.bf16.mxu0 0
        %2399 = vmatpush1.bf16.msra.mxu0 0
        %2400 = vmatprep.subr.bf16.mxu0 0
        %2401 = vmatpush1.bf16.msra.mxu0 0
        %2402 = vmatprep.subr.bf16.mxu0 0
        %2403 = vmatpush1.bf16.msra.mxu0 0
        %2404 = vmatprep.mubr.bf16.mxu0 0
        %2405 = vmatmul.mubr.bf16.gmra.mrb[0].mxu0 %v2370
        %v2406 = vpop.f32.mrb[0].mxu0
        %v2407 = vadd.f32 %v2355, %v2406
        %v2408 = vpop.f32.mrb[0].mxu0
        %v2409 = vpop.f32.mrb[0].mxu0
        %v2410 = vpop.f32.mrb[0].mxu0
        %2411 = vdwg.mxu0
        %v2412 = vxor.u32 %v2407, 2147483648
        %v2413 = vmul.f32 %v2412, 1.442695
        %v2414 = vpow.pop %v2413
        %v2415 = vadd.f32 %v2414, 1.0
        %v2416 = vrcp.pop %v2415
        %v2417 = vmul.f32 1.0, %v2416
        %v2418 = vmul.f32 %v2407, %v2417
        %v2419 = vpack.c.bf16 %v2418, %v2418
        %v2420 = vld [vmem:[#allocation28] sm:$0xf]
        %v2421 = vld [vmem:[#allocation28 + $0x4] sm:$0xf]
        %v2422 = vld [vmem:[#allocation28 + $0x8] sm:$0xf]
        %v2423 = vld [vmem:[#allocation28 + $0xc] sm:$0xf]
        %v2424 = vld [vmem:[#allocation28 + $0x10] sm:$0xf]
        %v2425 = vld [vmem:[#allocation28 + $0x14] sm:$0xf]
        %v2426 = vld [vmem:[#allocation28 + $0x18] sm:$0xf]
        %v2427 = vld [vmem:[#allocation28 + $0x1c] sm:$0xf]
        %v2428 = vld [vmem:[#allocation30] sm:$0x1]
        %v2430 = vlaneseq
        %v2431 = vshrl.u32 %v2430, 7
        %v2432 = vsub.s32 0, %v2431
        %v2433 = vrot.slane %v2428, %v2432
        %v2443 = vunpack.c.l.b16 %v2420
        %v2444 = vunpack.c.l.b16 %v2421
        %v2445 = vunpack.c.l.b16 %v2422
        %v2446 = vunpack.c.l.b16 %v2423
        %v2447 = vunpack.c.l.b16 %v2424
        %v2448 = vunpack.c.l.b16 %v2425
        %v2449 = vunpack.c.l.b16 %v2426
        %v2450 = vunpack.c.l.b16 %v2427
        %v2451 = vpack.c.b16 %v2444, %v2443
        %v2452 = vpack.c.b16 %v2446, %v2445
        %v2453 = vpack.c.b16 %v2448, %v2447
        %v2454 = vpack.c.b16 %v2450, %v2449
        %vm2459 = vcmask 523264
        %v2461 = vsel %vm2459, %v2419, 0
        %2463 = vmatprep.subr.bf16.mxu0 0
        %2464 = vmatpush1.bf16.msra.mxu0 %v2451
        %2465 = vmatprep.subr.bf16.mxu0 0
        %2466 = vmatpush1.bf16.msra.mxu0 %v2452
        %2467 = vmatprep.subr.bf16.mxu0 0
        %2468 = vmatpush1.bf16.msra.mxu0 %v2453
        %2469 = vmatprep.subr.bf16.mxu0 0
        %2470 = vmatpush1.bf16.msra.mxu0 %v2454
        %2471 = vmatprep.subr.bf16.mxu0 0
        %2472 = vmatpush1.bf16.msra.mxu0 0
        %2473 = vmatprep.subr.bf16.mxu0 0
        %2474 = vmatpush1.bf16.msra.mxu0 0
        %2475 = vmatprep.subr.bf16.mxu0 0
        %2476 = vmatpush1.bf16.msra.mxu0 0
        %2477 = vmatprep.subr.bf16.mxu0 0
        %2478 = vmatpush1.bf16.msra.mxu0 0
        %2479 = vmatprep.subr.bf16.mxu0 0
        %2480 = vmatpush1.bf16.msra.mxu0 0
        %2481 = vmatprep.subr.bf16.mxu0 0
        %2482 = vmatpush1.bf16.msra.mxu0 0
        %2483 = vmatprep.subr.bf16.mxu0 0
        %2484 = vmatpush1.bf16.msra.mxu0 0
        %2485 = vmatprep.subr.bf16.mxu0 0
        %2486 = vmatpush1.bf16.msra.mxu0 0
        %2487 = vmatprep.subr.bf16.mxu0 0
        %2488 = vmatpush1.bf16.msra.mxu0 0
        %2489 = vmatprep.subr.bf16.mxu0 0
        %2490 = vmatpush1.bf16.msra.mxu0 0
        %2491 = vmatprep.subr.bf16.mxu0 0
        %2492 = vmatpush1.bf16.msra.mxu0 0
        %2493 = vmatprep.subr.bf16.mxu0 0
        %2494 = vmatpush1.bf16.msra.mxu0 0
        %2495 = vmatprep.mubr.bf16.mxu0 0
        %2496 = vmatmul.mubr.bf16.gmra.mrb[0].mxu0 %v2461
        %v2497 = vpop.f32.mrb[0].mxu0
        %v2498 = vadd.f32 %v2433, %v2497
        %v2499 = vpop.f32.mrb[0].mxu0
        %v2500 = vpop.f32.mrb[0].mxu0
        %v2501 = vpop.f32.mrb[0].mxu0
        %2502 = vdwg.mxu0
        %v2503 = vadd.f32 %v2498, %v2344
        %2504 = vst.msk [vmem:[%s844] sm:$0xff] %vm1412, %v2503
        %s2505 = sand.u32 %s440, 1
        %s2506 = scalar_lea.sflag [#allocation6], %s2505
        %s2507 = sand.u32 %s440, 1
        %s2508 = smul.addr %s2507, 8
        %s2509 = scalar_lea.vmem [#allocation31], %s2508
        // Predicated region
        $region161: #{tpu_custom_call.1} parent=87 // pred_check
          %p2510 = pneg %p450
        $region162: #{tpu_custom_call.1} parent=87 // pred_check_branch
          %2512 = sbr.rel (%p2510) target = $region164
        $region163: #{tpu_custom_call.1} parent=87 // pred_region
          %s2514 = ssub.s32 128, 128
          %2515 = vsyncadd %s2506, %s2514
          %s2516 = sadd.s32 %s49, %s48
          %s2517 = smul.addr %s2516, 128
          %s2518 = scalar_lea.hbm %s17, %s2517
          %s2520 = sshll.u32 %s2509, 4
          %s2521 = int_to_ptr.vmem [resolvable:$true] %s2520
          %2523 = dma.vmem_to_hbm [thread:$0]  %s2521, 128, %s2518, %s2506
        $region164: #{tpu_custom_call.1} parent=87 // pred_fallthru
          _
      $region88: #{tpu_custom_call.1} parent=5 // pred_fallthru
        _
      %p2524 = scmp.le.s32.totalorder 2, %s39
      // Predicated region
      $region165: #{tpu_custom_call.1} parent=5 // pred_check
        %p2525 = pneg %p2524
      $region166: #{tpu_custom_call.1} parent=5 // pred_check_branch
        %2527 = sbr.rel (%p2525) target = $region168
      $region167: #{tpu_custom_call.1} parent=5 // pred_region
        %s2528 = ssub.s32 %s39, 2
        // Predicated region
        $region169: #{tpu_custom_call.1} parent=167 // pred_check
          %p2529 = pneg %p456
        $region170: #{tpu_custom_call.1} parent=167 // pred_check_branch
          %2531 = sbr.rel (%p2529) target = $region172
        $region171: #{tpu_custom_call.1} parent=167 // pred_region
          %s2532 = sand.u32 %s441, 1
          %s2533 = scalar_lea.sflag [#allocation6], %s2532
          %s2534 = sand.u32 %s441, 1
          %s2535 = smul.addr %s2534, 8
          %s2536 = scalar_lea.vmem [#allocation31], %s2535
          %2537 = dma.done %s2533, 128
        $region172: #{tpu_custom_call.1} parent=167 // pred_fallthru
          _
      $region168: #{tpu_custom_call.1} parent=5 // pred_fallthru
        _
    $region6: #{tpu_custom_call.1} parent=1 // loop_footer
      %s43 = sadd.s32 1, %s39
    $region7: #{tpu_custom_call.1} parent=1 // loop_footer_branch
      %38 = sbr.rel target = $region3
    $region8: #{tpu_custom_call.1} parent=1 // loop_exit
      _
    %2538 = vsyncpa [#allocation5], 1
    %s2539 = scalar_lea.sflag [#allocation5], 1
    %2540 = vsyncpa %s2539, 1
    %2541 = vsyncpa [#allocation8], 1
    %s2542 = scalar_lea.sflag [#allocation8], 1
    %2543 = vsyncpa %s2542, 1
    %2544 = vsyncpa [#allocation11], 1
    %2545 = vsyncpa [#allocation14], 1
    %2546 = vsyncpa [#allocation17], 1
    %2547 = vsyncpa [#allocation20], 1
    %2548 = vsyncpa [#allocation23], 1
    %2549 = vsyncpa [#allocation26], 1
    %2550 = vsyncpa [#allocation29], 1
    %2551 = vsyncpa [#allocation6], 1
    %s2552 = scalar_lea.sflag [#allocation6], 1
    %2553 = vsyncpa %s2552, 1

</llo_original>
